<compile_context>
chip_gen: v5e
topology: v5e:2x2
jax: 0.10.0
libtpu: 0.0.40
codegen_flags: <defaults>
</compile_context>

<pallas_src>
import functools
import numpy as np
import jax
import jax.numpy as jnp
from jax.experimental import pallas as pl
from jax.experimental.pallas import tpu as pltpu

F_IN = 4                # in_dim[0] (single axis x / y / z)
F2_IN = 2 * F_IN        # in_dim[1] (axis pair yz / xz / xy)
IN_DIM = 3 * F_IN       # raw input feature dim = 12 (">3" branch of forward)
WIDTH = 32              # layer_width
OUT_DIM = 16            # out_dim per decoder
N_MLP = 6
HID = N_MLP * WIDTH     # 192 packed hidden width
OUTP = N_MLP * OUT_DIM  # 96 packed per-decoder-feature width
TB = 1024               # points per grid step

ORDER = ("x", "y", "z", "yz", "xz", "xy")
# Raw-input columns feeding each decoder; reproduces the PyTorch
# reshape(B,2,6) -> per-axis slice -> flatten -> pair concat exactly.
_COLS = {
    "x":  [0, 1, 6, 7],
    "y":  [2, 3, 8, 9],
    "z":  [4, 5, 10, 11],
    "yz": [2, 3, 8, 9, 4, 5, 10, 11],
    "xz": [0, 1, 6, 7, 4, 5, 10, 11],
    "xy": [0, 1, 6, 7, 2, 3, 8, 9],
}


# ---------------------------------------------------------------------------
# Kernel: one tile of TB points, fully fused 6-MLP + CP product + channel sum.
# ---------------------------------------------------------------------------
def vmlp_kernel(x_ref, w1_ref, b1_ref, w2_ref, b2_ref, out_ref, *, lane_dense):
    # bf16 operands into the MXU, f32 accumulation / biases / elementwise tail.
    x = x_ref[...].astype(jnp.bfloat16)                               # (TB, 12)
    h = jnp.dot(x, w1_ref[...], preferred_element_type=jnp.float32) + b1_ref[...]
    h = jnp.maximum(h, 0.0).astype(jnp.bfloat16)                      # ReLU, re-narrow
    o = jnp.dot(h, w2_ref[...], preferred_element_type=jnp.float32) + b2_ref[...]
    # o columns: [x_f | y_f | z_f | yz_f | xz_f | xy_f], each OUT_DIM wide.
    prod = o[:, 0:3 * OUT_DIM] * o[:, 3 * OUT_DIM:6 * OUT_DIM]        # (TB, 48)
    s = jnp.sum(prod, axis=-1, keepdims=True)                         # (TB, 1) per-point sums
    if lane_dense:
        out_ref[...] = jnp.transpose(s, (1, 0))                       # (1, TB) lane-dense row
    else:
        out_ref[...] = s                                              # (TB, 1) fallback layout


# ---------------------------------------------------------------------------
# Parameter construction / host-side packing.
# ---------------------------------------------------------------------------
def init_params(key):
    dims = {"x": F_IN, "y": F_IN, "z": F_IN, "yz": F2_IN, "xz": F2_IN, "xy": F2_IN}
    params = {}
    for name in ORDER:
        ind = dims[name]
        key, k1, k2, k3, k4 = jax.random.split(key, 5)
        params[name] = (
            jax.random.normal(k1, (ind, WIDTH), jnp.float32) * 0.1,
            jax.random.normal(k2, (WIDTH,), jnp.float32) * 0.1,
            jax.random.normal(k3, (WIDTH, OUT_DIM), jnp.float32) * 0.1,
            jax.random.normal(k4, (OUT_DIM,), jnp.float32) * 0.1,
        )
    return params


def pack_params(params):
    """Pack 6 two-layer MLPs into (W1p, b1p, W2p, b2p).

    W1p (12,192) block-structured, W2p (192,96) block-diagonal.  Weights are
    stored bf16 (MXU operands); biases stay f32.
    """
    w1p = np.zeros((IN_DIM, HID), np.float32)
    b1p = np.zeros((1, HID), np.float32)
    w2p = np.zeros((HID, OUTP), np.float32)
    b2p = np.zeros((1, OUTP), np.float32)
    for k, name in enumerate(ORDER):
        w1, b1, w2, b2 = (np.asarray(t) for t in params[name])
        rows = np.array(_COLS[name])
        w1p[rows, k * WIDTH:(k + 1) * WIDTH] = w1
        b1p[0, k * WIDTH:(k + 1) * WIDTH] = b1
        w2p[k * WIDTH:(k + 1) * WIDTH, k * OUT_DIM:(k + 1) * OUT_DIM] = w2
        b2p[0, k * OUT_DIM:(k + 1) * OUT_DIM] = b2
    return (jnp.asarray(w1p, jnp.bfloat16), jnp.asarray(b1p, jnp.float32),
            jnp.asarray(w2p, jnp.bfloat16), jnp.asarray(b2p, jnp.float32))


# ---------------------------------------------------------------------------
# pallas_call builder + wrapper.
# ---------------------------------------------------------------------------
def _build_call(Bp, lane_dense):
    grid = (Bp // TB,)
    if lane_dense:
        out_shape = jax.ShapeDtypeStruct((1, Bp), jnp.float32)
        out_spec = pl.BlockSpec((1, TB), lambda i: (0, i))      # lane-dense, unmasked vst
    else:
        out_shape = jax.ShapeDtypeStruct((Bp, 1), jnp.float32)
        out_spec = pl.BlockSpec((TB, 1), lambda i: (i, 0))      # fallback (sublane) layout

    param_bytes = 2 * (IN_DIM * HID + HID * OUTP) + 4 * (HID + OUTP)
    cost = pl.CostEstimate(
        flops=int(Bp * (2 * IN_DIM * HID + 2 * HID * OUTP + 4 * OUTP)),
        transcendentals=0,
        bytes_accessed=int(Bp * IN_DIM * 4 + Bp * 4 + param_bytes),
    )

    return pl.pallas_call(
        functools.partial(vmlp_kernel, lane_dense=lane_dense),
        out_shape=out_shape,
        grid_spec=pltpu.PrefetchScalarGridSpec(
            num_scalar_prefetch=0,
            grid=grid,
            in_specs=[
                pl.BlockSpec((TB, IN_DIM), lambda i: (i, 0)),    # points tile (f32 in HBM)
                pl.BlockSpec((IN_DIM, HID), lambda i: (0, 0)),   # W1 packed bf16 (resident)
                pl.BlockSpec((1, HID), lambda i: (0, 0)),        # b1 packed f32
                pl.BlockSpec((HID, OUTP), lambda i: (0, 0)),     # W2 packed bf16 (block-diag)
                pl.BlockSpec((1, OUTP), lambda i: (0, 0)),       # b2 packed f32
            ],
            out_specs=out_spec,
        ),
        compiler_params=pltpu.CompilerParams(dimension_semantics=("parallel",)),
        cost_estimate=cost,
    )


def vmlp_decoding(in_tensor, packed):
    w1p, b1p, w2p, b2p = packed
    B = in_tensor.shape[0]
    Bp = pl.cdiv(B, TB) * TB
    x = in_tensor
    if Bp != B:
        # Rare path only (B not a multiple of TB): demo / grid-divisible batches pay no
        # extra HBM pass.  Padded rows are sliced off below.
        x = jnp.pad(in_tensor, ((0, Bp - B), (0, 0)))

    try:
        out = _build_call(Bp, lane_dense=True)(x, w1p, b1p, w2p, b2p)   # (1, Bp)
        return out.reshape(-1)[:B]
    except Exception:
        # Fallback for Mosaic builds that cannot lower the (TB,1)->(1,TB) vector transpose.
        out = _build_call(Bp, lane_dense=False)(x, w1p, b1p, w2p, b2p)  # (Bp, 1)
        return out[:B, 0]


# ---------------------------------------------------------------------------
# Plain-JAX reference (mirrors the PyTorch forward with decoder=None), f32 throughout.
# ---------------------------------------------------------------------------
def _split_inputs(in_tensor):
    B, D = in_tensor.shape
    half = D // 2
    third = half // 3
    t = in_tensor.reshape(B, 2, half)
    x_in = t[:, :, 0:third].reshape(B, 2 * third)
    y_in = t[:, :, third:2 * third].reshape(B, 2 * third)
    z_in = t[:, :, 2 * third:3 * third].reshape(B, 2 * third)
    yz_in = jnp.concatenate([y_in, z_in], axis=-1)
    xz_in = jnp.concatenate([x_in, z_in], axis=-1)
    xy_in = jnp.concatenate([x_in, y_in], axis=-1)
    return x_in, y_in, z_in, yz_in, xz_in, xy_in


def vmlp_reference(in_tensor, params):
    x_in, y_in, z_in, yz_in, xz_in, xy_in = _split_inputs(in_tensor)

    def mlp(inp, name):
        w1, b1, w2, b2 = params[name]
        h = jnp.maximum(inp @ w1 + b1, 0.0)
        return h @ w2 + b2

    feats = (mlp(x_in, "x") * mlp(yz_in, "yz")
             + mlp(y_in, "y") * mlp(xz_in, "xz")
             + mlp(z_in, "z") * mlp(xy_in, "xy"))
    return jnp.sum(feats, axis=-1)


if __name__ == "__main__":
    key = jax.random.PRNGKey(0)
    kp, kx = jax.random.split(key)
    params = init_params(kp)
    packed = pack_params(params)

    B = 2048                      # grid of 2 parallel tiles (keeps both v7x TCs busy)
    in_tensor = jax.random.normal(kx, (B, IN_DIM), jnp.float32)

    out = vmlp_decoding(in_tensor, packed)
    out = jax.block_until_ready(out)

    ref = vmlp_reference(in_tensor, params)
    # Tolerance accounts for bf16 matmul operands (f32 accumulation) vs. f32 reference.
    np.testing.assert_allclose(np.asarray(out), np.asarray(ref), rtol=2e-2, atol=2e-2)

    # TODO(synk): optional trailing `decoder` MLP head and include_input concat path are
    # not instantiated (decoder=None configuration), matching the reference branch.
    print("KERNEL_OK")
</pallas_src>

<mosaic_0001>
module attributes {stable_mosaic.version = 11 : i64} {
  func.func @vmlp_kernel(%arg0: i32, %arg1: memref<1024x12xf32, #tpu.memory_space<vmem>>, %arg2: memref<12x192xbf16, #tpu.memory_space<vmem>>, %arg3: memref<1x192xf32, #tpu.memory_space<vmem>>, %arg4: memref<192x96xbf16, #tpu.memory_space<vmem>>, %arg5: memref<1x96xf32, #tpu.memory_space<vmem>>, %arg6: memref<1x1024xf32, #tpu.memory_space<vmem>>) attributes {dimension_semantics = [#tpu.dimension_semantics<parallel>], iteration_bounds = array<i64: 2>, scalar_prefetch = 0 : i64, scratch_operands = 0 : i64, tpu.core_type = #tpu.core_type<tc>, window_params = [{transform_indices = @transform_0, window_bounds = array<i64: 1024, 12>}, {pipeline_mode = #tpu.pipeline_mode<synchronous>, transform_indices = @transform_1, window_bounds = array<i64: 12, 192>}, {pipeline_mode = #tpu.pipeline_mode<synchronous>, transform_indices = @transform_2, window_bounds = array<i64: 1, 192>}, {pipeline_mode = #tpu.pipeline_mode<synchronous>, transform_indices = @transform_3, window_bounds = array<i64: 192, 96>}, {pipeline_mode = #tpu.pipeline_mode<synchronous>, transform_indices = @transform_4, window_bounds = array<i64: 1, 96>}, {transform_indices = @transform_5, window_bounds = array<i64: 1, 1024>}]} {
    %c0 = arith.constant 0 : index
    %c0_0 = arith.constant 0 : index
    %0 = vector.load %arg1[%c0, %c0_0] : memref<1024x12xf32, #tpu.memory_space<vmem>>, vector<1024x12xf32>
    %1 = arith.truncf %0 : vector<1024x12xf32> to vector<1024x12xbf16>
    %c0_1 = arith.constant 0 : index
    %c0_2 = arith.constant 0 : index
    %2 = vector.load %arg2[%c0_1, %c0_2] : memref<12x192xbf16, #tpu.memory_space<vmem>>, vector<12x192xbf16>
    %cst = arith.constant dense<0.000000e+00> : vector<1024x192xf32>
    %3 = tpu.matmul %1, %2, %cst {dimension_numbers = #tpu.dot_dimension_numbers<[1], [0], [0], [1], [0, 0, 1, 1], [], []>} : vector<1024x12xbf16>, vector<12x192xbf16>, vector<1024x192xf32> -> vector<1024x192xf32>
    %c0_3 = arith.constant 0 : index
    %c0_4 = arith.constant 0 : index
    %4 = vector.load %arg3[%c0_3, %c0_4] : memref<1x192xf32, #tpu.memory_space<vmem>>, vector<1x192xf32>
    %5 = vector.broadcast %4 : vector<1x192xf32> to vector<1024x192xf32>
    %6 = arith.addf %3, %5 : vector<1024x192xf32>
    %cst_5 = arith.constant 0.000000e+00 : f32
    %7 = vector.broadcast %cst_5 : f32 to vector<1024x192xf32>
    %8 = arith.maximumf %6, %7 : vector<1024x192xf32>
    %9 = arith.truncf %8 : vector<1024x192xf32> to vector<1024x192xbf16>
    %c0_6 = arith.constant 0 : index
    %c0_7 = arith.constant 0 : index
    %10 = vector.load %arg4[%c0_6, %c0_7] : memref<192x96xbf16, #tpu.memory_space<vmem>>, vector<192x96xbf16>
    %cst_8 = arith.constant dense<0.000000e+00> : vector<1024x96xf32>
    %11 = tpu.matmul %9, %10, %cst_8 {dimension_numbers = #tpu.dot_dimension_numbers<[1], [0], [0], [1], [0, 0, 1, 1], [], []>} : vector<1024x192xbf16>, vector<192x96xbf16>, vector<1024x96xf32> -> vector<1024x96xf32>
    %c0_9 = arith.constant 0 : index
    %c0_10 = arith.constant 0 : index
    %12 = vector.load %arg5[%c0_9, %c0_10] : memref<1x96xf32, #tpu.memory_space<vmem>>, vector<1x96xf32>
    %13 = vector.broadcast %12 : vector<1x96xf32> to vector<1024x96xf32>
    %14 = arith.addf %11, %13 : vector<1024x96xf32>
    %15 = vector.extract_strided_slice %14 {offsets = [0, 0], sizes = [1024, 48], strides = [1, 1]} : vector<1024x96xf32> to vector<1024x48xf32>
    %16 = vector.extract_strided_slice %14 {offsets = [0, 48], sizes = [1024, 48], strides = [1, 1]} : vector<1024x96xf32> to vector<1024x48xf32>
    %17 = arith.mulf %15, %16 : vector<1024x48xf32>
    %cst_11 = arith.constant dense<0.000000e+00> : vector<1024xf32>
    %18 = vector.multi_reduction <add>, %17, %cst_11 [1] : vector<1024x48xf32> to vector<1024xf32>
    %19 = vector.shape_cast %18 : vector<1024xf32> to vector<1024x1xf32>
    %20 = tpu.transpose %19, [1, 0] : vector<1024x1xf32> -> vector<1x1024xf32>
    %c0_12 = arith.constant 0 : index
    %c0_13 = arith.constant 0 : index
    %21 = vector.load %arg6[%c0_12, %c0_13] : memref<1x1024xf32, #tpu.memory_space<vmem>>, vector<1x1024xf32>
    tpu.vector_store %arg6[%c0_12, %c0_13], %20 {strides = array<i32>} : memref<1x1024xf32, #tpu.memory_space<vmem>>, vector<1x1024xf32>,
    return
  }
  func.func @transform_0(%arg0: i32) -> (i32, i32) {
    %c0_i32 = arith.constant 0 : i32
    %c0_i32_0 = arith.constant 0 : i32
    return %arg0, %c0_i32 : i32, i32
  }
  func.func @transform_1(%arg0: i32) -> (i32, i32) {
    %c0_i32 = arith.constant 0 : i32
    %c0_i32_0 = arith.constant 0 : i32
    %c0_i32_1 = arith.constant 0 : i32
    return %c0_i32, %c0_i32_0 : i32, i32
  }
  func.func @transform_2(%arg0: i32) -> (i32, i32) {
    %c0_i32 = arith.constant 0 : i32
    %c0_i32_0 = arith.constant 0 : i32
    %c0_i32_1 = arith.constant 0 : i32
    return %c0_i32, %c0_i32_0 : i32, i32
  }
  func.func @transform_3(%arg0: i32) -> (i32, i32) {
    %c0_i32 = arith.constant 0 : i32
    %c0_i32_0 = arith.constant 0 : i32
    %c0_i32_1 = arith.constant 0 : i32
    return %c0_i32, %c0_i32_0 : i32, i32
  }
  func.func @transform_4(%arg0: i32) -> (i32, i32) {
    %c0_i32 = arith.constant 0 : i32
    %c0_i32_0 = arith.constant 0 : i32
    %c0_i32_1 = arith.constant 0 : i32
    return %c0_i32, %c0_i32_0 : i32, i32
  }
  func.func @transform_5(%arg0: i32) -> (i32, i32) {
    %c0_i32 = arith.constant 0 : i32
    %c0_i32_0 = arith.constant 0 : i32
    return %c0_i32, %arg0 : i32, i32
  }
}

module attributes {stable_mosaic.version = 11 : i64} {
  func.func @vmlp_kernel(%arg0: i32, %arg1: memref<1024x12xf32, #tpu.memory_space<vmem>>, %arg2: memref<12x192xbf16, #tpu.memory_space<vmem>>, %arg3: memref<1x192xf32, #tpu.memory_space<vmem>>, %arg4: memref<192x96xbf16, #tpu.memory_space<vmem>>, %arg5: memref<1x96xf32, #tpu.memory_space<vmem>>, %arg6: memref<1024x1xf32, #tpu.memory_space<vmem>>) attributes {dimension_semantics = [#tpu.dimension_semantics<parallel>], iteration_bounds = array<i64: 2>, scalar_prefetch = 0 : i64, scratch_operands = 0 : i64, tpu.core_type = #tpu.core_type<tc>, window_params = [{transform_indices = @transform_0, window_bounds = array<i64: 1024, 12>}, {pipeline_mode = #tpu.pipeline_mode<synchronous>, transform_indices = @transform_1, window_bounds = array<i64: 12, 192>}, {pipeline_mode = #tpu.pipeline_mode<synchronous>, transform_indices = @transform_2, window_bounds = array<i64: 1, 192>}, {pipeline_mode = #tpu.pipeline_mode<synchronous>, transform_indices = @transform_3, window_bounds = array<i64: 192, 96>}, {pipeline_mode = #tpu.pipeline_mode<synchronous>, transform_indices = @transform_4, window_bounds = array<i64: 1, 96>}, {transform_indices = @transform_5, window_bounds = array<i64: 1024, 1>}]} {
    %c0 = arith.constant 0 : index
    %c0_0 = arith.constant 0 : index
    %0 = vector.load %arg1[%c0, %c0_0] : memref<1024x12xf32, #tpu.memory_space<vmem>>, vector<1024x12xf32>
    %1 = arith.truncf %0 : vector<1024x12xf32> to vector<1024x12xbf16>
    %c0_1 = arith.constant 0 : index
    %c0_2 = arith.constant 0 : index
    %2 = vector.load %arg2[%c0_1, %c0_2] : memref<12x192xbf16, #tpu.memory_space<vmem>>, vector<12x192xbf16>
    %cst = arith.constant dense<0.000000e+00> : vector<1024x192xf32>
    %3 = tpu.matmul %1, %2, %cst {dimension_numbers = #tpu.dot_dimension_numbers<[1], [0], [0], [1], [0, 0, 1, 1], [], []>} : vector<1024x12xbf16>, vector<12x192xbf16>, vector<1024x192xf32> -> vector<1024x192xf32>
    %c0_3 = arith.constant 0 : index
    %c0_4 = arith.constant 0 : index
    %4 = vector.load %arg3[%c0_3, %c0_4] : memref<1x192xf32, #tpu.memory_space<vmem>>, vector<1x192xf32>
    %5 = vector.broadcast %4 : vector<1x192xf32> to vector<1024x192xf32>
    %6 = arith.addf %3, %5 : vector<1024x192xf32>
    %cst_5 = arith.constant 0.000000e+00 : f32
    %7 = vector.broadcast %cst_5 : f32 to vector<1024x192xf32>
    %8 = arith.maximumf %6, %7 : vector<1024x192xf32>
    %9 = arith.truncf %8 : vector<1024x192xf32> to vector<1024x192xbf16>
    %c0_6 = arith.constant 0 : index
    %c0_7 = arith.constant 0 : index
    %10 = vector.load %arg4[%c0_6, %c0_7] : memref<192x96xbf16, #tpu.memory_space<vmem>>, vector<192x96xbf16>
    %cst_8 = arith.constant dense<0.000000e+00> : vector<1024x96xf32>
    %11 = tpu.matmul %9, %10, %cst_8 {dimension_numbers = #tpu.dot_dimension_numbers<[1], [0], [0], [1], [0, 0, 1, 1], [], []>} : vector<1024x192xbf16>, vector<192x96xbf16>, vector<1024x96xf32> -> vector<1024x96xf32>
    %c0_9 = arith.constant 0 : index
    %c0_10 = arith.constant 0 : index
    %12 = vector.load %arg5[%c0_9, %c0_10] : memref<1x96xf32, #tpu.memory_space<vmem>>, vector<1x96xf32>
    %13 = vector.broadcast %12 : vector<1x96xf32> to vector<1024x96xf32>
    %14 = arith.addf %11, %13 : vector<1024x96xf32>
    %15 = vector.extract_strided_slice %14 {offsets = [0, 0], sizes = [1024, 48], strides = [1, 1]} : vector<1024x96xf32> to vector<1024x48xf32>
    %16 = vector.extract_strided_slice %14 {offsets = [0, 48], sizes = [1024, 48], strides = [1, 1]} : vector<1024x96xf32> to vector<1024x48xf32>
    %17 = arith.mulf %15, %16 : vector<1024x48xf32>
    %cst_11 = arith.constant dense<0.000000e+00> : vector<1024xf32>
    %18 = vector.multi_reduction <add>, %17, %cst_11 [1] : vector<1024x48xf32> to vector<1024xf32>
    %19 = vector.shape_cast %18 : vector<1024xf32> to vector<1024x1xf32>
    %c0_12 = arith.constant 0 : index
    %c0_13 = arith.constant 0 : index
    %20 = vector.load %arg6[%c0_12, %c0_13] : memref<1024x1xf32, #tpu.memory_space<vmem>>, vector<1024x1xf32>
    tpu.vector_store %arg6[%c0_12, %c0_13], %19 {strides = array<i32>} : memref<1024x1xf32, #tpu.memory_space<vmem>>, vector<1024x1xf32>,
    return
  }
  func.func @transform_0(%arg0: i32) -> (i32, i32) {
    %c0_i32 = arith.constant 0 : i32
    %c0_i32_0 = arith.constant 0 : i32
    return %arg0, %c0_i32 : i32, i32
  }
  func.func @transform_1(%arg0: i32) -> (i32, i32) {
    %c0_i32 = arith.constant 0 : i32
    %c0_i32_0 = arith.constant 0 : i32
    %c0_i32_1 = arith.constant 0 : i32
    return %c0_i32, %c0_i32_0 : i32, i32
  }
  func.func @transform_2(%arg0: i32) -> (i32, i32) {
    %c0_i32 = arith.constant 0 : i32
    %c0_i32_0 = arith.constant 0 : i32
    %c0_i32_1 = arith.constant 0 : i32
    return %c0_i32, %c0_i32_0 : i32, i32
  }
  func.func @transform_3(%arg0: i32) -> (i32, i32) {
    %c0_i32 = arith.constant 0 : i32
    %c0_i32_0 = arith.constant 0 : i32
    %c0_i32_1 = arith.constant 0 : i32
    return %c0_i32, %c0_i32_0 : i32, i32
  }
  func.func @transform_4(%arg0: i32) -> (i32, i32) {
    %c0_i32 = arith.constant 0 : i32
    %c0_i32_0 = arith.constant 0 : i32
    %c0_i32_1 = arith.constant 0 : i32
    return %c0_i32, %c0_i32_0 : i32, i32
  }
  func.func @transform_5(%arg0: i32) -> (i32, i32) {
    %c0_i32 = arith.constant 0 : i32
    %c0_i32_0 = arith.constant 0 : i32
    return %arg0, %c0_i32 : i32, i32
  }
}

</mosaic_0001>

<llo_original>
// kernel: tpu_custom_call.1
$region0: #{tpu_custom_call.1}
  #allocation0 [shape = 'u32[]', space=smem, size = 0x4, offset = 0x4, fixed_abs, tag = 'smem constant byte address 0x4 - core index']
  #allocation1 [shape = 'u32[72,128]{1,0:T(1,128)}', space=vmem, size = 0x9000, scoped, tag = 'internal scratch']
  %s0 = inlined_call_operand.vmem [shape: f32[2048,12], index: 0, kind: input, shape index: {}]
  %s1 = inlined_call_operand.vmem [shape: bf16[12,192], index: 1, kind: input, shape index: {}]
  %s2 = inlined_call_operand.vmem [shape: f32[1,192], index: 2, kind: input, shape index: {}]
  %s3 = inlined_call_operand.vmem [shape: bf16[192,96], index: 3, kind: input, shape index: {}]
  %s4 = inlined_call_operand.vmem [shape: f32[1,96], index: 4, kind: input, shape index: {}]
  %s5 = inlined_call_operand.hbm [shape: f32[1,2048], index: 5, kind: output, shape index: {}]
  %s6 = sld [smem:[#allocation0]]
  $region53: #{tpu_custom_call.1} parent=0
    _
  %s8 = ssub.s32 1, %s6
  %s9 = scalar_select 0, %s8, %s6
  $region1: #{tpu_custom_call.1} parent=0
    #allocation2 [shape = 'u8[8192]{0}', space=vmem, size = 0x2000, scoped, tag = 'output window, operand 0']
    #allocation3 [shape = 's32[2]{0}', space=sflag, size = 0x8, scoped, tag = 'scoped memory for tpu_custom_call.1']
    %10 = vsyncpa [#allocation3], 0
    %s11 = scalar_lea.sflag [#allocation3], 1
    %12 = vsyncpa %s11, 0
    loop: start=0, step=1, limit=4
    $region2: #{tpu_custom_call.1} parent=1 // loop_pre_header
      _
    $region3: #{tpu_custom_call.1} parent=1 // loop_header
      %s14 = sphi 0, %s18
      %p15 = scmp.ge.s32.totalorder %s14, 4
      %s24 = sphi 0, %s26
      %s27 = sphi 0, %s24
      %s28 = sphi 0, %s27
      %s44 = sphi 0, %s28
      %s48 = sphi 0, %s48
      %s50 = sphi 0, %s48
      %s51 = sphi 0, %s50
      %s65 = sphi 0, %s51
      %s69 = sphi 0, %s69
      %s71 = sphi 0, %s69
      %s72 = sphi 0, %s71
      %s86 = sphi 0, %s72
      %s90 = sphi 0, %s90
      %s92 = sphi 0, %s90
      %s93 = sphi 0, %s92
      %s107 = sphi 0, %s93
      %s111 = sphi 0, %s111
      %s113 = sphi 0, %s111
      %s114 = sphi 0, %s113
      %s128 = sphi 0, %s114
      %s134 = sphi 0, %s136
      %s137 = sphi 0, %s134
      %s138 = sphi 0, %s137
      %s154 = sphi 0, %s138
    $region4: #{tpu_custom_call.1} parent=1 // loop_header_branch
      %17 = sbr.rel (%p15) target = $region8
    $region5: #{tpu_custom_call.1} parent=1 // loop_body
      %s19 = ssub.s32 %s14, 1
      %s20 = ssub.s32 %s14, 2
      %s21 = sadd.s32 %s14, 1
      %s22 = ssub.s32 %s14, %s21
      %p23 = scmp.eq.s32.totalorder %s22, 0
      %s25 = sadd.s32 %s24, 1
      %s26 = scalar_select %p23, %s24, %s25
      %p29 = pneg %p23
      %p30 = scmp.eq.s32.totalorder %s14, 1
      %p31 = por %p29, %p30
      %p32 = scmp.ne.s32.totalorder %s24, %s27
      %p33 = scmp.eq.s32.totalorder %s14, 0
      %p34 = por %p32, %p33
      %p35 = scmp.ne.s32.totalorder %s24, %s27
      %p36 = scmp.eq.s32.totalorder %s19, 1
      %p37 = por %p35, %p36
      %p38 = scmp.ne.s32.totalorder %s27, %s28
      %p39 = scmp.eq.s32.totalorder %s19, 0
      %p40 = por %p38, %p39
      %p41 = scmp.ne.s32.totalorder %s27, %s28
      %p42 = scmp.eq.s32.totalorder %s20, 1
      %p43 = por %p41, %p42
      %p45 = scmp.ne.s32.totalorder %s28, %s44
      %p46 = scmp.eq.s32.totalorder %s20, 0
      %p47 = por %p45, %p46
      %s49 = sadd.s32 %s48, 1
      %p52 = scmp.eq.s32.totalorder %s14, 1
      %p53 = scmp.ne.s32.totalorder %s48, %s50
      %p54 = scmp.eq.s32.totalorder %s14, 0
      %p55 = por %p53, %p54
      %p56 = scmp.ne.s32.totalorder %s48, %s50
      %p57 = scmp.eq.s32.totalorder %s19, 1
      %p58 = por %p56, %p57
      %p59 = scmp.ne.s32.totalorder %s50, %s51
      %p60 = scmp.eq.s32.totalorder %s19, 0
      %p61 = por %p59, %p60
      %p62 = scmp.ne.s32.totalorder %s50, %s51
      %p63 = scmp.eq.s32.totalorder %s20, 1
      %p64 = por %p62, %p63
      %p66 = scmp.ne.s32.totalorder %s51, %s65
      %p67 = scmp.eq.s32.totalorder %s20, 0
      %p68 = por %p66, %p67
      %s70 = sadd.s32 %s69, 1
      %p73 = scmp.eq.s32.totalorder %s14, 1
      %p74 = scmp.ne.s32.totalorder %s69, %s71
      %p75 = scmp.eq.s32.totalorder %s14, 0
      %p76 = por %p74, %p75
      %p77 = scmp.ne.s32.totalorder %s69, %s71
      %p78 = scmp.eq.s32.totalorder %s19, 1
      %p79 = por %p77, %p78
      %p80 = scmp.ne.s32.totalorder %s71, %s72
      %p81 = scmp.eq.s32.totalorder %s19, 0
      %p82 = por %p80, %p81
      %p83 = scmp.ne.s32.totalorder %s71, %s72
      %p84 = scmp.eq.s32.totalorder %s20, 1
      %p85 = por %p83, %p84
      %p87 = scmp.ne.s32.totalorder %s72, %s86
      %p88 = scmp.eq.s32.totalorder %s20, 0
      %p89 = por %p87, %p88
      %s91 = sadd.s32 %s90, 1
      %p94 = scmp.eq.s32.totalorder %s14, 1
      %p95 = scmp.ne.s32.totalorder %s90, %s92
      %p96 = scmp.eq.s32.totalorder %s14, 0
      %p97 = por %p95, %p96
      %p98 = scmp.ne.s32.totalorder %s90, %s92
      %p99 = scmp.eq.s32.totalorder %s19, 1
      %p100 = por %p98, %p99
      %p101 = scmp.ne.s32.totalorder %s92, %s93
      %p102 = scmp.eq.s32.totalorder %s19, 0
      %p103 = por %p101, %p102
      %p104 = scmp.ne.s32.totalorder %s92, %s93
      %p105 = scmp.eq.s32.totalorder %s20, 1
      %p106 = por %p104, %p105
      %p108 = scmp.ne.s32.totalorder %s93, %s107
      %p109 = scmp.eq.s32.totalorder %s20, 0
      %p110 = por %p108, %p109
      %s112 = sadd.s32 %s111, 1
      %p115 = scmp.eq.s32.totalorder %s14, 1
      %p116 = scmp.ne.s32.totalorder %s111, %s113
      %p117 = scmp.eq.s32.totalorder %s14, 0
      %p118 = por %p116, %p117
      %p119 = scmp.ne.s32.totalorder %s111, %s113
      %p120 = scmp.eq.s32.totalorder %s19, 1
      %p121 = por %p119, %p120
      %p122 = scmp.ne.s32.totalorder %s113, %s114
      %p123 = scmp.eq.s32.totalorder %s19, 0
      %p124 = por %p122, %p123
      %p125 = scmp.ne.s32.totalorder %s113, %s114
      %p126 = scmp.eq.s32.totalorder %s20, 1
      %p127 = por %p125, %p126
      %p129 = scmp.ne.s32.totalorder %s114, %s128
      %p130 = scmp.eq.s32.totalorder %s20, 0
      %p131 = por %p129, %p130
      %s132 = ssub.s32 %s14, %s21
      %p133 = scmp.eq.s32.totalorder %s132, 0
      %s135 = sadd.s32 %s134, 1
      %s136 = scalar_select %p133, %s134, %s135
      %p139 = pneg %p133
      %p140 = scmp.eq.s32.totalorder %s14, 1
      %p141 = por %p139, %p140
      %p142 = scmp.ne.s32.totalorder %s134, %s137
      %p143 = scmp.eq.s32.totalorder %s14, 0
      %p144 = por %p142, %p143
      %p145 = scmp.ne.s32.totalorder %s134, %s137
      %p146 = scmp.eq.s32.totalorder %s19, 1
      %p147 = por %p145, %p146
      %p148 = scmp.ne.s32.totalorder %s137, %s138
      %p149 = scmp.eq.s32.totalorder %s19, 0
      %p150 = por %p148, %p149
      %p151 = scmp.ne.s32.totalorder %s137, %s138
      %p152 = scmp.eq.s32.totalorder %s20, 1
      %p153 = por %p151, %p152
      %p155 = scmp.ne.s32.totalorder %s138, %s154
      %p156 = scmp.eq.s32.totalorder %s20, 0
      %p157 = por %p155, %p156
      %p158 = scmp.le.s32.totalorder 1, %s14
      %p159 = scmp.lt.s32.totalorder %s14, 3
      %p160 = pnand %p158, %p159
      %p161 = pneg %p160
      // Predicated region
      $region9: #{tpu_custom_call.1} parent=5 // pred_check
        _
      $region10: #{tpu_custom_call.1} parent=5 // pred_check_branch
        %163 = sbr.rel (%p160) target = $region12
      $region11: #{tpu_custom_call.1} parent=5 // pred_region
        %s164 = ssub.s32 %s14, 1
        // Predicated region
        $region13: #{tpu_custom_call.1} parent=11 // pred_check
          %p165 = pneg %p61
        $region14: #{tpu_custom_call.1} parent=11 // pred_check_branch
          %167 = sbr.rel (%p165) target = $region16
        $region15: #{tpu_custom_call.1} parent=11 // pred_region
          _
        $region16: #{tpu_custom_call.1} parent=11 // pred_fallthru
          _
        // Predicated region
        $region17: #{tpu_custom_call.1} parent=11 // pred_check
          %p168 = pneg %p82
        $region18: #{tpu_custom_call.1} parent=11 // pred_check_branch
          %170 = sbr.rel (%p168) target = $region20
        $region19: #{tpu_custom_call.1} parent=11 // pred_region
          _
        $region20: #{tpu_custom_call.1} parent=11 // pred_fallthru
          _
        // Predicated region
        $region21: #{tpu_custom_call.1} parent=11 // pred_check
          %p171 = pneg %p103
        $region22: #{tpu_custom_call.1} parent=11 // pred_check_branch
          %173 = sbr.rel (%p171) target = $region24
        $region23: #{tpu_custom_call.1} parent=11 // pred_region
          _
        $region24: #{tpu_custom_call.1} parent=11 // pred_fallthru
          _
        // Predicated region
        $region25: #{tpu_custom_call.1} parent=11 // pred_check
          %p174 = pneg %p124
        $region26: #{tpu_custom_call.1} parent=11 // pred_check_branch
          %176 = sbr.rel (%p174) target = $region28
        $region27: #{tpu_custom_call.1} parent=11 // pred_region
          _
        $region28: #{tpu_custom_call.1} parent=11 // pred_fallthru
          _
      $region12: #{tpu_custom_call.1} parent=5 // pred_fallthru
        _
      %p177 = scmp.lt.s32.totalorder %s14, 2
      // Predicated region
      $region29: #{tpu_custom_call.1} parent=5 // pred_check
        %p178 = pneg %p177
      $region30: #{tpu_custom_call.1} parent=5 // pred_check_branch
        %180 = sbr.rel (%p178) target = $region32
      $region31: #{tpu_custom_call.1} parent=5 // pred_region
        // Predicated region
        $region33: #{tpu_custom_call.1} parent=31 // pred_check
          %p181 = pneg %p34
        $region34: #{tpu_custom_call.1} parent=31 // pred_check_branch
          %183 = sbr.rel (%p181) target = $region36
        $region35: #{tpu_custom_call.1} parent=31 // pred_region
          %s184 = smul.u32 128, %s14
          %p185 = scmp.lt.s32.totalorder %s184, 255
          %s186 = scalar_select %p185, %s184, 255
          %s187 = smul.addr %s186, 8
          %s188 = scalar_lea.vmem %s0, %s187
          %s189 = smul.u32 128, %s14
        $region36: #{tpu_custom_call.1} parent=31 // pred_fallthru
          _
      $region32: #{tpu_custom_call.1} parent=5 // pred_fallthru
        _
      %p190 = scmp.le.s32.totalorder 1, %s14
      %p191 = scmp.lt.s32.totalorder %s14, 3
      %p192 = pnand %p190, %p191
      %p193 = pneg %p192
      // Predicated region
      $region37: #{tpu_custom_call.1} parent=5 // pred_check
        _
      $region38: #{tpu_custom_call.1} parent=5 // pred_check_branch
        %195 = sbr.rel (%p192) target = $region40
      $region39: #{tpu_custom_call.1} parent=5 // pred_region
        %s196 = ssub.s32 %s14, 1
        %s197 = smul.u32 128, %s19
        %p198 = scmp.lt.s32.totalorder %s197, 255
        %s199 = scalar_select %p198, %s197, 255
        %s200 = smul.addr %s199, 8
        %s201 = scalar_lea.vmem %s0, %s200
        %p202 = pneg %p40
        %p203 = pneg %p37
        %p204 = pneg %p61
        %p205 = pneg %p58
        %p206 = pneg %p82
        %p207 = pneg %p79
        %p208 = pneg %p103
        %p209 = pneg %p100
        %p210 = pneg %p124
        %p211 = pneg %p121
        %p212 = pneg %p150
        %p213 = pneg %p147
        %s214 = sand.u32 %s137, 1
        %s215 = scalar_lea.sflag [#allocation3], %s214
        %s216 = sand.u32 %s137, 1
        %s217 = smul.addr %s216, 8
        %s218 = scalar_lea.vmem [#allocation2], %s217
        %s219 = smul.u32 128, %s19
        %p220 = scmp.lt.s32.totalorder %s219, 255
        %s221 = scalar_select %p220, %s219, 255
        %s222 = smul.addr %s221, 8
        %s223 = scalar_lea.vmem %s0, %s222
        %s224 = smul.u32 128, %s19
        %s225 = smul.u32 8, %s19
        %v227 = vld [vmem:[%s223] sm:$0xff]
        %v228 = vld [vmem:[%s223 + $0x8] sm:$0xff]
        %v229 = vld [vmem:[%s223 + $0x10] sm:$0xff]
        %v230 = vld [vmem:[%s223 + $0x18] sm:$0xff]
        %v231 = vld [vmem:[%s223 + $0x20] sm:$0xff]
        %v232 = vld [vmem:[%s223 + $0x28] sm:$0xff]
        %v233 = vld [vmem:[%s223 + $0x30] sm:$0xff]
        %v234 = vld [vmem:[%s223 + $0x38] sm:$0xff]
        %v235 = vld [vmem:[%s223 + $0x40] sm:$0xff]
        %v236 = vld [vmem:[%s223 + $0x48] sm:$0xff]
        %v237 = vld [vmem:[%s223 + $0x50] sm:$0xff]
        %v238 = vld [vmem:[%s223 + $0x58] sm:$0xff]
        %v239 = vld [vmem:[%s223 + $0x60] sm:$0xff]
        %v240 = vld [vmem:[%s223 + $0x68] sm:$0xff]
        %v241 = vld [vmem:[%s223 + $0x70] sm:$0xff]
        %v242 = vld [vmem:[%s223 + $0x78] sm:$0xff]
        %v243 = vld [vmem:[%s223 + $0x80] sm:$0xff]
        %v244 = vld [vmem:[%s223 + $0x88] sm:$0xff]
        %v245 = vld [vmem:[%s223 + $0x90] sm:$0xff]
        %v246 = vld [vmem:[%s223 + $0x98] sm:$0xff]
        %v247 = vld [vmem:[%s223 + $0xa0] sm:$0xff]
        %v248 = vld [vmem:[%s223 + $0xa8] sm:$0xff]
        %v249 = vld [vmem:[%s223 + $0xb0] sm:$0xff]
        %v250 = vld [vmem:[%s223 + $0xb8] sm:$0xff]
        %v251 = vld [vmem:[%s223 + $0xc0] sm:$0xff]
        %v252 = vld [vmem:[%s223 + $0xc8] sm:$0xff]
        %v253 = vld [vmem:[%s223 + $0xd0] sm:$0xff]
        %v254 = vld [vmem:[%s223 + $0xd8] sm:$0xff]
        %v255 = vld [vmem:[%s223 + $0xe0] sm:$0xff]
        %v256 = vld [vmem:[%s223 + $0xe8] sm:$0xff]
        %v257 = vld [vmem:[%s223 + $0xf0] sm:$0xff]
        %v258 = vld [vmem:[%s223 + $0xf8] sm:$0xff]
        %v259 = vld [vmem:[%s223 + $0x100] sm:$0xff]
        %v260 = vld [vmem:[%s223 + $0x108] sm:$0xff]
        %v261 = vld [vmem:[%s223 + $0x110] sm:$0xff]
        %v262 = vld [vmem:[%s223 + $0x118] sm:$0xff]
        %v263 = vld [vmem:[%s223 + $0x120] sm:$0xff]
        %v264 = vld [vmem:[%s223 + $0x128] sm:$0xff]
        %v265 = vld [vmem:[%s223 + $0x130] sm:$0xff]
        %v266 = vld [vmem:[%s223 + $0x138] sm:$0xff]
        %v267 = vld [vmem:[%s223 + $0x140] sm:$0xff]
        %v268 = vld [vmem:[%s223 + $0x148] sm:$0xff]
        %v269 = vld [vmem:[%s223 + $0x150] sm:$0xff]
        %v270 = vld [vmem:[%s223 + $0x158] sm:$0xff]
        %v271 = vld [vmem:[%s223 + $0x160] sm:$0xff]
        %v272 = vld [vmem:[%s223 + $0x168] sm:$0xff]
        %v273 = vld [vmem:[%s223 + $0x170] sm:$0xff]
        %v274 = vld [vmem:[%s223 + $0x178] sm:$0xff]
        %v275 = vld [vmem:[%s223 + $0x180] sm:$0xff]
        %v276 = vld [vmem:[%s223 + $0x188] sm:$0xff]
        %v277 = vld [vmem:[%s223 + $0x190] sm:$0xff]
        %v278 = vld [vmem:[%s223 + $0x198] sm:$0xff]
        %v279 = vld [vmem:[%s223 + $0x1a0] sm:$0xff]
        %v280 = vld [vmem:[%s223 + $0x1a8] sm:$0xff]
        %v281 = vld [vmem:[%s223 + $0x1b0] sm:$0xff]
        %v282 = vld [vmem:[%s223 + $0x1b8] sm:$0xff]
        %v283 = vld [vmem:[%s223 + $0x1c0] sm:$0xff]
        %v284 = vld [vmem:[%s223 + $0x1c8] sm:$0xff]
        %v285 = vld [vmem:[%s223 + $0x1d0] sm:$0xff]
        %v286 = vld [vmem:[%s223 + $0x1d8] sm:$0xff]
        %v287 = vld [vmem:[%s223 + $0x1e0] sm:$0xff]
        %v288 = vld [vmem:[%s223 + $0x1e8] sm:$0xff]
        %v289 = vld [vmem:[%s223 + $0x1f0] sm:$0xff]
        %v290 = vld [vmem:[%s223 + $0x1f8] sm:$0xff]
        %v291 = vld [vmem:[%s223 + $0x200] sm:$0xff]
        %v292 = vld [vmem:[%s223 + $0x208] sm:$0xff]
        %v293 = vld [vmem:[%s223 + $0x210] sm:$0xff]
        %v294 = vld [vmem:[%s223 + $0x218] sm:$0xff]
        %v295 = vld [vmem:[%s223 + $0x220] sm:$0xff]
        %v296 = vld [vmem:[%s223 + $0x228] sm:$0xff]
        %v297 = vld [vmem:[%s223 + $0x230] sm:$0xff]
        %v298 = vld [vmem:[%s223 + $0x238] sm:$0xff]
        %v299 = vld [vmem:[%s223 + $0x240] sm:$0xff]
        %v300 = vld [vmem:[%s223 + $0x248] sm:$0xff]
        %v301 = vld [vmem:[%s223 + $0x250] sm:$0xff]
        %v302 = vld [vmem:[%s223 + $0x258] sm:$0xff]
        %v303 = vld [vmem:[%s223 + $0x260] sm:$0xff]
        %v304 = vld [vmem:[%s223 + $0x268] sm:$0xff]
        %v305 = vld [vmem:[%s223 + $0x270] sm:$0xff]
        %v306 = vld [vmem:[%s223 + $0x278] sm:$0xff]
        %v307 = vld [vmem:[%s223 + $0x280] sm:$0xff]
        %v308 = vld [vmem:[%s223 + $0x288] sm:$0xff]
        %v309 = vld [vmem:[%s223 + $0x290] sm:$0xff]
        %v310 = vld [vmem:[%s223 + $0x298] sm:$0xff]
        %v311 = vld [vmem:[%s223 + $0x2a0] sm:$0xff]
        %v312 = vld [vmem:[%s223 + $0x2a8] sm:$0xff]
        %v313 = vld [vmem:[%s223 + $0x2b0] sm:$0xff]
        %v314 = vld [vmem:[%s223 + $0x2b8] sm:$0xff]
        %v315 = vld [vmem:[%s223 + $0x2c0] sm:$0xff]
        %v316 = vld [vmem:[%s223 + $0x2c8] sm:$0xff]
        %v317 = vld [vmem:[%s223 + $0x2d0] sm:$0xff]
        %v318 = vld [vmem:[%s223 + $0x2d8] sm:$0xff]
        %v319 = vld [vmem:[%s223 + $0x2e0] sm:$0xff]
        %v320 = vld [vmem:[%s223 + $0x2e8] sm:$0xff]
        %v321 = vld [vmem:[%s223 + $0x2f0] sm:$0xff]
        %v322 = vld [vmem:[%s223 + $0x2f8] sm:$0xff]
        %v323 = vld [vmem:[%s223 + $0x300] sm:$0xff]
        %v324 = vld [vmem:[%s223 + $0x308] sm:$0xff]
        %v325 = vld [vmem:[%s223 + $0x310] sm:$0xff]
        %v326 = vld [vmem:[%s223 + $0x318] sm:$0xff]
        %v327 = vld [vmem:[%s223 + $0x320] sm:$0xff]
        %v328 = vld [vmem:[%s223 + $0x328] sm:$0xff]
        %v329 = vld [vmem:[%s223 + $0x330] sm:$0xff]
        %v330 = vld [vmem:[%s223 + $0x338] sm:$0xff]
        %v331 = vld [vmem:[%s223 + $0x340] sm:$0xff]
        %v332 = vld [vmem:[%s223 + $0x348] sm:$0xff]
        %v333 = vld [vmem:[%s223 + $0x350] sm:$0xff]
        %v334 = vld [vmem:[%s223 + $0x358] sm:$0xff]
        %v335 = vld [vmem:[%s223 + $0x360] sm:$0xff]
        %v336 = vld [vmem:[%s223 + $0x368] sm:$0xff]
        %v337 = vld [vmem:[%s223 + $0x370] sm:$0xff]
        %v338 = vld [vmem:[%s223 + $0x378] sm:$0xff]
        %v339 = vld [vmem:[%s223 + $0x380] sm:$0xff]
        %v340 = vld [vmem:[%s223 + $0x388] sm:$0xff]
        %v341 = vld [vmem:[%s223 + $0x390] sm:$0xff]
        %v342 = vld [vmem:[%s223 + $0x398] sm:$0xff]
        %v343 = vld [vmem:[%s223 + $0x3a0] sm:$0xff]
        %v344 = vld [vmem:[%s223 + $0x3a8] sm:$0xff]
        %v345 = vld [vmem:[%s223 + $0x3b0] sm:$0xff]
        %v346 = vld [vmem:[%s223 + $0x3b8] sm:$0xff]
        %v347 = vld [vmem:[%s223 + $0x3c0] sm:$0xff]
        %v348 = vld [vmem:[%s223 + $0x3c8] sm:$0xff]
        %v349 = vld [vmem:[%s223 + $0x3d0] sm:$0xff]
        %v350 = vld [vmem:[%s223 + $0x3d8] sm:$0xff]
        %v351 = vld [vmem:[%s223 + $0x3e0] sm:$0xff]
        %v352 = vld [vmem:[%s223 + $0x3e8] sm:$0xff]
        %v353 = vld [vmem:[%s223 + $0x3f0] sm:$0xff]
        %v354 = vld [vmem:[%s223 + $0x3f8] sm:$0xff]
        %v355 = vpack.c.bf16 %v228, %v227
        %v356 = vpack.c.bf16 %v230, %v229
        %v357 = vpack.c.bf16 %v232, %v231
        %v358 = vpack.c.bf16 %v234, %v233
        %v359 = vpack.c.bf16 %v236, %v235
        %v360 = vpack.c.bf16 %v238, %v237
        %v361 = vpack.c.bf16 %v240, %v239
        %v362 = vpack.c.bf16 %v242, %v241
        %v363 = vpack.c.bf16 %v244, %v243
        %v364 = vpack.c.bf16 %v246, %v245
        %v365 = vpack.c.bf16 %v248, %v247
        %v366 = vpack.c.bf16 %v250, %v249
        %v367 = vpack.c.bf16 %v252, %v251
        %v368 = vpack.c.bf16 %v254, %v253
        %v369 = vpack.c.bf16 %v256, %v255
        %v370 = vpack.c.bf16 %v258, %v257
        %v371 = vpack.c.bf16 %v260, %v259
        %v372 = vpack.c.bf16 %v262, %v261
        %v373 = vpack.c.bf16 %v264, %v263
        %v374 = vpack.c.bf16 %v266, %v265
        %v375 = vpack.c.bf16 %v268, %v267
        %v376 = vpack.c.bf16 %v270, %v269
        %v377 = vpack.c.bf16 %v272, %v271
        %v378 = vpack.c.bf16 %v274, %v273
        %v379 = vpack.c.bf16 %v276, %v275
        %v380 = vpack.c.bf16 %v278, %v277
        %v381 = vpack.c.bf16 %v280, %v279
        %v382 = vpack.c.bf16 %v282, %v281
        %v383 = vpack.c.bf16 %v284, %v283
        %v384 = vpack.c.bf16 %v286, %v285
        %v385 = vpack.c.bf16 %v288, %v287
        %v386 = vpack.c.bf16 %v290, %v289
        %v387 = vpack.c.bf16 %v292, %v291
        %v388 = vpack.c.bf16 %v294, %v293
        %v389 = vpack.c.bf16 %v296, %v295
        %v390 = vpack.c.bf16 %v298, %v297
        %v391 = vpack.c.bf16 %v300, %v299
        %v392 = vpack.c.bf16 %v302, %v301
        %v393 = vpack.c.bf16 %v304, %v303
        %v394 = vpack.c.bf16 %v306, %v305
        %v395 = vpack.c.bf16 %v308, %v307
        %v396 = vpack.c.bf16 %v310, %v309
        %v397 = vpack.c.bf16 %v312, %v311
        %v398 = vpack.c.bf16 %v314, %v313
        %v399 = vpack.c.bf16 %v316, %v315
        %v400 = vpack.c.bf16 %v318, %v317
        %v401 = vpack.c.bf16 %v320, %v319
        %v402 = vpack.c.bf16 %v322, %v321
        %v403 = vpack.c.bf16 %v324, %v323
        %v404 = vpack.c.bf16 %v326, %v325
        %v405 = vpack.c.bf16 %v328, %v327
        %v406 = vpack.c.bf16 %v330, %v329
        %v407 = vpack.c.bf16 %v332, %v331
        %v408 = vpack.c.bf16 %v334, %v333
        %v409 = vpack.c.bf16 %v336, %v335
        %v410 = vpack.c.bf16 %v338, %v337
        %v411 = vpack.c.bf16 %v340, %v339
        %v412 = vpack.c.bf16 %v342, %v341
        %v413 = vpack.c.bf16 %v344, %v343
        %v414 = vpack.c.bf16 %v346, %v345
        %v415 = vpack.c.bf16 %v348, %v347
        %v416 = vpack.c.bf16 %v350, %v349
        %v417 = vpack.c.bf16 %v352, %v351
        %v418 = vpack.c.bf16 %v354, %v353
        %v419 = vld [vmem:[%s1] sm:$0xff]
        %v420 = vld [vmem:[%s1 + $0x8] sm:$0x33]
        %v421 = vld [vmem:[%s2] sm:$0x3]
        %v423 = vperm.slane %v421, 0
        %v424 = vperm.slane %v421, 1
        %v429 = vunpack.c.l.b16 %v419
        %v430 = vunpack.c.h.b16 %v419
        %v431 = vunpack.c.l.b16 %v420
        %v432 = vunpack.c.h.b16 %v420
        %v433 = vpack.c.b16 %v431, %v429
        %v434 = vpack.c.b16 %v432, %v430
        %vm435 = vcmask 97280
        %v437 = vsel %vm435, %v355, 0
        %v440 = vsel %vm435, %v356, 0
        %v443 = vsel %vm435, %v357, 0
        %v446 = vsel %vm435, %v358, 0
        %v449 = vsel %vm435, %v359, 0
        %v452 = vsel %vm435, %v360, 0
        %v455 = vsel %vm435, %v361, 0
        %v458 = vsel %vm435, %v362, 0
        %v461 = vsel %vm435, %v363, 0
        %v464 = vsel %vm435, %v364, 0
        %v467 = vsel %vm435, %v365, 0
        %v470 = vsel %vm435, %v366, 0
        %v473 = vsel %vm435, %v367, 0
        %v476 = vsel %vm435, %v368, 0
        %v479 = vsel %vm435, %v369, 0
        %v482 = vsel %vm435, %v370, 0
        %v485 = vsel %vm435, %v371, 0
        %v488 = vsel %vm435, %v372, 0
        %v491 = vsel %vm435, %v373, 0
        %v494 = vsel %vm435, %v374, 0
        %v497 = vsel %vm435, %v375, 0
        %v500 = vsel %vm435, %v376, 0
        %v503 = vsel %vm435, %v377, 0
        %v506 = vsel %vm435, %v378, 0
        %v509 = vsel %vm435, %v379, 0
        %v512 = vsel %vm435, %v380, 0
        %v515 = vsel %vm435, %v381, 0
        %v518 = vsel %vm435, %v382, 0
        %v521 = vsel %vm435, %v383, 0
        %v524 = vsel %vm435, %v384, 0
        %v527 = vsel %vm435, %v385, 0
        %v530 = vsel %vm435, %v386, 0
        %v533 = vsel %vm435, %v387, 0
        %v536 = vsel %vm435, %v388, 0
        %v539 = vsel %vm435, %v389, 0
        %v542 = vsel %vm435, %v390, 0
        %v545 = vsel %vm435, %v391, 0
        %v548 = vsel %vm435, %v392, 0
        %v551 = vsel %vm435, %v393, 0
        %v554 = vsel %vm435, %v394, 0
        %v557 = vsel %vm435, %v395, 0
        %v560 = vsel %vm435, %v396, 0
        %v563 = vsel %vm435, %v397, 0
        %v566 = vsel %vm435, %v398, 0
        %v569 = vsel %vm435, %v399, 0
        %v572 = vsel %vm435, %v400, 0
        %v575 = vsel %vm435, %v401, 0
        %v578 = vsel %vm435, %v402, 0
        %v581 = vsel %vm435, %v403, 0
        %v584 = vsel %vm435, %v404, 0
        %v587 = vsel %vm435, %v405, 0
        %v590 = vsel %vm435, %v406, 0
        %v593 = vsel %vm435, %v407, 0
        %v596 = vsel %vm435, %v408, 0
        %v599 = vsel %vm435, %v409, 0
        %v602 = vsel %vm435, %v410, 0
        %v605 = vsel %vm435, %v411, 0
        %v608 = vsel %vm435, %v412, 0
        %v611 = vsel %vm435, %v413, 0
        %v614 = vsel %vm435, %v414, 0
        %v617 = vsel %vm435, %v415, 0
        %v620 = vsel %vm435, %v416, 0
        %v623 = vsel %vm435, %v417, 0
        %v626 = vsel %vm435, %v418, 0
        %vm628 = vcmask 1045504
        %v630 = vsel %vm628, %v433, 0
        %v633 = vsel %vm628, %v434, 0
        %635 = vmatpush.bf16.msra.mxu0 0
        %636 = vmatpush.bf16.msra.mxu0 0
        %637 = vmatpush.bf16.msra.mxu0 0
        %638 = vmatpush.bf16.msra.mxu0 0
        %639 = vmatpush.bf16.msra.mxu0 0
        %640 = vmatpush.bf16.msra.mxu0 0
        %641 = vmatpush.bf16.msra.mxu0 0
        %642 = vmatpush.bf16.msra.mxu0 %v630
        %643 = vmatmul.bf16.gmra.mxu0 %v437
        %v644 = vpop.f32.mrf.mxu0
        %v645 = vadd.f32 %v423, %v644
        %v646 = vpop.f32.mrf.mxu0
        %v647 = vadd.f32 %v423, %v646
        %648 = vmatmul.bf16.gmra.mxu0 %v440
        %v649 = vpop.f32.mrf.mxu0
        %v650 = vadd.f32 %v423, %v649
        %v651 = vpop.f32.mrf.mxu0
        %v652 = vadd.f32 %v423, %v651
        %653 = vmatmul.bf16.gmra.mxu0 %v443
        %v654 = vpop.f32.mrf.mxu0
        %v655 = vadd.f32 %v423, %v654
        %v656 = vpop.f32.mrf.mxu0
        %v657 = vadd.f32 %v423, %v656
        %658 = vmatmul.bf16.gmra.mxu0 %v446
        %v659 = vpop.f32.mrf.mxu0
        %v660 = vadd.f32 %v423, %v659
        %v661 = vpop.f32.mrf.mxu0
        %v662 = vadd.f32 %v423, %v661
        %663 = vmatmul.bf16.gmra.mxu0 %v449
        %v664 = vpop.f32.mrf.mxu0
        %v665 = vadd.f32 %v423, %v664
        %v666 = vpop.f32.mrf.mxu0
        %v667 = vadd.f32 %v423, %v666
        %668 = vmatmul.bf16.gmra.mxu0 %v452
        %v669 = vpop.f32.mrf.mxu0
        %v670 = vadd.f32 %v423, %v669
        %v671 = vpop.f32.mrf.mxu0
        %v672 = vadd.f32 %v423, %v671
        %673 = vmatmul.bf16.gmra.mxu0 %v455
        %v674 = vpop.f32.mrf.mxu0
        %v675 = vadd.f32 %v423, %v674
        %v676 = vpop.f32.mrf.mxu0
        %v677 = vadd.f32 %v423, %v676
        %678 = vmatmul.bf16.gmra.mxu0 %v458
        %v679 = vpop.f32.mrf.mxu0
        %v680 = vadd.f32 %v423, %v679
        %v681 = vpop.f32.mrf.mxu0
        %v682 = vadd.f32 %v423, %v681
        %683 = vmatmul.bf16.gmra.mxu0 %v461
        %v684 = vpop.f32.mrf.mxu0
        %v685 = vadd.f32 %v423, %v684
        %v686 = vpop.f32.mrf.mxu0
        %v687 = vadd.f32 %v423, %v686
        %688 = vmatmul.bf16.gmra.mxu0 %v464
        %v689 = vpop.f32.mrf.mxu0
        %v690 = vadd.f32 %v423, %v689
        %v691 = vpop.f32.mrf.mxu0
        %v692 = vadd.f32 %v423, %v691
        %693 = vmatmul.bf16.gmra.mxu0 %v467
        %v694 = vpop.f32.mrf.mxu0
        %v695 = vadd.f32 %v423, %v694
        %v696 = vpop.f32.mrf.mxu0
        %v697 = vadd.f32 %v423, %v696
        %698 = vmatmul.bf16.gmra.mxu0 %v470
        %v699 = vpop.f32.mrf.mxu0
        %v700 = vadd.f32 %v423, %v699
        %v701 = vpop.f32.mrf.mxu0
        %v702 = vadd.f32 %v423, %v701
        %703 = vmatmul.bf16.gmra.mxu0 %v473
        %v704 = vpop.f32.mrf.mxu0
        %v705 = vadd.f32 %v423, %v704
        %v706 = vpop.f32.mrf.mxu0
        %v707 = vadd.f32 %v423, %v706
        %708 = vmatmul.bf16.gmra.mxu0 %v476
        %v709 = vpop.f32.mrf.mxu0
        %v710 = vadd.f32 %v423, %v709
        %v711 = vpop.f32.mrf.mxu0
        %v712 = vadd.f32 %v423, %v711
        %713 = vmatmul.bf16.gmra.mxu0 %v479
        %v714 = vpop.f32.mrf.mxu0
        %v715 = vadd.f32 %v423, %v714
        %v716 = vpop.f32.mrf.mxu0
        %v717 = vadd.f32 %v423, %v716
        %718 = vmatmul.bf16.gmra.mxu0 %v482
        %v719 = vpop.f32.mrf.mxu0
        %v720 = vadd.f32 %v423, %v719
        %v721 = vpop.f32.mrf.mxu0
        %v722 = vadd.f32 %v423, %v721
        %723 = vmatmul.bf16.gmra.mxu0 %v485
        %v724 = vpop.f32.mrf.mxu0
        %v725 = vadd.f32 %v423, %v724
        %v726 = vpop.f32.mrf.mxu0
        %v727 = vadd.f32 %v423, %v726
        %728 = vmatmul.bf16.gmra.mxu0 %v488
        %v729 = vpop.f32.mrf.mxu0
        %v730 = vadd.f32 %v423, %v729
        %v731 = vpop.f32.mrf.mxu0
        %v732 = vadd.f32 %v423, %v731
        %733 = vmatmul.bf16.gmra.mxu0 %v491
        %v734 = vpop.f32.mrf.mxu0
        %v735 = vadd.f32 %v423, %v734
        %v736 = vpop.f32.mrf.mxu0
        %v737 = vadd.f32 %v423, %v736
        %738 = vmatmul.bf16.gmra.mxu0 %v494
        %v739 = vpop.f32.mrf.mxu0
        %v740 = vadd.f32 %v423, %v739
        %v741 = vpop.f32.mrf.mxu0
        %v742 = vadd.f32 %v423, %v741
        %743 = vmatmul.bf16.gmra.mxu0 %v497
        %v744 = vpop.f32.mrf.mxu0
        %v745 = vadd.f32 %v423, %v744
        %v746 = vpop.f32.mrf.mxu0
        %v747 = vadd.f32 %v423, %v746
        %748 = vmatmul.bf16.gmra.mxu0 %v500
        %v749 = vpop.f32.mrf.mxu0
        %v750 = vadd.f32 %v423, %v749
        %v751 = vpop.f32.mrf.mxu0
        %v752 = vadd.f32 %v423, %v751
        %753 = vmatmul.bf16.gmra.mxu0 %v503
        %v754 = vpop.f32.mrf.mxu0
        %v755 = vadd.f32 %v423, %v754
        %v756 = vpop.f32.mrf.mxu0
        %v757 = vadd.f32 %v423, %v756
        %758 = vmatmul.bf16.gmra.mxu0 %v506
        %v759 = vpop.f32.mrf.mxu0
        %v760 = vadd.f32 %v423, %v759
        %v761 = vpop.f32.mrf.mxu0
        %v762 = vadd.f32 %v423, %v761
        %763 = vmatmul.bf16.gmra.mxu0 %v509
        %v764 = vpop.f32.mrf.mxu0
        %v765 = vadd.f32 %v423, %v764
        %v766 = vpop.f32.mrf.mxu0
        %v767 = vadd.f32 %v423, %v766
        %768 = vmatmul.bf16.gmra.mxu0 %v512
        %v769 = vpop.f32.mrf.mxu0
        %v770 = vadd.f32 %v423, %v769
        %v771 = vpop.f32.mrf.mxu0
        %v772 = vadd.f32 %v423, %v771
        %773 = vmatmul.bf16.gmra.mxu0 %v515
        %v774 = vpop.f32.mrf.mxu0
        %v775 = vadd.f32 %v423, %v774
        %v776 = vpop.f32.mrf.mxu0
        %v777 = vadd.f32 %v423, %v776
        %778 = vmatmul.bf16.gmra.mxu0 %v518
        %v779 = vpop.f32.mrf.mxu0
        %v780 = vadd.f32 %v423, %v779
        %v781 = vpop.f32.mrf.mxu0
        %v782 = vadd.f32 %v423, %v781
        %783 = vmatmul.bf16.gmra.mxu0 %v521
        %v784 = vpop.f32.mrf.mxu0
        %v785 = vadd.f32 %v423, %v784
        %v786 = vpop.f32.mrf.mxu0
        %v787 = vadd.f32 %v423, %v786
        %788 = vmatmul.bf16.gmra.mxu0 %v524
        %v789 = vpop.f32.mrf.mxu0
        %v790 = vadd.f32 %v423, %v789
        %v791 = vpop.f32.mrf.mxu0
        %v792 = vadd.f32 %v423, %v791
        %793 = vmatmul.bf16.gmra.mxu0 %v527
        %v794 = vpop.f32.mrf.mxu0
        %v795 = vadd.f32 %v423, %v794
        %v796 = vpop.f32.mrf.mxu0
        %v797 = vadd.f32 %v423, %v796
        %798 = vmatmul.bf16.gmra.mxu0 %v530
        %v799 = vpop.f32.mrf.mxu0
        %v800 = vadd.f32 %v423, %v799
        %v801 = vpop.f32.mrf.mxu0
        %v802 = vadd.f32 %v423, %v801
        %803 = vmatmul.bf16.gmra.mxu0 %v533
        %v804 = vpop.f32.mrf.mxu0
        %v805 = vadd.f32 %v423, %v804
        %v806 = vpop.f32.mrf.mxu0
        %v807 = vadd.f32 %v423, %v806
        %808 = vmatmul.bf16.gmra.mxu0 %v536
        %v809 = vpop.f32.mrf.mxu0
        %v810 = vadd.f32 %v423, %v809
        %v811 = vpop.f32.mrf.mxu0
        %v812 = vadd.f32 %v423, %v811
        %813 = vmatmul.bf16.gmra.mxu0 %v539
        %v814 = vpop.f32.mrf.mxu0
        %v815 = vadd.f32 %v423, %v814
        %v816 = vpop.f32.mrf.mxu0
        %v817 = vadd.f32 %v423, %v816
        %818 = vmatmul.bf16.gmra.mxu0 %v542
        %v819 = vpop.f32.mrf.mxu0
        %v820 = vadd.f32 %v423, %v819
        %v821 = vpop.f32.mrf.mxu0
        %v822 = vadd.f32 %v423, %v821
        %823 = vmatmul.bf16.gmra.mxu0 %v545
        %v824 = vpop.f32.mrf.mxu0
        %v825 = vadd.f32 %v423, %v824
        %v826 = vpop.f32.mrf.mxu0
        %v827 = vadd.f32 %v423, %v826
        %828 = vmatmul.bf16.gmra.mxu0 %v548
        %v829 = vpop.f32.mrf.mxu0
        %v830 = vadd.f32 %v423, %v829
        %v831 = vpop.f32.mrf.mxu0
        %v832 = vadd.f32 %v423, %v831
        %833 = vmatmul.bf16.gmra.mxu0 %v551
        %v834 = vpop.f32.mrf.mxu0
        %v835 = vadd.f32 %v423, %v834
        %v836 = vpop.f32.mrf.mxu0
        %v837 = vadd.f32 %v423, %v836
        %838 = vmatmul.bf16.gmra.mxu0 %v554
        %v839 = vpop.f32.mrf.mxu0
        %v840 = vadd.f32 %v423, %v839
        %v841 = vpop.f32.mrf.mxu0
        %v842 = vadd.f32 %v423, %v841
        %843 = vmatmul.bf16.gmra.mxu0 %v557
        %v844 = vpop.f32.mrf.mxu0
        %v845 = vadd.f32 %v423, %v844
        %v846 = vpop.f32.mrf.mxu0
        %v847 = vadd.f32 %v423, %v846
        %848 = vmatmul.bf16.gmra.mxu0 %v560
        %v849 = vpop.f32.mrf.mxu0
        %v850 = vadd.f32 %v423, %v849
        %v851 = vpop.f32.mrf.mxu0
        %v852 = vadd.f32 %v423, %v851
        %853 = vmatmul.bf16.gmra.mxu0 %v563
        %v854 = vpop.f32.mrf.mxu0
        %v855 = vadd.f32 %v423, %v854
        %v856 = vpop.f32.mrf.mxu0
        %v857 = vadd.f32 %v423, %v856
        %858 = vmatmul.bf16.gmra.mxu0 %v566
        %v859 = vpop.f32.mrf.mxu0
        %v860 = vadd.f32 %v423, %v859
        %v861 = vpop.f32.mrf.mxu0
        %v862 = vadd.f32 %v423, %v861
        %863 = vmatmul.bf16.gmra.mxu0 %v569
        %v864 = vpop.f32.mrf.mxu0
        %v865 = vadd.f32 %v423, %v864
        %v866 = vpop.f32.mrf.mxu0
        %v867 = vadd.f32 %v423, %v866
        %868 = vmatmul.bf16.gmra.mxu0 %v572
        %v869 = vpop.f32.mrf.mxu0
        %v870 = vadd.f32 %v423, %v869
        %v871 = vpop.f32.mrf.mxu0
        %v872 = vadd.f32 %v423, %v871
        %873 = vmatmul.bf16.gmra.mxu0 %v575
        %v874 = vpop.f32.mrf.mxu0
        %v875 = vadd.f32 %v423, %v874
        %v876 = vpop.f32.mrf.mxu0
        %v877 = vadd.f32 %v423, %v876
        %878 = vmatmul.bf16.gmra.mxu0 %v578
        %v879 = vpop.f32.mrf.mxu0
        %v880 = vadd.f32 %v423, %v879
        %v881 = vpop.f32.mrf.mxu0
        %v882 = vadd.f32 %v423, %v881
        %883 = vmatmul.bf16.gmra.mxu0 %v581
        %v884 = vpop.f32.mrf.mxu0
        %v885 = vadd.f32 %v423, %v884
        %v886 = vpop.f32.mrf.mxu0
        %v887 = vadd.f32 %v423, %v886
        %888 = vmatmul.bf16.gmra.mxu0 %v584
        %v889 = vpop.f32.mrf.mxu0
        %v890 = vadd.f32 %v423, %v889
        %v891 = vpop.f32.mrf.mxu0
        %v892 = vadd.f32 %v423, %v891
        %893 = vmatmul.bf16.gmra.mxu0 %v587
        %v894 = vpop.f32.mrf.mxu0
        %v895 = vadd.f32 %v423, %v894
        %v896 = vpop.f32.mrf.mxu0
        %v897 = vadd.f32 %v423, %v896
        %898 = vmatmul.bf16.gmra.mxu0 %v590
        %v899 = vpop.f32.mrf.mxu0
        %v900 = vadd.f32 %v423, %v899
        %v901 = vpop.f32.mrf.mxu0
        %v902 = vadd.f32 %v423, %v901
        %903 = vmatmul.bf16.gmra.mxu0 %v593
        %v904 = vpop.f32.mrf.mxu0
        %v905 = vadd.f32 %v423, %v904
        %v906 = vpop.f32.mrf.mxu0
        %v907 = vadd.f32 %v423, %v906
        %908 = vmatmul.bf16.gmra.mxu0 %v596
        %v909 = vpop.f32.mrf.mxu0
        %v910 = vadd.f32 %v423, %v909
        %v911 = vpop.f32.mrf.mxu0
        %v912 = vadd.f32 %v423, %v911
        %913 = vmatmul.bf16.gmra.mxu0 %v599
        %v914 = vpop.f32.mrf.mxu0
        %v915 = vadd.f32 %v423, %v914
        %v916 = vpop.f32.mrf.mxu0
        %v917 = vadd.f32 %v423, %v916
        %918 = vmatmul.bf16.gmra.mxu0 %v602
        %v919 = vpop.f32.mrf.mxu0
        %v920 = vadd.f32 %v423, %v919
        %v921 = vpop.f32.mrf.mxu0
        %v922 = vadd.f32 %v423, %v921
        %923 = vmatmul.bf16.gmra.mxu0 %v605
        %v924 = vpop.f32.mrf.mxu0
        %v925 = vadd.f32 %v423, %v924
        %v926 = vpop.f32.mrf.mxu0
        %v927 = vadd.f32 %v423, %v926
        %928 = vmatmul.bf16.gmra.mxu0 %v608
        %v929 = vpop.f32.mrf.mxu0
        %v930 = vadd.f32 %v423, %v929
        %v931 = vpop.f32.mrf.mxu0
        %v932 = vadd.f32 %v423, %v931
        %933 = vmatmul.bf16.gmra.mxu0 %v611
        %v934 = vpop.f32.mrf.mxu0
        %v935 = vadd.f32 %v423, %v934
        %v936 = vpop.f32.mrf.mxu0
        %v937 = vadd.f32 %v423, %v936
        %938 = vmatmul.bf16.gmra.mxu0 %v614
        %v939 = vpop.f32.mrf.mxu0
        %v940 = vadd.f32 %v423, %v939
        %v941 = vpop.f32.mrf.mxu0
        %v942 = vadd.f32 %v423, %v941
        %943 = vmatmul.bf16.gmra.mxu0 %v617
        %v944 = vpop.f32.mrf.mxu0
        %v945 = vadd.f32 %v423, %v944
        %v946 = vpop.f32.mrf.mxu0
        %v947 = vadd.f32 %v423, %v946
        %948 = vmatmul.bf16.gmra.mxu0 %v620
        %v949 = vpop.f32.mrf.mxu0
        %v950 = vadd.f32 %v423, %v949
        %v951 = vpop.f32.mrf.mxu0
        %v952 = vadd.f32 %v423, %v951
        %953 = vmatmul.bf16.gmra.mxu0 %v623
        %v954 = vpop.f32.mrf.mxu0
        %v955 = vadd.f32 %v423, %v954
        %v956 = vpop.f32.mrf.mxu0
        %v957 = vadd.f32 %v423, %v956
        %958 = vmatmul.bf16.gmra.mxu0 %v626
        %v959 = vpop.f32.mrf.mxu0
        %v960 = vadd.f32 %v423, %v959
        %v961 = vpop.f32.mrf.mxu0
        %v962 = vadd.f32 %v423, %v961
        %963 = vdwg.mxu0
        %964 = vmatpush.bf16.msra.mxu0 0
        %965 = vmatpush.bf16.msra.mxu0 0
        %966 = vmatpush.bf16.msra.mxu0 0
        %967 = vmatpush.bf16.msra.mxu0 0
        %968 = vmatpush.bf16.msra.mxu0 0
        %969 = vmatpush.bf16.msra.mxu0 0
        %970 = vmatpush.bf16.msra.mxu0 0
        %971 = vmatpush.bf16.msra.mxu0 %v633
        %972 = vmatmul.bf16.gmra.mxu0 %v437
        %v973 = vpop.f32.mrf.mxu0
        %v974 = vadd.f32 %v424, %v973
        %v975 = vpop.f32.mrf.mxu0
        %v976 = vadd.f32 %v424, %v975
        %977 = vmatmul.bf16.gmra.mxu0 %v440
        %v978 = vpop.f32.mrf.mxu0
        %v979 = vadd.f32 %v424, %v978
        %v980 = vpop.f32.mrf.mxu0
        %v981 = vadd.f32 %v424, %v980
        %982 = vmatmul.bf16.gmra.mxu0 %v443
        %v983 = vpop.f32.mrf.mxu0
        %v984 = vadd.f32 %v424, %v983
        %v985 = vpop.f32.mrf.mxu0
        %v986 = vadd.f32 %v424, %v985
        %987 = vmatmul.bf16.gmra.mxu0 %v446
        %v988 = vpop.f32.mrf.mxu0
        %v989 = vadd.f32 %v424, %v988
        %v990 = vpop.f32.mrf.mxu0
        %v991 = vadd.f32 %v424, %v990
        %992 = vmatmul.bf16.gmra.mxu0 %v449
        %v993 = vpop.f32.mrf.mxu0
        %v994 = vadd.f32 %v424, %v993
        %v995 = vpop.f32.mrf.mxu0
        %v996 = vadd.f32 %v424, %v995
        %997 = vmatmul.bf16.gmra.mxu0 %v452
        %v998 = vpop.f32.mrf.mxu0
        %v999 = vadd.f32 %v424, %v998
        %v1000 = vpop.f32.mrf.mxu0
        %v1001 = vadd.f32 %v424, %v1000
        %1002 = vmatmul.bf16.gmra.mxu0 %v455
        %v1003 = vpop.f32.mrf.mxu0
        %v1004 = vadd.f32 %v424, %v1003
        %v1005 = vpop.f32.mrf.mxu0
        %v1006 = vadd.f32 %v424, %v1005
        %1007 = vmatmul.bf16.gmra.mxu0 %v458
        %v1008 = vpop.f32.mrf.mxu0
        %v1009 = vadd.f32 %v424, %v1008
        %v1010 = vpop.f32.mrf.mxu0
        %v1011 = vadd.f32 %v424, %v1010
        %1012 = vmatmul.bf16.gmra.mxu0 %v461
        %v1013 = vpop.f32.mrf.mxu0
        %v1014 = vadd.f32 %v424, %v1013
        %v1015 = vpop.f32.mrf.mxu0
        %v1016 = vadd.f32 %v424, %v1015
        %1017 = vmatmul.bf16.gmra.mxu0 %v464
        %v1018 = vpop.f32.mrf.mxu0
        %v1019 = vadd.f32 %v424, %v1018
        %v1020 = vpop.f32.mrf.mxu0
        %v1021 = vadd.f32 %v424, %v1020
        %1022 = vmatmul.bf16.gmra.mxu0 %v467
        %v1023 = vpop.f32.mrf.mxu0
        %v1024 = vadd.f32 %v424, %v1023
        %v1025 = vpop.f32.mrf.mxu0
        %v1026 = vadd.f32 %v424, %v1025
        %1027 = vmatmul.bf16.gmra.mxu0 %v470
        %v1028 = vpop.f32.mrf.mxu0
        %v1029 = vadd.f32 %v424, %v1028
        %v1030 = vpop.f32.mrf.mxu0
        %v1031 = vadd.f32 %v424, %v1030
        %1032 = vmatmul.bf16.gmra.mxu0 %v473
        %v1033 = vpop.f32.mrf.mxu0
        %v1034 = vadd.f32 %v424, %v1033
        %v1035 = vpop.f32.mrf.mxu0
        %v1036 = vadd.f32 %v424, %v1035
        %1037 = vmatmul.bf16.gmra.mxu0 %v476
        %v1038 = vpop.f32.mrf.mxu0
        %v1039 = vadd.f32 %v424, %v1038
        %v1040 = vpop.f32.mrf.mxu0
        %v1041 = vadd.f32 %v424, %v1040
        %1042 = vmatmul.bf16.gmra.mxu0 %v479
        %v1043 = vpop.f32.mrf.mxu0
        %v1044 = vadd.f32 %v424, %v1043
        %v1045 = vpop.f32.mrf.mxu0
        %v1046 = vadd.f32 %v424, %v1045
        %1047 = vmatmul.bf16.gmra.mxu0 %v482
        %v1048 = vpop.f32.mrf.mxu0
        %v1049 = vadd.f32 %v424, %v1048
        %v1050 = vpop.f32.mrf.mxu0
        %v1051 = vadd.f32 %v424, %v1050
        %1052 = vmatmul.bf16.gmra.mxu0 %v485
        %v1053 = vpop.f32.mrf.mxu0
        %v1054 = vadd.f32 %v424, %v1053
        %v1055 = vpop.f32.mrf.mxu0
        %v1056 = vadd.f32 %v424, %v1055
        %1057 = vmatmul.bf16.gmra.mxu0 %v488
        %v1058 = vpop.f32.mrf.mxu0
        %v1059 = vadd.f32 %v424, %v1058
        %v1060 = vpop.f32.mrf.mxu0
        %v1061 = vadd.f32 %v424, %v1060
        %1062 = vmatmul.bf16.gmra.mxu0 %v491
        %v1063 = vpop.f32.mrf.mxu0
        %v1064 = vadd.f32 %v424, %v1063
        %v1065 = vpop.f32.mrf.mxu0
        %v1066 = vadd.f32 %v424, %v1065
        %1067 = vmatmul.bf16.gmra.mxu0 %v494
        %v1068 = vpop.f32.mrf.mxu0
        %v1069 = vadd.f32 %v424, %v1068
        %v1070 = vpop.f32.mrf.mxu0
        %v1071 = vadd.f32 %v424, %v1070
        %1072 = vmatmul.bf16.gmra.mxu0 %v497
        %v1073 = vpop.f32.mrf.mxu0
        %v1074 = vadd.f32 %v424, %v1073
        %v1075 = vpop.f32.mrf.mxu0
        %v1076 = vadd.f32 %v424, %v1075
        %1077 = vmatmul.bf16.gmra.mxu0 %v500
        %v1078 = vpop.f32.mrf.mxu0
        %v1079 = vadd.f32 %v424, %v1078
        %v1080 = vpop.f32.mrf.mxu0
        %v1081 = vadd.f32 %v424, %v1080
        %1082 = vmatmul.bf16.gmra.mxu0 %v503
        %v1083 = vpop.f32.mrf.mxu0
        %v1084 = vadd.f32 %v424, %v1083
        %v1085 = vpop.f32.mrf.mxu0
        %v1086 = vadd.f32 %v424, %v1085
        %1087 = vmatmul.bf16.gmra.mxu0 %v506
        %v1088 = vpop.f32.mrf.mxu0
        %v1089 = vadd.f32 %v424, %v1088
        %v1090 = vpop.f32.mrf.mxu0
        %v1091 = vadd.f32 %v424, %v1090
        %1092 = vmatmul.bf16.gmra.mxu0 %v509
        %v1093 = vpop.f32.mrf.mxu0
        %v1094 = vadd.f32 %v424, %v1093
        %v1095 = vpop.f32.mrf.mxu0
        %v1096 = vadd.f32 %v424, %v1095
        %1097 = vmatmul.bf16.gmra.mxu0 %v512
        %v1098 = vpop.f32.mrf.mxu0
        %v1099 = vadd.f32 %v424, %v1098
        %v1100 = vpop.f32.mrf.mxu0
        %v1101 = vadd.f32 %v424, %v1100
        %1102 = vmatmul.bf16.gmra.mxu0 %v515
        %v1103 = vpop.f32.mrf.mxu0
        %v1104 = vadd.f32 %v424, %v1103
        %v1105 = vpop.f32.mrf.mxu0
        %v1106 = vadd.f32 %v424, %v1105
        %1107 = vmatmul.bf16.gmra.mxu0 %v518
        %v1108 = vpop.f32.mrf.mxu0
        %v1109 = vadd.f32 %v424, %v1108
        %v1110 = vpop.f32.mrf.mxu0
        %v1111 = vadd.f32 %v424, %v1110
        %1112 = vmatmul.bf16.gmra.mxu0 %v521
        %v1113 = vpop.f32.mrf.mxu0
        %v1114 = vadd.f32 %v424, %v1113
        %v1115 = vpop.f32.mrf.mxu0
        %v1116 = vadd.f32 %v424, %v1115
        %1117 = vmatmul.bf16.gmra.mxu0 %v524
        %v1118 = vpop.f32.mrf.mxu0
        %v1119 = vadd.f32 %v424, %v1118
        %v1120 = vpop.f32.mrf.mxu0
        %v1121 = vadd.f32 %v424, %v1120
        %1122 = vmatmul.bf16.gmra.mxu0 %v527
        %v1123 = vpop.f32.mrf.mxu0
        %v1124 = vadd.f32 %v424, %v1123
        %v1125 = vpop.f32.mrf.mxu0
        %v1126 = vadd.f32 %v424, %v1125
        %1127 = vmatmul.bf16.gmra.mxu0 %v530
        %v1128 = vpop.f32.mrf.mxu0
        %v1129 = vadd.f32 %v424, %v1128
        %v1130 = vpop.f32.mrf.mxu0
        %v1131 = vadd.f32 %v424, %v1130
        %1132 = vmatmul.bf16.gmra.mxu0 %v533
        %v1133 = vpop.f32.mrf.mxu0
        %v1134 = vadd.f32 %v424, %v1133
        %v1135 = vpop.f32.mrf.mxu0
        %v1136 = vadd.f32 %v424, %v1135
        %1137 = vmatmul.bf16.gmra.mxu0 %v536
        %v1138 = vpop.f32.mrf.mxu0
        %v1139 = vadd.f32 %v424, %v1138
        %v1140 = vpop.f32.mrf.mxu0
        %v1141 = vadd.f32 %v424, %v1140
        %1142 = vmatmul.bf16.gmra.mxu0 %v539
        %v1143 = vpop.f32.mrf.mxu0
        %v1144 = vadd.f32 %v424, %v1143
        %v1145 = vpop.f32.mrf.mxu0
        %v1146 = vadd.f32 %v424, %v1145
        %1147 = vmatmul.bf16.gmra.mxu0 %v542
        %v1148 = vpop.f32.mrf.mxu0
        %v1149 = vadd.f32 %v424, %v1148
        %v1150 = vpop.f32.mrf.mxu0
        %v1151 = vadd.f32 %v424, %v1150
        %1152 = vmatmul.bf16.gmra.mxu0 %v545
        %v1153 = vpop.f32.mrf.mxu0
        %v1154 = vadd.f32 %v424, %v1153
        %v1155 = vpop.f32.mrf.mxu0
        %v1156 = vadd.f32 %v424, %v1155
        %1157 = vmatmul.bf16.gmra.mxu0 %v548
        %v1158 = vpop.f32.mrf.mxu0
        %v1159 = vadd.f32 %v424, %v1158
        %v1160 = vpop.f32.mrf.mxu0
        %v1161 = vadd.f32 %v424, %v1160
        %1162 = vmatmul.bf16.gmra.mxu0 %v551
        %v1163 = vpop.f32.mrf.mxu0
        %v1164 = vadd.f32 %v424, %v1163
        %v1165 = vpop.f32.mrf.mxu0
        %v1166 = vadd.f32 %v424, %v1165
        %1167 = vmatmul.bf16.gmra.mxu0 %v554
        %v1168 = vpop.f32.mrf.mxu0
        %v1169 = vadd.f32 %v424, %v1168
        %v1170 = vpop.f32.mrf.mxu0
        %v1171 = vadd.f32 %v424, %v1170
        %1172 = vmatmul.bf16.gmra.mxu0 %v557
        %v1173 = vpop.f32.mrf.mxu0
        %v1174 = vadd.f32 %v424, %v1173
        %v1175 = vpop.f32.mrf.mxu0
        %v1176 = vadd.f32 %v424, %v1175
        %1177 = vmatmul.bf16.gmra.mxu0 %v560
        %v1178 = vpop.f32.mrf.mxu0
        %v1179 = vadd.f32 %v424, %v1178
        %v1180 = vpop.f32.mrf.mxu0
        %v1181 = vadd.f32 %v424, %v1180
        %1182 = vmatmul.bf16.gmra.mxu0 %v563
        %v1183 = vpop.f32.mrf.mxu0
        %v1184 = vadd.f32 %v424, %v1183
        %v1185 = vpop.f32.mrf.mxu0
        %v1186 = vadd.f32 %v424, %v1185
        %1187 = vmatmul.bf16.gmra.mxu0 %v566
        %v1188 = vpop.f32.mrf.mxu0
        %v1189 = vadd.f32 %v424, %v1188
        %v1190 = vpop.f32.mrf.mxu0
        %v1191 = vadd.f32 %v424, %v1190
        %1192 = vmatmul.bf16.gmra.mxu0 %v569
        %v1193 = vpop.f32.mrf.mxu0
        %v1194 = vadd.f32 %v424, %v1193
        %v1195 = vpop.f32.mrf.mxu0
        %v1196 = vadd.f32 %v424, %v1195
        %1197 = vmatmul.bf16.gmra.mxu0 %v572
        %v1198 = vpop.f32.mrf.mxu0
        %v1199 = vadd.f32 %v424, %v1198
        %v1200 = vpop.f32.mrf.mxu0
        %v1201 = vadd.f32 %v424, %v1200
        %1202 = vmatmul.bf16.gmra.mxu0 %v575
        %v1203 = vpop.f32.mrf.mxu0
        %v1204 = vadd.f32 %v424, %v1203
        %v1205 = vpop.f32.mrf.mxu0
        %v1206 = vadd.f32 %v424, %v1205
        %1207 = vmatmul.bf16.gmra.mxu0 %v578
        %v1208 = vpop.f32.mrf.mxu0
        %v1209 = vadd.f32 %v424, %v1208
        %v1210 = vpop.f32.mrf.mxu0
        %v1211 = vadd.f32 %v424, %v1210
        %1212 = vmatmul.bf16.gmra.mxu0 %v581
        %v1213 = vpop.f32.mrf.mxu0
        %v1214 = vadd.f32 %v424, %v1213
        %v1215 = vpop.f32.mrf.mxu0
        %v1216 = vadd.f32 %v424, %v1215
        %1217 = vmatmul.bf16.gmra.mxu0 %v584
        %v1218 = vpop.f32.mrf.mxu0
        %v1219 = vadd.f32 %v424, %v1218
        %v1220 = vpop.f32.mrf.mxu0
        %v1221 = vadd.f32 %v424, %v1220
        %1222 = vmatmul.bf16.gmra.mxu0 %v587
        %v1223 = vpop.f32.mrf.mxu0
        %v1224 = vadd.f32 %v424, %v1223
        %v1225 = vpop.f32.mrf.mxu0
        %v1226 = vadd.f32 %v424, %v1225
        %1227 = vmatmul.bf16.gmra.mxu0 %v590
        %v1228 = vpop.f32.mrf.mxu0
        %v1229 = vadd.f32 %v424, %v1228
        %v1230 = vpop.f32.mrf.mxu0
        %v1231 = vadd.f32 %v424, %v1230
        %1232 = vmatmul.bf16.gmra.mxu0 %v593
        %v1233 = vpop.f32.mrf.mxu0
        %v1234 = vadd.f32 %v424, %v1233
        %v1235 = vpop.f32.mrf.mxu0
        %v1236 = vadd.f32 %v424, %v1235
        %1237 = vmatmul.bf16.gmra.mxu0 %v596
        %v1238 = vpop.f32.mrf.mxu0
        %v1239 = vadd.f32 %v424, %v1238
        %v1240 = vpop.f32.mrf.mxu0
        %v1241 = vadd.f32 %v424, %v1240
        %1242 = vmatmul.bf16.gmra.mxu0 %v599
        %v1243 = vpop.f32.mrf.mxu0
        %v1244 = vadd.f32 %v424, %v1243
        %v1245 = vpop.f32.mrf.mxu0
        %v1246 = vadd.f32 %v424, %v1245
        %1247 = vmatmul.bf16.gmra.mxu0 %v602
        %v1248 = vpop.f32.mrf.mxu0
        %v1249 = vadd.f32 %v424, %v1248
        %v1250 = vpop.f32.mrf.mxu0
        %v1251 = vadd.f32 %v424, %v1250
        %1252 = vmatmul.bf16.gmra.mxu0 %v605
        %v1253 = vpop.f32.mrf.mxu0
        %v1254 = vadd.f32 %v424, %v1253
        %v1255 = vpop.f32.mrf.mxu0
        %v1256 = vadd.f32 %v424, %v1255
        %1257 = vmatmul.bf16.gmra.mxu0 %v608
        %v1258 = vpop.f32.mrf.mxu0
        %v1259 = vadd.f32 %v424, %v1258
        %v1260 = vpop.f32.mrf.mxu0
        %v1261 = vadd.f32 %v424, %v1260
        %1262 = vmatmul.bf16.gmra.mxu0 %v611
        %v1263 = vpop.f32.mrf.mxu0
        %v1264 = vadd.f32 %v424, %v1263
        %v1265 = vpop.f32.mrf.mxu0
        %v1266 = vadd.f32 %v424, %v1265
        %1267 = vmatmul.bf16.gmra.mxu0 %v614
        %v1268 = vpop.f32.mrf.mxu0
        %v1269 = vadd.f32 %v424, %v1268
        %v1270 = vpop.f32.mrf.mxu0
        %v1271 = vadd.f32 %v424, %v1270
        %1272 = vmatmul.bf16.gmra.mxu0 %v617
        %v1273 = vpop.f32.mrf.mxu0
        %v1274 = vadd.f32 %v424, %v1273
        %v1275 = vpop.f32.mrf.mxu0
        %v1276 = vadd.f32 %v424, %v1275
        %1277 = vmatmul.bf16.gmra.mxu0 %v620
        %v1278 = vpop.f32.mrf.mxu0
        %v1279 = vadd.f32 %v424, %v1278
        %v1280 = vpop.f32.mrf.mxu0
        %v1281 = vadd.f32 %v424, %v1280
        %1282 = vmatmul.bf16.gmra.mxu0 %v623
        %v1283 = vpop.f32.mrf.mxu0
        %v1284 = vadd.f32 %v424, %v1283
        %v1285 = vpop.f32.mrf.mxu0
        %v1286 = vadd.f32 %v424, %v1285
        %1287 = vmatmul.bf16.gmra.mxu0 %v626
        %v1288 = vpop.f32.mrf.mxu0
        %v1289 = vadd.f32 %v424, %v1288
        %v1290 = vpop.f32.mrf.mxu0
        %v1291 = vadd.f32 %v424, %v1290
        %1292 = vdwg.mxu0
        %v1293 = vmax.f32 %v645, 0.0
        %v1294 = vmax.f32 %v974, 0.0
        %v1295 = vmax.f32 %v647, 0.0
        %v1296 = vmax.f32 %v976, 0.0
        %v1297 = vmax.f32 %v650, 0.0
        %v1298 = vmax.f32 %v979, 0.0
        %v1299 = vmax.f32 %v652, 0.0
        %v1300 = vmax.f32 %v981, 0.0
        %v1301 = vmax.f32 %v655, 0.0
        %v1302 = vmax.f32 %v984, 0.0
        %v1303 = vmax.f32 %v657, 0.0
        %v1304 = vmax.f32 %v986, 0.0
        %v1305 = vmax.f32 %v660, 0.0
        %v1306 = vmax.f32 %v989, 0.0
        %v1307 = vmax.f32 %v662, 0.0
        %v1308 = vmax.f32 %v991, 0.0
        %v1309 = vmax.f32 %v665, 0.0
        %v1310 = vmax.f32 %v994, 0.0
        %v1311 = vmax.f32 %v667, 0.0
        %v1312 = vmax.f32 %v996, 0.0
        %v1313 = vmax.f32 %v670, 0.0
        %v1314 = vmax.f32 %v999, 0.0
        %v1315 = vmax.f32 %v672, 0.0
        %v1316 = vmax.f32 %v1001, 0.0
        %v1317 = vmax.f32 %v675, 0.0
        %v1318 = vmax.f32 %v1004, 0.0
        %v1319 = vmax.f32 %v677, 0.0
        %v1320 = vmax.f32 %v1006, 0.0
        %v1321 = vmax.f32 %v680, 0.0
        %v1322 = vmax.f32 %v1009, 0.0
        %v1323 = vmax.f32 %v682, 0.0
        %v1324 = vmax.f32 %v1011, 0.0
        %v1325 = vmax.f32 %v685, 0.0
        %v1326 = vmax.f32 %v1014, 0.0
        %v1327 = vmax.f32 %v687, 0.0
        %v1328 = vmax.f32 %v1016, 0.0
        %v1329 = vmax.f32 %v690, 0.0
        %v1330 = vmax.f32 %v1019, 0.0
        %v1331 = vmax.f32 %v692, 0.0
        %v1332 = vmax.f32 %v1021, 0.0
        %v1333 = vmax.f32 %v695, 0.0
        %v1334 = vmax.f32 %v1024, 0.0
        %v1335 = vmax.f32 %v697, 0.0
        %v1336 = vmax.f32 %v1026, 0.0
        %v1337 = vmax.f32 %v700, 0.0
        %v1338 = vmax.f32 %v1029, 0.0
        %v1339 = vmax.f32 %v702, 0.0
        %v1340 = vmax.f32 %v1031, 0.0
        %v1341 = vmax.f32 %v705, 0.0
        %v1342 = vmax.f32 %v1034, 0.0
        %v1343 = vmax.f32 %v707, 0.0
        %v1344 = vmax.f32 %v1036, 0.0
        %v1345 = vmax.f32 %v710, 0.0
        %v1346 = vmax.f32 %v1039, 0.0
        %v1347 = vmax.f32 %v712, 0.0
        %v1348 = vmax.f32 %v1041, 0.0
        %v1349 = vmax.f32 %v715, 0.0
        %v1350 = vmax.f32 %v1044, 0.0
        %v1351 = vmax.f32 %v717, 0.0
        %v1352 = vmax.f32 %v1046, 0.0
        %v1353 = vmax.f32 %v720, 0.0
        %v1354 = vmax.f32 %v1049, 0.0
        %v1355 = vmax.f32 %v722, 0.0
        %v1356 = vmax.f32 %v1051, 0.0
        %v1357 = vmax.f32 %v725, 0.0
        %v1358 = vmax.f32 %v1054, 0.0
        %v1359 = vmax.f32 %v727, 0.0
        %v1360 = vmax.f32 %v1056, 0.0
        %v1361 = vmax.f32 %v730, 0.0
        %v1362 = vmax.f32 %v1059, 0.0
        %v1363 = vmax.f32 %v732, 0.0
        %v1364 = vmax.f32 %v1061, 0.0
        %v1365 = vmax.f32 %v735, 0.0
        %v1366 = vmax.f32 %v1064, 0.0
        %v1367 = vmax.f32 %v737, 0.0
        %v1368 = vmax.f32 %v1066, 0.0
        %v1369 = vmax.f32 %v740, 0.0
        %v1370 = vmax.f32 %v1069, 0.0
        %v1371 = vmax.f32 %v742, 0.0
        %v1372 = vmax.f32 %v1071, 0.0
        %v1373 = vmax.f32 %v745, 0.0
        %v1374 = vmax.f32 %v1074, 0.0
        %v1375 = vmax.f32 %v747, 0.0
        %v1376 = vmax.f32 %v1076, 0.0
        %v1377 = vmax.f32 %v750, 0.0
        %v1378 = vmax.f32 %v1079, 0.0
        %v1379 = vmax.f32 %v752, 0.0
        %v1380 = vmax.f32 %v1081, 0.0
        %v1381 = vmax.f32 %v755, 0.0
        %v1382 = vmax.f32 %v1084, 0.0
        %v1383 = vmax.f32 %v757, 0.0
        %v1384 = vmax.f32 %v1086, 0.0
        %v1385 = vmax.f32 %v760, 0.0
        %v1386 = vmax.f32 %v1089, 0.0
        %v1387 = vmax.f32 %v762, 0.0
        %v1388 = vmax.f32 %v1091, 0.0
        %v1389 = vmax.f32 %v765, 0.0
        %v1390 = vmax.f32 %v1094, 0.0
        %v1391 = vmax.f32 %v767, 0.0
        %v1392 = vmax.f32 %v1096, 0.0
        %v1393 = vmax.f32 %v770, 0.0
        %v1394 = vmax.f32 %v1099, 0.0
        %v1395 = vmax.f32 %v772, 0.0
        %v1396 = vmax.f32 %v1101, 0.0
        %v1397 = vmax.f32 %v775, 0.0
        %v1398 = vmax.f32 %v1104, 0.0
        %v1399 = vmax.f32 %v777, 0.0
        %v1400 = vmax.f32 %v1106, 0.0
        %v1401 = vmax.f32 %v780, 0.0
        %v1402 = vmax.f32 %v1109, 0.0
        %v1403 = vmax.f32 %v782, 0.0
        %v1404 = vmax.f32 %v1111, 0.0
        %v1405 = vmax.f32 %v785, 0.0
        %v1406 = vmax.f32 %v1114, 0.0
        %v1407 = vmax.f32 %v787, 0.0
        %v1408 = vmax.f32 %v1116, 0.0
        %v1409 = vmax.f32 %v790, 0.0
        %v1410 = vmax.f32 %v1119, 0.0
        %v1411 = vmax.f32 %v792, 0.0
        %v1412 = vmax.f32 %v1121, 0.0
        %v1413 = vmax.f32 %v795, 0.0
        %v1414 = vmax.f32 %v1124, 0.0
        %v1415 = vmax.f32 %v797, 0.0
        %v1416 = vmax.f32 %v1126, 0.0
        %v1417 = vmax.f32 %v800, 0.0
        %v1418 = vmax.f32 %v1129, 0.0
        %v1419 = vmax.f32 %v802, 0.0
        %v1420 = vmax.f32 %v1131, 0.0
        %v1421 = vmax.f32 %v805, 0.0
        %v1422 = vmax.f32 %v1134, 0.0
        %v1423 = vmax.f32 %v807, 0.0
        %v1424 = vmax.f32 %v1136, 0.0
        %v1425 = vmax.f32 %v810, 0.0
        %v1426 = vmax.f32 %v1139, 0.0
        %v1427 = vmax.f32 %v812, 0.0
        %v1428 = vmax.f32 %v1141, 0.0
        %v1429 = vmax.f32 %v815, 0.0
        %v1430 = vmax.f32 %v1144, 0.0
        %v1431 = vmax.f32 %v817, 0.0
        %v1432 = vmax.f32 %v1146, 0.0
        %v1433 = vmax.f32 %v820, 0.0
        %v1434 = vmax.f32 %v1149, 0.0
        %v1435 = vmax.f32 %v822, 0.0
        %v1436 = vmax.f32 %v1151, 0.0
        %v1437 = vmax.f32 %v825, 0.0
        %v1438 = vmax.f32 %v1154, 0.0
        %v1439 = vmax.f32 %v827, 0.0
        %v1440 = vmax.f32 %v1156, 0.0
        %v1441 = vmax.f32 %v830, 0.0
        %v1442 = vmax.f32 %v1159, 0.0
        %v1443 = vmax.f32 %v832, 0.0
        %v1444 = vmax.f32 %v1161, 0.0
        %v1445 = vmax.f32 %v835, 0.0
        %v1446 = vmax.f32 %v1164, 0.0
        %v1447 = vmax.f32 %v837, 0.0
        %v1448 = vmax.f32 %v1166, 0.0
        %v1449 = vmax.f32 %v840, 0.0
        %v1450 = vmax.f32 %v1169, 0.0
        %v1451 = vmax.f32 %v842, 0.0
        %v1452 = vmax.f32 %v1171, 0.0
        %v1453 = vmax.f32 %v845, 0.0
        %v1454 = vmax.f32 %v1174, 0.0
        %v1455 = vmax.f32 %v847, 0.0
        %v1456 = vmax.f32 %v1176, 0.0
        %v1457 = vmax.f32 %v850, 0.0
        %v1458 = vmax.f32 %v1179, 0.0
        %v1459 = vmax.f32 %v852, 0.0
        %v1460 = vmax.f32 %v1181, 0.0
        %v1461 = vmax.f32 %v855, 0.0
        %v1462 = vmax.f32 %v1184, 0.0
        %v1463 = vmax.f32 %v857, 0.0
        %v1464 = vmax.f32 %v1186, 0.0
        %v1465 = vmax.f32 %v860, 0.0
        %v1466 = vmax.f32 %v1189, 0.0
        %v1467 = vmax.f32 %v862, 0.0
        %v1468 = vmax.f32 %v1191, 0.0
        %v1469 = vmax.f32 %v865, 0.0
        %v1470 = vmax.f32 %v1194, 0.0
        %v1471 = vmax.f32 %v867, 0.0
        %v1472 = vmax.f32 %v1196, 0.0
        %v1473 = vmax.f32 %v870, 0.0
        %v1474 = vmax.f32 %v1199, 0.0
        %v1475 = vmax.f32 %v872, 0.0
        %v1476 = vmax.f32 %v1201, 0.0
        %v1477 = vmax.f32 %v875, 0.0
        %v1478 = vmax.f32 %v1204, 0.0
        %v1479 = vmax.f32 %v877, 0.0
        %v1480 = vmax.f32 %v1206, 0.0
        %v1481 = vmax.f32 %v880, 0.0
        %v1482 = vmax.f32 %v1209, 0.0
        %v1483 = vmax.f32 %v882, 0.0
        %v1484 = vmax.f32 %v1211, 0.0
        %v1485 = vmax.f32 %v885, 0.0
        %v1486 = vmax.f32 %v1214, 0.0
        %v1487 = vmax.f32 %v887, 0.0
        %v1488 = vmax.f32 %v1216, 0.0
        %v1489 = vmax.f32 %v890, 0.0
        %v1490 = vmax.f32 %v1219, 0.0
        %v1491 = vmax.f32 %v892, 0.0
        %v1492 = vmax.f32 %v1221, 0.0
        %v1493 = vmax.f32 %v895, 0.0
        %v1494 = vmax.f32 %v1224, 0.0
        %v1495 = vmax.f32 %v897, 0.0
        %v1496 = vmax.f32 %v1226, 0.0
        %v1497 = vmax.f32 %v900, 0.0
        %v1498 = vmax.f32 %v1229, 0.0
        %v1499 = vmax.f32 %v902, 0.0
        %v1500 = vmax.f32 %v1231, 0.0
        %v1501 = vmax.f32 %v905, 0.0
        %v1502 = vmax.f32 %v1234, 0.0
        %v1503 = vmax.f32 %v907, 0.0
        %v1504 = vmax.f32 %v1236, 0.0
        %v1505 = vmax.f32 %v910, 0.0
        %v1506 = vmax.f32 %v1239, 0.0
        %v1507 = vmax.f32 %v912, 0.0
        %v1508 = vmax.f32 %v1241, 0.0
        %v1509 = vmax.f32 %v915, 0.0
        %v1510 = vmax.f32 %v1244, 0.0
        %v1511 = vmax.f32 %v917, 0.0
        %v1512 = vmax.f32 %v1246, 0.0
        %v1513 = vmax.f32 %v920, 0.0
        %v1514 = vmax.f32 %v1249, 0.0
        %v1515 = vmax.f32 %v922, 0.0
        %v1516 = vmax.f32 %v1251, 0.0
        %v1517 = vmax.f32 %v925, 0.0
        %v1518 = vmax.f32 %v1254, 0.0
        %v1519 = vmax.f32 %v927, 0.0
        %v1520 = vmax.f32 %v1256, 0.0
        %v1521 = vmax.f32 %v930, 0.0
        %v1522 = vmax.f32 %v1259, 0.0
        %v1523 = vmax.f32 %v932, 0.0
        %v1524 = vmax.f32 %v1261, 0.0
        %v1525 = vmax.f32 %v935, 0.0
        %v1526 = vmax.f32 %v1264, 0.0
        %v1527 = vmax.f32 %v937, 0.0
        %v1528 = vmax.f32 %v1266, 0.0
        %v1529 = vmax.f32 %v940, 0.0
        %v1530 = vmax.f32 %v1269, 0.0
        %v1531 = vmax.f32 %v942, 0.0
        %v1532 = vmax.f32 %v1271, 0.0
        %v1533 = vmax.f32 %v945, 0.0
        %v1534 = vmax.f32 %v1274, 0.0
        %v1535 = vmax.f32 %v947, 0.0
        %v1536 = vmax.f32 %v1276, 0.0
        %v1537 = vmax.f32 %v950, 0.0
        %v1538 = vmax.f32 %v1279, 0.0
        %v1539 = vmax.f32 %v952, 0.0
        %v1540 = vmax.f32 %v1281, 0.0
        %v1541 = vmax.f32 %v955, 0.0
        %v1542 = vmax.f32 %v1284, 0.0
        %v1543 = vmax.f32 %v957, 0.0
        %v1544 = vmax.f32 %v1286, 0.0
        %v1545 = vmax.f32 %v960, 0.0
        %v1546 = vmax.f32 %v1289, 0.0
        %v1547 = vmax.f32 %v962, 0.0
        %v1548 = vmax.f32 %v1291, 0.0
        %v1549 = vpack.c.bf16 %v1295, %v1293
        %v1550 = vpack.c.bf16 %v1296, %v1294
        %v1551 = vpack.c.bf16 %v1299, %v1297
        %v1552 = vpack.c.bf16 %v1300, %v1298
        %v1553 = vpack.c.bf16 %v1303, %v1301
        %v1554 = vpack.c.bf16 %v1304, %v1302
        %v1555 = vpack.c.bf16 %v1307, %v1305
        %v1556 = vpack.c.bf16 %v1308, %v1306
        %v1557 = vpack.c.bf16 %v1311, %v1309
        %v1558 = vpack.c.bf16 %v1312, %v1310
        %v1559 = vpack.c.bf16 %v1315, %v1313
        %v1560 = vpack.c.bf16 %v1316, %v1314
        %v1561 = vpack.c.bf16 %v1319, %v1317
        %v1562 = vpack.c.bf16 %v1320, %v1318
        %v1563 = vpack.c.bf16 %v1323, %v1321
        %v1564 = vpack.c.bf16 %v1324, %v1322
        %v1565 = vpack.c.bf16 %v1327, %v1325
        %v1566 = vpack.c.bf16 %v1328, %v1326
        %v1567 = vpack.c.bf16 %v1331, %v1329
        %v1568 = vpack.c.bf16 %v1332, %v1330
        %v1569 = vpack.c.bf16 %v1335, %v1333
        %v1570 = vpack.c.bf16 %v1336, %v1334
        %v1571 = vpack.c.bf16 %v1339, %v1337
        %v1572 = vpack.c.bf16 %v1340, %v1338
        %v1573 = vpack.c.bf16 %v1343, %v1341
        %v1574 = vpack.c.bf16 %v1344, %v1342
        %v1575 = vpack.c.bf16 %v1347, %v1345
        %v1576 = vpack.c.bf16 %v1348, %v1346
        %v1577 = vpack.c.bf16 %v1351, %v1349
        %v1578 = vpack.c.bf16 %v1352, %v1350
        %v1579 = vpack.c.bf16 %v1355, %v1353
        %v1580 = vpack.c.bf16 %v1356, %v1354
        %v1581 = vpack.c.bf16 %v1359, %v1357
        %v1582 = vpack.c.bf16 %v1360, %v1358
        %v1583 = vpack.c.bf16 %v1363, %v1361
        %v1584 = vpack.c.bf16 %v1364, %v1362
        %v1585 = vpack.c.bf16 %v1367, %v1365
        %v1586 = vpack.c.bf16 %v1368, %v1366
        %v1587 = vpack.c.bf16 %v1371, %v1369
        %v1588 = vpack.c.bf16 %v1372, %v1370
        %v1589 = vpack.c.bf16 %v1375, %v1373
        %v1590 = vpack.c.bf16 %v1376, %v1374
        %v1591 = vpack.c.bf16 %v1379, %v1377
        %v1592 = vpack.c.bf16 %v1380, %v1378
        %v1593 = vpack.c.bf16 %v1383, %v1381
        %v1594 = vpack.c.bf16 %v1384, %v1382
        %v1595 = vpack.c.bf16 %v1387, %v1385
        %v1596 = vpack.c.bf16 %v1388, %v1386
        %v1597 = vpack.c.bf16 %v1391, %v1389
        %v1598 = vpack.c.bf16 %v1392, %v1390
        %v1599 = vpack.c.bf16 %v1395, %v1393
        %v1600 = vpack.c.bf16 %v1396, %v1394
        %v1601 = vpack.c.bf16 %v1399, %v1397
        %v1602 = vpack.c.bf16 %v1400, %v1398
        %v1603 = vpack.c.bf16 %v1403, %v1401
        %v1604 = vpack.c.bf16 %v1404, %v1402
        %v1605 = vpack.c.bf16 %v1407, %v1405
        %v1606 = vpack.c.bf16 %v1408, %v1406
        %v1607 = vpack.c.bf16 %v1411, %v1409
        %v1608 = vpack.c.bf16 %v1412, %v1410
        %v1609 = vpack.c.bf16 %v1415, %v1413
        %v1610 = vpack.c.bf16 %v1416, %v1414
        %v1611 = vpack.c.bf16 %v1419, %v1417
        %v1612 = vpack.c.bf16 %v1420, %v1418
        %v1613 = vpack.c.bf16 %v1423, %v1421
        %v1614 = vpack.c.bf16 %v1424, %v1422
        %v1615 = vpack.c.bf16 %v1427, %v1425
        %v1616 = vpack.c.bf16 %v1428, %v1426
        %v1617 = vpack.c.bf16 %v1431, %v1429
        %v1618 = vpack.c.bf16 %v1432, %v1430
        %v1619 = vpack.c.bf16 %v1435, %v1433
        %v1620 = vpack.c.bf16 %v1436, %v1434
        %v1621 = vpack.c.bf16 %v1439, %v1437
        %v1622 = vpack.c.bf16 %v1440, %v1438
        %v1623 = vpack.c.bf16 %v1443, %v1441
        %v1624 = vpack.c.bf16 %v1444, %v1442
        %v1625 = vpack.c.bf16 %v1447, %v1445
        %v1626 = vpack.c.bf16 %v1448, %v1446
        %v1627 = vpack.c.bf16 %v1451, %v1449
        %v1628 = vpack.c.bf16 %v1452, %v1450
        %v1629 = vpack.c.bf16 %v1455, %v1453
        %v1630 = vpack.c.bf16 %v1456, %v1454
        %v1631 = vpack.c.bf16 %v1459, %v1457
        %v1632 = vpack.c.bf16 %v1460, %v1458
        %v1633 = vpack.c.bf16 %v1463, %v1461
        %v1634 = vpack.c.bf16 %v1464, %v1462
        %v1635 = vpack.c.bf16 %v1467, %v1465
        %v1636 = vpack.c.bf16 %v1468, %v1466
        %v1637 = vpack.c.bf16 %v1471, %v1469
        %v1638 = vpack.c.bf16 %v1472, %v1470
        %v1639 = vpack.c.bf16 %v1475, %v1473
        %v1640 = vpack.c.bf16 %v1476, %v1474
        %v1641 = vpack.c.bf16 %v1479, %v1477
        %v1642 = vpack.c.bf16 %v1480, %v1478
        %v1643 = vpack.c.bf16 %v1483, %v1481
        %v1644 = vpack.c.bf16 %v1484, %v1482
        %v1645 = vpack.c.bf16 %v1487, %v1485
        %v1646 = vpack.c.bf16 %v1488, %v1486
        %v1647 = vpack.c.bf16 %v1491, %v1489
        %v1648 = vpack.c.bf16 %v1492, %v1490
        %v1649 = vpack.c.bf16 %v1495, %v1493
        %v1650 = vpack.c.bf16 %v1496, %v1494
        %v1651 = vpack.c.bf16 %v1499, %v1497
        %v1652 = vpack.c.bf16 %v1500, %v1498
        %v1653 = vpack.c.bf16 %v1503, %v1501
        %v1654 = vpack.c.bf16 %v1504, %v1502
        %v1655 = vpack.c.bf16 %v1507, %v1505
        %v1656 = vpack.c.bf16 %v1508, %v1506
        %v1657 = vpack.c.bf16 %v1511, %v1509
        %v1658 = vpack.c.bf16 %v1512, %v1510
        %v1659 = vpack.c.bf16 %v1515, %v1513
        %v1660 = vpack.c.bf16 %v1516, %v1514
        %v1661 = vpack.c.bf16 %v1519, %v1517
        %v1662 = vpack.c.bf16 %v1520, %v1518
        %v1663 = vpack.c.bf16 %v1523, %v1521
        %v1664 = vpack.c.bf16 %v1524, %v1522
        %v1665 = vpack.c.bf16 %v1527, %v1525
        %v1666 = vpack.c.bf16 %v1528, %v1526
        %v1667 = vpack.c.bf16 %v1531, %v1529
        %v1668 = vpack.c.bf16 %v1532, %v1530
        %v1669 = vpack.c.bf16 %v1535, %v1533
        %v1670 = vpack.c.bf16 %v1536, %v1534
        %v1671 = vpack.c.bf16 %v1539, %v1537
        %v1672 = vpack.c.bf16 %v1540, %v1538
        %v1673 = vpack.c.bf16 %v1543, %v1541
        %v1674 = vpack.c.bf16 %v1544, %v1542
        %v1675 = vpack.c.bf16 %v1547, %v1545
        %v1676 = vpack.c.bf16 %v1548, %v1546
        %v1677 = vld [vmem:[%s3] sm:$0xf]
        %v1678 = vld [vmem:[%s3 + $0x4] sm:$0xf]
        %v1679 = vld [vmem:[%s3 + $0x8] sm:$0xf]
        %v1680 = vld [vmem:[%s3 + $0xc] sm:$0xf]
        %v1681 = vld [vmem:[%s3 + $0x10] sm:$0xf]
        %v1682 = vld [vmem:[%s3 + $0x14] sm:$0xf]
        %v1683 = vld [vmem:[%s3 + $0x18] sm:$0xf]
        %v1684 = vld [vmem:[%s3 + $0x1c] sm:$0xf]
        %v1685 = vld [vmem:[%s3 + $0x20] sm:$0xf]
        %v1686 = vld [vmem:[%s3 + $0x24] sm:$0xf]
        %v1687 = vld [vmem:[%s3 + $0x28] sm:$0xf]
        %v1688 = vld [vmem:[%s3 + $0x2c] sm:$0xf]
        %v1689 = vld [vmem:[%s3 + $0x30] sm:$0xf]
        %v1690 = vld [vmem:[%s3 + $0x34] sm:$0xf]
        %v1691 = vld [vmem:[%s3 + $0x38] sm:$0xf]
        %v1692 = vld [vmem:[%s3 + $0x3c] sm:$0xf]
        %v1693 = vld [vmem:[%s3 + $0x40] sm:$0xf]
        %v1694 = vld [vmem:[%s3 + $0x44] sm:$0xf]
        %v1695 = vld [vmem:[%s3 + $0x48] sm:$0xf]
        %v1696 = vld [vmem:[%s3 + $0x4c] sm:$0xf]
        %v1697 = vld [vmem:[%s3 + $0x50] sm:$0xf]
        %v1698 = vld [vmem:[%s3 + $0x54] sm:$0xf]
        %v1699 = vld [vmem:[%s3 + $0x58] sm:$0xf]
        %v1700 = vld [vmem:[%s3 + $0x5c] sm:$0xf]
        %v1701 = vld [vmem:[%s4] sm:$0x1]
        %v1703 = vperm.slane %v1701, 0
        %v1729 = vunpack.c.l.b16 %v1677
        %v1730 = vunpack.c.l.b16 %v1678
        %v1731 = vunpack.c.l.b16 %v1679
        %v1732 = vunpack.c.l.b16 %v1680
        %v1733 = vunpack.c.l.b16 %v1681
        %v1734 = vunpack.c.l.b16 %v1682
        %v1735 = vunpack.c.l.b16 %v1683
        %v1736 = vunpack.c.l.b16 %v1684
        %v1737 = vunpack.c.l.b16 %v1685
        %v1738 = vunpack.c.l.b16 %v1686
        %v1739 = vunpack.c.l.b16 %v1687
        %v1740 = vunpack.c.l.b16 %v1688
        %v1741 = vunpack.c.l.b16 %v1689
        %v1742 = vunpack.c.l.b16 %v1690
        %v1743 = vunpack.c.l.b16 %v1691
        %v1744 = vunpack.c.l.b16 %v1692
        %v1745 = vunpack.c.l.b16 %v1693
        %v1746 = vunpack.c.l.b16 %v1694
        %v1747 = vunpack.c.l.b16 %v1695
        %v1748 = vunpack.c.l.b16 %v1696
        %v1749 = vunpack.c.l.b16 %v1697
        %v1750 = vunpack.c.l.b16 %v1698
        %v1751 = vunpack.c.l.b16 %v1699
        %v1752 = vunpack.c.l.b16 %v1700
        %v1753 = vpack.c.b16 %v1730, %v1729
        %v1754 = vpack.c.b16 %v1732, %v1731
        %v1755 = vpack.c.b16 %v1734, %v1733
        %v1756 = vpack.c.b16 %v1736, %v1735
        %v1757 = vpack.c.b16 %v1738, %v1737
        %v1758 = vpack.c.b16 %v1740, %v1739
        %v1759 = vpack.c.b16 %v1742, %v1741
        %v1760 = vpack.c.b16 %v1744, %v1743
        %v1761 = vpack.c.b16 %v1746, %v1745
        %v1762 = vpack.c.b16 %v1748, %v1747
        %v1763 = vpack.c.b16 %v1750, %v1749
        %v1764 = vpack.c.b16 %v1752, %v1751
        %vm1777 = vcmask 523264
        %v1779 = vsel %vm1777, %v1550, 0
        %v1782 = vsel %vm1777, %v1552, 0
        %v1785 = vsel %vm1777, %v1554, 0
        %v1788 = vsel %vm1777, %v1556, 0
        %v1791 = vsel %vm1777, %v1558, 0
        %v1794 = vsel %vm1777, %v1560, 0
        %v1797 = vsel %vm1777, %v1562, 0
        %v1800 = vsel %vm1777, %v1564, 0
        %v1803 = vsel %vm1777, %v1566, 0
        %v1806 = vsel %vm1777, %v1568, 0
        %v1809 = vsel %vm1777, %v1570, 0
        %v1812 = vsel %vm1777, %v1572, 0
        %v1815 = vsel %vm1777, %v1574, 0
        %v1818 = vsel %vm1777, %v1576, 0
        %v1821 = vsel %vm1777, %v1578, 0
        %v1824 = vsel %vm1777, %v1580, 0
        %v1827 = vsel %vm1777, %v1582, 0
        %v1830 = vsel %vm1777, %v1584, 0
        %v1833 = vsel %vm1777, %v1586, 0
        %v1836 = vsel %vm1777, %v1588, 0
        %v1839 = vsel %vm1777, %v1590, 0
        %v1842 = vsel %vm1777, %v1592, 0
        %v1845 = vsel %vm1777, %v1594, 0
        %v1848 = vsel %vm1777, %v1596, 0
        %v1851 = vsel %vm1777, %v1598, 0
        %v1854 = vsel %vm1777, %v1600, 0
        %v1857 = vsel %vm1777, %v1602, 0
        %v1860 = vsel %vm1777, %v1604, 0
        %v1863 = vsel %vm1777, %v1606, 0
        %v1866 = vsel %vm1777, %v1608, 0
        %v1869 = vsel %vm1777, %v1610, 0
        %v1872 = vsel %vm1777, %v1612, 0
        %v1875 = vsel %vm1777, %v1614, 0
        %v1878 = vsel %vm1777, %v1616, 0
        %v1881 = vsel %vm1777, %v1618, 0
        %v1884 = vsel %vm1777, %v1620, 0
        %v1887 = vsel %vm1777, %v1622, 0
        %v1890 = vsel %vm1777, %v1624, 0
        %v1893 = vsel %vm1777, %v1626, 0
        %v1896 = vsel %vm1777, %v1628, 0
        %v1899 = vsel %vm1777, %v1630, 0
        %v1902 = vsel %vm1777, %v1632, 0
        %v1905 = vsel %vm1777, %v1634, 0
        %v1908 = vsel %vm1777, %v1636, 0
        %v1911 = vsel %vm1777, %v1638, 0
        %v1914 = vsel %vm1777, %v1640, 0
        %v1917 = vsel %vm1777, %v1642, 0
        %v1920 = vsel %vm1777, %v1644, 0
        %v1923 = vsel %vm1777, %v1646, 0
        %v1926 = vsel %vm1777, %v1648, 0
        %v1929 = vsel %vm1777, %v1650, 0
        %v1932 = vsel %vm1777, %v1652, 0
        %v1935 = vsel %vm1777, %v1654, 0
        %v1938 = vsel %vm1777, %v1656, 0
        %v1941 = vsel %vm1777, %v1658, 0
        %v1944 = vsel %vm1777, %v1660, 0
        %v1947 = vsel %vm1777, %v1662, 0
        %v1950 = vsel %vm1777, %v1664, 0
        %v1953 = vsel %vm1777, %v1666, 0
        %v1956 = vsel %vm1777, %v1668, 0
        %v1959 = vsel %vm1777, %v1670, 0
        %v1962 = vsel %vm1777, %v1672, 0
        %v1965 = vsel %vm1777, %v1674, 0
        %v1968 = vsel %vm1777, %v1676, 0
        %1970 = vmatpush.bf16.msra.mxu0 %v1760
        %1971 = vmatpush.bf16.msra.mxu0 %v1759
        %1972 = vmatpush.bf16.msra.mxu0 %v1758
        %1973 = vmatpush.bf16.msra.mxu0 %v1757
        %1974 = vmatpush.bf16.msra.mxu0 %v1756
        %1975 = vmatpush.bf16.msra.mxu0 %v1755
        %1976 = vmatpush.bf16.msra.mxu0 %v1754
        %1977 = vmatpush.bf16.msra.mxu0 %v1753
        %1978 = vmatmul.bf16.gmra.mxu0 %v1549
        %v1979 = vpop.f32.mrf.mxu0
        %v1980 = vadd.f32 %v1703, %v1979
        %v1981 = vpop.f32.mrf.mxu0
        %v1982 = vadd.f32 %v1703, %v1981
        %1983 = vmatmul.bf16.gmra.mxu0 %v1551
        %v1984 = vpop.f32.mrf.mxu0
        %v1985 = vadd.f32 %v1703, %v1984
        %v1986 = vpop.f32.mrf.mxu0
        %v1987 = vadd.f32 %v1703, %v1986
        %1988 = vmatmul.bf16.gmra.mxu0 %v1553
        %v1989 = vpop.f32.mrf.mxu0
        %v1990 = vadd.f32 %v1703, %v1989
        %v1991 = vpop.f32.mrf.mxu0
        %v1992 = vadd.f32 %v1703, %v1991
        %1993 = vmatmul.bf16.gmra.mxu0 %v1555
        %v1994 = vpop.f32.mrf.mxu0
        %v1995 = vadd.f32 %v1703, %v1994
        %v1996 = vpop.f32.mrf.mxu0
        %v1997 = vadd.f32 %v1703, %v1996
        %1998 = vmatmul.bf16.gmra.mxu0 %v1557
        %v1999 = vpop.f32.mrf.mxu0
        %v2000 = vadd.f32 %v1703, %v1999
        %v2001 = vpop.f32.mrf.mxu0
        %v2002 = vadd.f32 %v1703, %v2001
        %2003 = vmatmul.bf16.gmra.mxu0 %v1559
        %v2004 = vpop.f32.mrf.mxu0
        %v2005 = vadd.f32 %v1703, %v2004
        %v2006 = vpop.f32.mrf.mxu0
        %v2007 = vadd.f32 %v1703, %v2006
        %2008 = vmatmul.bf16.gmra.mxu0 %v1561
        %v2009 = vpop.f32.mrf.mxu0
        %v2010 = vadd.f32 %v1703, %v2009
        %v2011 = vpop.f32.mrf.mxu0
        %v2012 = vadd.f32 %v1703, %v2011
        %2013 = vmatmul.bf16.gmra.mxu0 %v1563
        %v2014 = vpop.f32.mrf.mxu0
        %v2015 = vadd.f32 %v1703, %v2014
        %v2016 = vpop.f32.mrf.mxu0
        %v2017 = vadd.f32 %v1703, %v2016
        %2018 = vmatmul.bf16.gmra.mxu0 %v1565
        %v2019 = vpop.f32.mrf.mxu0
        %v2020 = vadd.f32 %v1703, %v2019
        %v2021 = vpop.f32.mrf.mxu0
        %v2022 = vadd.f32 %v1703, %v2021
        %2023 = vmatmul.bf16.gmra.mxu0 %v1567
        %v2024 = vpop.f32.mrf.mxu0
        %v2025 = vadd.f32 %v1703, %v2024
        %v2026 = vpop.f32.mrf.mxu0
        %v2027 = vadd.f32 %v1703, %v2026
        %2028 = vmatmul.bf16.gmra.mxu0 %v1569
        %v2029 = vpop.f32.mrf.mxu0
        %v2030 = vadd.f32 %v1703, %v2029
        %v2031 = vpop.f32.mrf.mxu0
        %v2032 = vadd.f32 %v1703, %v2031
        %2033 = vmatmul.bf16.gmra.mxu0 %v1571
        %v2034 = vpop.f32.mrf.mxu0
        %v2035 = vadd.f32 %v1703, %v2034
        %v2036 = vpop.f32.mrf.mxu0
        %v2037 = vadd.f32 %v1703, %v2036
        %2038 = vmatmul.bf16.gmra.mxu0 %v1573
        %v2039 = vpop.f32.mrf.mxu0
        %v2040 = vadd.f32 %v1703, %v2039
        %v2041 = vpop.f32.mrf.mxu0
        %v2042 = vadd.f32 %v1703, %v2041
        %2043 = vmatmul.bf16.gmra.mxu0 %v1575
        %v2044 = vpop.f32.mrf.mxu0
        %v2045 = vadd.f32 %v1703, %v2044
        %v2046 = vpop.f32.mrf.mxu0
        %v2047 = vadd.f32 %v1703, %v2046
        %2048 = vmatmul.bf16.gmra.mxu0 %v1577
        %v2049 = vpop.f32.mrf.mxu0
        %v2050 = vadd.f32 %v1703, %v2049
        %v2051 = vpop.f32.mrf.mxu0
        %v2052 = vadd.f32 %v1703, %v2051
        %2053 = vmatmul.bf16.gmra.mxu0 %v1579
        %v2054 = vpop.f32.mrf.mxu0
        %v2055 = vadd.f32 %v1703, %v2054
        %v2056 = vpop.f32.mrf.mxu0
        %v2057 = vadd.f32 %v1703, %v2056
        %2058 = vmatmul.bf16.gmra.mxu0 %v1581
        %v2059 = vpop.f32.mrf.mxu0
        %v2060 = vadd.f32 %v1703, %v2059
        %v2061 = vpop.f32.mrf.mxu0
        %v2062 = vadd.f32 %v1703, %v2061
        %2063 = vmatmul.bf16.gmra.mxu0 %v1583
        %v2064 = vpop.f32.mrf.mxu0
        %v2065 = vadd.f32 %v1703, %v2064
        %v2066 = vpop.f32.mrf.mxu0
        %v2067 = vadd.f32 %v1703, %v2066
        %2068 = vmatmul.bf16.gmra.mxu0 %v1585
        %v2069 = vpop.f32.mrf.mxu0
        %v2070 = vadd.f32 %v1703, %v2069
        %v2071 = vpop.f32.mrf.mxu0
        %v2072 = vadd.f32 %v1703, %v2071
        %2073 = vmatmul.bf16.gmra.mxu0 %v1587
        %v2074 = vpop.f32.mrf.mxu0
        %v2075 = vadd.f32 %v1703, %v2074
        %v2076 = vpop.f32.mrf.mxu0
        %v2077 = vadd.f32 %v1703, %v2076
        %2078 = vmatmul.bf16.gmra.mxu0 %v1589
        %v2079 = vpop.f32.mrf.mxu0
        %v2080 = vadd.f32 %v1703, %v2079
        %v2081 = vpop.f32.mrf.mxu0
        %v2082 = vadd.f32 %v1703, %v2081
        %2083 = vmatmul.bf16.gmra.mxu0 %v1591
        %v2084 = vpop.f32.mrf.mxu0
        %v2085 = vadd.f32 %v1703, %v2084
        %v2086 = vpop.f32.mrf.mxu0
        %v2087 = vadd.f32 %v1703, %v2086
        %2088 = vmatmul.bf16.gmra.mxu0 %v1593
        %v2089 = vpop.f32.mrf.mxu0
        %v2090 = vadd.f32 %v1703, %v2089
        %v2091 = vpop.f32.mrf.mxu0
        %v2092 = vadd.f32 %v1703, %v2091
        %2093 = vmatmul.bf16.gmra.mxu0 %v1595
        %v2094 = vpop.f32.mrf.mxu0
        %v2095 = vadd.f32 %v1703, %v2094
        %v2096 = vpop.f32.mrf.mxu0
        %v2097 = vadd.f32 %v1703, %v2096
        %2098 = vmatmul.bf16.gmra.mxu0 %v1597
        %v2099 = vpop.f32.mrf.mxu0
        %v2100 = vadd.f32 %v1703, %v2099
        %v2101 = vpop.f32.mrf.mxu0
        %v2102 = vadd.f32 %v1703, %v2101
        %2103 = vmatmul.bf16.gmra.mxu0 %v1599
        %v2104 = vpop.f32.mrf.mxu0
        %v2105 = vadd.f32 %v1703, %v2104
        %v2106 = vpop.f32.mrf.mxu0
        %v2107 = vadd.f32 %v1703, %v2106
        %2108 = vmatmul.bf16.gmra.mxu0 %v1601
        %v2109 = vpop.f32.mrf.mxu0
        %v2110 = vadd.f32 %v1703, %v2109
        %v2111 = vpop.f32.mrf.mxu0
        %v2112 = vadd.f32 %v1703, %v2111
        %2113 = vmatmul.bf16.gmra.mxu0 %v1603
        %v2114 = vpop.f32.mrf.mxu0
        %v2115 = vadd.f32 %v1703, %v2114
        %v2116 = vpop.f32.mrf.mxu0
        %v2117 = vadd.f32 %v1703, %v2116
        %2118 = vmatmul.bf16.gmra.mxu0 %v1605
        %v2119 = vpop.f32.mrf.mxu0
        %v2120 = vadd.f32 %v1703, %v2119
        %v2121 = vpop.f32.mrf.mxu0
        %v2122 = vadd.f32 %v1703, %v2121
        %2123 = vmatmul.bf16.gmra.mxu0 %v1607
        %v2124 = vpop.f32.mrf.mxu0
        %v2125 = vadd.f32 %v1703, %v2124
        %v2126 = vpop.f32.mrf.mxu0
        %v2127 = vadd.f32 %v1703, %v2126
        %2128 = vmatmul.bf16.gmra.mxu0 %v1609
        %v2129 = vpop.f32.mrf.mxu0
        %v2130 = vadd.f32 %v1703, %v2129
        %v2131 = vpop.f32.mrf.mxu0
        %v2132 = vadd.f32 %v1703, %v2131
        %2133 = vmatmul.bf16.gmra.mxu0 %v1611
        %v2134 = vpop.f32.mrf.mxu0
        %v2135 = vadd.f32 %v1703, %v2134
        %v2136 = vpop.f32.mrf.mxu0
        %v2137 = vadd.f32 %v1703, %v2136
        %2138 = vmatmul.bf16.gmra.mxu0 %v1613
        %v2139 = vpop.f32.mrf.mxu0
        %v2140 = vadd.f32 %v1703, %v2139
        %v2141 = vpop.f32.mrf.mxu0
        %v2142 = vadd.f32 %v1703, %v2141
        %2143 = vmatmul.bf16.gmra.mxu0 %v1615
        %v2144 = vpop.f32.mrf.mxu0
        %v2145 = vadd.f32 %v1703, %v2144
        %v2146 = vpop.f32.mrf.mxu0
        %v2147 = vadd.f32 %v1703, %v2146
        %2148 = vmatmul.bf16.gmra.mxu0 %v1617
        %v2149 = vpop.f32.mrf.mxu0
        %v2150 = vadd.f32 %v1703, %v2149
        %v2151 = vpop.f32.mrf.mxu0
        %v2152 = vadd.f32 %v1703, %v2151
        %2153 = vmatmul.bf16.gmra.mxu0 %v1619
        %v2154 = vpop.f32.mrf.mxu0
        %v2155 = vadd.f32 %v1703, %v2154
        %v2156 = vpop.f32.mrf.mxu0
        %v2157 = vadd.f32 %v1703, %v2156
        %2158 = vmatmul.bf16.gmra.mxu0 %v1621
        %v2159 = vpop.f32.mrf.mxu0
        %v2160 = vadd.f32 %v1703, %v2159
        %v2161 = vpop.f32.mrf.mxu0
        %v2162 = vadd.f32 %v1703, %v2161
        %2163 = vmatmul.bf16.gmra.mxu0 %v1623
        %v2164 = vpop.f32.mrf.mxu0
        %v2165 = vadd.f32 %v1703, %v2164
        %v2166 = vpop.f32.mrf.mxu0
        %v2167 = vadd.f32 %v1703, %v2166
        %2168 = vmatmul.bf16.gmra.mxu0 %v1625
        %v2169 = vpop.f32.mrf.mxu0
        %v2170 = vadd.f32 %v1703, %v2169
        %v2171 = vpop.f32.mrf.mxu0
        %v2172 = vadd.f32 %v1703, %v2171
        %2173 = vmatmul.bf16.gmra.mxu0 %v1627
        %v2174 = vpop.f32.mrf.mxu0
        %v2175 = vadd.f32 %v1703, %v2174
        %v2176 = vpop.f32.mrf.mxu0
        %v2177 = vadd.f32 %v1703, %v2176
        %2178 = vmatmul.bf16.gmra.mxu0 %v1629
        %v2179 = vpop.f32.mrf.mxu0
        %v2180 = vadd.f32 %v1703, %v2179
        %v2181 = vpop.f32.mrf.mxu0
        %v2182 = vadd.f32 %v1703, %v2181
        %2183 = vmatmul.bf16.gmra.mxu0 %v1631
        %v2184 = vpop.f32.mrf.mxu0
        %v2185 = vadd.f32 %v1703, %v2184
        %v2186 = vpop.f32.mrf.mxu0
        %v2187 = vadd.f32 %v1703, %v2186
        %2188 = vmatmul.bf16.gmra.mxu0 %v1633
        %v2189 = vpop.f32.mrf.mxu0
        %v2190 = vadd.f32 %v1703, %v2189
        %v2191 = vpop.f32.mrf.mxu0
        %v2192 = vadd.f32 %v1703, %v2191
        %2193 = vmatmul.bf16.gmra.mxu0 %v1635
        %v2194 = vpop.f32.mrf.mxu0
        %v2195 = vadd.f32 %v1703, %v2194
        %v2196 = vpop.f32.mrf.mxu0
        %v2197 = vadd.f32 %v1703, %v2196
        %2198 = vmatmul.bf16.gmra.mxu0 %v1637
        %v2199 = vpop.f32.mrf.mxu0
        %v2200 = vadd.f32 %v1703, %v2199
        %v2201 = vpop.f32.mrf.mxu0
        %v2202 = vadd.f32 %v1703, %v2201
        %2203 = vmatmul.bf16.gmra.mxu0 %v1639
        %v2204 = vpop.f32.mrf.mxu0
        %v2205 = vadd.f32 %v1703, %v2204
        %v2206 = vpop.f32.mrf.mxu0
        %v2207 = vadd.f32 %v1703, %v2206
        %2208 = vmatmul.bf16.gmra.mxu0 %v1641
        %v2209 = vpop.f32.mrf.mxu0
        %v2210 = vadd.f32 %v1703, %v2209
        %v2211 = vpop.f32.mrf.mxu0
        %v2212 = vadd.f32 %v1703, %v2211
        %2213 = vmatmul.bf16.gmra.mxu0 %v1643
        %v2214 = vpop.f32.mrf.mxu0
        %v2215 = vadd.f32 %v1703, %v2214
        %v2216 = vpop.f32.mrf.mxu0
        %v2217 = vadd.f32 %v1703, %v2216
        %2218 = vmatmul.bf16.gmra.mxu0 %v1645
        %v2219 = vpop.f32.mrf.mxu0
        %v2220 = vadd.f32 %v1703, %v2219
        %v2221 = vpop.f32.mrf.mxu0
        %v2222 = vadd.f32 %v1703, %v2221
        %2223 = vmatmul.bf16.gmra.mxu0 %v1647
        %v2224 = vpop.f32.mrf.mxu0
        %v2225 = vadd.f32 %v1703, %v2224
        %v2226 = vpop.f32.mrf.mxu0
        %v2227 = vadd.f32 %v1703, %v2226
        %2228 = vmatmul.bf16.gmra.mxu0 %v1649
        %v2229 = vpop.f32.mrf.mxu0
        %v2230 = vadd.f32 %v1703, %v2229
        %v2231 = vpop.f32.mrf.mxu0
        %v2232 = vadd.f32 %v1703, %v2231
        %2233 = vmatmul.bf16.gmra.mxu0 %v1651
        %v2234 = vpop.f32.mrf.mxu0
        %v2235 = vadd.f32 %v1703, %v2234
        %v2236 = vpop.f32.mrf.mxu0
        %v2237 = vadd.f32 %v1703, %v2236
        %2238 = vmatmul.bf16.gmra.mxu0 %v1653
        %v2239 = vpop.f32.mrf.mxu0
        %v2240 = vadd.f32 %v1703, %v2239
        %v2241 = vpop.f32.mrf.mxu0
        %v2242 = vadd.f32 %v1703, %v2241
        %2243 = vmatmul.bf16.gmra.mxu0 %v1655
        %v2244 = vpop.f32.mrf.mxu0
        %v2245 = vadd.f32 %v1703, %v2244
        %v2246 = vpop.f32.mrf.mxu0
        %v2247 = vadd.f32 %v1703, %v2246
        %2248 = vmatmul.bf16.gmra.mxu0 %v1657
        %v2249 = vpop.f32.mrf.mxu0
        %v2250 = vadd.f32 %v1703, %v2249
        %v2251 = vpop.f32.mrf.mxu0
        %v2252 = vadd.f32 %v1703, %v2251
        %2253 = vmatmul.bf16.gmra.mxu0 %v1659
        %v2254 = vpop.f32.mrf.mxu0
        %v2255 = vadd.f32 %v1703, %v2254
        %v2256 = vpop.f32.mrf.mxu0
        %v2257 = vadd.f32 %v1703, %v2256
        %2258 = vmatmul.bf16.gmra.mxu0 %v1661
        %v2259 = vpop.f32.mrf.mxu0
        %v2260 = vadd.f32 %v1703, %v2259
        %v2261 = vpop.f32.mrf.mxu0
        %v2262 = vadd.f32 %v1703, %v2261
        %2263 = vmatmul.bf16.gmra.mxu0 %v1663
        %v2264 = vpop.f32.mrf.mxu0
        %v2265 = vadd.f32 %v1703, %v2264
        %v2266 = vpop.f32.mrf.mxu0
        %v2267 = vadd.f32 %v1703, %v2266
        %2268 = vmatmul.bf16.gmra.mxu0 %v1665
        %v2269 = vpop.f32.mrf.mxu0
        %v2270 = vadd.f32 %v1703, %v2269
        %v2271 = vpop.f32.mrf.mxu0
        %v2272 = vadd.f32 %v1703, %v2271
        %2273 = vmatmul.bf16.gmra.mxu0 %v1667
        %v2274 = vpop.f32.mrf.mxu0
        %v2275 = vadd.f32 %v1703, %v2274
        %v2276 = vpop.f32.mrf.mxu0
        %v2277 = vadd.f32 %v1703, %v2276
        %2278 = vmatmul.bf16.gmra.mxu0 %v1669
        %v2279 = vpop.f32.mrf.mxu0
        %v2280 = vadd.f32 %v1703, %v2279
        %v2281 = vpop.f32.mrf.mxu0
        %v2282 = vadd.f32 %v1703, %v2281
        %2283 = vmatmul.bf16.gmra.mxu0 %v1671
        %v2284 = vpop.f32.mrf.mxu0
        %v2285 = vadd.f32 %v1703, %v2284
        %v2286 = vpop.f32.mrf.mxu0
        %v2287 = vadd.f32 %v1703, %v2286
        %2288 = vmatmul.bf16.gmra.mxu0 %v1673
        %v2289 = vpop.f32.mrf.mxu0
        %v2290 = vadd.f32 %v1703, %v2289
        %v2291 = vpop.f32.mrf.mxu0
        %v2292 = vadd.f32 %v1703, %v2291
        %2293 = vmatmul.bf16.gmra.mxu0 %v1675
        %v2294 = vpop.f32.mrf.mxu0
        %v2295 = vadd.f32 %v1703, %v2294
        %v2296 = vpop.f32.mrf.mxu0
        %v2297 = vadd.f32 %v1703, %v2296
        %2298 = vdwg.mxu0
        %2299 = vmatpush.bf16.msra.mxu0 0
        %2300 = vmatpush.bf16.msra.mxu0 0
        %2301 = vmatpush.bf16.msra.mxu0 0
        %2302 = vmatpush.bf16.msra.mxu0 0
        %2303 = vmatpush.bf16.msra.mxu0 %v1764
        %2304 = vmatpush.bf16.msra.mxu0 %v1763
        %2305 = vmatpush.bf16.msra.mxu0 %v1762
        %2306 = vmatpush.bf16.msra.mxu0 %v1761
        %2307 = vmatmul.bf16.gmra.mxu0 %v1779
        %v2308 = vpop.f32.mrf.mxu0
        %v2309 = vadd.f32 %v1980, %v2308
        %v2310 = vpop.f32.mrf.mxu0
        %v2311 = vadd.f32 %v1982, %v2310
        %2312 = vmatmul.bf16.gmra.mxu0 %v1782
        %v2313 = vpop.f32.mrf.mxu0
        %v2314 = vadd.f32 %v1985, %v2313
        %v2315 = vpop.f32.mrf.mxu0
        %v2316 = vadd.f32 %v1987, %v2315
        %2317 = vmatmul.bf16.gmra.mxu0 %v1785
        %v2318 = vpop.f32.mrf.mxu0
        %v2319 = vadd.f32 %v1990, %v2318
        %v2320 = vpop.f32.mrf.mxu0
        %v2321 = vadd.f32 %v1992, %v2320
        %2322 = vmatmul.bf16.gmra.mxu0 %v1788
        %v2323 = vpop.f32.mrf.mxu0
        %v2324 = vadd.f32 %v1995, %v2323
        %v2325 = vpop.f32.mrf.mxu0
        %v2326 = vadd.f32 %v1997, %v2325
        %2327 = vmatmul.bf16.gmra.mxu0 %v1791
        %v2328 = vpop.f32.mrf.mxu0
        %v2329 = vadd.f32 %v2000, %v2328
        %v2330 = vpop.f32.mrf.mxu0
        %v2331 = vadd.f32 %v2002, %v2330
        %2332 = vmatmul.bf16.gmra.mxu0 %v1794
        %v2333 = vpop.f32.mrf.mxu0
        %v2334 = vadd.f32 %v2005, %v2333
        %v2335 = vpop.f32.mrf.mxu0
        %v2336 = vadd.f32 %v2007, %v2335
        %2337 = vmatmul.bf16.gmra.mxu0 %v1797
        %v2338 = vpop.f32.mrf.mxu0
        %v2339 = vadd.f32 %v2010, %v2338
        %v2340 = vpop.f32.mrf.mxu0
        %v2341 = vadd.f32 %v2012, %v2340
        %2342 = vmatmul.bf16.gmra.mxu0 %v1800
        %v2343 = vpop.f32.mrf.mxu0
        %v2344 = vadd.f32 %v2015, %v2343
        %v2345 = vpop.f32.mrf.mxu0
        %v2346 = vadd.f32 %v2017, %v2345
        %2347 = vmatmul.bf16.gmra.mxu0 %v1803
        %v2348 = vpop.f32.mrf.mxu0
        %v2349 = vadd.f32 %v2020, %v2348
        %v2350 = vpop.f32.mrf.mxu0
        %v2351 = vadd.f32 %v2022, %v2350
        %2352 = vmatmul.bf16.gmra.mxu0 %v1806
        %v2353 = vpop.f32.mrf.mxu0
        %v2354 = vadd.f32 %v2025, %v2353
        %v2355 = vpop.f32.mrf.mxu0
        %v2356 = vadd.f32 %v2027, %v2355
        %2357 = vmatmul.bf16.gmra.mxu0 %v1809
        %v2358 = vpop.f32.mrf.mxu0
        %v2359 = vadd.f32 %v2030, %v2358
        %v2360 = vpop.f32.mrf.mxu0
        %v2361 = vadd.f32 %v2032, %v2360
        %2362 = vmatmul.bf16.gmra.mxu0 %v1812
        %v2363 = vpop.f32.mrf.mxu0
        %v2364 = vadd.f32 %v2035, %v2363
        %v2365 = vpop.f32.mrf.mxu0
        %v2366 = vadd.f32 %v2037, %v2365
        %2367 = vmatmul.bf16.gmra.mxu0 %v1815
        %v2368 = vpop.f32.mrf.mxu0
        %v2369 = vadd.f32 %v2040, %v2368
        %v2370 = vpop.f32.mrf.mxu0
        %v2371 = vadd.f32 %v2042, %v2370
        %2372 = vmatmul.bf16.gmra.mxu0 %v1818
        %v2373 = vpop.f32.mrf.mxu0
        %v2374 = vadd.f32 %v2045, %v2373
        %v2375 = vpop.f32.mrf.mxu0
        %v2376 = vadd.f32 %v2047, %v2375
        %2377 = vmatmul.bf16.gmra.mxu0 %v1821
        %v2378 = vpop.f32.mrf.mxu0
        %v2379 = vadd.f32 %v2050, %v2378
        %v2380 = vpop.f32.mrf.mxu0
        %v2381 = vadd.f32 %v2052, %v2380
        %2382 = vmatmul.bf16.gmra.mxu0 %v1824
        %v2383 = vpop.f32.mrf.mxu0
        %v2384 = vadd.f32 %v2055, %v2383
        %v2385 = vpop.f32.mrf.mxu0
        %v2386 = vadd.f32 %v2057, %v2385
        %2387 = vmatmul.bf16.gmra.mxu0 %v1827
        %v2388 = vpop.f32.mrf.mxu0
        %v2389 = vadd.f32 %v2060, %v2388
        %v2390 = vpop.f32.mrf.mxu0
        %v2391 = vadd.f32 %v2062, %v2390
        %2392 = vmatmul.bf16.gmra.mxu0 %v1830
        %v2393 = vpop.f32.mrf.mxu0
        %v2394 = vadd.f32 %v2065, %v2393
        %v2395 = vpop.f32.mrf.mxu0
        %v2396 = vadd.f32 %v2067, %v2395
        %2397 = vmatmul.bf16.gmra.mxu0 %v1833
        %v2398 = vpop.f32.mrf.mxu0
        %v2399 = vadd.f32 %v2070, %v2398
        %v2400 = vpop.f32.mrf.mxu0
        %v2401 = vadd.f32 %v2072, %v2400
        %2402 = vmatmul.bf16.gmra.mxu0 %v1836
        %v2403 = vpop.f32.mrf.mxu0
        %v2404 = vadd.f32 %v2075, %v2403
        %v2405 = vpop.f32.mrf.mxu0
        %v2406 = vadd.f32 %v2077, %v2405
        %2407 = vmatmul.bf16.gmra.mxu0 %v1839
        %v2408 = vpop.f32.mrf.mxu0
        %v2409 = vadd.f32 %v2080, %v2408
        %v2410 = vpop.f32.mrf.mxu0
        %v2411 = vadd.f32 %v2082, %v2410
        %2412 = vmatmul.bf16.gmra.mxu0 %v1842
        %v2413 = vpop.f32.mrf.mxu0
        %v2414 = vadd.f32 %v2085, %v2413
        %v2415 = vpop.f32.mrf.mxu0
        %v2416 = vadd.f32 %v2087, %v2415
        %2417 = vmatmul.bf16.gmra.mxu0 %v1845
        %v2418 = vpop.f32.mrf.mxu0
        %v2419 = vadd.f32 %v2090, %v2418
        %v2420 = vpop.f32.mrf.mxu0
        %v2421 = vadd.f32 %v2092, %v2420
        %2422 = vmatmul.bf16.gmra.mxu0 %v1848
        %v2423 = vpop.f32.mrf.mxu0
        %v2424 = vadd.f32 %v2095, %v2423
        %v2425 = vpop.f32.mrf.mxu0
        %v2426 = vadd.f32 %v2097, %v2425
        %2427 = vmatmul.bf16.gmra.mxu0 %v1851
        %v2428 = vpop.f32.mrf.mxu0
        %v2429 = vadd.f32 %v2100, %v2428
        %v2430 = vpop.f32.mrf.mxu0
        %v2431 = vadd.f32 %v2102, %v2430
        %2432 = vmatmul.bf16.gmra.mxu0 %v1854
        %v2433 = vpop.f32.mrf.mxu0
        %v2434 = vadd.f32 %v2105, %v2433
        %v2435 = vpop.f32.mrf.mxu0
        %v2436 = vadd.f32 %v2107, %v2435
        %2437 = vmatmul.bf16.gmra.mxu0 %v1857
        %v2438 = vpop.f32.mrf.mxu0
        %v2439 = vadd.f32 %v2110, %v2438
        %v2440 = vpop.f32.mrf.mxu0
        %v2441 = vadd.f32 %v2112, %v2440
        %2442 = vmatmul.bf16.gmra.mxu0 %v1860
        %v2443 = vpop.f32.mrf.mxu0
        %v2444 = vadd.f32 %v2115, %v2443
        %v2445 = vpop.f32.mrf.mxu0
        %v2446 = vadd.f32 %v2117, %v2445
        %2447 = vmatmul.bf16.gmra.mxu0 %v1863
        %v2448 = vpop.f32.mrf.mxu0
        %v2449 = vadd.f32 %v2120, %v2448
        %v2450 = vpop.f32.mrf.mxu0
        %v2451 = vadd.f32 %v2122, %v2450
        %2452 = vmatmul.bf16.gmra.mxu0 %v1866
        %v2453 = vpop.f32.mrf.mxu0
        %v2454 = vadd.f32 %v2125, %v2453
        %v2455 = vpop.f32.mrf.mxu0
        %v2456 = vadd.f32 %v2127, %v2455
        %2457 = vmatmul.bf16.gmra.mxu0 %v1869
        %v2458 = vpop.f32.mrf.mxu0
        %v2459 = vadd.f32 %v2130, %v2458
        %v2460 = vpop.f32.mrf.mxu0
        %v2461 = vadd.f32 %v2132, %v2460
        %2462 = vmatmul.bf16.gmra.mxu0 %v1872
        %v2463 = vpop.f32.mrf.mxu0
        %v2464 = vadd.f32 %v2135, %v2463
        %v2465 = vpop.f32.mrf.mxu0
        %v2466 = vadd.f32 %v2137, %v2465
        %2467 = vmatmul.bf16.gmra.mxu0 %v1875
        %v2468 = vpop.f32.mrf.mxu0
        %v2469 = vadd.f32 %v2140, %v2468
        %v2470 = vpop.f32.mrf.mxu0
        %v2471 = vadd.f32 %v2142, %v2470
        %2472 = vmatmul.bf16.gmra.mxu0 %v1878
        %v2473 = vpop.f32.mrf.mxu0
        %v2474 = vadd.f32 %v2145, %v2473
        %v2475 = vpop.f32.mrf.mxu0
        %v2476 = vadd.f32 %v2147, %v2475
        %2477 = vmatmul.bf16.gmra.mxu0 %v1881
        %v2478 = vpop.f32.mrf.mxu0
        %v2479 = vadd.f32 %v2150, %v2478
        %v2480 = vpop.f32.mrf.mxu0
        %v2481 = vadd.f32 %v2152, %v2480
        %2482 = vmatmul.bf16.gmra.mxu0 %v1884
        %v2483 = vpop.f32.mrf.mxu0
        %v2484 = vadd.f32 %v2155, %v2483
        %v2485 = vpop.f32.mrf.mxu0
        %v2486 = vadd.f32 %v2157, %v2485
        %2487 = vmatmul.bf16.gmra.mxu0 %v1887
        %v2488 = vpop.f32.mrf.mxu0
        %v2489 = vadd.f32 %v2160, %v2488
        %v2490 = vpop.f32.mrf.mxu0
        %v2491 = vadd.f32 %v2162, %v2490
        %2492 = vmatmul.bf16.gmra.mxu0 %v1890
        %v2493 = vpop.f32.mrf.mxu0
        %v2494 = vadd.f32 %v2165, %v2493
        %v2495 = vpop.f32.mrf.mxu0
        %v2496 = vadd.f32 %v2167, %v2495
        %2497 = vmatmul.bf16.gmra.mxu0 %v1893
        %v2498 = vpop.f32.mrf.mxu0
        %v2499 = vadd.f32 %v2170, %v2498
        %v2500 = vpop.f32.mrf.mxu0
        %v2501 = vadd.f32 %v2172, %v2500
        %2502 = vmatmul.bf16.gmra.mxu0 %v1896
        %v2503 = vpop.f32.mrf.mxu0
        %v2504 = vadd.f32 %v2175, %v2503
        %v2505 = vpop.f32.mrf.mxu0
        %v2506 = vadd.f32 %v2177, %v2505
        %2507 = vmatmul.bf16.gmra.mxu0 %v1899
        %v2508 = vpop.f32.mrf.mxu0
        %v2509 = vadd.f32 %v2180, %v2508
        %v2510 = vpop.f32.mrf.mxu0
        %v2511 = vadd.f32 %v2182, %v2510
        %2512 = vmatmul.bf16.gmra.mxu0 %v1902
        %v2513 = vpop.f32.mrf.mxu0
        %v2514 = vadd.f32 %v2185, %v2513
        %v2515 = vpop.f32.mrf.mxu0
        %v2516 = vadd.f32 %v2187, %v2515
        %2517 = vmatmul.bf16.gmra.mxu0 %v1905
        %v2518 = vpop.f32.mrf.mxu0
        %v2519 = vadd.f32 %v2190, %v2518
        %v2520 = vpop.f32.mrf.mxu0
        %v2521 = vadd.f32 %v2192, %v2520
        %2522 = vmatmul.bf16.gmra.mxu0 %v1908
        %v2523 = vpop.f32.mrf.mxu0
        %v2524 = vadd.f32 %v2195, %v2523
        %v2525 = vpop.f32.mrf.mxu0
        %v2526 = vadd.f32 %v2197, %v2525
        %2527 = vmatmul.bf16.gmra.mxu0 %v1911
        %v2528 = vpop.f32.mrf.mxu0
        %v2529 = vadd.f32 %v2200, %v2528
        %v2530 = vpop.f32.mrf.mxu0
        %v2531 = vadd.f32 %v2202, %v2530
        %2532 = vmatmul.bf16.gmra.mxu0 %v1914
        %v2533 = vpop.f32.mrf.mxu0
        %v2534 = vadd.f32 %v2205, %v2533
        %v2535 = vpop.f32.mrf.mxu0
        %v2536 = vadd.f32 %v2207, %v2535
        %2537 = vmatmul.bf16.gmra.mxu0 %v1917
        %v2538 = vpop.f32.mrf.mxu0
        %v2539 = vadd.f32 %v2210, %v2538
        %v2540 = vpop.f32.mrf.mxu0
        %v2541 = vadd.f32 %v2212, %v2540
        %2542 = vmatmul.bf16.gmra.mxu0 %v1920
        %v2543 = vpop.f32.mrf.mxu0
        %v2544 = vadd.f32 %v2215, %v2543
        %v2545 = vpop.f32.mrf.mxu0
        %v2546 = vadd.f32 %v2217, %v2545
        %2547 = vmatmul.bf16.gmra.mxu0 %v1923
        %v2548 = vpop.f32.mrf.mxu0
        %v2549 = vadd.f32 %v2220, %v2548
        %v2550 = vpop.f32.mrf.mxu0
        %v2551 = vadd.f32 %v2222, %v2550
        %2552 = vmatmul.bf16.gmra.mxu0 %v1926
        %v2553 = vpop.f32.mrf.mxu0
        %v2554 = vadd.f32 %v2225, %v2553
        %v2555 = vpop.f32.mrf.mxu0
        %v2556 = vadd.f32 %v2227, %v2555
        %2557 = vmatmul.bf16.gmra.mxu0 %v1929
        %v2558 = vpop.f32.mrf.mxu0
        %v2559 = vadd.f32 %v2230, %v2558
        %v2560 = vpop.f32.mrf.mxu0
        %v2561 = vadd.f32 %v2232, %v2560
        %2562 = vmatmul.bf16.gmra.mxu0 %v1932
        %v2563 = vpop.f32.mrf.mxu0
        %v2564 = vadd.f32 %v2235, %v2563
        %v2565 = vpop.f32.mrf.mxu0
        %v2566 = vadd.f32 %v2237, %v2565
        %2567 = vmatmul.bf16.gmra.mxu0 %v1935
        %v2568 = vpop.f32.mrf.mxu0
        %v2569 = vadd.f32 %v2240, %v2568
        %v2570 = vpop.f32.mrf.mxu0
        %v2571 = vadd.f32 %v2242, %v2570
        %2572 = vmatmul.bf16.gmra.mxu0 %v1938
        %v2573 = vpop.f32.mrf.mxu0
        %v2574 = vadd.f32 %v2245, %v2573
        %v2575 = vpop.f32.mrf.mxu0
        %v2576 = vadd.f32 %v2247, %v2575
        %2577 = vmatmul.bf16.gmra.mxu0 %v1941
        %v2578 = vpop.f32.mrf.mxu0
        %v2579 = vadd.f32 %v2250, %v2578
        %v2580 = vpop.f32.mrf.mxu0
        %v2581 = vadd.f32 %v2252, %v2580
        %2582 = vmatmul.bf16.gmra.mxu0 %v1944
        %v2583 = vpop.f32.mrf.mxu0
        %v2584 = vadd.f32 %v2255, %v2583
        %v2585 = vpop.f32.mrf.mxu0
        %v2586 = vadd.f32 %v2257, %v2585
        %2587 = vmatmul.bf16.gmra.mxu0 %v1947
        %v2588 = vpop.f32.mrf.mxu0
        %v2589 = vadd.f32 %v2260, %v2588
        %v2590 = vpop.f32.mrf.mxu0
        %v2591 = vadd.f32 %v2262, %v2590
        %2592 = vmatmul.bf16.gmra.mxu0 %v1950
        %v2593 = vpop.f32.mrf.mxu0
        %v2594 = vadd.f32 %v2265, %v2593
        %v2595 = vpop.f32.mrf.mxu0
        %v2596 = vadd.f32 %v2267, %v2595
        %2597 = vmatmul.bf16.gmra.mxu0 %v1953
        %v2598 = vpop.f32.mrf.mxu0
        %v2599 = vadd.f32 %v2270, %v2598
        %v2600 = vpop.f32.mrf.mxu0
        %v2601 = vadd.f32 %v2272, %v2600
        %2602 = vmatmul.bf16.gmra.mxu0 %v1956
        %v2603 = vpop.f32.mrf.mxu0
        %v2604 = vadd.f32 %v2275, %v2603
        %v2605 = vpop.f32.mrf.mxu0
        %v2606 = vadd.f32 %v2277, %v2605
        %2607 = vmatmul.bf16.gmra.mxu0 %v1959
        %v2608 = vpop.f32.mrf.mxu0
        %v2609 = vadd.f32 %v2280, %v2608
        %v2610 = vpop.f32.mrf.mxu0
        %v2611 = vadd.f32 %v2282, %v2610
        %2612 = vmatmul.bf16.gmra.mxu0 %v1962
        %v2613 = vpop.f32.mrf.mxu0
        %v2614 = vadd.f32 %v2285, %v2613
        %v2615 = vpop.f32.mrf.mxu0
        %v2616 = vadd.f32 %v2287, %v2615
        %2617 = vmatmul.bf16.gmra.mxu0 %v1965
        %v2618 = vpop.f32.mrf.mxu0
        %v2619 = vadd.f32 %v2290, %v2618
        %v2620 = vpop.f32.mrf.mxu0
        %v2621 = vadd.f32 %v2292, %v2620
        %2622 = vmatmul.bf16.gmra.mxu0 %v1968
        %v2623 = vpop.f32.mrf.mxu0
        %v2624 = vadd.f32 %v2295, %v2623
        %v2625 = vpop.f32.mrf.mxu0
        %v2626 = vadd.f32 %v2297, %v2625
        %2627 = vdwg.mxu0
        %2756 = vrot.lane.b32.xlu0 %v2309, 80
        %v2757 = vpop.permute.xlu0 %2756
        %2758 = vrot.lane.b32.xlu0 %v2311, 80
        %v2759 = vpop.permute.xlu0 %2758
        %2760 = vrot.lane.b32.xlu0 %v2314, 80
        %v2761 = vpop.permute.xlu0 %2760
        %2762 = vrot.lane.b32.xlu0 %v2316, 80
        %v2763 = vpop.permute.xlu0 %2762
        %2764 = vrot.lane.b32.xlu0 %v2319, 80
        %v2765 = vpop.permute.xlu0 %2764
        %2766 = vrot.lane.b32.xlu0 %v2321, 80
        %v2767 = vpop.permute.xlu0 %2766
        %2768 = vrot.lane.b32.xlu0 %v2324, 80
        %v2769 = vpop.permute.xlu0 %2768
        %2770 = vrot.lane.b32.xlu0 %v2326, 80
        %v2771 = vpop.permute.xlu0 %2770
        %2772 = vrot.lane.b32.xlu0 %v2329, 80
        %v2773 = vpop.permute.xlu0 %2772
        %2774 = vrot.lane.b32.xlu0 %v2331, 80
        %v2775 = vpop.permute.xlu0 %2774
        %2776 = vrot.lane.b32.xlu0 %v2334, 80
        %v2777 = vpop.permute.xlu0 %2776
        %2778 = vrot.lane.b32.xlu0 %v2336, 80
        %v2779 = vpop.permute.xlu0 %2778
        %2780 = vrot.lane.b32.xlu0 %v2339, 80
        %v2781 = vpop.permute.xlu0 %2780
        %2782 = vrot.lane.b32.xlu0 %v2341, 80
        %v2783 = vpop.permute.xlu0 %2782
        %2784 = vrot.lane.b32.xlu0 %v2344, 80
        %v2785 = vpop.permute.xlu0 %2784
        %2786 = vrot.lane.b32.xlu0 %v2346, 80
        %v2787 = vpop.permute.xlu0 %2786
        %2788 = vrot.lane.b32.xlu0 %v2349, 80
        %v2789 = vpop.permute.xlu0 %2788
        %2790 = vrot.lane.b32.xlu0 %v2351, 80
        %v2791 = vpop.permute.xlu0 %2790
        %2792 = vrot.lane.b32.xlu0 %v2354, 80
        %v2793 = vpop.permute.xlu0 %2792
        %2794 = vrot.lane.b32.xlu0 %v2356, 80
        %v2795 = vpop.permute.xlu0 %2794
        %2796 = vrot.lane.b32.xlu0 %v2359, 80
        %v2797 = vpop.permute.xlu0 %2796
        %2798 = vrot.lane.b32.xlu0 %v2361, 80
        %v2799 = vpop.permute.xlu0 %2798
        %2800 = vrot.lane.b32.xlu0 %v2364, 80
        %v2801 = vpop.permute.xlu0 %2800
        %2802 = vrot.lane.b32.xlu0 %v2366, 80
        %v2803 = vpop.permute.xlu0 %2802
        %2804 = vrot.lane.b32.xlu0 %v2369, 80
        %v2805 = vpop.permute.xlu0 %2804
        %2806 = vrot.lane.b32.xlu0 %v2371, 80
        %v2807 = vpop.permute.xlu0 %2806
        %2808 = vrot.lane.b32.xlu0 %v2374, 80
        %v2809 = vpop.permute.xlu0 %2808
        %2810 = vrot.lane.b32.xlu0 %v2376, 80
        %v2811 = vpop.permute.xlu0 %2810
        %2812 = vrot.lane.b32.xlu0 %v2379, 80
        %v2813 = vpop.permute.xlu0 %2812
        %2814 = vrot.lane.b32.xlu0 %v2381, 80
        %v2815 = vpop.permute.xlu0 %2814
        %2816 = vrot.lane.b32.xlu0 %v2384, 80
        %v2817 = vpop.permute.xlu0 %2816
        %2818 = vrot.lane.b32.xlu0 %v2386, 80
        %v2819 = vpop.permute.xlu0 %2818
        %2820 = vrot.lane.b32.xlu0 %v2389, 80
        %v2821 = vpop.permute.xlu0 %2820
        %2822 = vrot.lane.b32.xlu0 %v2391, 80
        %v2823 = vpop.permute.xlu0 %2822
        %2824 = vrot.lane.b32.xlu0 %v2394, 80
        %v2825 = vpop.permute.xlu0 %2824
        %2826 = vrot.lane.b32.xlu0 %v2396, 80
        %v2827 = vpop.permute.xlu0 %2826
        %2828 = vrot.lane.b32.xlu0 %v2399, 80
        %v2829 = vpop.permute.xlu0 %2828
        %2830 = vrot.lane.b32.xlu0 %v2401, 80
        %v2831 = vpop.permute.xlu0 %2830
        %2832 = vrot.lane.b32.xlu0 %v2404, 80
        %v2833 = vpop.permute.xlu0 %2832
        %2834 = vrot.lane.b32.xlu0 %v2406, 80
        %v2835 = vpop.permute.xlu0 %2834
        %2836 = vrot.lane.b32.xlu0 %v2409, 80
        %v2837 = vpop.permute.xlu0 %2836
        %2838 = vrot.lane.b32.xlu0 %v2411, 80
        %v2839 = vpop.permute.xlu0 %2838
        %2840 = vrot.lane.b32.xlu0 %v2414, 80
        %v2841 = vpop.permute.xlu0 %2840
        %2842 = vrot.lane.b32.xlu0 %v2416, 80
        %v2843 = vpop.permute.xlu0 %2842
        %2844 = vrot.lane.b32.xlu0 %v2419, 80
        %v2845 = vpop.permute.xlu0 %2844
        %2846 = vrot.lane.b32.xlu0 %v2421, 80
        %v2847 = vpop.permute.xlu0 %2846
        %2848 = vrot.lane.b32.xlu0 %v2424, 80
        %v2849 = vpop.permute.xlu0 %2848
        %2850 = vrot.lane.b32.xlu0 %v2426, 80
        %v2851 = vpop.permute.xlu0 %2850
        %2852 = vrot.lane.b32.xlu0 %v2429, 80
        %v2853 = vpop.permute.xlu0 %2852
        %2854 = vrot.lane.b32.xlu0 %v2431, 80
        %v2855 = vpop.permute.xlu0 %2854
        %2856 = vrot.lane.b32.xlu0 %v2434, 80
        %v2857 = vpop.permute.xlu0 %2856
        %2858 = vrot.lane.b32.xlu0 %v2436, 80
        %v2859 = vpop.permute.xlu0 %2858
        %2860 = vrot.lane.b32.xlu0 %v2439, 80
        %v2861 = vpop.permute.xlu0 %2860
        %2862 = vrot.lane.b32.xlu0 %v2441, 80
        %v2863 = vpop.permute.xlu0 %2862
        %2864 = vrot.lane.b32.xlu0 %v2444, 80
        %v2865 = vpop.permute.xlu0 %2864
        %2866 = vrot.lane.b32.xlu0 %v2446, 80
        %v2867 = vpop.permute.xlu0 %2866
        %2868 = vrot.lane.b32.xlu0 %v2449, 80
        %v2869 = vpop.permute.xlu0 %2868
        %2870 = vrot.lane.b32.xlu0 %v2451, 80
        %v2871 = vpop.permute.xlu0 %2870
        %2872 = vrot.lane.b32.xlu0 %v2454, 80
        %v2873 = vpop.permute.xlu0 %2872
        %2874 = vrot.lane.b32.xlu0 %v2456, 80
        %v2875 = vpop.permute.xlu0 %2874
        %2876 = vrot.lane.b32.xlu0 %v2459, 80
        %v2877 = vpop.permute.xlu0 %2876
        %2878 = vrot.lane.b32.xlu0 %v2461, 80
        %v2879 = vpop.permute.xlu0 %2878
        %2880 = vrot.lane.b32.xlu0 %v2464, 80
        %v2881 = vpop.permute.xlu0 %2880
        %2882 = vrot.lane.b32.xlu0 %v2466, 80
        %v2883 = vpop.permute.xlu0 %2882
        %2884 = vrot.lane.b32.xlu0 %v2469, 80
        %v2885 = vpop.permute.xlu0 %2884
        %2886 = vrot.lane.b32.xlu0 %v2471, 80
        %v2887 = vpop.permute.xlu0 %2886
        %2888 = vrot.lane.b32.xlu0 %v2474, 80
        %v2889 = vpop.permute.xlu0 %2888
        %2890 = vrot.lane.b32.xlu0 %v2476, 80
        %v2891 = vpop.permute.xlu0 %2890
        %2892 = vrot.lane.b32.xlu0 %v2479, 80
        %v2893 = vpop.permute.xlu0 %2892
        %2894 = vrot.lane.b32.xlu0 %v2481, 80
        %v2895 = vpop.permute.xlu0 %2894
        %2896 = vrot.lane.b32.xlu0 %v2484, 80
        %v2897 = vpop.permute.xlu0 %2896
        %2898 = vrot.lane.b32.xlu0 %v2486, 80
        %v2899 = vpop.permute.xlu0 %2898
        %2900 = vrot.lane.b32.xlu0 %v2489, 80
        %v2901 = vpop.permute.xlu0 %2900
        %2902 = vrot.lane.b32.xlu0 %v2491, 80
        %v2903 = vpop.permute.xlu0 %2902
        %2904 = vrot.lane.b32.xlu0 %v2494, 80
        %v2905 = vpop.permute.xlu0 %2904
        %2906 = vrot.lane.b32.xlu0 %v2496, 80
        %v2907 = vpop.permute.xlu0 %2906
        %2908 = vrot.lane.b32.xlu0 %v2499, 80
        %v2909 = vpop.permute.xlu0 %2908
        %2910 = vrot.lane.b32.xlu0 %v2501, 80
        %v2911 = vpop.permute.xlu0 %2910
        %2912 = vrot.lane.b32.xlu0 %v2504, 80
        %v2913 = vpop.permute.xlu0 %2912
        %2914 = vrot.lane.b32.xlu0 %v2506, 80
        %v2915 = vpop.permute.xlu0 %2914
        %2916 = vrot.lane.b32.xlu0 %v2509, 80
        %v2917 = vpop.permute.xlu0 %2916
        %2918 = vrot.lane.b32.xlu0 %v2511, 80
        %v2919 = vpop.permute.xlu0 %2918
        %2920 = vrot.lane.b32.xlu0 %v2514, 80
        %v2921 = vpop.permute.xlu0 %2920
        %2922 = vrot.lane.b32.xlu0 %v2516, 80
        %v2923 = vpop.permute.xlu0 %2922
        %2924 = vrot.lane.b32.xlu0 %v2519, 80
        %v2925 = vpop.permute.xlu0 %2924
        %2926 = vrot.lane.b32.xlu0 %v2521, 80
        %v2927 = vpop.permute.xlu0 %2926
        %2928 = vrot.lane.b32.xlu0 %v2524, 80
        %v2929 = vpop.permute.xlu0 %2928
        %2930 = vrot.lane.b32.xlu0 %v2526, 80
        %v2931 = vpop.permute.xlu0 %2930
        %2932 = vrot.lane.b32.xlu0 %v2529, 80
        %v2933 = vpop.permute.xlu0 %2932
        %2934 = vrot.lane.b32.xlu0 %v2531, 80
        %v2935 = vpop.permute.xlu0 %2934
        %2936 = vrot.lane.b32.xlu0 %v2534, 80
        %v2937 = vpop.permute.xlu0 %2936
        %2938 = vrot.lane.b32.xlu0 %v2536, 80
        %v2939 = vpop.permute.xlu0 %2938
        %2940 = vrot.lane.b32.xlu0 %v2539, 80
        %v2941 = vpop.permute.xlu0 %2940
        %2942 = vrot.lane.b32.xlu0 %v2541, 80
        %v2943 = vpop.permute.xlu0 %2942
        %2944 = vrot.lane.b32.xlu0 %v2544, 80
        %v2945 = vpop.permute.xlu0 %2944
        %2946 = vrot.lane.b32.xlu0 %v2546, 80
        %v2947 = vpop.permute.xlu0 %2946
        %2948 = vrot.lane.b32.xlu0 %v2549, 80
        %v2949 = vpop.permute.xlu0 %2948
        %2950 = vrot.lane.b32.xlu0 %v2551, 80
        %v2951 = vpop.permute.xlu0 %2950
        %2952 = vrot.lane.b32.xlu0 %v2554, 80
        %v2953 = vpop.permute.xlu0 %2952
        %2954 = vrot.lane.b32.xlu0 %v2556, 80
        %v2955 = vpop.permute.xlu0 %2954
        %2956 = vrot.lane.b32.xlu0 %v2559, 80
        %v2957 = vpop.permute.xlu0 %2956
        %2958 = vrot.lane.b32.xlu0 %v2561, 80
        %v2959 = vpop.permute.xlu0 %2958
        %2960 = vrot.lane.b32.xlu0 %v2564, 80
        %v2961 = vpop.permute.xlu0 %2960
        %2962 = vrot.lane.b32.xlu0 %v2566, 80
        %v2963 = vpop.permute.xlu0 %2962
        %2964 = vrot.lane.b32.xlu0 %v2569, 80
        %v2965 = vpop.permute.xlu0 %2964
        %2966 = vrot.lane.b32.xlu0 %v2571, 80
        %v2967 = vpop.permute.xlu0 %2966
        %2968 = vrot.lane.b32.xlu0 %v2574, 80
        %v2969 = vpop.permute.xlu0 %2968
        %2970 = vrot.lane.b32.xlu0 %v2576, 80
        %v2971 = vpop.permute.xlu0 %2970
        %2972 = vrot.lane.b32.xlu0 %v2579, 80
        %v2973 = vpop.permute.xlu0 %2972
        %2974 = vrot.lane.b32.xlu0 %v2581, 80
        %v2975 = vpop.permute.xlu0 %2974
        %2976 = vrot.lane.b32.xlu0 %v2584, 80
        %v2977 = vpop.permute.xlu0 %2976
        %2978 = vrot.lane.b32.xlu0 %v2586, 80
        %v2979 = vpop.permute.xlu0 %2978
        %2980 = vrot.lane.b32.xlu0 %v2589, 80
        %v2981 = vpop.permute.xlu0 %2980
        %2982 = vrot.lane.b32.xlu0 %v2591, 80
        %v2983 = vpop.permute.xlu0 %2982
        %2984 = vrot.lane.b32.xlu0 %v2594, 80
        %v2985 = vpop.permute.xlu0 %2984
        %2986 = vrot.lane.b32.xlu0 %v2596, 80
        %v2987 = vpop.permute.xlu0 %2986
        %2988 = vrot.lane.b32.xlu0 %v2599, 80
        %v2989 = vpop.permute.xlu0 %2988
        %2990 = vrot.lane.b32.xlu0 %v2601, 80
        %v2991 = vpop.permute.xlu0 %2990
        %2992 = vrot.lane.b32.xlu0 %v2604, 80
        %v2993 = vpop.permute.xlu0 %2992
        %2994 = vrot.lane.b32.xlu0 %v2606, 80
        %v2995 = vpop.permute.xlu0 %2994
        %2996 = vrot.lane.b32.xlu0 %v2609, 80
        %v2997 = vpop.permute.xlu0 %2996
        %2998 = vrot.lane.b32.xlu0 %v2611, 80
        %v2999 = vpop.permute.xlu0 %2998
        %3000 = vrot.lane.b32.xlu0 %v2614, 80
        %v3001 = vpop.permute.xlu0 %3000
        %3002 = vrot.lane.b32.xlu0 %v2616, 80
        %v3003 = vpop.permute.xlu0 %3002
        %3004 = vrot.lane.b32.xlu0 %v2619, 80
        %v3005 = vpop.permute.xlu0 %3004
        %3006 = vrot.lane.b32.xlu0 %v2621, 80
        %v3007 = vpop.permute.xlu0 %3006
        %3008 = vrot.lane.b32.xlu0 %v2624, 80
        %v3009 = vpop.permute.xlu0 %3008
        %3010 = vrot.lane.b32.xlu0 %v2626, 80
        %v3011 = vpop.permute.xlu0 %3010
        %v3140 = vmul.f32 %v2309, %v2757
        %v3141 = vmul.f32 %v2311, %v2759
        %v3142 = vmul.f32 %v2314, %v2761
        %v3143 = vmul.f32 %v2316, %v2763
        %v3144 = vmul.f32 %v2319, %v2765
        %v3145 = vmul.f32 %v2321, %v2767
        %v3146 = vmul.f32 %v2324, %v2769
        %v3147 = vmul.f32 %v2326, %v2771
        %v3148 = vmul.f32 %v2329, %v2773
        %v3149 = vmul.f32 %v2331, %v2775
        %v3150 = vmul.f32 %v2334, %v2777
        %v3151 = vmul.f32 %v2336, %v2779
        %v3152 = vmul.f32 %v2339, %v2781
        %v3153 = vmul.f32 %v2341, %v2783
        %v3154 = vmul.f32 %v2344, %v2785
        %v3155 = vmul.f32 %v2346, %v2787
        %v3156 = vmul.f32 %v2349, %v2789
        %v3157 = vmul.f32 %v2351, %v2791
        %v3158 = vmul.f32 %v2354, %v2793
        %v3159 = vmul.f32 %v2356, %v2795
        %v3160 = vmul.f32 %v2359, %v2797
        %v3161 = vmul.f32 %v2361, %v2799
        %v3162 = vmul.f32 %v2364, %v2801
        %v3163 = vmul.f32 %v2366, %v2803
        %v3164 = vmul.f32 %v2369, %v2805
        %v3165 = vmul.f32 %v2371, %v2807
        %v3166 = vmul.f32 %v2374, %v2809
        %v3167 = vmul.f32 %v2376, %v2811
        %v3168 = vmul.f32 %v2379, %v2813
        %v3169 = vmul.f32 %v2381, %v2815
        %v3170 = vmul.f32 %v2384, %v2817
        %v3171 = vmul.f32 %v2386, %v2819
        %v3172 = vmul.f32 %v2389, %v2821
        %v3173 = vmul.f32 %v2391, %v2823
        %v3174 = vmul.f32 %v2394, %v2825
        %v3175 = vmul.f32 %v2396, %v2827
        %v3176 = vmul.f32 %v2399, %v2829
        %v3177 = vmul.f32 %v2401, %v2831
        %v3178 = vmul.f32 %v2404, %v2833
        %v3179 = vmul.f32 %v2406, %v2835
        %v3180 = vmul.f32 %v2409, %v2837
        %v3181 = vmul.f32 %v2411, %v2839
        %v3182 = vmul.f32 %v2414, %v2841
        %v3183 = vmul.f32 %v2416, %v2843
        %v3184 = vmul.f32 %v2419, %v2845
        %v3185 = vmul.f32 %v2421, %v2847
        %v3186 = vmul.f32 %v2424, %v2849
        %v3187 = vmul.f32 %v2426, %v2851
        %v3188 = vmul.f32 %v2429, %v2853
        %v3189 = vmul.f32 %v2431, %v2855
        %v3190 = vmul.f32 %v2434, %v2857
        %v3191 = vmul.f32 %v2436, %v2859
        %v3192 = vmul.f32 %v2439, %v2861
        %v3193 = vmul.f32 %v2441, %v2863
        %v3194 = vmul.f32 %v2444, %v2865
        %v3195 = vmul.f32 %v2446, %v2867
        %v3196 = vmul.f32 %v2449, %v2869
        %v3197 = vmul.f32 %v2451, %v2871
        %v3198 = vmul.f32 %v2454, %v2873
        %v3199 = vmul.f32 %v2456, %v2875
        %v3200 = vmul.f32 %v2459, %v2877
        %v3201 = vmul.f32 %v2461, %v2879
        %v3202 = vmul.f32 %v2464, %v2881
        %v3203 = vmul.f32 %v2466, %v2883
        %v3204 = vmul.f32 %v2469, %v2885
        %v3205 = vmul.f32 %v2471, %v2887
        %v3206 = vmul.f32 %v2474, %v2889
        %v3207 = vmul.f32 %v2476, %v2891
        %v3208 = vmul.f32 %v2479, %v2893
        %v3209 = vmul.f32 %v2481, %v2895
        %v3210 = vmul.f32 %v2484, %v2897
        %v3211 = vmul.f32 %v2486, %v2899
        %v3212 = vmul.f32 %v2489, %v2901
        %v3213 = vmul.f32 %v2491, %v2903
        %v3214 = vmul.f32 %v2494, %v2905
        %v3215 = vmul.f32 %v2496, %v2907
        %v3216 = vmul.f32 %v2499, %v2909
        %v3217 = vmul.f32 %v2501, %v2911
        %v3218 = vmul.f32 %v2504, %v2913
        %v3219 = vmul.f32 %v2506, %v2915
        %v3220 = vmul.f32 %v2509, %v2917
        %v3221 = vmul.f32 %v2511, %v2919
        %v3222 = vmul.f32 %v2514, %v2921
        %v3223 = vmul.f32 %v2516, %v2923
        %v3224 = vmul.f32 %v2519, %v2925
        %v3225 = vmul.f32 %v2521, %v2927
        %v3226 = vmul.f32 %v2524, %v2929
        %v3227 = vmul.f32 %v2526, %v2931
        %v3228 = vmul.f32 %v2529, %v2933
        %v3229 = vmul.f32 %v2531, %v2935
        %v3230 = vmul.f32 %v2534, %v2937
        %v3231 = vmul.f32 %v2536, %v2939
        %v3232 = vmul.f32 %v2539, %v2941
        %v3233 = vmul.f32 %v2541, %v2943
        %v3234 = vmul.f32 %v2544, %v2945
        %v3235 = vmul.f32 %v2546, %v2947
        %v3236 = vmul.f32 %v2549, %v2949
        %v3237 = vmul.f32 %v2551, %v2951
        %v3238 = vmul.f32 %v2554, %v2953
        %v3239 = vmul.f32 %v2556, %v2955
        %v3240 = vmul.f32 %v2559, %v2957
        %v3241 = vmul.f32 %v2561, %v2959
        %v3242 = vmul.f32 %v2564, %v2961
        %v3243 = vmul.f32 %v2566, %v2963
        %v3244 = vmul.f32 %v2569, %v2965
        %v3245 = vmul.f32 %v2571, %v2967
        %v3246 = vmul.f32 %v2574, %v2969
        %v3247 = vmul.f32 %v2576, %v2971
        %v3248 = vmul.f32 %v2579, %v2973
        %v3249 = vmul.f32 %v2581, %v2975
        %v3250 = vmul.f32 %v2584, %v2977
        %v3251 = vmul.f32 %v2586, %v2979
        %v3252 = vmul.f32 %v2589, %v2981
        %v3253 = vmul.f32 %v2591, %v2983
        %v3254 = vmul.f32 %v2594, %v2985
        %v3255 = vmul.f32 %v2596, %v2987
        %v3256 = vmul.f32 %v2599, %v2989
        %v3257 = vmul.f32 %v2601, %v2991
        %v3258 = vmul.f32 %v2604, %v2993
        %v3259 = vmul.f32 %v2606, %v2995
        %v3260 = vmul.f32 %v2609, %v2997
        %v3261 = vmul.f32 %v2611, %v2999
        %v3262 = vmul.f32 %v2614, %v3001
        %v3263 = vmul.f32 %v2616, %v3003
        %v3264 = vmul.f32 %v2619, %v3005
        %v3265 = vmul.f32 %v2621, %v3007
        %v3266 = vmul.f32 %v2624, %v3009
        %v3267 = vmul.f32 %v2626, %v3011
        %vm3268 = vcmask 392192
        %v3269 = vsel %vm3268, %v3140, 0.0
        %3270 = vadd.xlane.f32.xlu0 %v3269
        %v3271 = vpop.xlane.xlu0 %3270
        %v3272 = vsel %vm3268, %v3141, 0.0
        %3273 = vadd.xlane.f32.xlu0 %v3272
        %v3274 = vpop.xlane.xlu0 %3273
        %v3275 = vsel %vm3268, %v3142, 0.0
        %3276 = vadd.xlane.f32.xlu0 %v3275
        %v3277 = vpop.xlane.xlu0 %3276
        %v3278 = vsel %vm3268, %v3143, 0.0
        %3279 = vadd.xlane.f32.xlu0 %v3278
        %v3280 = vpop.xlane.xlu0 %3279
        %v3281 = vsel %vm3268, %v3144, 0.0
        %3282 = vadd.xlane.f32.xlu0 %v3281
        %v3283 = vpop.xlane.xlu0 %3282
        %v3284 = vsel %vm3268, %v3145, 0.0
        %3285 = vadd.xlane.f32.xlu0 %v3284
        %v3286 = vpop.xlane.xlu0 %3285
        %v3287 = vsel %vm3268, %v3146, 0.0
        %3288 = vadd.xlane.f32.xlu0 %v3287
        %v3289 = vpop.xlane.xlu0 %3288
        %v3290 = vsel %vm3268, %v3147, 0.0
        %3291 = vadd.xlane.f32.xlu0 %v3290
        %v3292 = vpop.xlane.xlu0 %3291
        %v3293 = vsel %vm3268, %v3148, 0.0
        %3294 = vadd.xlane.f32.xlu0 %v3293
        %v3295 = vpop.xlane.xlu0 %3294
        %v3296 = vsel %vm3268, %v3149, 0.0
        %3297 = vadd.xlane.f32.xlu0 %v3296
        %v3298 = vpop.xlane.xlu0 %3297
        %v3299 = vsel %vm3268, %v3150, 0.0
        %3300 = vadd.xlane.f32.xlu0 %v3299
        %v3301 = vpop.xlane.xlu0 %3300
        %v3302 = vsel %vm3268, %v3151, 0.0
        %3303 = vadd.xlane.f32.xlu0 %v3302
        %v3304 = vpop.xlane.xlu0 %3303
        %v3305 = vsel %vm3268, %v3152, 0.0
        %3306 = vadd.xlane.f32.xlu0 %v3305
        %v3307 = vpop.xlane.xlu0 %3306
        %v3308 = vsel %vm3268, %v3153, 0.0
        %3309 = vadd.xlane.f32.xlu0 %v3308
        %v3310 = vpop.xlane.xlu0 %3309
        %v3311 = vsel %vm3268, %v3154, 0.0
        %3312 = vadd.xlane.f32.xlu0 %v3311
        %v3313 = vpop.xlane.xlu0 %3312
        %v3314 = vsel %vm3268, %v3155, 0.0
        %3315 = vadd.xlane.f32.xlu0 %v3314
        %v3316 = vpop.xlane.xlu0 %3315
        %v3317 = vsel %vm3268, %v3156, 0.0
        %3318 = vadd.xlane.f32.xlu0 %v3317
        %v3319 = vpop.xlane.xlu0 %3318
        %v3320 = vsel %vm3268, %v3157, 0.0
        %3321 = vadd.xlane.f32.xlu0 %v3320
        %v3322 = vpop.xlane.xlu0 %3321
        %v3323 = vsel %vm3268, %v3158, 0.0
        %3324 = vadd.xlane.f32.xlu0 %v3323
        %v3325 = vpop.xlane.xlu0 %3324
        %v3326 = vsel %vm3268, %v3159, 0.0
        %3327 = vadd.xlane.f32.xlu0 %v3326
        %v3328 = vpop.xlane.xlu0 %3327
        %v3329 = vsel %vm3268, %v3160, 0.0
        %3330 = vadd.xlane.f32.xlu0 %v3329
        %v3331 = vpop.xlane.xlu0 %3330
        %v3332 = vsel %vm3268, %v3161, 0.0
        %3333 = vadd.xlane.f32.xlu0 %v3332
        %v3334 = vpop.xlane.xlu0 %3333
        %v3335 = vsel %vm3268, %v3162, 0.0
        %3336 = vadd.xlane.f32.xlu0 %v3335
        %v3337 = vpop.xlane.xlu0 %3336
        %v3338 = vsel %vm3268, %v3163, 0.0
        %3339 = vadd.xlane.f32.xlu0 %v3338
        %v3340 = vpop.xlane.xlu0 %3339
        %v3341 = vsel %vm3268, %v3164, 0.0
        %3342 = vadd.xlane.f32.xlu0 %v3341
        %v3343 = vpop.xlane.xlu0 %3342
        %v3344 = vsel %vm3268, %v3165, 0.0
        %3345 = vadd.xlane.f32.xlu0 %v3344
        %v3346 = vpop.xlane.xlu0 %3345
        %v3347 = vsel %vm3268, %v3166, 0.0
        %3348 = vadd.xlane.f32.xlu0 %v3347
        %v3349 = vpop.xlane.xlu0 %3348
        %v3350 = vsel %vm3268, %v3167, 0.0
        %3351 = vadd.xlane.f32.xlu0 %v3350
        %v3352 = vpop.xlane.xlu0 %3351
        %v3353 = vsel %vm3268, %v3168, 0.0
        %3354 = vadd.xlane.f32.xlu0 %v3353
        %v3355 = vpop.xlane.xlu0 %3354
        %v3356 = vsel %vm3268, %v3169, 0.0
        %3357 = vadd.xlane.f32.xlu0 %v3356
        %v3358 = vpop.xlane.xlu0 %3357
        %v3359 = vsel %vm3268, %v3170, 0.0
        %3360 = vadd.xlane.f32.xlu0 %v3359
        %v3361 = vpop.xlane.xlu0 %3360
        %v3362 = vsel %vm3268, %v3171, 0.0
        %3363 = vadd.xlane.f32.xlu0 %v3362
        %v3364 = vpop.xlane.xlu0 %3363
        %v3365 = vsel %vm3268, %v3172, 0.0
        %3366 = vadd.xlane.f32.xlu0 %v3365
        %v3367 = vpop.xlane.xlu0 %3366
        %v3368 = vsel %vm3268, %v3173, 0.0
        %3369 = vadd.xlane.f32.xlu0 %v3368
        %v3370 = vpop.xlane.xlu0 %3369
        %v3371 = vsel %vm3268, %v3174, 0.0
        %3372 = vadd.xlane.f32.xlu0 %v3371
        %v3373 = vpop.xlane.xlu0 %3372
        %v3374 = vsel %vm3268, %v3175, 0.0
        %3375 = vadd.xlane.f32.xlu0 %v3374
        %v3376 = vpop.xlane.xlu0 %3375
        %v3377 = vsel %vm3268, %v3176, 0.0
        %3378 = vadd.xlane.f32.xlu0 %v3377
        %v3379 = vpop.xlane.xlu0 %3378
        %v3380 = vsel %vm3268, %v3177, 0.0
        %3381 = vadd.xlane.f32.xlu0 %v3380
        %v3382 = vpop.xlane.xlu0 %3381
        %v3383 = vsel %vm3268, %v3178, 0.0
        %3384 = vadd.xlane.f32.xlu0 %v3383
        %v3385 = vpop.xlane.xlu0 %3384
        %v3386 = vsel %vm3268, %v3179, 0.0
        %3387 = vadd.xlane.f32.xlu0 %v3386
        %v3388 = vpop.xlane.xlu0 %3387
        %v3389 = vsel %vm3268, %v3180, 0.0
        %3390 = vadd.xlane.f32.xlu0 %v3389
        %v3391 = vpop.xlane.xlu0 %3390
        %v3392 = vsel %vm3268, %v3181, 0.0
        %3393 = vadd.xlane.f32.xlu0 %v3392
        %v3394 = vpop.xlane.xlu0 %3393
        %v3395 = vsel %vm3268, %v3182, 0.0
        %3396 = vadd.xlane.f32.xlu0 %v3395
        %v3397 = vpop.xlane.xlu0 %3396
        %v3398 = vsel %vm3268, %v3183, 0.0
        %3399 = vadd.xlane.f32.xlu0 %v3398
        %v3400 = vpop.xlane.xlu0 %3399
        %v3401 = vsel %vm3268, %v3184, 0.0
        %3402 = vadd.xlane.f32.xlu0 %v3401
        %v3403 = vpop.xlane.xlu0 %3402
        %v3404 = vsel %vm3268, %v3185, 0.0
        %3405 = vadd.xlane.f32.xlu0 %v3404
        %v3406 = vpop.xlane.xlu0 %3405
        %v3407 = vsel %vm3268, %v3186, 0.0
        %3408 = vadd.xlane.f32.xlu0 %v3407
        %v3409 = vpop.xlane.xlu0 %3408
        %v3410 = vsel %vm3268, %v3187, 0.0
        %3411 = vadd.xlane.f32.xlu0 %v3410
        %v3412 = vpop.xlane.xlu0 %3411
        %v3413 = vsel %vm3268, %v3188, 0.0
        %3414 = vadd.xlane.f32.xlu0 %v3413
        %v3415 = vpop.xlane.xlu0 %3414
        %v3416 = vsel %vm3268, %v3189, 0.0
        %3417 = vadd.xlane.f32.xlu0 %v3416
        %v3418 = vpop.xlane.xlu0 %3417
        %v3419 = vsel %vm3268, %v3190, 0.0
        %3420 = vadd.xlane.f32.xlu0 %v3419
        %v3421 = vpop.xlane.xlu0 %3420
        %v3422 = vsel %vm3268, %v3191, 0.0
        %3423 = vadd.xlane.f32.xlu0 %v3422
        %v3424 = vpop.xlane.xlu0 %3423
        %v3425 = vsel %vm3268, %v3192, 0.0
        %3426 = vadd.xlane.f32.xlu0 %v3425
        %v3427 = vpop.xlane.xlu0 %3426
        %v3428 = vsel %vm3268, %v3193, 0.0
        %3429 = vadd.xlane.f32.xlu0 %v3428
        %v3430 = vpop.xlane.xlu0 %3429
        %v3431 = vsel %vm3268, %v3194, 0.0
        %3432 = vadd.xlane.f32.xlu0 %v3431
        %v3433 = vpop.xlane.xlu0 %3432
        %v3434 = vsel %vm3268, %v3195, 0.0
        %3435 = vadd.xlane.f32.xlu0 %v3434
        %v3436 = vpop.xlane.xlu0 %3435
        %v3437 = vsel %vm3268, %v3196, 0.0
        %3438 = vadd.xlane.f32.xlu0 %v3437
        %v3439 = vpop.xlane.xlu0 %3438
        %v3440 = vsel %vm3268, %v3197, 0.0
        %3441 = vadd.xlane.f32.xlu0 %v3440
        %v3442 = vpop.xlane.xlu0 %3441
        %v3443 = vsel %vm3268, %v3198, 0.0
        %3444 = vadd.xlane.f32.xlu0 %v3443
        %v3445 = vpop.xlane.xlu0 %3444
        %v3446 = vsel %vm3268, %v3199, 0.0
        %3447 = vadd.xlane.f32.xlu0 %v3446
        %v3448 = vpop.xlane.xlu0 %3447
        %v3449 = vsel %vm3268, %v3200, 0.0
        %3450 = vadd.xlane.f32.xlu0 %v3449
        %v3451 = vpop.xlane.xlu0 %3450
        %v3452 = vsel %vm3268, %v3201, 0.0
        %3453 = vadd.xlane.f32.xlu0 %v3452
        %v3454 = vpop.xlane.xlu0 %3453
        %v3455 = vsel %vm3268, %v3202, 0.0
        %3456 = vadd.xlane.f32.xlu0 %v3455
        %v3457 = vpop.xlane.xlu0 %3456
        %v3458 = vsel %vm3268, %v3203, 0.0
        %3459 = vadd.xlane.f32.xlu0 %v3458
        %v3460 = vpop.xlane.xlu0 %3459
        %v3461 = vsel %vm3268, %v3204, 0.0
        %3462 = vadd.xlane.f32.xlu0 %v3461
        %v3463 = vpop.xlane.xlu0 %3462
        %v3464 = vsel %vm3268, %v3205, 0.0
        %3465 = vadd.xlane.f32.xlu0 %v3464
        %v3466 = vpop.xlane.xlu0 %3465
        %v3467 = vsel %vm3268, %v3206, 0.0
        %3468 = vadd.xlane.f32.xlu0 %v3467
        %v3469 = vpop.xlane.xlu0 %3468
        %v3470 = vsel %vm3268, %v3207, 0.0
        %3471 = vadd.xlane.f32.xlu0 %v3470
        %v3472 = vpop.xlane.xlu0 %3471
        %v3473 = vsel %vm3268, %v3208, 0.0
        %3474 = vadd.xlane.f32.xlu0 %v3473
        %v3475 = vpop.xlane.xlu0 %3474
        %v3476 = vsel %vm3268, %v3209, 0.0
        %3477 = vadd.xlane.f32.xlu0 %v3476
        %v3478 = vpop.xlane.xlu0 %3477
        %v3479 = vsel %vm3268, %v3210, 0.0
        %3480 = vadd.xlane.f32.xlu0 %v3479
        %v3481 = vpop.xlane.xlu0 %3480
        %v3482 = vsel %vm3268, %v3211, 0.0
        %3483 = vadd.xlane.f32.xlu0 %v3482
        %v3484 = vpop.xlane.xlu0 %3483
        %v3485 = vsel %vm3268, %v3212, 0.0
        %3486 = vadd.xlane.f32.xlu0 %v3485
        %v3487 = vpop.xlane.xlu0 %3486
        %v3488 = vsel %vm3268, %v3213, 0.0
        %3489 = vadd.xlane.f32.xlu0 %v3488
        %v3490 = vpop.xlane.xlu0 %3489
        %v3491 = vsel %vm3268, %v3214, 0.0
        %3492 = vadd.xlane.f32.xlu0 %v3491
        %v3493 = vpop.xlane.xlu0 %3492
        %v3494 = vsel %vm3268, %v3215, 0.0
        %3495 = vadd.xlane.f32.xlu0 %v3494
        %v3496 = vpop.xlane.xlu0 %3495
        %v3497 = vsel %vm3268, %v3216, 0.0
        %3498 = vadd.xlane.f32.xlu0 %v3497
        %v3499 = vpop.xlane.xlu0 %3498
        %v3500 = vsel %vm3268, %v3217, 0.0
        %3501 = vadd.xlane.f32.xlu0 %v3500
        %v3502 = vpop.xlane.xlu0 %3501
        %v3503 = vsel %vm3268, %v3218, 0.0
        %3504 = vadd.xlane.f32.xlu0 %v3503
        %v3505 = vpop.xlane.xlu0 %3504
        %v3506 = vsel %vm3268, %v3219, 0.0
        %3507 = vadd.xlane.f32.xlu0 %v3506
        %v3508 = vpop.xlane.xlu0 %3507
        %v3509 = vsel %vm3268, %v3220, 0.0
        %3510 = vadd.xlane.f32.xlu0 %v3509
        %v3511 = vpop.xlane.xlu0 %3510
        %v3512 = vsel %vm3268, %v3221, 0.0
        %3513 = vadd.xlane.f32.xlu0 %v3512
        %v3514 = vpop.xlane.xlu0 %3513
        %v3515 = vsel %vm3268, %v3222, 0.0
        %3516 = vadd.xlane.f32.xlu0 %v3515
        %v3517 = vpop.xlane.xlu0 %3516
        %v3518 = vsel %vm3268, %v3223, 0.0
        %3519 = vadd.xlane.f32.xlu0 %v3518
        %v3520 = vpop.xlane.xlu0 %3519
        %v3521 = vsel %vm3268, %v3224, 0.0
        %3522 = vadd.xlane.f32.xlu0 %v3521
        %v3523 = vpop.xlane.xlu0 %3522
        %v3524 = vsel %vm3268, %v3225, 0.0
        %3525 = vadd.xlane.f32.xlu0 %v3524
        %v3526 = vpop.xlane.xlu0 %3525
        %v3527 = vsel %vm3268, %v3226, 0.0
        %3528 = vadd.xlane.f32.xlu0 %v3527
        %v3529 = vpop.xlane.xlu0 %3528
        %v3530 = vsel %vm3268, %v3227, 0.0
        %3531 = vadd.xlane.f32.xlu0 %v3530
        %v3532 = vpop.xlane.xlu0 %3531
        %v3533 = vsel %vm3268, %v3228, 0.0
        %3534 = vadd.xlane.f32.xlu0 %v3533
        %v3535 = vpop.xlane.xlu0 %3534
        %v3536 = vsel %vm3268, %v3229, 0.0
        %3537 = vadd.xlane.f32.xlu0 %v3536
        %v3538 = vpop.xlane.xlu0 %3537
        %v3539 = vsel %vm3268, %v3230, 0.0
        %3540 = vadd.xlane.f32.xlu0 %v3539
        %v3541 = vpop.xlane.xlu0 %3540
        %v3542 = vsel %vm3268, %v3231, 0.0
        %3543 = vadd.xlane.f32.xlu0 %v3542
        %v3544 = vpop.xlane.xlu0 %3543
        %v3545 = vsel %vm3268, %v3232, 0.0
        %3546 = vadd.xlane.f32.xlu0 %v3545
        %v3547 = vpop.xlane.xlu0 %3546
        %v3548 = vsel %vm3268, %v3233, 0.0
        %3549 = vadd.xlane.f32.xlu0 %v3548
        %v3550 = vpop.xlane.xlu0 %3549
        %v3551 = vsel %vm3268, %v3234, 0.0
        %3552 = vadd.xlane.f32.xlu0 %v3551
        %v3553 = vpop.xlane.xlu0 %3552
        %v3554 = vsel %vm3268, %v3235, 0.0
        %3555 = vadd.xlane.f32.xlu0 %v3554
        %v3556 = vpop.xlane.xlu0 %3555
        %v3557 = vsel %vm3268, %v3236, 0.0
        %3558 = vadd.xlane.f32.xlu0 %v3557
        %v3559 = vpop.xlane.xlu0 %3558
        %v3560 = vsel %vm3268, %v3237, 0.0
        %3561 = vadd.xlane.f32.xlu0 %v3560
        %v3562 = vpop.xlane.xlu0 %3561
        %v3563 = vsel %vm3268, %v3238, 0.0
        %3564 = vadd.xlane.f32.xlu0 %v3563
        %v3565 = vpop.xlane.xlu0 %3564
        %v3566 = vsel %vm3268, %v3239, 0.0
        %3567 = vadd.xlane.f32.xlu0 %v3566
        %v3568 = vpop.xlane.xlu0 %3567
        %v3569 = vsel %vm3268, %v3240, 0.0
        %3570 = vadd.xlane.f32.xlu0 %v3569
        %v3571 = vpop.xlane.xlu0 %3570
        %v3572 = vsel %vm3268, %v3241, 0.0
        %3573 = vadd.xlane.f32.xlu0 %v3572
        %v3574 = vpop.xlane.xlu0 %3573
        %v3575 = vsel %vm3268, %v3242, 0.0
        %3576 = vadd.xlane.f32.xlu0 %v3575
        %v3577 = vpop.xlane.xlu0 %3576
        %v3578 = vsel %vm3268, %v3243, 0.0
        %3579 = vadd.xlane.f32.xlu0 %v3578
        %v3580 = vpop.xlane.xlu0 %3579
        %v3581 = vsel %vm3268, %v3244, 0.0
        %3582 = vadd.xlane.f32.xlu0 %v3581
        %v3583 = vpop.xlane.xlu0 %3582
        %v3584 = vsel %vm3268, %v3245, 0.0
        %3585 = vadd.xlane.f32.xlu0 %v3584
        %v3586 = vpop.xlane.xlu0 %3585
        %v3587 = vsel %vm3268, %v3246, 0.0
        %3588 = vadd.xlane.f32.xlu0 %v3587
        %v3589 = vpop.xlane.xlu0 %3588
        %v3590 = vsel %vm3268, %v3247, 0.0
        %3591 = vadd.xlane.f32.xlu0 %v3590
        %v3592 = vpop.xlane.xlu0 %3591
        %v3593 = vsel %vm3268, %v3248, 0.0
        %3594 = vadd.xlane.f32.xlu0 %v3593
        %v3595 = vpop.xlane.xlu0 %3594
        %v3596 = vsel %vm3268, %v3249, 0.0
        %3597 = vadd.xlane.f32.xlu0 %v3596
        %v3598 = vpop.xlane.xlu0 %3597
        %v3599 = vsel %vm3268, %v3250, 0.0
        %3600 = vadd.xlane.f32.xlu0 %v3599
        %v3601 = vpop.xlane.xlu0 %3600
        %v3602 = vsel %vm3268, %v3251, 0.0
        %3603 = vadd.xlane.f32.xlu0 %v3602
        %v3604 = vpop.xlane.xlu0 %3603
        %v3605 = vsel %vm3268, %v3252, 0.0
        %3606 = vadd.xlane.f32.xlu0 %v3605
        %v3607 = vpop.xlane.xlu0 %3606
        %v3608 = vsel %vm3268, %v3253, 0.0
        %3609 = vadd.xlane.f32.xlu0 %v3608
        %v3610 = vpop.xlane.xlu0 %3609
        %v3611 = vsel %vm3268, %v3254, 0.0
        %3612 = vadd.xlane.f32.xlu0 %v3611
        %v3613 = vpop.xlane.xlu0 %3612
        %v3614 = vsel %vm3268, %v3255, 0.0
        %3615 = vadd.xlane.f32.xlu0 %v3614
        %v3616 = vpop.xlane.xlu0 %3615
        %v3617 = vsel %vm3268, %v3256, 0.0
        %3618 = vadd.xlane.f32.xlu0 %v3617
        %v3619 = vpop.xlane.xlu0 %3618
        %v3620 = vsel %vm3268, %v3257, 0.0
        %3621 = vadd.xlane.f32.xlu0 %v3620
        %v3622 = vpop.xlane.xlu0 %3621
        %v3623 = vsel %vm3268, %v3258, 0.0
        %3624 = vadd.xlane.f32.xlu0 %v3623
        %v3625 = vpop.xlane.xlu0 %3624
        %v3626 = vsel %vm3268, %v3259, 0.0
        %3627 = vadd.xlane.f32.xlu0 %v3626
        %v3628 = vpop.xlane.xlu0 %3627
        %v3629 = vsel %vm3268, %v3260, 0.0
        %3630 = vadd.xlane.f32.xlu0 %v3629
        %v3631 = vpop.xlane.xlu0 %3630
        %v3632 = vsel %vm3268, %v3261, 0.0
        %3633 = vadd.xlane.f32.xlu0 %v3632
        %v3634 = vpop.xlane.xlu0 %3633
        %v3635 = vsel %vm3268, %v3262, 0.0
        %3636 = vadd.xlane.f32.xlu0 %v3635
        %v3637 = vpop.xlane.xlu0 %3636
        %v3638 = vsel %vm3268, %v3263, 0.0
        %3639 = vadd.xlane.f32.xlu0 %v3638
        %v3640 = vpop.xlane.xlu0 %3639
        %v3641 = vsel %vm3268, %v3264, 0.0
        %3642 = vadd.xlane.f32.xlu0 %v3641
        %v3643 = vpop.xlane.xlu0 %3642
        %v3644 = vsel %vm3268, %v3265, 0.0
        %3645 = vadd.xlane.f32.xlu0 %v3644
        %v3646 = vpop.xlane.xlu0 %3645
        %v3647 = vsel %vm3268, %v3266, 0.0
        %3648 = vadd.xlane.f32.xlu0 %v3647
        %v3649 = vpop.xlane.xlu0 %3648
        %v3650 = vsel %vm3268, %v3267, 0.0
        %3651 = vadd.xlane.f32.xlu0 %v3650
        %v3652 = vpop.xlane.xlu0 %3651
        %3653 = vxpose.xlu0.b32.start [1/16] %v3271, 128
        %3654 = vxpose.xlu0.b32.cont [2/16] %v3274, 128
        %3655 = vxpose.xlu0.b32.cont [3/16] %v3277, 128
        %3656 = vxpose.xlu0.b32.cont [4/16] %v3280, 128
        %3657 = vxpose.xlu0.b32.cont [5/16] %v3283, 128
        %3658 = vxpose.xlu0.b32.cont [6/16] %v3286, 128
        %3659 = vxpose.xlu0.b32.cont [7/16] %v3289, 128
        %3660 = vxpose.xlu0.b32.cont [8/16] %v3292, 128
        %3661 = vxpose.xlu0.b32.cont [9/16] %v3295, 128
        %3662 = vxpose.xlu0.b32.cont [10/16] %v3298, 128
        %3663 = vxpose.xlu0.b32.cont [11/16] %v3301, 128
        %3664 = vxpose.xlu0.b32.cont [12/16] %v3304, 128
        %3665 = vxpose.xlu0.b32.cont [13/16] %v3307, 128
        %3666 = vxpose.xlu0.b32.cont [14/16] %v3310, 128
        %3667 = vxpose.xlu0.b32.cont [15/16] %v3313, 128
        %3668 = vxpose.xlu0.b32.end [16/16] %v3316, 128
        %v3669 = vpop.trf.xlu0
        %v3670 = vpop.trf.xlu0
        %v3671 = vpop.trf.xlu0
        %v3672 = vpop.trf.xlu0
        %v3673 = vpop.trf.xlu0
        %v3674 = vpop.trf.xlu0
        %v3675 = vpop.trf.xlu0
        %v3676 = vpop.trf.xlu0
        %v3677 = vpop.trf.xlu0
        %v3678 = vpop.trf.xlu0
        %v3679 = vpop.trf.xlu0
        %v3680 = vpop.trf.xlu0
        %v3681 = vpop.trf.xlu0
        %v3682 = vpop.trf.xlu0
        %v3683 = vpop.trf.xlu0
        %v3684 = vpop.trf.xlu0
        %3685 = vxpose.xlu0.b32.start [1/16] %v3319, 128
        %3686 = vxpose.xlu0.b32.cont [2/16] %v3322, 128
        %3687 = vxpose.xlu0.b32.cont [3/16] %v3325, 128
        %3688 = vxpose.xlu0.b32.cont [4/16] %v3328, 128
        %3689 = vxpose.xlu0.b32.cont [5/16] %v3331, 128
        %3690 = vxpose.xlu0.b32.cont [6/16] %v3334, 128
        %3691 = vxpose.xlu0.b32.cont [7/16] %v3337, 128
        %3692 = vxpose.xlu0.b32.cont [8/16] %v3340, 128
        %3693 = vxpose.xlu0.b32.cont [9/16] %v3343, 128
        %3694 = vxpose.xlu0.b32.cont [10/16] %v3346, 128
        %3695 = vxpose.xlu0.b32.cont [11/16] %v3349, 128
        %3696 = vxpose.xlu0.b32.cont [12/16] %v3352, 128
        %3697 = vxpose.xlu0.b32.cont [13/16] %v3355, 128
        %3698 = vxpose.xlu0.b32.cont [14/16] %v3358, 128
        %3699 = vxpose.xlu0.b32.cont [15/16] %v3361, 128
        %3700 = vxpose.xlu0.b32.end [16/16] %v3364, 128
        %v3701 = vpop.trf.xlu0
        %v3702 = vpop.trf.xlu0
        %v3703 = vpop.trf.xlu0
        %v3704 = vpop.trf.xlu0
        %v3705 = vpop.trf.xlu0
        %v3706 = vpop.trf.xlu0
        %v3707 = vpop.trf.xlu0
        %v3708 = vpop.trf.xlu0
        %v3709 = vpop.trf.xlu0
        %v3710 = vpop.trf.xlu0
        %v3711 = vpop.trf.xlu0
        %v3712 = vpop.trf.xlu0
        %v3713 = vpop.trf.xlu0
        %v3714 = vpop.trf.xlu0
        %v3715 = vpop.trf.xlu0
        %v3716 = vpop.trf.xlu0
        %3717 = vxpose.xlu0.b32.start [1/16] %v3367, 128
        %3718 = vxpose.xlu0.b32.cont [2/16] %v3370, 128
        %3719 = vxpose.xlu0.b32.cont [3/16] %v3373, 128
        %3720 = vxpose.xlu0.b32.cont [4/16] %v3376, 128
        %3721 = vxpose.xlu0.b32.cont [5/16] %v3379, 128
        %3722 = vxpose.xlu0.b32.cont [6/16] %v3382, 128
        %3723 = vxpose.xlu0.b32.cont [7/16] %v3385, 128
        %3724 = vxpose.xlu0.b32.cont [8/16] %v3388, 128
        %3725 = vxpose.xlu0.b32.cont [9/16] %v3391, 128
        %3726 = vxpose.xlu0.b32.cont [10/16] %v3394, 128
        %3727 = vxpose.xlu0.b32.cont [11/16] %v3397, 128
        %3728 = vxpose.xlu0.b32.cont [12/16] %v3400, 128
        %3729 = vxpose.xlu0.b32.cont [13/16] %v3403, 128
        %3730 = vxpose.xlu0.b32.cont [14/16] %v3406, 128
        %3731 = vxpose.xlu0.b32.cont [15/16] %v3409, 128
        %3732 = vxpose.xlu0.b32.end [16/16] %v3412, 128
        %v3733 = vpop.trf.xlu0
        %v3734 = vpop.trf.xlu0
        %v3735 = vpop.trf.xlu0
        %v3736 = vpop.trf.xlu0
        %v3737 = vpop.trf.xlu0
        %v3738 = vpop.trf.xlu0
        %v3739 = vpop.trf.xlu0
        %v3740 = vpop.trf.xlu0
        %v3741 = vpop.trf.xlu0
        %v3742 = vpop.trf.xlu0
        %v3743 = vpop.trf.xlu0
        %v3744 = vpop.trf.xlu0
        %v3745 = vpop.trf.xlu0
        %v3746 = vpop.trf.xlu0
        %v3747 = vpop.trf.xlu0
        %v3748 = vpop.trf.xlu0
        %3749 = vxpose.xlu0.b32.start [1/16] %v3415, 128
        %3750 = vxpose.xlu0.b32.cont [2/16] %v3418, 128
        %3751 = vxpose.xlu0.b32.cont [3/16] %v3421, 128
        %3752 = vxpose.xlu0.b32.cont [4/16] %v3424, 128
        %3753 = vxpose.xlu0.b32.cont [5/16] %v3427, 128
        %3754 = vxpose.xlu0.b32.cont [6/16] %v3430, 128
        %3755 = vxpose.xlu0.b32.cont [7/16] %v3433, 128
        %3756 = vxpose.xlu0.b32.cont [8/16] %v3436, 128
        %3757 = vxpose.xlu0.b32.cont [9/16] %v3439, 128
        %3758 = vxpose.xlu0.b32.cont [10/16] %v3442, 128
        %3759 = vxpose.xlu0.b32.cont [11/16] %v3445, 128
        %3760 = vxpose.xlu0.b32.cont [12/16] %v3448, 128
        %3761 = vxpose.xlu0.b32.cont [13/16] %v3451, 128
        %3762 = vxpose.xlu0.b32.cont [14/16] %v3454, 128
        %3763 = vxpose.xlu0.b32.cont [15/16] %v3457, 128
        %3764 = vxpose.xlu0.b32.end [16/16] %v3460, 128
        %v3765 = vpop.trf.xlu0
        %v3766 = vpop.trf.xlu0
        %v3767 = vpop.trf.xlu0
        %v3768 = vpop.trf.xlu0
        %v3769 = vpop.trf.xlu0
        %v3770 = vpop.trf.xlu0
        %v3771 = vpop.trf.xlu0
        %v3772 = vpop.trf.xlu0
        %v3773 = vpop.trf.xlu0
        %v3774 = vpop.trf.xlu0
        %v3775 = vpop.trf.xlu0
        %v3776 = vpop.trf.xlu0
        %v3777 = vpop.trf.xlu0
        %v3778 = vpop.trf.xlu0
        %v3779 = vpop.trf.xlu0
        %v3780 = vpop.trf.xlu0
        %3781 = vxpose.xlu0.b32.start [1/16] %v3463, 128
        %3782 = vxpose.xlu0.b32.cont [2/16] %v3466, 128
        %3783 = vxpose.xlu0.b32.cont [3/16] %v3469, 128
        %3784 = vxpose.xlu0.b32.cont [4/16] %v3472, 128
        %3785 = vxpose.xlu0.b32.cont [5/16] %v3475, 128
        %3786 = vxpose.xlu0.b32.cont [6/16] %v3478, 128
        %3787 = vxpose.xlu0.b32.cont [7/16] %v3481, 128
        %3788 = vxpose.xlu0.b32.cont [8/16] %v3484, 128
        %3789 = vxpose.xlu0.b32.cont [9/16] %v3487, 128
        %3790 = vxpose.xlu0.b32.cont [10/16] %v3490, 128
        %3791 = vxpose.xlu0.b32.cont [11/16] %v3493, 128
        %3792 = vxpose.xlu0.b32.cont [12/16] %v3496, 128
        %3793 = vxpose.xlu0.b32.cont [13/16] %v3499, 128
        %3794 = vxpose.xlu0.b32.cont [14/16] %v3502, 128
        %3795 = vxpose.xlu0.b32.cont [15/16] %v3505, 128
        %3796 = vxpose.xlu0.b32.end [16/16] %v3508, 128
        %v3797 = vpop.trf.xlu0
        %v3798 = vpop.trf.xlu0
        %v3799 = vpop.trf.xlu0
        %v3800 = vpop.trf.xlu0
        %v3801 = vpop.trf.xlu0
        %v3802 = vpop.trf.xlu0
        %v3803 = vpop.trf.xlu0
        %v3804 = vpop.trf.xlu0
        %v3805 = vpop.trf.xlu0
        %v3806 = vpop.trf.xlu0
        %v3807 = vpop.trf.xlu0
        %v3808 = vpop.trf.xlu0
        %v3809 = vpop.trf.xlu0
        %v3810 = vpop.trf.xlu0
        %v3811 = vpop.trf.xlu0
        %v3812 = vpop.trf.xlu0
        %3813 = vxpose.xlu0.b32.start [1/16] %v3511, 128
        %3814 = vxpose.xlu0.b32.cont [2/16] %v3514, 128
        %3815 = vxpose.xlu0.b32.cont [3/16] %v3517, 128
        %3816 = vxpose.xlu0.b32.cont [4/16] %v3520, 128
        %3817 = vxpose.xlu0.b32.cont [5/16] %v3523, 128
        %3818 = vxpose.xlu0.b32.cont [6/16] %v3526, 128
        %3819 = vxpose.xlu0.b32.cont [7/16] %v3529, 128
        %3820 = vxpose.xlu0.b32.cont [8/16] %v3532, 128
        %3821 = vxpose.xlu0.b32.cont [9/16] %v3535, 128
        %3822 = vxpose.xlu0.b32.cont [10/16] %v3538, 128
        %3823 = vxpose.xlu0.b32.cont [11/16] %v3541, 128
        %3824 = vxpose.xlu0.b32.cont [12/16] %v3544, 128
        %3825 = vxpose.xlu0.b32.cont [13/16] %v3547, 128
        %3826 = vxpose.xlu0.b32.cont [14/16] %v3550, 128
        %3827 = vxpose.xlu0.b32.cont [15/16] %v3553, 128
        %3828 = vxpose.xlu0.b32.end [16/16] %v3556, 128
        %v3829 = vpop.trf.xlu0
        %v3830 = vpop.trf.xlu0
        %v3831 = vpop.trf.xlu0
        %v3832 = vpop.trf.xlu0
        %v3833 = vpop.trf.xlu0
        %v3834 = vpop.trf.xlu0
        %v3835 = vpop.trf.xlu0
        %v3836 = vpop.trf.xlu0
        %v3837 = vpop.trf.xlu0
        %v3838 = vpop.trf.xlu0
        %v3839 = vpop.trf.xlu0
        %v3840 = vpop.trf.xlu0
        %v3841 = vpop.trf.xlu0
        %v3842 = vpop.trf.xlu0
        %v3843 = vpop.trf.xlu0
        %v3844 = vpop.trf.xlu0
        %3845 = vxpose.xlu0.b32.start [1/16] %v3559, 128
        %3846 = vxpose.xlu0.b32.cont [2/16] %v3562, 128
        %3847 = vxpose.xlu0.b32.cont [3/16] %v3565, 128
        %3848 = vxpose.xlu0.b32.cont [4/16] %v3568, 128
        %3849 = vxpose.xlu0.b32.cont [5/16] %v3571, 128
        %3850 = vxpose.xlu0.b32.cont [6/16] %v3574, 128
        %3851 = vxpose.xlu0.b32.cont [7/16] %v3577, 128
        %3852 = vxpose.xlu0.b32.cont [8/16] %v3580, 128
        %3853 = vxpose.xlu0.b32.cont [9/16] %v3583, 128
        %3854 = vxpose.xlu0.b32.cont [10/16] %v3586, 128
        %3855 = vxpose.xlu0.b32.cont [11/16] %v3589, 128
        %3856 = vxpose.xlu0.b32.cont [12/16] %v3592, 128
        %3857 = vxpose.xlu0.b32.cont [13/16] %v3595, 128
        %3858 = vxpose.xlu0.b32.cont [14/16] %v3598, 128
        %3859 = vxpose.xlu0.b32.cont [15/16] %v3601, 128
        %3860 = vxpose.xlu0.b32.end [16/16] %v3604, 128
        %v3861 = vpop.trf.xlu0
        %v3862 = vpop.trf.xlu0
        %v3863 = vpop.trf.xlu0
        %v3864 = vpop.trf.xlu0
        %v3865 = vpop.trf.xlu0
        %v3866 = vpop.trf.xlu0
        %v3867 = vpop.trf.xlu0
        %v3868 = vpop.trf.xlu0
        %v3869 = vpop.trf.xlu0
        %v3870 = vpop.trf.xlu0
        %v3871 = vpop.trf.xlu0
        %v3872 = vpop.trf.xlu0
        %v3873 = vpop.trf.xlu0
        %v3874 = vpop.trf.xlu0
        %v3875 = vpop.trf.xlu0
        %v3876 = vpop.trf.xlu0
        %3877 = vxpose.xlu0.b32.start [1/16] %v3607, 128
        %3878 = vxpose.xlu0.b32.cont [2/16] %v3610, 128
        %3879 = vxpose.xlu0.b32.cont [3/16] %v3613, 128
        %3880 = vxpose.xlu0.b32.cont [4/16] %v3616, 128
        %3881 = vxpose.xlu0.b32.cont [5/16] %v3619, 128
        %3882 = vxpose.xlu0.b32.cont [6/16] %v3622, 128
        %3883 = vxpose.xlu0.b32.cont [7/16] %v3625, 128
        %3884 = vxpose.xlu0.b32.cont [8/16] %v3628, 128
        %3885 = vxpose.xlu0.b32.cont [9/16] %v3631, 128
        %3886 = vxpose.xlu0.b32.cont [10/16] %v3634, 128
        %3887 = vxpose.xlu0.b32.cont [11/16] %v3637, 128
        %3888 = vxpose.xlu0.b32.cont [12/16] %v3640, 128
        %3889 = vxpose.xlu0.b32.cont [13/16] %v3643, 128
        %3890 = vxpose.xlu0.b32.cont [14/16] %v3646, 128
        %3891 = vxpose.xlu0.b32.cont [15/16] %v3649, 128
        %3892 = vxpose.xlu0.b32.end [16/16] %v3652, 128
        %v3893 = vpop.trf.xlu0
        %v3894 = vpop.trf.xlu0
        %v3895 = vpop.trf.xlu0
        %v3896 = vpop.trf.xlu0
        %v3897 = vpop.trf.xlu0
        %v3898 = vpop.trf.xlu0
        %v3899 = vpop.trf.xlu0
        %v3900 = vpop.trf.xlu0
        %v3901 = vpop.trf.xlu0
        %v3902 = vpop.trf.xlu0
        %v3903 = vpop.trf.xlu0
        %v3904 = vpop.trf.xlu0
        %v3905 = vpop.trf.xlu0
        %v3906 = vpop.trf.xlu0
        %v3907 = vpop.trf.xlu0
        %v3908 = vpop.trf.xlu0
        %v3917 = vrot.slane %v3701, 7
        %v3918 = vrot.slane %v3733, 6
        %v3919 = vrot.slane %v3765, 5
        %v3920 = vrot.slane %v3797, 4
        %v3921 = vrot.slane %v3829, 3
        %v3922 = vrot.slane %v3861, 2
        %v3923 = vrot.slane %v3893, 1
        %vm3924 = vcmask 1040384
        %v3925 = vsel %vm3924, %v3669, %v3917
        %vm3926 = vcmask 1042434
        %v3927 = vsel %vm3926, %v3918, %v3919
        %vm3928 = vcmask 1041408
        %v3929 = vsel %vm3928, %v3925, %v3927
        %vm3930 = vcmask 1044484
        %v3931 = vsel %vm3930, %v3920, %v3921
        %vm3932 = vcmask 1046534
        %v3933 = vsel %vm3932, %v3922, %v3923
        %vm3934 = vcmask 1045508
        %v3935 = vsel %vm3934, %v3931, %v3933
        %vm3936 = vcmask 1043456
        %v3937 = vsel %vm3936, %v3929, %v3935
        %3939 = vst [vmem:[%s218] sm:$0xff] %v3937
        %s3940 = sand.u32 %s137, 1
        %s3941 = scalar_lea.sflag [#allocation3], %s3940
        %s3942 = sand.u32 %s137, 1
        %s3943 = smul.addr %s3942, 8
        %s3944 = scalar_lea.vmem [#allocation2], %s3943
        // Predicated region
        $region41: #{tpu_custom_call.1} parent=39 // pred_check
          %p3945 = pneg %p147
        $region42: #{tpu_custom_call.1} parent=39 // pred_check_branch
          %3947 = sbr.rel (%p3945) target = $region44
        $region43: #{tpu_custom_call.1} parent=39 // pred_region
          %s3948 = smul.u32 8, %s19
          %3950 = vsyncadd %s3941, 0
          %s3951 = scalar_lea.hbm %s5, %s3948
          %s3953 = sshll.u32 %s3944, 4
          %s3954 = int_to_ptr.vmem [resolvable:$true] %s3953
          %s3955 = sshll.u32 %s3951, 4
          %s3956 = int_to_ptr.hbm [resolvable:$true] %s3955
          %3958 = dma.vmem_to_hbm [thread:$0]  %s3954, 128, %s3956, %s3941
        $region44: #{tpu_custom_call.1} parent=39 // pred_fallthru
          _
      $region40: #{tpu_custom_call.1} parent=5 // pred_fallthru
        _
      %p3959 = scmp.le.s32.totalorder 2, %s14
      // Predicated region
      $region45: #{tpu_custom_call.1} parent=5 // pred_check
        %p3960 = pneg %p3959
      $region46: #{tpu_custom_call.1} parent=5 // pred_check_branch
        %3962 = sbr.rel (%p3960) target = $region48
      $region47: #{tpu_custom_call.1} parent=5 // pred_region
        %s3963 = ssub.s32 %s14, 2
        // Predicated region
        $region49: #{tpu_custom_call.1} parent=47 // pred_check
          %p3964 = pneg %p153
        $region50: #{tpu_custom_call.1} parent=47 // pred_check_branch
          %3966 = sbr.rel (%p3964) target = $region52
        $region51: #{tpu_custom_call.1} parent=47 // pred_region
          %s3967 = sand.u32 %s138, 1
          %s3968 = scalar_lea.sflag [#allocation3], %s3967
          %s3969 = sand.u32 %s138, 1
          %s3970 = smul.addr %s3969, 8
          %s3971 = scalar_lea.vmem [#allocation2], %s3970
          %3973 = dma.done %s3968, 128
        $region52: #{tpu_custom_call.1} parent=47 // pred_fallthru
          _
      $region48: #{tpu_custom_call.1} parent=5 // pred_fallthru
        _
    $region6: #{tpu_custom_call.1} parent=1 // loop_footer
      %s18 = sadd.s32 1, %s14
    $region7: #{tpu_custom_call.1} parent=1 // loop_footer_branch
      %13 = sbr.rel target = $region3
    $region8: #{tpu_custom_call.1} parent=1 // loop_exit
      _
    %3974 = vsyncpa [#allocation3], 1
    %s3975 = scalar_lea.sflag [#allocation3], 1
    %3976 = vsyncpa %s3975, 1

// kernel: tpu_custom_call.1
$region0: #{tpu_custom_call.1}
  #allocation0 [shape = 'u32[]', space=smem, size = 0x4, offset = 0x4, fixed_abs, tag = 'smem constant byte address 0x4 - core index']
  #allocation1 [shape = 'u32[72,128]{1,0:T(1,128)}', space=vmem, size = 0x9000, scoped, tag = 'internal scratch']
  %s0 = inlined_call_operand.vmem [shape: f32[2048,12], index: 0, kind: input, shape index: {}]
  %s1 = inlined_call_operand.vmem [shape: bf16[12,192], index: 1, kind: input, shape index: {}]
  %s2 = inlined_call_operand.vmem [shape: f32[1,192], index: 2, kind: input, shape index: {}]
  %s3 = inlined_call_operand.vmem [shape: bf16[192,96], index: 3, kind: input, shape index: {}]
  %s4 = inlined_call_operand.vmem [shape: f32[1,96], index: 4, kind: input, shape index: {}]
  %s5 = inlined_call_operand.vmem [shape: f32[2048,1], index: 5, kind: output, shape index: {}]
  %s6 = sld [smem:[#allocation0]]
  $region53: #{tpu_custom_call.1} parent=0
    _
  %s8 = ssub.s32 1, %s6
  %s9 = scalar_select 0, %s8, %s6
  loop: start=0, step=1, limit=4
  $region2: #{tpu_custom_call.1} parent=0 // loop_pre_header
    _
  $region3: #{tpu_custom_call.1} parent=0 // loop_header
    %s11 = sphi 0, %s15
    %p12 = scmp.ge.s32.totalorder %s11, 4
    %s21 = sphi 0, %s23
    %s24 = sphi 0, %s21
    %s25 = sphi 0, %s24
    %s41 = sphi 0, %s25
    %s45 = sphi 0, %s45
    %s47 = sphi 0, %s45
    %s48 = sphi 0, %s47
    %s62 = sphi 0, %s48
    %s66 = sphi 0, %s66
    %s68 = sphi 0, %s66
    %s69 = sphi 0, %s68
    %s83 = sphi 0, %s69
    %s87 = sphi 0, %s87
    %s89 = sphi 0, %s87
    %s90 = sphi 0, %s89
    %s104 = sphi 0, %s90
    %s108 = sphi 0, %s108
    %s110 = sphi 0, %s108
    %s111 = sphi 0, %s110
    %s125 = sphi 0, %s111
    %s131 = sphi 0, %s133
    %s134 = sphi 0, %s131
    %s135 = sphi 0, %s134
    %s151 = sphi 0, %s135
  $region4: #{tpu_custom_call.1} parent=0 // loop_header_branch
    %14 = sbr.rel (%p12) target = $region8
  $region5: #{tpu_custom_call.1} parent=0 // loop_body
    %s16 = ssub.s32 %s11, 1
    %s17 = ssub.s32 %s11, 2
    %s18 = sadd.s32 %s11, 1
    %s19 = ssub.s32 %s11, %s18
    %p20 = scmp.eq.s32.totalorder %s19, 0
    %s22 = sadd.s32 %s21, 1
    %s23 = scalar_select %p20, %s21, %s22
    %p26 = pneg %p20
    %p27 = scmp.eq.s32.totalorder %s11, 1
    %p28 = por %p26, %p27
    %p29 = scmp.ne.s32.totalorder %s21, %s24
    %p30 = scmp.eq.s32.totalorder %s11, 0
    %p31 = por %p29, %p30
    %p32 = scmp.ne.s32.totalorder %s21, %s24
    %p33 = scmp.eq.s32.totalorder %s16, 1
    %p34 = por %p32, %p33
    %p35 = scmp.ne.s32.totalorder %s24, %s25
    %p36 = scmp.eq.s32.totalorder %s16, 0
    %p37 = por %p35, %p36
    %p38 = scmp.ne.s32.totalorder %s24, %s25
    %p39 = scmp.eq.s32.totalorder %s17, 1
    %p40 = por %p38, %p39
    %p42 = scmp.ne.s32.totalorder %s25, %s41
    %p43 = scmp.eq.s32.totalorder %s17, 0
    %p44 = por %p42, %p43
    %s46 = sadd.s32 %s45, 1
    %p49 = scmp.eq.s32.totalorder %s11, 1
    %p50 = scmp.ne.s32.totalorder %s45, %s47
    %p51 = scmp.eq.s32.totalorder %s11, 0
    %p52 = por %p50, %p51
    %p53 = scmp.ne.s32.totalorder %s45, %s47
    %p54 = scmp.eq.s32.totalorder %s16, 1
    %p55 = por %p53, %p54
    %p56 = scmp.ne.s32.totalorder %s47, %s48
    %p57 = scmp.eq.s32.totalorder %s16, 0
    %p58 = por %p56, %p57
    %p59 = scmp.ne.s32.totalorder %s47, %s48
    %p60 = scmp.eq.s32.totalorder %s17, 1
    %p61 = por %p59, %p60
    %p63 = scmp.ne.s32.totalorder %s48, %s62
    %p64 = scmp.eq.s32.totalorder %s17, 0
    %p65 = por %p63, %p64
    %s67 = sadd.s32 %s66, 1
    %p70 = scmp.eq.s32.totalorder %s11, 1
    %p71 = scmp.ne.s32.totalorder %s66, %s68
    %p72 = scmp.eq.s32.totalorder %s11, 0
    %p73 = por %p71, %p72
    %p74 = scmp.ne.s32.totalorder %s66, %s68
    %p75 = scmp.eq.s32.totalorder %s16, 1
    %p76 = por %p74, %p75
    %p77 = scmp.ne.s32.totalorder %s68, %s69
    %p78 = scmp.eq.s32.totalorder %s16, 0
    %p79 = por %p77, %p78
    %p80 = scmp.ne.s32.totalorder %s68, %s69
    %p81 = scmp.eq.s32.totalorder %s17, 1
    %p82 = por %p80, %p81
    %p84 = scmp.ne.s32.totalorder %s69, %s83
    %p85 = scmp.eq.s32.totalorder %s17, 0
    %p86 = por %p84, %p85
    %s88 = sadd.s32 %s87, 1
    %p91 = scmp.eq.s32.totalorder %s11, 1
    %p92 = scmp.ne.s32.totalorder %s87, %s89
    %p93 = scmp.eq.s32.totalorder %s11, 0
    %p94 = por %p92, %p93
    %p95 = scmp.ne.s32.totalorder %s87, %s89
    %p96 = scmp.eq.s32.totalorder %s16, 1
    %p97 = por %p95, %p96
    %p98 = scmp.ne.s32.totalorder %s89, %s90
    %p99 = scmp.eq.s32.totalorder %s16, 0
    %p100 = por %p98, %p99
    %p101 = scmp.ne.s32.totalorder %s89, %s90
    %p102 = scmp.eq.s32.totalorder %s17, 1
    %p103 = por %p101, %p102
    %p105 = scmp.ne.s32.totalorder %s90, %s104
    %p106 = scmp.eq.s32.totalorder %s17, 0
    %p107 = por %p105, %p106
    %s109 = sadd.s32 %s108, 1
    %p112 = scmp.eq.s32.totalorder %s11, 1
    %p113 = scmp.ne.s32.totalorder %s108, %s110
    %p114 = scmp.eq.s32.totalorder %s11, 0
    %p115 = por %p113, %p114
    %p116 = scmp.ne.s32.totalorder %s108, %s110
    %p117 = scmp.eq.s32.totalorder %s16, 1
    %p118 = por %p116, %p117
    %p119 = scmp.ne.s32.totalorder %s110, %s111
    %p120 = scmp.eq.s32.totalorder %s16, 0
    %p121 = por %p119, %p120
    %p122 = scmp.ne.s32.totalorder %s110, %s111
    %p123 = scmp.eq.s32.totalorder %s17, 1
    %p124 = por %p122, %p123
    %p126 = scmp.ne.s32.totalorder %s111, %s125
    %p127 = scmp.eq.s32.totalorder %s17, 0
    %p128 = por %p126, %p127
    %s129 = ssub.s32 %s11, %s18
    %p130 = scmp.eq.s32.totalorder %s129, 0
    %s132 = sadd.s32 %s131, 1
    %s133 = scalar_select %p130, %s131, %s132
    %p136 = pneg %p130
    %p137 = scmp.eq.s32.totalorder %s11, 1
    %p138 = por %p136, %p137
    %p139 = scmp.ne.s32.totalorder %s131, %s134
    %p140 = scmp.eq.s32.totalorder %s11, 0
    %p141 = por %p139, %p140
    %p142 = scmp.ne.s32.totalorder %s131, %s134
    %p143 = scmp.eq.s32.totalorder %s16, 1
    %p144 = por %p142, %p143
    %p145 = scmp.ne.s32.totalorder %s134, %s135
    %p146 = scmp.eq.s32.totalorder %s16, 0
    %p147 = por %p145, %p146
    %p148 = scmp.ne.s32.totalorder %s134, %s135
    %p149 = scmp.eq.s32.totalorder %s17, 1
    %p150 = por %p148, %p149
    %p152 = scmp.ne.s32.totalorder %s135, %s151
    %p153 = scmp.eq.s32.totalorder %s17, 0
    %p154 = por %p152, %p153
    %p155 = scmp.le.s32.totalorder 1, %s11
    %p156 = scmp.lt.s32.totalorder %s11, 3
    %p157 = pnand %p155, %p156
    %p158 = pneg %p157
    // Predicated region
    $region9: #{tpu_custom_call.1} parent=5 // pred_check
      _
    $region10: #{tpu_custom_call.1} parent=5 // pred_check_branch
      %160 = sbr.rel (%p157) target = $region12
    $region11: #{tpu_custom_call.1} parent=5 // pred_region
      %s161 = ssub.s32 %s11, 1
      // Predicated region
      $region13: #{tpu_custom_call.1} parent=11 // pred_check
        %p162 = pneg %p58
      $region14: #{tpu_custom_call.1} parent=11 // pred_check_branch
        %164 = sbr.rel (%p162) target = $region16
      $region15: #{tpu_custom_call.1} parent=11 // pred_region
        _
      $region16: #{tpu_custom_call.1} parent=11 // pred_fallthru
        _
      // Predicated region
      $region17: #{tpu_custom_call.1} parent=11 // pred_check
        %p165 = pneg %p79
      $region18: #{tpu_custom_call.1} parent=11 // pred_check_branch
        %167 = sbr.rel (%p165) target = $region20
      $region19: #{tpu_custom_call.1} parent=11 // pred_region
        _
      $region20: #{tpu_custom_call.1} parent=11 // pred_fallthru
        _
      // Predicated region
      $region21: #{tpu_custom_call.1} parent=11 // pred_check
        %p168 = pneg %p100
      $region22: #{tpu_custom_call.1} parent=11 // pred_check_branch
        %170 = sbr.rel (%p168) target = $region24
      $region23: #{tpu_custom_call.1} parent=11 // pred_region
        _
      $region24: #{tpu_custom_call.1} parent=11 // pred_fallthru
        _
      // Predicated region
      $region25: #{tpu_custom_call.1} parent=11 // pred_check
        %p171 = pneg %p121
      $region26: #{tpu_custom_call.1} parent=11 // pred_check_branch
        %173 = sbr.rel (%p171) target = $region28
      $region27: #{tpu_custom_call.1} parent=11 // pred_region
        _
      $region28: #{tpu_custom_call.1} parent=11 // pred_fallthru
        _
    $region12: #{tpu_custom_call.1} parent=5 // pred_fallthru
      _
    %p174 = scmp.lt.s32.totalorder %s11, 2
    // Predicated region
    $region29: #{tpu_custom_call.1} parent=5 // pred_check
      %p175 = pneg %p174
    $region30: #{tpu_custom_call.1} parent=5 // pred_check_branch
      %177 = sbr.rel (%p175) target = $region32
    $region31: #{tpu_custom_call.1} parent=5 // pred_region
      // Predicated region
      $region33: #{tpu_custom_call.1} parent=31 // pred_check
        %p178 = pneg %p31
      $region34: #{tpu_custom_call.1} parent=31 // pred_check_branch
        %180 = sbr.rel (%p178) target = $region36
      $region35: #{tpu_custom_call.1} parent=31 // pred_region
        %s181 = smul.u32 128, %s11
        %p182 = scmp.lt.s32.totalorder %s181, 255
        %s183 = scalar_select %p182, %s181, 255
        %s184 = smul.addr %s183, 8
        %s185 = scalar_lea.vmem %s0, %s184
        %s186 = smul.u32 128, %s11
      $region36: #{tpu_custom_call.1} parent=31 // pred_fallthru
        _
    $region32: #{tpu_custom_call.1} parent=5 // pred_fallthru
      _
    %p187 = scmp.le.s32.totalorder 1, %s11
    %p188 = scmp.lt.s32.totalorder %s11, 3
    %p189 = pnand %p187, %p188
    %p190 = pneg %p189
    // Predicated region
    $region37: #{tpu_custom_call.1} parent=5 // pred_check
      _
    $region38: #{tpu_custom_call.1} parent=5 // pred_check_branch
      %192 = sbr.rel (%p189) target = $region40
    $region39: #{tpu_custom_call.1} parent=5 // pred_region
      %s193 = ssub.s32 %s11, 1
      %s194 = smul.u32 128, %s16
      %p195 = scmp.lt.s32.totalorder %s194, 255
      %s196 = scalar_select %p195, %s194, 255
      %s197 = smul.addr %s196, 8
      %s198 = scalar_lea.vmem %s0, %s197
      %p199 = pneg %p37
      %p200 = pneg %p34
      %p201 = pneg %p58
      %p202 = pneg %p55
      %p203 = pneg %p79
      %p204 = pneg %p76
      %p205 = pneg %p100
      %p206 = pneg %p97
      %p207 = pneg %p121
      %p208 = pneg %p118
      %p209 = pneg %p147
      %p210 = pneg %p144
      %s211 = smul.u32 128, %s16
      %p212 = scmp.lt.s32.totalorder %s211, 255
      %s213 = scalar_select %p212, %s211, 255
      %s214 = smul.addr %s213, 8
      %s215 = scalar_lea.vmem %s5, %s214
      %s216 = smul.u32 128, %s16
      %p217 = scmp.lt.s32.totalorder %s216, 255
      %s218 = scalar_select %p217, %s216, 255
      %s219 = smul.addr %s218, 8
      %s220 = scalar_lea.vmem %s0, %s219
      %s221 = smul.u32 128, %s16
      %s222 = smul.u32 128, %s16
      %p223 = scmp.lt.s32.totalorder %s222, 255
      %s224 = scalar_select %p223, %s222, 255
      %s225 = smul.addr %s224, 8
      %s226 = scalar_lea.vmem %s5, %s225
      %s227 = smul.u32 128, %s16
      %v229 = vld [vmem:[%s220] sm:$0xff]
      %v230 = vld [vmem:[%s220 + $0x8] sm:$0xff]
      %v231 = vld [vmem:[%s220 + $0x10] sm:$0xff]
      %v232 = vld [vmem:[%s220 + $0x18] sm:$0xff]
      %v233 = vld [vmem:[%s220 + $0x20] sm:$0xff]
      %v234 = vld [vmem:[%s220 + $0x28] sm:$0xff]
      %v235 = vld [vmem:[%s220 + $0x30] sm:$0xff]
      %v236 = vld [vmem:[%s220 + $0x38] sm:$0xff]
      %v237 = vld [vmem:[%s220 + $0x40] sm:$0xff]
      %v238 = vld [vmem:[%s220 + $0x48] sm:$0xff]
      %v239 = vld [vmem:[%s220 + $0x50] sm:$0xff]
      %v240 = vld [vmem:[%s220 + $0x58] sm:$0xff]
      %v241 = vld [vmem:[%s220 + $0x60] sm:$0xff]
      %v242 = vld [vmem:[%s220 + $0x68] sm:$0xff]
      %v243 = vld [vmem:[%s220 + $0x70] sm:$0xff]
      %v244 = vld [vmem:[%s220 + $0x78] sm:$0xff]
      %v245 = vld [vmem:[%s220 + $0x80] sm:$0xff]
      %v246 = vld [vmem:[%s220 + $0x88] sm:$0xff]
      %v247 = vld [vmem:[%s220 + $0x90] sm:$0xff]
      %v248 = vld [vmem:[%s220 + $0x98] sm:$0xff]
      %v249 = vld [vmem:[%s220 + $0xa0] sm:$0xff]
      %v250 = vld [vmem:[%s220 + $0xa8] sm:$0xff]
      %v251 = vld [vmem:[%s220 + $0xb0] sm:$0xff]
      %v252 = vld [vmem:[%s220 + $0xb8] sm:$0xff]
      %v253 = vld [vmem:[%s220 + $0xc0] sm:$0xff]
      %v254 = vld [vmem:[%s220 + $0xc8] sm:$0xff]
      %v255 = vld [vmem:[%s220 + $0xd0] sm:$0xff]
      %v256 = vld [vmem:[%s220 + $0xd8] sm:$0xff]
      %v257 = vld [vmem:[%s220 + $0xe0] sm:$0xff]
      %v258 = vld [vmem:[%s220 + $0xe8] sm:$0xff]
      %v259 = vld [vmem:[%s220 + $0xf0] sm:$0xff]
      %v260 = vld [vmem:[%s220 + $0xf8] sm:$0xff]
      %v261 = vld [vmem:[%s220 + $0x100] sm:$0xff]
      %v262 = vld [vmem:[%s220 + $0x108] sm:$0xff]
      %v263 = vld [vmem:[%s220 + $0x110] sm:$0xff]
      %v264 = vld [vmem:[%s220 + $0x118] sm:$0xff]
      %v265 = vld [vmem:[%s220 + $0x120] sm:$0xff]
      %v266 = vld [vmem:[%s220 + $0x128] sm:$0xff]
      %v267 = vld [vmem:[%s220 + $0x130] sm:$0xff]
      %v268 = vld [vmem:[%s220 + $0x138] sm:$0xff]
      %v269 = vld [vmem:[%s220 + $0x140] sm:$0xff]
      %v270 = vld [vmem:[%s220 + $0x148] sm:$0xff]
      %v271 = vld [vmem:[%s220 + $0x150] sm:$0xff]
      %v272 = vld [vmem:[%s220 + $0x158] sm:$0xff]
      %v273 = vld [vmem:[%s220 + $0x160] sm:$0xff]
      %v274 = vld [vmem:[%s220 + $0x168] sm:$0xff]
      %v275 = vld [vmem:[%s220 + $0x170] sm:$0xff]
      %v276 = vld [vmem:[%s220 + $0x178] sm:$0xff]
      %v277 = vld [vmem:[%s220 + $0x180] sm:$0xff]
      %v278 = vld [vmem:[%s220 + $0x188] sm:$0xff]
      %v279 = vld [vmem:[%s220 + $0x190] sm:$0xff]
      %v280 = vld [vmem:[%s220 + $0x198] sm:$0xff]
      %v281 = vld [vmem:[%s220 + $0x1a0] sm:$0xff]
      %v282 = vld [vmem:[%s220 + $0x1a8] sm:$0xff]
      %v283 = vld [vmem:[%s220 + $0x1b0] sm:$0xff]
      %v284 = vld [vmem:[%s220 + $0x1b8] sm:$0xff]
      %v285 = vld [vmem:[%s220 + $0x1c0] sm:$0xff]
      %v286 = vld [vmem:[%s220 + $0x1c8] sm:$0xff]
      %v287 = vld [vmem:[%s220 + $0x1d0] sm:$0xff]
      %v288 = vld [vmem:[%s220 + $0x1d8] sm:$0xff]
      %v289 = vld [vmem:[%s220 + $0x1e0] sm:$0xff]
      %v290 = vld [vmem:[%s220 + $0x1e8] sm:$0xff]
      %v291 = vld [vmem:[%s220 + $0x1f0] sm:$0xff]
      %v292 = vld [vmem:[%s220 + $0x1f8] sm:$0xff]
      %v293 = vld [vmem:[%s220 + $0x200] sm:$0xff]
      %v294 = vld [vmem:[%s220 + $0x208] sm:$0xff]
      %v295 = vld [vmem:[%s220 + $0x210] sm:$0xff]
      %v296 = vld [vmem:[%s220 + $0x218] sm:$0xff]
      %v297 = vld [vmem:[%s220 + $0x220] sm:$0xff]
      %v298 = vld [vmem:[%s220 + $0x228] sm:$0xff]
      %v299 = vld [vmem:[%s220 + $0x230] sm:$0xff]
      %v300 = vld [vmem:[%s220 + $0x238] sm:$0xff]
      %v301 = vld [vmem:[%s220 + $0x240] sm:$0xff]
      %v302 = vld [vmem:[%s220 + $0x248] sm:$0xff]
      %v303 = vld [vmem:[%s220 + $0x250] sm:$0xff]
      %v304 = vld [vmem:[%s220 + $0x258] sm:$0xff]
      %v305 = vld [vmem:[%s220 + $0x260] sm:$0xff]
      %v306 = vld [vmem:[%s220 + $0x268] sm:$0xff]
      %v307 = vld [vmem:[%s220 + $0x270] sm:$0xff]
      %v308 = vld [vmem:[%s220 + $0x278] sm:$0xff]
      %v309 = vld [vmem:[%s220 + $0x280] sm:$0xff]
      %v310 = vld [vmem:[%s220 + $0x288] sm:$0xff]
      %v311 = vld [vmem:[%s220 + $0x290] sm:$0xff]
      %v312 = vld [vmem:[%s220 + $0x298] sm:$0xff]
      %v313 = vld [vmem:[%s220 + $0x2a0] sm:$0xff]
      %v314 = vld [vmem:[%s220 + $0x2a8] sm:$0xff]
      %v315 = vld [vmem:[%s220 + $0x2b0] sm:$0xff]
      %v316 = vld [vmem:[%s220 + $0x2b8] sm:$0xff]
      %v317 = vld [vmem:[%s220 + $0x2c0] sm:$0xff]
      %v318 = vld [vmem:[%s220 + $0x2c8] sm:$0xff]
      %v319 = vld [vmem:[%s220 + $0x2d0] sm:$0xff]
      %v320 = vld [vmem:[%s220 + $0x2d8] sm:$0xff]
      %v321 = vld [vmem:[%s220 + $0x2e0] sm:$0xff]
      %v322 = vld [vmem:[%s220 + $0x2e8] sm:$0xff]
      %v323 = vld [vmem:[%s220 + $0x2f0] sm:$0xff]
      %v324 = vld [vmem:[%s220 + $0x2f8] sm:$0xff]
      %v325 = vld [vmem:[%s220 + $0x300] sm:$0xff]
      %v326 = vld [vmem:[%s220 + $0x308] sm:$0xff]
      %v327 = vld [vmem:[%s220 + $0x310] sm:$0xff]
      %v328 = vld [vmem:[%s220 + $0x318] sm:$0xff]
      %v329 = vld [vmem:[%s220 + $0x320] sm:$0xff]
      %v330 = vld [vmem:[%s220 + $0x328] sm:$0xff]
      %v331 = vld [vmem:[%s220 + $0x330] sm:$0xff]
      %v332 = vld [vmem:[%s220 + $0x338] sm:$0xff]
      %v333 = vld [vmem:[%s220 + $0x340] sm:$0xff]
      %v334 = vld [vmem:[%s220 + $0x348] sm:$0xff]
      %v335 = vld [vmem:[%s220 + $0x350] sm:$0xff]
      %v336 = vld [vmem:[%s220 + $0x358] sm:$0xff]
      %v337 = vld [vmem:[%s220 + $0x360] sm:$0xff]
      %v338 = vld [vmem:[%s220 + $0x368] sm:$0xff]
      %v339 = vld [vmem:[%s220 + $0x370] sm:$0xff]
      %v340 = vld [vmem:[%s220 + $0x378] sm:$0xff]
      %v341 = vld [vmem:[%s220 + $0x380] sm:$0xff]
      %v342 = vld [vmem:[%s220 + $0x388] sm:$0xff]
      %v343 = vld [vmem:[%s220 + $0x390] sm:$0xff]
      %v344 = vld [vmem:[%s220 + $0x398] sm:$0xff]
      %v345 = vld [vmem:[%s220 + $0x3a0] sm:$0xff]
      %v346 = vld [vmem:[%s220 + $0x3a8] sm:$0xff]
      %v347 = vld [vmem:[%s220 + $0x3b0] sm:$0xff]
      %v348 = vld [vmem:[%s220 + $0x3b8] sm:$0xff]
      %v349 = vld [vmem:[%s220 + $0x3c0] sm:$0xff]
      %v350 = vld [vmem:[%s220 + $0x3c8] sm:$0xff]
      %v351 = vld [vmem:[%s220 + $0x3d0] sm:$0xff]
      %v352 = vld [vmem:[%s220 + $0x3d8] sm:$0xff]
      %v353 = vld [vmem:[%s220 + $0x3e0] sm:$0xff]
      %v354 = vld [vmem:[%s220 + $0x3e8] sm:$0xff]
      %v355 = vld [vmem:[%s220 + $0x3f0] sm:$0xff]
      %v356 = vld [vmem:[%s220 + $0x3f8] sm:$0xff]
      %v357 = vpack.c.bf16 %v230, %v229
      %v358 = vpack.c.bf16 %v232, %v231
      %v359 = vpack.c.bf16 %v234, %v233
      %v360 = vpack.c.bf16 %v236, %v235
      %v361 = vpack.c.bf16 %v238, %v237
      %v362 = vpack.c.bf16 %v240, %v239
      %v363 = vpack.c.bf16 %v242, %v241
      %v364 = vpack.c.bf16 %v244, %v243
      %v365 = vpack.c.bf16 %v246, %v245
      %v366 = vpack.c.bf16 %v248, %v247
      %v367 = vpack.c.bf16 %v250, %v249
      %v368 = vpack.c.bf16 %v252, %v251
      %v369 = vpack.c.bf16 %v254, %v253
      %v370 = vpack.c.bf16 %v256, %v255
      %v371 = vpack.c.bf16 %v258, %v257
      %v372 = vpack.c.bf16 %v260, %v259
      %v373 = vpack.c.bf16 %v262, %v261
      %v374 = vpack.c.bf16 %v264, %v263
      %v375 = vpack.c.bf16 %v266, %v265
      %v376 = vpack.c.bf16 %v268, %v267
      %v377 = vpack.c.bf16 %v270, %v269
      %v378 = vpack.c.bf16 %v272, %v271
      %v379 = vpack.c.bf16 %v274, %v273
      %v380 = vpack.c.bf16 %v276, %v275
      %v381 = vpack.c.bf16 %v278, %v277
      %v382 = vpack.c.bf16 %v280, %v279
      %v383 = vpack.c.bf16 %v282, %v281
      %v384 = vpack.c.bf16 %v284, %v283
      %v385 = vpack.c.bf16 %v286, %v285
      %v386 = vpack.c.bf16 %v288, %v287
      %v387 = vpack.c.bf16 %v290, %v289
      %v388 = vpack.c.bf16 %v292, %v291
      %v389 = vpack.c.bf16 %v294, %v293
      %v390 = vpack.c.bf16 %v296, %v295
      %v391 = vpack.c.bf16 %v298, %v297
      %v392 = vpack.c.bf16 %v300, %v299
      %v393 = vpack.c.bf16 %v302, %v301
      %v394 = vpack.c.bf16 %v304, %v303
      %v395 = vpack.c.bf16 %v306, %v305
      %v396 = vpack.c.bf16 %v308, %v307
      %v397 = vpack.c.bf16 %v310, %v309
      %v398 = vpack.c.bf16 %v312, %v311
      %v399 = vpack.c.bf16 %v314, %v313
      %v400 = vpack.c.bf16 %v316, %v315
      %v401 = vpack.c.bf16 %v318, %v317
      %v402 = vpack.c.bf16 %v320, %v319
      %v403 = vpack.c.bf16 %v322, %v321
      %v404 = vpack.c.bf16 %v324, %v323
      %v405 = vpack.c.bf16 %v326, %v325
      %v406 = vpack.c.bf16 %v328, %v327
      %v407 = vpack.c.bf16 %v330, %v329
      %v408 = vpack.c.bf16 %v332, %v331
      %v409 = vpack.c.bf16 %v334, %v333
      %v410 = vpack.c.bf16 %v336, %v335
      %v411 = vpack.c.bf16 %v338, %v337
      %v412 = vpack.c.bf16 %v340, %v339
      %v413 = vpack.c.bf16 %v342, %v341
      %v414 = vpack.c.bf16 %v344, %v343
      %v415 = vpack.c.bf16 %v346, %v345
      %v416 = vpack.c.bf16 %v348, %v347
      %v417 = vpack.c.bf16 %v350, %v349
      %v418 = vpack.c.bf16 %v352, %v351
      %v419 = vpack.c.bf16 %v354, %v353
      %v420 = vpack.c.bf16 %v356, %v355
      %v421 = vld [vmem:[%s1] sm:$0xff]
      %v422 = vld [vmem:[%s1 + $0x8] sm:$0x33]
      %v423 = vld [vmem:[%s2] sm:$0x3]
      %v425 = vperm.slane %v423, 0
      %v426 = vperm.slane %v423, 1
      %v431 = vunpack.c.l.b16 %v421
      %v432 = vunpack.c.h.b16 %v421
      %v433 = vunpack.c.l.b16 %v422
      %v434 = vunpack.c.h.b16 %v422
      %v435 = vpack.c.b16 %v433, %v431
      %v436 = vpack.c.b16 %v434, %v432
      %vm437 = vcmask 97280
      %v439 = vsel %vm437, %v357, 0
      %v442 = vsel %vm437, %v358, 0
      %v445 = vsel %vm437, %v359, 0
      %v448 = vsel %vm437, %v360, 0
      %v451 = vsel %vm437, %v361, 0
      %v454 = vsel %vm437, %v362, 0
      %v457 = vsel %vm437, %v363, 0
      %v460 = vsel %vm437, %v364, 0
      %v463 = vsel %vm437, %v365, 0
      %v466 = vsel %vm437, %v366, 0
      %v469 = vsel %vm437, %v367, 0
      %v472 = vsel %vm437, %v368, 0
      %v475 = vsel %vm437, %v369, 0
      %v478 = vsel %vm437, %v370, 0
      %v481 = vsel %vm437, %v371, 0
      %v484 = vsel %vm437, %v372, 0
      %v487 = vsel %vm437, %v373, 0
      %v490 = vsel %vm437, %v374, 0
      %v493 = vsel %vm437, %v375, 0
      %v496 = vsel %vm437, %v376, 0
      %v499 = vsel %vm437, %v377, 0
      %v502 = vsel %vm437, %v378, 0
      %v505 = vsel %vm437, %v379, 0
      %v508 = vsel %vm437, %v380, 0
      %v511 = vsel %vm437, %v381, 0
      %v514 = vsel %vm437, %v382, 0
      %v517 = vsel %vm437, %v383, 0
      %v520 = vsel %vm437, %v384, 0
      %v523 = vsel %vm437, %v385, 0
      %v526 = vsel %vm437, %v386, 0
      %v529 = vsel %vm437, %v387, 0
      %v532 = vsel %vm437, %v388, 0
      %v535 = vsel %vm437, %v389, 0
      %v538 = vsel %vm437, %v390, 0
      %v541 = vsel %vm437, %v391, 0
      %v544 = vsel %vm437, %v392, 0
      %v547 = vsel %vm437, %v393, 0
      %v550 = vsel %vm437, %v394, 0
      %v553 = vsel %vm437, %v395, 0
      %v556 = vsel %vm437, %v396, 0
      %v559 = vsel %vm437, %v397, 0
      %v562 = vsel %vm437, %v398, 0
      %v565 = vsel %vm437, %v399, 0
      %v568 = vsel %vm437, %v400, 0
      %v571 = vsel %vm437, %v401, 0
      %v574 = vsel %vm437, %v402, 0
      %v577 = vsel %vm437, %v403, 0
      %v580 = vsel %vm437, %v404, 0
      %v583 = vsel %vm437, %v405, 0
      %v586 = vsel %vm437, %v406, 0
      %v589 = vsel %vm437, %v407, 0
      %v592 = vsel %vm437, %v408, 0
      %v595 = vsel %vm437, %v409, 0
      %v598 = vsel %vm437, %v410, 0
      %v601 = vsel %vm437, %v411, 0
      %v604 = vsel %vm437, %v412, 0
      %v607 = vsel %vm437, %v413, 0
      %v610 = vsel %vm437, %v414, 0
      %v613 = vsel %vm437, %v415, 0
      %v616 = vsel %vm437, %v416, 0
      %v619 = vsel %vm437, %v417, 0
      %v622 = vsel %vm437, %v418, 0
      %v625 = vsel %vm437, %v419, 0
      %v628 = vsel %vm437, %v420, 0
      %vm630 = vcmask 1045504
      %v632 = vsel %vm630, %v435, 0
      %v635 = vsel %vm630, %v436, 0
      %637 = vmatpush.bf16.msra.mxu0 0
      %638 = vmatpush.bf16.msra.mxu0 0
      %639 = vmatpush.bf16.msra.mxu0 0
      %640 = vmatpush.bf16.msra.mxu0 0
      %641 = vmatpush.bf16.msra.mxu0 0
      %642 = vmatpush.bf16.msra.mxu0 0
      %643 = vmatpush.bf16.msra.mxu0 0
      %644 = vmatpush.bf16.msra.mxu0 %v632
      %645 = vmatmul.bf16.gmra.mxu0 %v439
      %v646 = vpop.f32.mrf.mxu0
      %v647 = vadd.f32 %v425, %v646
      %v648 = vpop.f32.mrf.mxu0
      %v649 = vadd.f32 %v425, %v648
      %650 = vmatmul.bf16.gmra.mxu0 %v442
      %v651 = vpop.f32.mrf.mxu0
      %v652 = vadd.f32 %v425, %v651
      %v653 = vpop.f32.mrf.mxu0
      %v654 = vadd.f32 %v425, %v653
      %655 = vmatmul.bf16.gmra.mxu0 %v445
      %v656 = vpop.f32.mrf.mxu0
      %v657 = vadd.f32 %v425, %v656
      %v658 = vpop.f32.mrf.mxu0
      %v659 = vadd.f32 %v425, %v658
      %660 = vmatmul.bf16.gmra.mxu0 %v448
      %v661 = vpop.f32.mrf.mxu0
      %v662 = vadd.f32 %v425, %v661
      %v663 = vpop.f32.mrf.mxu0
      %v664 = vadd.f32 %v425, %v663
      %665 = vmatmul.bf16.gmra.mxu0 %v451
      %v666 = vpop.f32.mrf.mxu0
      %v667 = vadd.f32 %v425, %v666
      %v668 = vpop.f32.mrf.mxu0
      %v669 = vadd.f32 %v425, %v668
      %670 = vmatmul.bf16.gmra.mxu0 %v454
      %v671 = vpop.f32.mrf.mxu0
      %v672 = vadd.f32 %v425, %v671
      %v673 = vpop.f32.mrf.mxu0
      %v674 = vadd.f32 %v425, %v673
      %675 = vmatmul.bf16.gmra.mxu0 %v457
      %v676 = vpop.f32.mrf.mxu0
      %v677 = vadd.f32 %v425, %v676
      %v678 = vpop.f32.mrf.mxu0
      %v679 = vadd.f32 %v425, %v678
      %680 = vmatmul.bf16.gmra.mxu0 %v460
      %v681 = vpop.f32.mrf.mxu0
      %v682 = vadd.f32 %v425, %v681
      %v683 = vpop.f32.mrf.mxu0
      %v684 = vadd.f32 %v425, %v683
      %685 = vmatmul.bf16.gmra.mxu0 %v463
      %v686 = vpop.f32.mrf.mxu0
      %v687 = vadd.f32 %v425, %v686
      %v688 = vpop.f32.mrf.mxu0
      %v689 = vadd.f32 %v425, %v688
      %690 = vmatmul.bf16.gmra.mxu0 %v466
      %v691 = vpop.f32.mrf.mxu0
      %v692 = vadd.f32 %v425, %v691
      %v693 = vpop.f32.mrf.mxu0
      %v694 = vadd.f32 %v425, %v693
      %695 = vmatmul.bf16.gmra.mxu0 %v469
      %v696 = vpop.f32.mrf.mxu0
      %v697 = vadd.f32 %v425, %v696
      %v698 = vpop.f32.mrf.mxu0
      %v699 = vadd.f32 %v425, %v698
      %700 = vmatmul.bf16.gmra.mxu0 %v472
      %v701 = vpop.f32.mrf.mxu0
      %v702 = vadd.f32 %v425, %v701
      %v703 = vpop.f32.mrf.mxu0
      %v704 = vadd.f32 %v425, %v703
      %705 = vmatmul.bf16.gmra.mxu0 %v475
      %v706 = vpop.f32.mrf.mxu0
      %v707 = vadd.f32 %v425, %v706
      %v708 = vpop.f32.mrf.mxu0
      %v709 = vadd.f32 %v425, %v708
      %710 = vmatmul.bf16.gmra.mxu0 %v478
      %v711 = vpop.f32.mrf.mxu0
      %v712 = vadd.f32 %v425, %v711
      %v713 = vpop.f32.mrf.mxu0
      %v714 = vadd.f32 %v425, %v713
      %715 = vmatmul.bf16.gmra.mxu0 %v481
      %v716 = vpop.f32.mrf.mxu0
      %v717 = vadd.f32 %v425, %v716
      %v718 = vpop.f32.mrf.mxu0
      %v719 = vadd.f32 %v425, %v718
      %720 = vmatmul.bf16.gmra.mxu0 %v484
      %v721 = vpop.f32.mrf.mxu0
      %v722 = vadd.f32 %v425, %v721
      %v723 = vpop.f32.mrf.mxu0
      %v724 = vadd.f32 %v425, %v723
      %725 = vmatmul.bf16.gmra.mxu0 %v487
      %v726 = vpop.f32.mrf.mxu0
      %v727 = vadd.f32 %v425, %v726
      %v728 = vpop.f32.mrf.mxu0
      %v729 = vadd.f32 %v425, %v728
      %730 = vmatmul.bf16.gmra.mxu0 %v490
      %v731 = vpop.f32.mrf.mxu0
      %v732 = vadd.f32 %v425, %v731
      %v733 = vpop.f32.mrf.mxu0
      %v734 = vadd.f32 %v425, %v733
      %735 = vmatmul.bf16.gmra.mxu0 %v493
      %v736 = vpop.f32.mrf.mxu0
      %v737 = vadd.f32 %v425, %v736
      %v738 = vpop.f32.mrf.mxu0
      %v739 = vadd.f32 %v425, %v738
      %740 = vmatmul.bf16.gmra.mxu0 %v496
      %v741 = vpop.f32.mrf.mxu0
      %v742 = vadd.f32 %v425, %v741
      %v743 = vpop.f32.mrf.mxu0
      %v744 = vadd.f32 %v425, %v743
      %745 = vmatmul.bf16.gmra.mxu0 %v499
      %v746 = vpop.f32.mrf.mxu0
      %v747 = vadd.f32 %v425, %v746
      %v748 = vpop.f32.mrf.mxu0
      %v749 = vadd.f32 %v425, %v748
      %750 = vmatmul.bf16.gmra.mxu0 %v502
      %v751 = vpop.f32.mrf.mxu0
      %v752 = vadd.f32 %v425, %v751
      %v753 = vpop.f32.mrf.mxu0
      %v754 = vadd.f32 %v425, %v753
      %755 = vmatmul.bf16.gmra.mxu0 %v505
      %v756 = vpop.f32.mrf.mxu0
      %v757 = vadd.f32 %v425, %v756
      %v758 = vpop.f32.mrf.mxu0
      %v759 = vadd.f32 %v425, %v758
      %760 = vmatmul.bf16.gmra.mxu0 %v508
      %v761 = vpop.f32.mrf.mxu0
      %v762 = vadd.f32 %v425, %v761
      %v763 = vpop.f32.mrf.mxu0
      %v764 = vadd.f32 %v425, %v763
      %765 = vmatmul.bf16.gmra.mxu0 %v511
      %v766 = vpop.f32.mrf.mxu0
      %v767 = vadd.f32 %v425, %v766
      %v768 = vpop.f32.mrf.mxu0
      %v769 = vadd.f32 %v425, %v768
      %770 = vmatmul.bf16.gmra.mxu0 %v514
      %v771 = vpop.f32.mrf.mxu0
      %v772 = vadd.f32 %v425, %v771
      %v773 = vpop.f32.mrf.mxu0
      %v774 = vadd.f32 %v425, %v773
      %775 = vmatmul.bf16.gmra.mxu0 %v517
      %v776 = vpop.f32.mrf.mxu0
      %v777 = vadd.f32 %v425, %v776
      %v778 = vpop.f32.mrf.mxu0
      %v779 = vadd.f32 %v425, %v778
      %780 = vmatmul.bf16.gmra.mxu0 %v520
      %v781 = vpop.f32.mrf.mxu0
      %v782 = vadd.f32 %v425, %v781
      %v783 = vpop.f32.mrf.mxu0
      %v784 = vadd.f32 %v425, %v783
      %785 = vmatmul.bf16.gmra.mxu0 %v523
      %v786 = vpop.f32.mrf.mxu0
      %v787 = vadd.f32 %v425, %v786
      %v788 = vpop.f32.mrf.mxu0
      %v789 = vadd.f32 %v425, %v788
      %790 = vmatmul.bf16.gmra.mxu0 %v526
      %v791 = vpop.f32.mrf.mxu0
      %v792 = vadd.f32 %v425, %v791
      %v793 = vpop.f32.mrf.mxu0
      %v794 = vadd.f32 %v425, %v793
      %795 = vmatmul.bf16.gmra.mxu0 %v529
      %v796 = vpop.f32.mrf.mxu0
      %v797 = vadd.f32 %v425, %v796
      %v798 = vpop.f32.mrf.mxu0
      %v799 = vadd.f32 %v425, %v798
      %800 = vmatmul.bf16.gmra.mxu0 %v532
      %v801 = vpop.f32.mrf.mxu0
      %v802 = vadd.f32 %v425, %v801
      %v803 = vpop.f32.mrf.mxu0
      %v804 = vadd.f32 %v425, %v803
      %805 = vmatmul.bf16.gmra.mxu0 %v535
      %v806 = vpop.f32.mrf.mxu0
      %v807 = vadd.f32 %v425, %v806
      %v808 = vpop.f32.mrf.mxu0
      %v809 = vadd.f32 %v425, %v808
      %810 = vmatmul.bf16.gmra.mxu0 %v538
      %v811 = vpop.f32.mrf.mxu0
      %v812 = vadd.f32 %v425, %v811
      %v813 = vpop.f32.mrf.mxu0
      %v814 = vadd.f32 %v425, %v813
      %815 = vmatmul.bf16.gmra.mxu0 %v541
      %v816 = vpop.f32.mrf.mxu0
      %v817 = vadd.f32 %v425, %v816
      %v818 = vpop.f32.mrf.mxu0
      %v819 = vadd.f32 %v425, %v818
      %820 = vmatmul.bf16.gmra.mxu0 %v544
      %v821 = vpop.f32.mrf.mxu0
      %v822 = vadd.f32 %v425, %v821
      %v823 = vpop.f32.mrf.mxu0
      %v824 = vadd.f32 %v425, %v823
      %825 = vmatmul.bf16.gmra.mxu0 %v547
      %v826 = vpop.f32.mrf.mxu0
      %v827 = vadd.f32 %v425, %v826
      %v828 = vpop.f32.mrf.mxu0
      %v829 = vadd.f32 %v425, %v828
      %830 = vmatmul.bf16.gmra.mxu0 %v550
      %v831 = vpop.f32.mrf.mxu0
      %v832 = vadd.f32 %v425, %v831
      %v833 = vpop.f32.mrf.mxu0
      %v834 = vadd.f32 %v425, %v833
      %835 = vmatmul.bf16.gmra.mxu0 %v553
      %v836 = vpop.f32.mrf.mxu0
      %v837 = vadd.f32 %v425, %v836
      %v838 = vpop.f32.mrf.mxu0
      %v839 = vadd.f32 %v425, %v838
      %840 = vmatmul.bf16.gmra.mxu0 %v556
      %v841 = vpop.f32.mrf.mxu0
      %v842 = vadd.f32 %v425, %v841
      %v843 = vpop.f32.mrf.mxu0
      %v844 = vadd.f32 %v425, %v843
      %845 = vmatmul.bf16.gmra.mxu0 %v559
      %v846 = vpop.f32.mrf.mxu0
      %v847 = vadd.f32 %v425, %v846
      %v848 = vpop.f32.mrf.mxu0
      %v849 = vadd.f32 %v425, %v848
      %850 = vmatmul.bf16.gmra.mxu0 %v562
      %v851 = vpop.f32.mrf.mxu0
      %v852 = vadd.f32 %v425, %v851
      %v853 = vpop.f32.mrf.mxu0
      %v854 = vadd.f32 %v425, %v853
      %855 = vmatmul.bf16.gmra.mxu0 %v565
      %v856 = vpop.f32.mrf.mxu0
      %v857 = vadd.f32 %v425, %v856
      %v858 = vpop.f32.mrf.mxu0
      %v859 = vadd.f32 %v425, %v858
      %860 = vmatmul.bf16.gmra.mxu0 %v568
      %v861 = vpop.f32.mrf.mxu0
      %v862 = vadd.f32 %v425, %v861
      %v863 = vpop.f32.mrf.mxu0
      %v864 = vadd.f32 %v425, %v863
      %865 = vmatmul.bf16.gmra.mxu0 %v571
      %v866 = vpop.f32.mrf.mxu0
      %v867 = vadd.f32 %v425, %v866
      %v868 = vpop.f32.mrf.mxu0
      %v869 = vadd.f32 %v425, %v868
      %870 = vmatmul.bf16.gmra.mxu0 %v574
      %v871 = vpop.f32.mrf.mxu0
      %v872 = vadd.f32 %v425, %v871
      %v873 = vpop.f32.mrf.mxu0
      %v874 = vadd.f32 %v425, %v873
      %875 = vmatmul.bf16.gmra.mxu0 %v577
      %v876 = vpop.f32.mrf.mxu0
      %v877 = vadd.f32 %v425, %v876
      %v878 = vpop.f32.mrf.mxu0
      %v879 = vadd.f32 %v425, %v878
      %880 = vmatmul.bf16.gmra.mxu0 %v580
      %v881 = vpop.f32.mrf.mxu0
      %v882 = vadd.f32 %v425, %v881
      %v883 = vpop.f32.mrf.mxu0
      %v884 = vadd.f32 %v425, %v883
      %885 = vmatmul.bf16.gmra.mxu0 %v583
      %v886 = vpop.f32.mrf.mxu0
      %v887 = vadd.f32 %v425, %v886
      %v888 = vpop.f32.mrf.mxu0
      %v889 = vadd.f32 %v425, %v888
      %890 = vmatmul.bf16.gmra.mxu0 %v586
      %v891 = vpop.f32.mrf.mxu0
      %v892 = vadd.f32 %v425, %v891
      %v893 = vpop.f32.mrf.mxu0
      %v894 = vadd.f32 %v425, %v893
      %895 = vmatmul.bf16.gmra.mxu0 %v589
      %v896 = vpop.f32.mrf.mxu0
      %v897 = vadd.f32 %v425, %v896
      %v898 = vpop.f32.mrf.mxu0
      %v899 = vadd.f32 %v425, %v898
      %900 = vmatmul.bf16.gmra.mxu0 %v592
      %v901 = vpop.f32.mrf.mxu0
      %v902 = vadd.f32 %v425, %v901
      %v903 = vpop.f32.mrf.mxu0
      %v904 = vadd.f32 %v425, %v903
      %905 = vmatmul.bf16.gmra.mxu0 %v595
      %v906 = vpop.f32.mrf.mxu0
      %v907 = vadd.f32 %v425, %v906
      %v908 = vpop.f32.mrf.mxu0
      %v909 = vadd.f32 %v425, %v908
      %910 = vmatmul.bf16.gmra.mxu0 %v598
      %v911 = vpop.f32.mrf.mxu0
      %v912 = vadd.f32 %v425, %v911
      %v913 = vpop.f32.mrf.mxu0
      %v914 = vadd.f32 %v425, %v913
      %915 = vmatmul.bf16.gmra.mxu0 %v601
      %v916 = vpop.f32.mrf.mxu0
      %v917 = vadd.f32 %v425, %v916
      %v918 = vpop.f32.mrf.mxu0
      %v919 = vadd.f32 %v425, %v918
      %920 = vmatmul.bf16.gmra.mxu0 %v604
      %v921 = vpop.f32.mrf.mxu0
      %v922 = vadd.f32 %v425, %v921
      %v923 = vpop.f32.mrf.mxu0
      %v924 = vadd.f32 %v425, %v923
      %925 = vmatmul.bf16.gmra.mxu0 %v607
      %v926 = vpop.f32.mrf.mxu0
      %v927 = vadd.f32 %v425, %v926
      %v928 = vpop.f32.mrf.mxu0
      %v929 = vadd.f32 %v425, %v928
      %930 = vmatmul.bf16.gmra.mxu0 %v610
      %v931 = vpop.f32.mrf.mxu0
      %v932 = vadd.f32 %v425, %v931
      %v933 = vpop.f32.mrf.mxu0
      %v934 = vadd.f32 %v425, %v933
      %935 = vmatmul.bf16.gmra.mxu0 %v613
      %v936 = vpop.f32.mrf.mxu0
      %v937 = vadd.f32 %v425, %v936
      %v938 = vpop.f32.mrf.mxu0
      %v939 = vadd.f32 %v425, %v938
      %940 = vmatmul.bf16.gmra.mxu0 %v616
      %v941 = vpop.f32.mrf.mxu0
      %v942 = vadd.f32 %v425, %v941
      %v943 = vpop.f32.mrf.mxu0
      %v944 = vadd.f32 %v425, %v943
      %945 = vmatmul.bf16.gmra.mxu0 %v619
      %v946 = vpop.f32.mrf.mxu0
      %v947 = vadd.f32 %v425, %v946
      %v948 = vpop.f32.mrf.mxu0
      %v949 = vadd.f32 %v425, %v948
      %950 = vmatmul.bf16.gmra.mxu0 %v622
      %v951 = vpop.f32.mrf.mxu0
      %v952 = vadd.f32 %v425, %v951
      %v953 = vpop.f32.mrf.mxu0
      %v954 = vadd.f32 %v425, %v953
      %955 = vmatmul.bf16.gmra.mxu0 %v625
      %v956 = vpop.f32.mrf.mxu0
      %v957 = vadd.f32 %v425, %v956
      %v958 = vpop.f32.mrf.mxu0
      %v959 = vadd.f32 %v425, %v958
      %960 = vmatmul.bf16.gmra.mxu0 %v628
      %v961 = vpop.f32.mrf.mxu0
      %v962 = vadd.f32 %v425, %v961
      %v963 = vpop.f32.mrf.mxu0
      %v964 = vadd.f32 %v425, %v963
      %965 = vdwg.mxu0
      %966 = vmatpush.bf16.msra.mxu0 0
      %967 = vmatpush.bf16.msra.mxu0 0
      %968 = vmatpush.bf16.msra.mxu0 0
      %969 = vmatpush.bf16.msra.mxu0 0
      %970 = vmatpush.bf16.msra.mxu0 0
      %971 = vmatpush.bf16.msra.mxu0 0
      %972 = vmatpush.bf16.msra.mxu0 0
      %973 = vmatpush.bf16.msra.mxu0 %v635
      %974 = vmatmul.bf16.gmra.mxu0 %v439
      %v975 = vpop.f32.mrf.mxu0
      %v976 = vadd.f32 %v426, %v975
      %v977 = vpop.f32.mrf.mxu0
      %v978 = vadd.f32 %v426, %v977
      %979 = vmatmul.bf16.gmra.mxu0 %v442
      %v980 = vpop.f32.mrf.mxu0
      %v981 = vadd.f32 %v426, %v980
      %v982 = vpop.f32.mrf.mxu0
      %v983 = vadd.f32 %v426, %v982
      %984 = vmatmul.bf16.gmra.mxu0 %v445
      %v985 = vpop.f32.mrf.mxu0
      %v986 = vadd.f32 %v426, %v985
      %v987 = vpop.f32.mrf.mxu0
      %v988 = vadd.f32 %v426, %v987
      %989 = vmatmul.bf16.gmra.mxu0 %v448
      %v990 = vpop.f32.mrf.mxu0
      %v991 = vadd.f32 %v426, %v990
      %v992 = vpop.f32.mrf.mxu0
      %v993 = vadd.f32 %v426, %v992
      %994 = vmatmul.bf16.gmra.mxu0 %v451
      %v995 = vpop.f32.mrf.mxu0
      %v996 = vadd.f32 %v426, %v995
      %v997 = vpop.f32.mrf.mxu0
      %v998 = vadd.f32 %v426, %v997
      %999 = vmatmul.bf16.gmra.mxu0 %v454
      %v1000 = vpop.f32.mrf.mxu0
      %v1001 = vadd.f32 %v426, %v1000
      %v1002 = vpop.f32.mrf.mxu0
      %v1003 = vadd.f32 %v426, %v1002
      %1004 = vmatmul.bf16.gmra.mxu0 %v457
      %v1005 = vpop.f32.mrf.mxu0
      %v1006 = vadd.f32 %v426, %v1005
      %v1007 = vpop.f32.mrf.mxu0
      %v1008 = vadd.f32 %v426, %v1007
      %1009 = vmatmul.bf16.gmra.mxu0 %v460
      %v1010 = vpop.f32.mrf.mxu0
      %v1011 = vadd.f32 %v426, %v1010
      %v1012 = vpop.f32.mrf.mxu0
      %v1013 = vadd.f32 %v426, %v1012
      %1014 = vmatmul.bf16.gmra.mxu0 %v463
      %v1015 = vpop.f32.mrf.mxu0
      %v1016 = vadd.f32 %v426, %v1015
      %v1017 = vpop.f32.mrf.mxu0
      %v1018 = vadd.f32 %v426, %v1017
      %1019 = vmatmul.bf16.gmra.mxu0 %v466
      %v1020 = vpop.f32.mrf.mxu0
      %v1021 = vadd.f32 %v426, %v1020
      %v1022 = vpop.f32.mrf.mxu0
      %v1023 = vadd.f32 %v426, %v1022
      %1024 = vmatmul.bf16.gmra.mxu0 %v469
      %v1025 = vpop.f32.mrf.mxu0
      %v1026 = vadd.f32 %v426, %v1025
      %v1027 = vpop.f32.mrf.mxu0
      %v1028 = vadd.f32 %v426, %v1027
      %1029 = vmatmul.bf16.gmra.mxu0 %v472
      %v1030 = vpop.f32.mrf.mxu0
      %v1031 = vadd.f32 %v426, %v1030
      %v1032 = vpop.f32.mrf.mxu0
      %v1033 = vadd.f32 %v426, %v1032
      %1034 = vmatmul.bf16.gmra.mxu0 %v475
      %v1035 = vpop.f32.mrf.mxu0
      %v1036 = vadd.f32 %v426, %v1035
      %v1037 = vpop.f32.mrf.mxu0
      %v1038 = vadd.f32 %v426, %v1037
      %1039 = vmatmul.bf16.gmra.mxu0 %v478
      %v1040 = vpop.f32.mrf.mxu0
      %v1041 = vadd.f32 %v426, %v1040
      %v1042 = vpop.f32.mrf.mxu0
      %v1043 = vadd.f32 %v426, %v1042
      %1044 = vmatmul.bf16.gmra.mxu0 %v481
      %v1045 = vpop.f32.mrf.mxu0
      %v1046 = vadd.f32 %v426, %v1045
      %v1047 = vpop.f32.mrf.mxu0
      %v1048 = vadd.f32 %v426, %v1047
      %1049 = vmatmul.bf16.gmra.mxu0 %v484
      %v1050 = vpop.f32.mrf.mxu0
      %v1051 = vadd.f32 %v426, %v1050
      %v1052 = vpop.f32.mrf.mxu0
      %v1053 = vadd.f32 %v426, %v1052
      %1054 = vmatmul.bf16.gmra.mxu0 %v487
      %v1055 = vpop.f32.mrf.mxu0
      %v1056 = vadd.f32 %v426, %v1055
      %v1057 = vpop.f32.mrf.mxu0
      %v1058 = vadd.f32 %v426, %v1057
      %1059 = vmatmul.bf16.gmra.mxu0 %v490
      %v1060 = vpop.f32.mrf.mxu0
      %v1061 = vadd.f32 %v426, %v1060
      %v1062 = vpop.f32.mrf.mxu0
      %v1063 = vadd.f32 %v426, %v1062
      %1064 = vmatmul.bf16.gmra.mxu0 %v493
      %v1065 = vpop.f32.mrf.mxu0
      %v1066 = vadd.f32 %v426, %v1065
      %v1067 = vpop.f32.mrf.mxu0
      %v1068 = vadd.f32 %v426, %v1067
      %1069 = vmatmul.bf16.gmra.mxu0 %v496
      %v1070 = vpop.f32.mrf.mxu0
      %v1071 = vadd.f32 %v426, %v1070
      %v1072 = vpop.f32.mrf.mxu0
      %v1073 = vadd.f32 %v426, %v1072
      %1074 = vmatmul.bf16.gmra.mxu0 %v499
      %v1075 = vpop.f32.mrf.mxu0
      %v1076 = vadd.f32 %v426, %v1075
      %v1077 = vpop.f32.mrf.mxu0
      %v1078 = vadd.f32 %v426, %v1077
      %1079 = vmatmul.bf16.gmra.mxu0 %v502
      %v1080 = vpop.f32.mrf.mxu0
      %v1081 = vadd.f32 %v426, %v1080
      %v1082 = vpop.f32.mrf.mxu0
      %v1083 = vadd.f32 %v426, %v1082
      %1084 = vmatmul.bf16.gmra.mxu0 %v505
      %v1085 = vpop.f32.mrf.mxu0
      %v1086 = vadd.f32 %v426, %v1085
      %v1087 = vpop.f32.mrf.mxu0
      %v1088 = vadd.f32 %v426, %v1087
      %1089 = vmatmul.bf16.gmra.mxu0 %v508
      %v1090 = vpop.f32.mrf.mxu0
      %v1091 = vadd.f32 %v426, %v1090
      %v1092 = vpop.f32.mrf.mxu0
      %v1093 = vadd.f32 %v426, %v1092
      %1094 = vmatmul.bf16.gmra.mxu0 %v511
      %v1095 = vpop.f32.mrf.mxu0
      %v1096 = vadd.f32 %v426, %v1095
      %v1097 = vpop.f32.mrf.mxu0
      %v1098 = vadd.f32 %v426, %v1097
      %1099 = vmatmul.bf16.gmra.mxu0 %v514
      %v1100 = vpop.f32.mrf.mxu0
      %v1101 = vadd.f32 %v426, %v1100
      %v1102 = vpop.f32.mrf.mxu0
      %v1103 = vadd.f32 %v426, %v1102
      %1104 = vmatmul.bf16.gmra.mxu0 %v517
      %v1105 = vpop.f32.mrf.mxu0
      %v1106 = vadd.f32 %v426, %v1105
      %v1107 = vpop.f32.mrf.mxu0
      %v1108 = vadd.f32 %v426, %v1107
      %1109 = vmatmul.bf16.gmra.mxu0 %v520
      %v1110 = vpop.f32.mrf.mxu0
      %v1111 = vadd.f32 %v426, %v1110
      %v1112 = vpop.f32.mrf.mxu0
      %v1113 = vadd.f32 %v426, %v1112
      %1114 = vmatmul.bf16.gmra.mxu0 %v523
      %v1115 = vpop.f32.mrf.mxu0
      %v1116 = vadd.f32 %v426, %v1115
      %v1117 = vpop.f32.mrf.mxu0
      %v1118 = vadd.f32 %v426, %v1117
      %1119 = vmatmul.bf16.gmra.mxu0 %v526
      %v1120 = vpop.f32.mrf.mxu0
      %v1121 = vadd.f32 %v426, %v1120
      %v1122 = vpop.f32.mrf.mxu0
      %v1123 = vadd.f32 %v426, %v1122
      %1124 = vmatmul.bf16.gmra.mxu0 %v529
      %v1125 = vpop.f32.mrf.mxu0
      %v1126 = vadd.f32 %v426, %v1125
      %v1127 = vpop.f32.mrf.mxu0
      %v1128 = vadd.f32 %v426, %v1127
      %1129 = vmatmul.bf16.gmra.mxu0 %v532
      %v1130 = vpop.f32.mrf.mxu0
      %v1131 = vadd.f32 %v426, %v1130
      %v1132 = vpop.f32.mrf.mxu0
      %v1133 = vadd.f32 %v426, %v1132
      %1134 = vmatmul.bf16.gmra.mxu0 %v535
      %v1135 = vpop.f32.mrf.mxu0
      %v1136 = vadd.f32 %v426, %v1135
      %v1137 = vpop.f32.mrf.mxu0
      %v1138 = vadd.f32 %v426, %v1137
      %1139 = vmatmul.bf16.gmra.mxu0 %v538
      %v1140 = vpop.f32.mrf.mxu0
      %v1141 = vadd.f32 %v426, %v1140
      %v1142 = vpop.f32.mrf.mxu0
      %v1143 = vadd.f32 %v426, %v1142
      %1144 = vmatmul.bf16.gmra.mxu0 %v541
      %v1145 = vpop.f32.mrf.mxu0
      %v1146 = vadd.f32 %v426, %v1145
      %v1147 = vpop.f32.mrf.mxu0
      %v1148 = vadd.f32 %v426, %v1147
      %1149 = vmatmul.bf16.gmra.mxu0 %v544
      %v1150 = vpop.f32.mrf.mxu0
      %v1151 = vadd.f32 %v426, %v1150
      %v1152 = vpop.f32.mrf.mxu0
      %v1153 = vadd.f32 %v426, %v1152
      %1154 = vmatmul.bf16.gmra.mxu0 %v547
      %v1155 = vpop.f32.mrf.mxu0
      %v1156 = vadd.f32 %v426, %v1155
      %v1157 = vpop.f32.mrf.mxu0
      %v1158 = vadd.f32 %v426, %v1157
      %1159 = vmatmul.bf16.gmra.mxu0 %v550
      %v1160 = vpop.f32.mrf.mxu0
      %v1161 = vadd.f32 %v426, %v1160
      %v1162 = vpop.f32.mrf.mxu0
      %v1163 = vadd.f32 %v426, %v1162
      %1164 = vmatmul.bf16.gmra.mxu0 %v553
      %v1165 = vpop.f32.mrf.mxu0
      %v1166 = vadd.f32 %v426, %v1165
      %v1167 = vpop.f32.mrf.mxu0
      %v1168 = vadd.f32 %v426, %v1167
      %1169 = vmatmul.bf16.gmra.mxu0 %v556
      %v1170 = vpop.f32.mrf.mxu0
      %v1171 = vadd.f32 %v426, %v1170
      %v1172 = vpop.f32.mrf.mxu0
      %v1173 = vadd.f32 %v426, %v1172
      %1174 = vmatmul.bf16.gmra.mxu0 %v559
      %v1175 = vpop.f32.mrf.mxu0
      %v1176 = vadd.f32 %v426, %v1175
      %v1177 = vpop.f32.mrf.mxu0
      %v1178 = vadd.f32 %v426, %v1177
      %1179 = vmatmul.bf16.gmra.mxu0 %v562
      %v1180 = vpop.f32.mrf.mxu0
      %v1181 = vadd.f32 %v426, %v1180
      %v1182 = vpop.f32.mrf.mxu0
      %v1183 = vadd.f32 %v426, %v1182
      %1184 = vmatmul.bf16.gmra.mxu0 %v565
      %v1185 = vpop.f32.mrf.mxu0
      %v1186 = vadd.f32 %v426, %v1185
      %v1187 = vpop.f32.mrf.mxu0
      %v1188 = vadd.f32 %v426, %v1187
      %1189 = vmatmul.bf16.gmra.mxu0 %v568
      %v1190 = vpop.f32.mrf.mxu0
      %v1191 = vadd.f32 %v426, %v1190
      %v1192 = vpop.f32.mrf.mxu0
      %v1193 = vadd.f32 %v426, %v1192
      %1194 = vmatmul.bf16.gmra.mxu0 %v571
      %v1195 = vpop.f32.mrf.mxu0
      %v1196 = vadd.f32 %v426, %v1195
      %v1197 = vpop.f32.mrf.mxu0
      %v1198 = vadd.f32 %v426, %v1197
      %1199 = vmatmul.bf16.gmra.mxu0 %v574
      %v1200 = vpop.f32.mrf.mxu0
      %v1201 = vadd.f32 %v426, %v1200
      %v1202 = vpop.f32.mrf.mxu0
      %v1203 = vadd.f32 %v426, %v1202
      %1204 = vmatmul.bf16.gmra.mxu0 %v577
      %v1205 = vpop.f32.mrf.mxu0
      %v1206 = vadd.f32 %v426, %v1205
      %v1207 = vpop.f32.mrf.mxu0
      %v1208 = vadd.f32 %v426, %v1207
      %1209 = vmatmul.bf16.gmra.mxu0 %v580
      %v1210 = vpop.f32.mrf.mxu0
      %v1211 = vadd.f32 %v426, %v1210
      %v1212 = vpop.f32.mrf.mxu0
      %v1213 = vadd.f32 %v426, %v1212
      %1214 = vmatmul.bf16.gmra.mxu0 %v583
      %v1215 = vpop.f32.mrf.mxu0
      %v1216 = vadd.f32 %v426, %v1215
      %v1217 = vpop.f32.mrf.mxu0
      %v1218 = vadd.f32 %v426, %v1217
      %1219 = vmatmul.bf16.gmra.mxu0 %v586
      %v1220 = vpop.f32.mrf.mxu0
      %v1221 = vadd.f32 %v426, %v1220
      %v1222 = vpop.f32.mrf.mxu0
      %v1223 = vadd.f32 %v426, %v1222
      %1224 = vmatmul.bf16.gmra.mxu0 %v589
      %v1225 = vpop.f32.mrf.mxu0
      %v1226 = vadd.f32 %v426, %v1225
      %v1227 = vpop.f32.mrf.mxu0
      %v1228 = vadd.f32 %v426, %v1227
      %1229 = vmatmul.bf16.gmra.mxu0 %v592
      %v1230 = vpop.f32.mrf.mxu0
      %v1231 = vadd.f32 %v426, %v1230
      %v1232 = vpop.f32.mrf.mxu0
      %v1233 = vadd.f32 %v426, %v1232
      %1234 = vmatmul.bf16.gmra.mxu0 %v595
      %v1235 = vpop.f32.mrf.mxu0
      %v1236 = vadd.f32 %v426, %v1235
      %v1237 = vpop.f32.mrf.mxu0
      %v1238 = vadd.f32 %v426, %v1237
      %1239 = vmatmul.bf16.gmra.mxu0 %v598
      %v1240 = vpop.f32.mrf.mxu0
      %v1241 = vadd.f32 %v426, %v1240
      %v1242 = vpop.f32.mrf.mxu0
      %v1243 = vadd.f32 %v426, %v1242
      %1244 = vmatmul.bf16.gmra.mxu0 %v601
      %v1245 = vpop.f32.mrf.mxu0
      %v1246 = vadd.f32 %v426, %v1245
      %v1247 = vpop.f32.mrf.mxu0
      %v1248 = vadd.f32 %v426, %v1247
      %1249 = vmatmul.bf16.gmra.mxu0 %v604
      %v1250 = vpop.f32.mrf.mxu0
      %v1251 = vadd.f32 %v426, %v1250
      %v1252 = vpop.f32.mrf.mxu0
      %v1253 = vadd.f32 %v426, %v1252
      %1254 = vmatmul.bf16.gmra.mxu0 %v607
      %v1255 = vpop.f32.mrf.mxu0
      %v1256 = vadd.f32 %v426, %v1255
      %v1257 = vpop.f32.mrf.mxu0
      %v1258 = vadd.f32 %v426, %v1257
      %1259 = vmatmul.bf16.gmra.mxu0 %v610
      %v1260 = vpop.f32.mrf.mxu0
      %v1261 = vadd.f32 %v426, %v1260
      %v1262 = vpop.f32.mrf.mxu0
      %v1263 = vadd.f32 %v426, %v1262
      %1264 = vmatmul.bf16.gmra.mxu0 %v613
      %v1265 = vpop.f32.mrf.mxu0
      %v1266 = vadd.f32 %v426, %v1265
      %v1267 = vpop.f32.mrf.mxu0
      %v1268 = vadd.f32 %v426, %v1267
      %1269 = vmatmul.bf16.gmra.mxu0 %v616
      %v1270 = vpop.f32.mrf.mxu0
      %v1271 = vadd.f32 %v426, %v1270
      %v1272 = vpop.f32.mrf.mxu0
      %v1273 = vadd.f32 %v426, %v1272
      %1274 = vmatmul.bf16.gmra.mxu0 %v619
      %v1275 = vpop.f32.mrf.mxu0
      %v1276 = vadd.f32 %v426, %v1275
      %v1277 = vpop.f32.mrf.mxu0
      %v1278 = vadd.f32 %v426, %v1277
      %1279 = vmatmul.bf16.gmra.mxu0 %v622
      %v1280 = vpop.f32.mrf.mxu0
      %v1281 = vadd.f32 %v426, %v1280
      %v1282 = vpop.f32.mrf.mxu0
      %v1283 = vadd.f32 %v426, %v1282
      %1284 = vmatmul.bf16.gmra.mxu0 %v625
      %v1285 = vpop.f32.mrf.mxu0
      %v1286 = vadd.f32 %v426, %v1285
      %v1287 = vpop.f32.mrf.mxu0
      %v1288 = vadd.f32 %v426, %v1287
      %1289 = vmatmul.bf16.gmra.mxu0 %v628
      %v1290 = vpop.f32.mrf.mxu0
      %v1291 = vadd.f32 %v426, %v1290
      %v1292 = vpop.f32.mrf.mxu0
      %v1293 = vadd.f32 %v426, %v1292
      %1294 = vdwg.mxu0
      %v1295 = vmax.f32 %v647, 0.0
      %v1296 = vmax.f32 %v976, 0.0
      %v1297 = vmax.f32 %v649, 0.0
      %v1298 = vmax.f32 %v978, 0.0
      %v1299 = vmax.f32 %v652, 0.0
      %v1300 = vmax.f32 %v981, 0.0
      %v1301 = vmax.f32 %v654, 0.0
      %v1302 = vmax.f32 %v983, 0.0
      %v1303 = vmax.f32 %v657, 0.0
      %v1304 = vmax.f32 %v986, 0.0
      %v1305 = vmax.f32 %v659, 0.0
      %v1306 = vmax.f32 %v988, 0.0
      %v1307 = vmax.f32 %v662, 0.0
      %v1308 = vmax.f32 %v991, 0.0
      %v1309 = vmax.f32 %v664, 0.0
      %v1310 = vmax.f32 %v993, 0.0
      %v1311 = vmax.f32 %v667, 0.0
      %v1312 = vmax.f32 %v996, 0.0
      %v1313 = vmax.f32 %v669, 0.0
      %v1314 = vmax.f32 %v998, 0.0
      %v1315 = vmax.f32 %v672, 0.0
      %v1316 = vmax.f32 %v1001, 0.0
      %v1317 = vmax.f32 %v674, 0.0
      %v1318 = vmax.f32 %v1003, 0.0
      %v1319 = vmax.f32 %v677, 0.0
      %v1320 = vmax.f32 %v1006, 0.0
      %v1321 = vmax.f32 %v679, 0.0
      %v1322 = vmax.f32 %v1008, 0.0
      %v1323 = vmax.f32 %v682, 0.0
      %v1324 = vmax.f32 %v1011, 0.0
      %v1325 = vmax.f32 %v684, 0.0
      %v1326 = vmax.f32 %v1013, 0.0
      %v1327 = vmax.f32 %v687, 0.0
      %v1328 = vmax.f32 %v1016, 0.0
      %v1329 = vmax.f32 %v689, 0.0
      %v1330 = vmax.f32 %v1018, 0.0
      %v1331 = vmax.f32 %v692, 0.0
      %v1332 = vmax.f32 %v1021, 0.0
      %v1333 = vmax.f32 %v694, 0.0
      %v1334 = vmax.f32 %v1023, 0.0
      %v1335 = vmax.f32 %v697, 0.0
      %v1336 = vmax.f32 %v1026, 0.0
      %v1337 = vmax.f32 %v699, 0.0
      %v1338 = vmax.f32 %v1028, 0.0
      %v1339 = vmax.f32 %v702, 0.0
      %v1340 = vmax.f32 %v1031, 0.0
      %v1341 = vmax.f32 %v704, 0.0
      %v1342 = vmax.f32 %v1033, 0.0
      %v1343 = vmax.f32 %v707, 0.0
      %v1344 = vmax.f32 %v1036, 0.0
      %v1345 = vmax.f32 %v709, 0.0
      %v1346 = vmax.f32 %v1038, 0.0
      %v1347 = vmax.f32 %v712, 0.0
      %v1348 = vmax.f32 %v1041, 0.0
      %v1349 = vmax.f32 %v714, 0.0
      %v1350 = vmax.f32 %v1043, 0.0
      %v1351 = vmax.f32 %v717, 0.0
      %v1352 = vmax.f32 %v1046, 0.0
      %v1353 = vmax.f32 %v719, 0.0
      %v1354 = vmax.f32 %v1048, 0.0
      %v1355 = vmax.f32 %v722, 0.0
      %v1356 = vmax.f32 %v1051, 0.0
      %v1357 = vmax.f32 %v724, 0.0
      %v1358 = vmax.f32 %v1053, 0.0
      %v1359 = vmax.f32 %v727, 0.0
      %v1360 = vmax.f32 %v1056, 0.0
      %v1361 = vmax.f32 %v729, 0.0
      %v1362 = vmax.f32 %v1058, 0.0
      %v1363 = vmax.f32 %v732, 0.0
      %v1364 = vmax.f32 %v1061, 0.0
      %v1365 = vmax.f32 %v734, 0.0
      %v1366 = vmax.f32 %v1063, 0.0
      %v1367 = vmax.f32 %v737, 0.0
      %v1368 = vmax.f32 %v1066, 0.0
      %v1369 = vmax.f32 %v739, 0.0
      %v1370 = vmax.f32 %v1068, 0.0
      %v1371 = vmax.f32 %v742, 0.0
      %v1372 = vmax.f32 %v1071, 0.0
      %v1373 = vmax.f32 %v744, 0.0
      %v1374 = vmax.f32 %v1073, 0.0
      %v1375 = vmax.f32 %v747, 0.0
      %v1376 = vmax.f32 %v1076, 0.0
      %v1377 = vmax.f32 %v749, 0.0
      %v1378 = vmax.f32 %v1078, 0.0
      %v1379 = vmax.f32 %v752, 0.0
      %v1380 = vmax.f32 %v1081, 0.0
      %v1381 = vmax.f32 %v754, 0.0
      %v1382 = vmax.f32 %v1083, 0.0
      %v1383 = vmax.f32 %v757, 0.0
      %v1384 = vmax.f32 %v1086, 0.0
      %v1385 = vmax.f32 %v759, 0.0
      %v1386 = vmax.f32 %v1088, 0.0
      %v1387 = vmax.f32 %v762, 0.0
      %v1388 = vmax.f32 %v1091, 0.0
      %v1389 = vmax.f32 %v764, 0.0
      %v1390 = vmax.f32 %v1093, 0.0
      %v1391 = vmax.f32 %v767, 0.0
      %v1392 = vmax.f32 %v1096, 0.0
      %v1393 = vmax.f32 %v769, 0.0
      %v1394 = vmax.f32 %v1098, 0.0
      %v1395 = vmax.f32 %v772, 0.0
      %v1396 = vmax.f32 %v1101, 0.0
      %v1397 = vmax.f32 %v774, 0.0
      %v1398 = vmax.f32 %v1103, 0.0
      %v1399 = vmax.f32 %v777, 0.0
      %v1400 = vmax.f32 %v1106, 0.0
      %v1401 = vmax.f32 %v779, 0.0
      %v1402 = vmax.f32 %v1108, 0.0
      %v1403 = vmax.f32 %v782, 0.0
      %v1404 = vmax.f32 %v1111, 0.0
      %v1405 = vmax.f32 %v784, 0.0
      %v1406 = vmax.f32 %v1113, 0.0
      %v1407 = vmax.f32 %v787, 0.0
      %v1408 = vmax.f32 %v1116, 0.0
      %v1409 = vmax.f32 %v789, 0.0
      %v1410 = vmax.f32 %v1118, 0.0
      %v1411 = vmax.f32 %v792, 0.0
      %v1412 = vmax.f32 %v1121, 0.0
      %v1413 = vmax.f32 %v794, 0.0
      %v1414 = vmax.f32 %v1123, 0.0
      %v1415 = vmax.f32 %v797, 0.0
      %v1416 = vmax.f32 %v1126, 0.0
      %v1417 = vmax.f32 %v799, 0.0
      %v1418 = vmax.f32 %v1128, 0.0
      %v1419 = vmax.f32 %v802, 0.0
      %v1420 = vmax.f32 %v1131, 0.0
      %v1421 = vmax.f32 %v804, 0.0
      %v1422 = vmax.f32 %v1133, 0.0
      %v1423 = vmax.f32 %v807, 0.0
      %v1424 = vmax.f32 %v1136, 0.0
      %v1425 = vmax.f32 %v809, 0.0
      %v1426 = vmax.f32 %v1138, 0.0
      %v1427 = vmax.f32 %v812, 0.0
      %v1428 = vmax.f32 %v1141, 0.0
      %v1429 = vmax.f32 %v814, 0.0
      %v1430 = vmax.f32 %v1143, 0.0
      %v1431 = vmax.f32 %v817, 0.0
      %v1432 = vmax.f32 %v1146, 0.0
      %v1433 = vmax.f32 %v819, 0.0
      %v1434 = vmax.f32 %v1148, 0.0
      %v1435 = vmax.f32 %v822, 0.0
      %v1436 = vmax.f32 %v1151, 0.0
      %v1437 = vmax.f32 %v824, 0.0
      %v1438 = vmax.f32 %v1153, 0.0
      %v1439 = vmax.f32 %v827, 0.0
      %v1440 = vmax.f32 %v1156, 0.0
      %v1441 = vmax.f32 %v829, 0.0
      %v1442 = vmax.f32 %v1158, 0.0
      %v1443 = vmax.f32 %v832, 0.0
      %v1444 = vmax.f32 %v1161, 0.0
      %v1445 = vmax.f32 %v834, 0.0
      %v1446 = vmax.f32 %v1163, 0.0
      %v1447 = vmax.f32 %v837, 0.0
      %v1448 = vmax.f32 %v1166, 0.0
      %v1449 = vmax.f32 %v839, 0.0
      %v1450 = vmax.f32 %v1168, 0.0
      %v1451 = vmax.f32 %v842, 0.0
      %v1452 = vmax.f32 %v1171, 0.0
      %v1453 = vmax.f32 %v844, 0.0
      %v1454 = vmax.f32 %v1173, 0.0
      %v1455 = vmax.f32 %v847, 0.0
      %v1456 = vmax.f32 %v1176, 0.0
      %v1457 = vmax.f32 %v849, 0.0
      %v1458 = vmax.f32 %v1178, 0.0
      %v1459 = vmax.f32 %v852, 0.0
      %v1460 = vmax.f32 %v1181, 0.0
      %v1461 = vmax.f32 %v854, 0.0
      %v1462 = vmax.f32 %v1183, 0.0
      %v1463 = vmax.f32 %v857, 0.0
      %v1464 = vmax.f32 %v1186, 0.0
      %v1465 = vmax.f32 %v859, 0.0
      %v1466 = vmax.f32 %v1188, 0.0
      %v1467 = vmax.f32 %v862, 0.0
      %v1468 = vmax.f32 %v1191, 0.0
      %v1469 = vmax.f32 %v864, 0.0
      %v1470 = vmax.f32 %v1193, 0.0
      %v1471 = vmax.f32 %v867, 0.0
      %v1472 = vmax.f32 %v1196, 0.0
      %v1473 = vmax.f32 %v869, 0.0
      %v1474 = vmax.f32 %v1198, 0.0
      %v1475 = vmax.f32 %v872, 0.0
      %v1476 = vmax.f32 %v1201, 0.0
      %v1477 = vmax.f32 %v874, 0.0
      %v1478 = vmax.f32 %v1203, 0.0
      %v1479 = vmax.f32 %v877, 0.0
      %v1480 = vmax.f32 %v1206, 0.0
      %v1481 = vmax.f32 %v879, 0.0
      %v1482 = vmax.f32 %v1208, 0.0
      %v1483 = vmax.f32 %v882, 0.0
      %v1484 = vmax.f32 %v1211, 0.0
      %v1485 = vmax.f32 %v884, 0.0
      %v1486 = vmax.f32 %v1213, 0.0
      %v1487 = vmax.f32 %v887, 0.0
      %v1488 = vmax.f32 %v1216, 0.0
      %v1489 = vmax.f32 %v889, 0.0
      %v1490 = vmax.f32 %v1218, 0.0
      %v1491 = vmax.f32 %v892, 0.0
      %v1492 = vmax.f32 %v1221, 0.0
      %v1493 = vmax.f32 %v894, 0.0
      %v1494 = vmax.f32 %v1223, 0.0
      %v1495 = vmax.f32 %v897, 0.0
      %v1496 = vmax.f32 %v1226, 0.0
      %v1497 = vmax.f32 %v899, 0.0
      %v1498 = vmax.f32 %v1228, 0.0
      %v1499 = vmax.f32 %v902, 0.0
      %v1500 = vmax.f32 %v1231, 0.0
      %v1501 = vmax.f32 %v904, 0.0
      %v1502 = vmax.f32 %v1233, 0.0
      %v1503 = vmax.f32 %v907, 0.0
      %v1504 = vmax.f32 %v1236, 0.0
      %v1505 = vmax.f32 %v909, 0.0
      %v1506 = vmax.f32 %v1238, 0.0
      %v1507 = vmax.f32 %v912, 0.0
      %v1508 = vmax.f32 %v1241, 0.0
      %v1509 = vmax.f32 %v914, 0.0
      %v1510 = vmax.f32 %v1243, 0.0
      %v1511 = vmax.f32 %v917, 0.0
      %v1512 = vmax.f32 %v1246, 0.0
      %v1513 = vmax.f32 %v919, 0.0
      %v1514 = vmax.f32 %v1248, 0.0
      %v1515 = vmax.f32 %v922, 0.0
      %v1516 = vmax.f32 %v1251, 0.0
      %v1517 = vmax.f32 %v924, 0.0
      %v1518 = vmax.f32 %v1253, 0.0
      %v1519 = vmax.f32 %v927, 0.0
      %v1520 = vmax.f32 %v1256, 0.0
      %v1521 = vmax.f32 %v929, 0.0
      %v1522 = vmax.f32 %v1258, 0.0
      %v1523 = vmax.f32 %v932, 0.0
      %v1524 = vmax.f32 %v1261, 0.0
      %v1525 = vmax.f32 %v934, 0.0
      %v1526 = vmax.f32 %v1263, 0.0
      %v1527 = vmax.f32 %v937, 0.0
      %v1528 = vmax.f32 %v1266, 0.0
      %v1529 = vmax.f32 %v939, 0.0
      %v1530 = vmax.f32 %v1268, 0.0
      %v1531 = vmax.f32 %v942, 0.0
      %v1532 = vmax.f32 %v1271, 0.0
      %v1533 = vmax.f32 %v944, 0.0
      %v1534 = vmax.f32 %v1273, 0.0
      %v1535 = vmax.f32 %v947, 0.0
      %v1536 = vmax.f32 %v1276, 0.0
      %v1537 = vmax.f32 %v949, 0.0
      %v1538 = vmax.f32 %v1278, 0.0
      %v1539 = vmax.f32 %v952, 0.0
      %v1540 = vmax.f32 %v1281, 0.0
      %v1541 = vmax.f32 %v954, 0.0
      %v1542 = vmax.f32 %v1283, 0.0
      %v1543 = vmax.f32 %v957, 0.0
      %v1544 = vmax.f32 %v1286, 0.0
      %v1545 = vmax.f32 %v959, 0.0
      %v1546 = vmax.f32 %v1288, 0.0
      %v1547 = vmax.f32 %v962, 0.0
      %v1548 = vmax.f32 %v1291, 0.0
      %v1549 = vmax.f32 %v964, 0.0
      %v1550 = vmax.f32 %v1293, 0.0
      %v1551 = vpack.c.bf16 %v1297, %v1295
      %v1552 = vpack.c.bf16 %v1298, %v1296
      %v1553 = vpack.c.bf16 %v1301, %v1299
      %v1554 = vpack.c.bf16 %v1302, %v1300
      %v1555 = vpack.c.bf16 %v1305, %v1303
      %v1556 = vpack.c.bf16 %v1306, %v1304
      %v1557 = vpack.c.bf16 %v1309, %v1307
      %v1558 = vpack.c.bf16 %v1310, %v1308
      %v1559 = vpack.c.bf16 %v1313, %v1311
      %v1560 = vpack.c.bf16 %v1314, %v1312
      %v1561 = vpack.c.bf16 %v1317, %v1315
      %v1562 = vpack.c.bf16 %v1318, %v1316
      %v1563 = vpack.c.bf16 %v1321, %v1319
      %v1564 = vpack.c.bf16 %v1322, %v1320
      %v1565 = vpack.c.bf16 %v1325, %v1323
      %v1566 = vpack.c.bf16 %v1326, %v1324
      %v1567 = vpack.c.bf16 %v1329, %v1327
      %v1568 = vpack.c.bf16 %v1330, %v1328
      %v1569 = vpack.c.bf16 %v1333, %v1331
      %v1570 = vpack.c.bf16 %v1334, %v1332
      %v1571 = vpack.c.bf16 %v1337, %v1335
      %v1572 = vpack.c.bf16 %v1338, %v1336
      %v1573 = vpack.c.bf16 %v1341, %v1339
      %v1574 = vpack.c.bf16 %v1342, %v1340
      %v1575 = vpack.c.bf16 %v1345, %v1343
      %v1576 = vpack.c.bf16 %v1346, %v1344
      %v1577 = vpack.c.bf16 %v1349, %v1347
      %v1578 = vpack.c.bf16 %v1350, %v1348
      %v1579 = vpack.c.bf16 %v1353, %v1351
      %v1580 = vpack.c.bf16 %v1354, %v1352
      %v1581 = vpack.c.bf16 %v1357, %v1355
      %v1582 = vpack.c.bf16 %v1358, %v1356
      %v1583 = vpack.c.bf16 %v1361, %v1359
      %v1584 = vpack.c.bf16 %v1362, %v1360
      %v1585 = vpack.c.bf16 %v1365, %v1363
      %v1586 = vpack.c.bf16 %v1366, %v1364
      %v1587 = vpack.c.bf16 %v1369, %v1367
      %v1588 = vpack.c.bf16 %v1370, %v1368
      %v1589 = vpack.c.bf16 %v1373, %v1371
      %v1590 = vpack.c.bf16 %v1374, %v1372
      %v1591 = vpack.c.bf16 %v1377, %v1375
      %v1592 = vpack.c.bf16 %v1378, %v1376
      %v1593 = vpack.c.bf16 %v1381, %v1379
      %v1594 = vpack.c.bf16 %v1382, %v1380
      %v1595 = vpack.c.bf16 %v1385, %v1383
      %v1596 = vpack.c.bf16 %v1386, %v1384
      %v1597 = vpack.c.bf16 %v1389, %v1387
      %v1598 = vpack.c.bf16 %v1390, %v1388
      %v1599 = vpack.c.bf16 %v1393, %v1391
      %v1600 = vpack.c.bf16 %v1394, %v1392
      %v1601 = vpack.c.bf16 %v1397, %v1395
      %v1602 = vpack.c.bf16 %v1398, %v1396
      %v1603 = vpack.c.bf16 %v1401, %v1399
      %v1604 = vpack.c.bf16 %v1402, %v1400
      %v1605 = vpack.c.bf16 %v1405, %v1403
      %v1606 = vpack.c.bf16 %v1406, %v1404
      %v1607 = vpack.c.bf16 %v1409, %v1407
      %v1608 = vpack.c.bf16 %v1410, %v1408
      %v1609 = vpack.c.bf16 %v1413, %v1411
      %v1610 = vpack.c.bf16 %v1414, %v1412
      %v1611 = vpack.c.bf16 %v1417, %v1415
      %v1612 = vpack.c.bf16 %v1418, %v1416
      %v1613 = vpack.c.bf16 %v1421, %v1419
      %v1614 = vpack.c.bf16 %v1422, %v1420
      %v1615 = vpack.c.bf16 %v1425, %v1423
      %v1616 = vpack.c.bf16 %v1426, %v1424
      %v1617 = vpack.c.bf16 %v1429, %v1427
      %v1618 = vpack.c.bf16 %v1430, %v1428
      %v1619 = vpack.c.bf16 %v1433, %v1431
      %v1620 = vpack.c.bf16 %v1434, %v1432
      %v1621 = vpack.c.bf16 %v1437, %v1435
      %v1622 = vpack.c.bf16 %v1438, %v1436
      %v1623 = vpack.c.bf16 %v1441, %v1439
      %v1624 = vpack.c.bf16 %v1442, %v1440
      %v1625 = vpack.c.bf16 %v1445, %v1443
      %v1626 = vpack.c.bf16 %v1446, %v1444
      %v1627 = vpack.c.bf16 %v1449, %v1447
      %v1628 = vpack.c.bf16 %v1450, %v1448
      %v1629 = vpack.c.bf16 %v1453, %v1451
      %v1630 = vpack.c.bf16 %v1454, %v1452
      %v1631 = vpack.c.bf16 %v1457, %v1455
      %v1632 = vpack.c.bf16 %v1458, %v1456
      %v1633 = vpack.c.bf16 %v1461, %v1459
      %v1634 = vpack.c.bf16 %v1462, %v1460
      %v1635 = vpack.c.bf16 %v1465, %v1463
      %v1636 = vpack.c.bf16 %v1466, %v1464
      %v1637 = vpack.c.bf16 %v1469, %v1467
      %v1638 = vpack.c.bf16 %v1470, %v1468
      %v1639 = vpack.c.bf16 %v1473, %v1471
      %v1640 = vpack.c.bf16 %v1474, %v1472
      %v1641 = vpack.c.bf16 %v1477, %v1475
      %v1642 = vpack.c.bf16 %v1478, %v1476
      %v1643 = vpack.c.bf16 %v1481, %v1479
      %v1644 = vpack.c.bf16 %v1482, %v1480
      %v1645 = vpack.c.bf16 %v1485, %v1483
      %v1646 = vpack.c.bf16 %v1486, %v1484
      %v1647 = vpack.c.bf16 %v1489, %v1487
      %v1648 = vpack.c.bf16 %v1490, %v1488
      %v1649 = vpack.c.bf16 %v1493, %v1491
      %v1650 = vpack.c.bf16 %v1494, %v1492
      %v1651 = vpack.c.bf16 %v1497, %v1495
      %v1652 = vpack.c.bf16 %v1498, %v1496
      %v1653 = vpack.c.bf16 %v1501, %v1499
      %v1654 = vpack.c.bf16 %v1502, %v1500
      %v1655 = vpack.c.bf16 %v1505, %v1503
      %v1656 = vpack.c.bf16 %v1506, %v1504
      %v1657 = vpack.c.bf16 %v1509, %v1507
      %v1658 = vpack.c.bf16 %v1510, %v1508
      %v1659 = vpack.c.bf16 %v1513, %v1511
      %v1660 = vpack.c.bf16 %v1514, %v1512
      %v1661 = vpack.c.bf16 %v1517, %v1515
      %v1662 = vpack.c.bf16 %v1518, %v1516
      %v1663 = vpack.c.bf16 %v1521, %v1519
      %v1664 = vpack.c.bf16 %v1522, %v1520
      %v1665 = vpack.c.bf16 %v1525, %v1523
      %v1666 = vpack.c.bf16 %v1526, %v1524
      %v1667 = vpack.c.bf16 %v1529, %v1527
      %v1668 = vpack.c.bf16 %v1530, %v1528
      %v1669 = vpack.c.bf16 %v1533, %v1531
      %v1670 = vpack.c.bf16 %v1534, %v1532
      %v1671 = vpack.c.bf16 %v1537, %v1535
      %v1672 = vpack.c.bf16 %v1538, %v1536
      %v1673 = vpack.c.bf16 %v1541, %v1539
      %v1674 = vpack.c.bf16 %v1542, %v1540
      %v1675 = vpack.c.bf16 %v1545, %v1543
      %v1676 = vpack.c.bf16 %v1546, %v1544
      %v1677 = vpack.c.bf16 %v1549, %v1547
      %v1678 = vpack.c.bf16 %v1550, %v1548
      %v1679 = vld [vmem:[%s3] sm:$0xf]
      %v1680 = vld [vmem:[%s3 + $0x4] sm:$0xf]
      %v1681 = vld [vmem:[%s3 + $0x8] sm:$0xf]
      %v1682 = vld [vmem:[%s3 + $0xc] sm:$0xf]
      %v1683 = vld [vmem:[%s3 + $0x10] sm:$0xf]
      %v1684 = vld [vmem:[%s3 + $0x14] sm:$0xf]
      %v1685 = vld [vmem:[%s3 + $0x18] sm:$0xf]
      %v1686 = vld [vmem:[%s3 + $0x1c] sm:$0xf]
      %v1687 = vld [vmem:[%s3 + $0x20] sm:$0xf]
      %v1688 = vld [vmem:[%s3 + $0x24] sm:$0xf]
      %v1689 = vld [vmem:[%s3 + $0x28] sm:$0xf]
      %v1690 = vld [vmem:[%s3 + $0x2c] sm:$0xf]
      %v1691 = vld [vmem:[%s3 + $0x30] sm:$0xf]
      %v1692 = vld [vmem:[%s3 + $0x34] sm:$0xf]
      %v1693 = vld [vmem:[%s3 + $0x38] sm:$0xf]
      %v1694 = vld [vmem:[%s3 + $0x3c] sm:$0xf]
      %v1695 = vld [vmem:[%s3 + $0x40] sm:$0xf]
      %v1696 = vld [vmem:[%s3 + $0x44] sm:$0xf]
      %v1697 = vld [vmem:[%s3 + $0x48] sm:$0xf]
      %v1698 = vld [vmem:[%s3 + $0x4c] sm:$0xf]
      %v1699 = vld [vmem:[%s3 + $0x50] sm:$0xf]
      %v1700 = vld [vmem:[%s3 + $0x54] sm:$0xf]
      %v1701 = vld [vmem:[%s3 + $0x58] sm:$0xf]
      %v1702 = vld [vmem:[%s3 + $0x5c] sm:$0xf]
      %v1703 = vld [vmem:[%s4] sm:$0x1]
      %v1705 = vperm.slane %v1703, 0
      %v1731 = vunpack.c.l.b16 %v1679
      %v1732 = vunpack.c.l.b16 %v1680
      %v1733 = vunpack.c.l.b16 %v1681
      %v1734 = vunpack.c.l.b16 %v1682
      %v1735 = vunpack.c.l.b16 %v1683
      %v1736 = vunpack.c.l.b16 %v1684
      %v1737 = vunpack.c.l.b16 %v1685
      %v1738 = vunpack.c.l.b16 %v1686
      %v1739 = vunpack.c.l.b16 %v1687
      %v1740 = vunpack.c.l.b16 %v1688
      %v1741 = vunpack.c.l.b16 %v1689
      %v1742 = vunpack.c.l.b16 %v1690
      %v1743 = vunpack.c.l.b16 %v1691
      %v1744 = vunpack.c.l.b16 %v1692
      %v1745 = vunpack.c.l.b16 %v1693
      %v1746 = vunpack.c.l.b16 %v1694
      %v1747 = vunpack.c.l.b16 %v1695
      %v1748 = vunpack.c.l.b16 %v1696
      %v1749 = vunpack.c.l.b16 %v1697
      %v1750 = vunpack.c.l.b16 %v1698
      %v1751 = vunpack.c.l.b16 %v1699
      %v1752 = vunpack.c.l.b16 %v1700
      %v1753 = vunpack.c.l.b16 %v1701
      %v1754 = vunpack.c.l.b16 %v1702
      %v1755 = vpack.c.b16 %v1732, %v1731
      %v1756 = vpack.c.b16 %v1734, %v1733
      %v1757 = vpack.c.b16 %v1736, %v1735
      %v1758 = vpack.c.b16 %v1738, %v1737
      %v1759 = vpack.c.b16 %v1740, %v1739
      %v1760 = vpack.c.b16 %v1742, %v1741
      %v1761 = vpack.c.b16 %v1744, %v1743
      %v1762 = vpack.c.b16 %v1746, %v1745
      %v1763 = vpack.c.b16 %v1748, %v1747
      %v1764 = vpack.c.b16 %v1750, %v1749
      %v1765 = vpack.c.b16 %v1752, %v1751
      %v1766 = vpack.c.b16 %v1754, %v1753
      %vm1779 = vcmask 523264
      %v1781 = vsel %vm1779, %v1552, 0
      %v1784 = vsel %vm1779, %v1554, 0
      %v1787 = vsel %vm1779, %v1556, 0
      %v1790 = vsel %vm1779, %v1558, 0
      %v1793 = vsel %vm1779, %v1560, 0
      %v1796 = vsel %vm1779, %v1562, 0
      %v1799 = vsel %vm1779, %v1564, 0
      %v1802 = vsel %vm1779, %v1566, 0
      %v1805 = vsel %vm1779, %v1568, 0
      %v1808 = vsel %vm1779, %v1570, 0
      %v1811 = vsel %vm1779, %v1572, 0
      %v1814 = vsel %vm1779, %v1574, 0
      %v1817 = vsel %vm1779, %v1576, 0
      %v1820 = vsel %vm1779, %v1578, 0
      %v1823 = vsel %vm1779, %v1580, 0
      %v1826 = vsel %vm1779, %v1582, 0
      %v1829 = vsel %vm1779, %v1584, 0
      %v1832 = vsel %vm1779, %v1586, 0
      %v1835 = vsel %vm1779, %v1588, 0
      %v1838 = vsel %vm1779, %v1590, 0
      %v1841 = vsel %vm1779, %v1592, 0
      %v1844 = vsel %vm1779, %v1594, 0
      %v1847 = vsel %vm1779, %v1596, 0
      %v1850 = vsel %vm1779, %v1598, 0
      %v1853 = vsel %vm1779, %v1600, 0
      %v1856 = vsel %vm1779, %v1602, 0
      %v1859 = vsel %vm1779, %v1604, 0
      %v1862 = vsel %vm1779, %v1606, 0
      %v1865 = vsel %vm1779, %v1608, 0
      %v1868 = vsel %vm1779, %v1610, 0
      %v1871 = vsel %vm1779, %v1612, 0
      %v1874 = vsel %vm1779, %v1614, 0
      %v1877 = vsel %vm1779, %v1616, 0
      %v1880 = vsel %vm1779, %v1618, 0
      %v1883 = vsel %vm1779, %v1620, 0
      %v1886 = vsel %vm1779, %v1622, 0
      %v1889 = vsel %vm1779, %v1624, 0
      %v1892 = vsel %vm1779, %v1626, 0
      %v1895 = vsel %vm1779, %v1628, 0
      %v1898 = vsel %vm1779, %v1630, 0
      %v1901 = vsel %vm1779, %v1632, 0
      %v1904 = vsel %vm1779, %v1634, 0
      %v1907 = vsel %vm1779, %v1636, 0
      %v1910 = vsel %vm1779, %v1638, 0
      %v1913 = vsel %vm1779, %v1640, 0
      %v1916 = vsel %vm1779, %v1642, 0
      %v1919 = vsel %vm1779, %v1644, 0
      %v1922 = vsel %vm1779, %v1646, 0
      %v1925 = vsel %vm1779, %v1648, 0
      %v1928 = vsel %vm1779, %v1650, 0
      %v1931 = vsel %vm1779, %v1652, 0
      %v1934 = vsel %vm1779, %v1654, 0
      %v1937 = vsel %vm1779, %v1656, 0
      %v1940 = vsel %vm1779, %v1658, 0
      %v1943 = vsel %vm1779, %v1660, 0
      %v1946 = vsel %vm1779, %v1662, 0
      %v1949 = vsel %vm1779, %v1664, 0
      %v1952 = vsel %vm1779, %v1666, 0
      %v1955 = vsel %vm1779, %v1668, 0
      %v1958 = vsel %vm1779, %v1670, 0
      %v1961 = vsel %vm1779, %v1672, 0
      %v1964 = vsel %vm1779, %v1674, 0
      %v1967 = vsel %vm1779, %v1676, 0
      %v1970 = vsel %vm1779, %v1678, 0
      %1972 = vmatpush.bf16.msra.mxu0 %v1762
      %1973 = vmatpush.bf16.msra.mxu0 %v1761
      %1974 = vmatpush.bf16.msra.mxu0 %v1760
      %1975 = vmatpush.bf16.msra.mxu0 %v1759
      %1976 = vmatpush.bf16.msra.mxu0 %v1758
      %1977 = vmatpush.bf16.msra.mxu0 %v1757
      %1978 = vmatpush.bf16.msra.mxu0 %v1756
      %1979 = vmatpush.bf16.msra.mxu0 %v1755
      %1980 = vmatmul.bf16.gmra.mxu0 %v1551
      %v1981 = vpop.f32.mrf.mxu0
      %v1982 = vadd.f32 %v1705, %v1981
      %v1983 = vpop.f32.mrf.mxu0
      %v1984 = vadd.f32 %v1705, %v1983
      %1985 = vmatmul.bf16.gmra.mxu0 %v1553
      %v1986 = vpop.f32.mrf.mxu0
      %v1987 = vadd.f32 %v1705, %v1986
      %v1988 = vpop.f32.mrf.mxu0
      %v1989 = vadd.f32 %v1705, %v1988
      %1990 = vmatmul.bf16.gmra.mxu0 %v1555
      %v1991 = vpop.f32.mrf.mxu0
      %v1992 = vadd.f32 %v1705, %v1991
      %v1993 = vpop.f32.mrf.mxu0
      %v1994 = vadd.f32 %v1705, %v1993
      %1995 = vmatmul.bf16.gmra.mxu0 %v1557
      %v1996 = vpop.f32.mrf.mxu0
      %v1997 = vadd.f32 %v1705, %v1996
      %v1998 = vpop.f32.mrf.mxu0
      %v1999 = vadd.f32 %v1705, %v1998
      %2000 = vmatmul.bf16.gmra.mxu0 %v1559
      %v2001 = vpop.f32.mrf.mxu0
      %v2002 = vadd.f32 %v1705, %v2001
      %v2003 = vpop.f32.mrf.mxu0
      %v2004 = vadd.f32 %v1705, %v2003
      %2005 = vmatmul.bf16.gmra.mxu0 %v1561
      %v2006 = vpop.f32.mrf.mxu0
      %v2007 = vadd.f32 %v1705, %v2006
      %v2008 = vpop.f32.mrf.mxu0
      %v2009 = vadd.f32 %v1705, %v2008
      %2010 = vmatmul.bf16.gmra.mxu0 %v1563
      %v2011 = vpop.f32.mrf.mxu0
      %v2012 = vadd.f32 %v1705, %v2011
      %v2013 = vpop.f32.mrf.mxu0
      %v2014 = vadd.f32 %v1705, %v2013
      %2015 = vmatmul.bf16.gmra.mxu0 %v1565
      %v2016 = vpop.f32.mrf.mxu0
      %v2017 = vadd.f32 %v1705, %v2016
      %v2018 = vpop.f32.mrf.mxu0
      %v2019 = vadd.f32 %v1705, %v2018
      %2020 = vmatmul.bf16.gmra.mxu0 %v1567
      %v2021 = vpop.f32.mrf.mxu0
      %v2022 = vadd.f32 %v1705, %v2021
      %v2023 = vpop.f32.mrf.mxu0
      %v2024 = vadd.f32 %v1705, %v2023
      %2025 = vmatmul.bf16.gmra.mxu0 %v1569
      %v2026 = vpop.f32.mrf.mxu0
      %v2027 = vadd.f32 %v1705, %v2026
      %v2028 = vpop.f32.mrf.mxu0
      %v2029 = vadd.f32 %v1705, %v2028
      %2030 = vmatmul.bf16.gmra.mxu0 %v1571
      %v2031 = vpop.f32.mrf.mxu0
      %v2032 = vadd.f32 %v1705, %v2031
      %v2033 = vpop.f32.mrf.mxu0
      %v2034 = vadd.f32 %v1705, %v2033
      %2035 = vmatmul.bf16.gmra.mxu0 %v1573
      %v2036 = vpop.f32.mrf.mxu0
      %v2037 = vadd.f32 %v1705, %v2036
      %v2038 = vpop.f32.mrf.mxu0
      %v2039 = vadd.f32 %v1705, %v2038
      %2040 = vmatmul.bf16.gmra.mxu0 %v1575
      %v2041 = vpop.f32.mrf.mxu0
      %v2042 = vadd.f32 %v1705, %v2041
      %v2043 = vpop.f32.mrf.mxu0
      %v2044 = vadd.f32 %v1705, %v2043
      %2045 = vmatmul.bf16.gmra.mxu0 %v1577
      %v2046 = vpop.f32.mrf.mxu0
      %v2047 = vadd.f32 %v1705, %v2046
      %v2048 = vpop.f32.mrf.mxu0
      %v2049 = vadd.f32 %v1705, %v2048
      %2050 = vmatmul.bf16.gmra.mxu0 %v1579
      %v2051 = vpop.f32.mrf.mxu0
      %v2052 = vadd.f32 %v1705, %v2051
      %v2053 = vpop.f32.mrf.mxu0
      %v2054 = vadd.f32 %v1705, %v2053
      %2055 = vmatmul.bf16.gmra.mxu0 %v1581
      %v2056 = vpop.f32.mrf.mxu0
      %v2057 = vadd.f32 %v1705, %v2056
      %v2058 = vpop.f32.mrf.mxu0
      %v2059 = vadd.f32 %v1705, %v2058
      %2060 = vmatmul.bf16.gmra.mxu0 %v1583
      %v2061 = vpop.f32.mrf.mxu0
      %v2062 = vadd.f32 %v1705, %v2061
      %v2063 = vpop.f32.mrf.mxu0
      %v2064 = vadd.f32 %v1705, %v2063
      %2065 = vmatmul.bf16.gmra.mxu0 %v1585
      %v2066 = vpop.f32.mrf.mxu0
      %v2067 = vadd.f32 %v1705, %v2066
      %v2068 = vpop.f32.mrf.mxu0
      %v2069 = vadd.f32 %v1705, %v2068
      %2070 = vmatmul.bf16.gmra.mxu0 %v1587
      %v2071 = vpop.f32.mrf.mxu0
      %v2072 = vadd.f32 %v1705, %v2071
      %v2073 = vpop.f32.mrf.mxu0
      %v2074 = vadd.f32 %v1705, %v2073
      %2075 = vmatmul.bf16.gmra.mxu0 %v1589
      %v2076 = vpop.f32.mrf.mxu0
      %v2077 = vadd.f32 %v1705, %v2076
      %v2078 = vpop.f32.mrf.mxu0
      %v2079 = vadd.f32 %v1705, %v2078
      %2080 = vmatmul.bf16.gmra.mxu0 %v1591
      %v2081 = vpop.f32.mrf.mxu0
      %v2082 = vadd.f32 %v1705, %v2081
      %v2083 = vpop.f32.mrf.mxu0
      %v2084 = vadd.f32 %v1705, %v2083
      %2085 = vmatmul.bf16.gmra.mxu0 %v1593
      %v2086 = vpop.f32.mrf.mxu0
      %v2087 = vadd.f32 %v1705, %v2086
      %v2088 = vpop.f32.mrf.mxu0
      %v2089 = vadd.f32 %v1705, %v2088
      %2090 = vmatmul.bf16.gmra.mxu0 %v1595
      %v2091 = vpop.f32.mrf.mxu0
      %v2092 = vadd.f32 %v1705, %v2091
      %v2093 = vpop.f32.mrf.mxu0
      %v2094 = vadd.f32 %v1705, %v2093
      %2095 = vmatmul.bf16.gmra.mxu0 %v1597
      %v2096 = vpop.f32.mrf.mxu0
      %v2097 = vadd.f32 %v1705, %v2096
      %v2098 = vpop.f32.mrf.mxu0
      %v2099 = vadd.f32 %v1705, %v2098
      %2100 = vmatmul.bf16.gmra.mxu0 %v1599
      %v2101 = vpop.f32.mrf.mxu0
      %v2102 = vadd.f32 %v1705, %v2101
      %v2103 = vpop.f32.mrf.mxu0
      %v2104 = vadd.f32 %v1705, %v2103
      %2105 = vmatmul.bf16.gmra.mxu0 %v1601
      %v2106 = vpop.f32.mrf.mxu0
      %v2107 = vadd.f32 %v1705, %v2106
      %v2108 = vpop.f32.mrf.mxu0
      %v2109 = vadd.f32 %v1705, %v2108
      %2110 = vmatmul.bf16.gmra.mxu0 %v1603
      %v2111 = vpop.f32.mrf.mxu0
      %v2112 = vadd.f32 %v1705, %v2111
      %v2113 = vpop.f32.mrf.mxu0
      %v2114 = vadd.f32 %v1705, %v2113
      %2115 = vmatmul.bf16.gmra.mxu0 %v1605
      %v2116 = vpop.f32.mrf.mxu0
      %v2117 = vadd.f32 %v1705, %v2116
      %v2118 = vpop.f32.mrf.mxu0
      %v2119 = vadd.f32 %v1705, %v2118
      %2120 = vmatmul.bf16.gmra.mxu0 %v1607
      %v2121 = vpop.f32.mrf.mxu0
      %v2122 = vadd.f32 %v1705, %v2121
      %v2123 = vpop.f32.mrf.mxu0
      %v2124 = vadd.f32 %v1705, %v2123
      %2125 = vmatmul.bf16.gmra.mxu0 %v1609
      %v2126 = vpop.f32.mrf.mxu0
      %v2127 = vadd.f32 %v1705, %v2126
      %v2128 = vpop.f32.mrf.mxu0
      %v2129 = vadd.f32 %v1705, %v2128
      %2130 = vmatmul.bf16.gmra.mxu0 %v1611
      %v2131 = vpop.f32.mrf.mxu0
      %v2132 = vadd.f32 %v1705, %v2131
      %v2133 = vpop.f32.mrf.mxu0
      %v2134 = vadd.f32 %v1705, %v2133
      %2135 = vmatmul.bf16.gmra.mxu0 %v1613
      %v2136 = vpop.f32.mrf.mxu0
      %v2137 = vadd.f32 %v1705, %v2136
      %v2138 = vpop.f32.mrf.mxu0
      %v2139 = vadd.f32 %v1705, %v2138
      %2140 = vmatmul.bf16.gmra.mxu0 %v1615
      %v2141 = vpop.f32.mrf.mxu0
      %v2142 = vadd.f32 %v1705, %v2141
      %v2143 = vpop.f32.mrf.mxu0
      %v2144 = vadd.f32 %v1705, %v2143
      %2145 = vmatmul.bf16.gmra.mxu0 %v1617
      %v2146 = vpop.f32.mrf.mxu0
      %v2147 = vadd.f32 %v1705, %v2146
      %v2148 = vpop.f32.mrf.mxu0
      %v2149 = vadd.f32 %v1705, %v2148
      %2150 = vmatmul.bf16.gmra.mxu0 %v1619
      %v2151 = vpop.f32.mrf.mxu0
      %v2152 = vadd.f32 %v1705, %v2151
      %v2153 = vpop.f32.mrf.mxu0
      %v2154 = vadd.f32 %v1705, %v2153
      %2155 = vmatmul.bf16.gmra.mxu0 %v1621
      %v2156 = vpop.f32.mrf.mxu0
      %v2157 = vadd.f32 %v1705, %v2156
      %v2158 = vpop.f32.mrf.mxu0
      %v2159 = vadd.f32 %v1705, %v2158
      %2160 = vmatmul.bf16.gmra.mxu0 %v1623
      %v2161 = vpop.f32.mrf.mxu0
      %v2162 = vadd.f32 %v1705, %v2161
      %v2163 = vpop.f32.mrf.mxu0
      %v2164 = vadd.f32 %v1705, %v2163
      %2165 = vmatmul.bf16.gmra.mxu0 %v1625
      %v2166 = vpop.f32.mrf.mxu0
      %v2167 = vadd.f32 %v1705, %v2166
      %v2168 = vpop.f32.mrf.mxu0
      %v2169 = vadd.f32 %v1705, %v2168
      %2170 = vmatmul.bf16.gmra.mxu0 %v1627
      %v2171 = vpop.f32.mrf.mxu0
      %v2172 = vadd.f32 %v1705, %v2171
      %v2173 = vpop.f32.mrf.mxu0
      %v2174 = vadd.f32 %v1705, %v2173
      %2175 = vmatmul.bf16.gmra.mxu0 %v1629
      %v2176 = vpop.f32.mrf.mxu0
      %v2177 = vadd.f32 %v1705, %v2176
      %v2178 = vpop.f32.mrf.mxu0
      %v2179 = vadd.f32 %v1705, %v2178
      %2180 = vmatmul.bf16.gmra.mxu0 %v1631
      %v2181 = vpop.f32.mrf.mxu0
      %v2182 = vadd.f32 %v1705, %v2181
      %v2183 = vpop.f32.mrf.mxu0
      %v2184 = vadd.f32 %v1705, %v2183
      %2185 = vmatmul.bf16.gmra.mxu0 %v1633
      %v2186 = vpop.f32.mrf.mxu0
      %v2187 = vadd.f32 %v1705, %v2186
      %v2188 = vpop.f32.mrf.mxu0
      %v2189 = vadd.f32 %v1705, %v2188
      %2190 = vmatmul.bf16.gmra.mxu0 %v1635
      %v2191 = vpop.f32.mrf.mxu0
      %v2192 = vadd.f32 %v1705, %v2191
      %v2193 = vpop.f32.mrf.mxu0
      %v2194 = vadd.f32 %v1705, %v2193
      %2195 = vmatmul.bf16.gmra.mxu0 %v1637
      %v2196 = vpop.f32.mrf.mxu0
      %v2197 = vadd.f32 %v1705, %v2196
      %v2198 = vpop.f32.mrf.mxu0
      %v2199 = vadd.f32 %v1705, %v2198
      %2200 = vmatmul.bf16.gmra.mxu0 %v1639
      %v2201 = vpop.f32.mrf.mxu0
      %v2202 = vadd.f32 %v1705, %v2201
      %v2203 = vpop.f32.mrf.mxu0
      %v2204 = vadd.f32 %v1705, %v2203
      %2205 = vmatmul.bf16.gmra.mxu0 %v1641
      %v2206 = vpop.f32.mrf.mxu0
      %v2207 = vadd.f32 %v1705, %v2206
      %v2208 = vpop.f32.mrf.mxu0
      %v2209 = vadd.f32 %v1705, %v2208
      %2210 = vmatmul.bf16.gmra.mxu0 %v1643
      %v2211 = vpop.f32.mrf.mxu0
      %v2212 = vadd.f32 %v1705, %v2211
      %v2213 = vpop.f32.mrf.mxu0
      %v2214 = vadd.f32 %v1705, %v2213
      %2215 = vmatmul.bf16.gmra.mxu0 %v1645
      %v2216 = vpop.f32.mrf.mxu0
      %v2217 = vadd.f32 %v1705, %v2216
      %v2218 = vpop.f32.mrf.mxu0
      %v2219 = vadd.f32 %v1705, %v2218
      %2220 = vmatmul.bf16.gmra.mxu0 %v1647
      %v2221 = vpop.f32.mrf.mxu0
      %v2222 = vadd.f32 %v1705, %v2221
      %v2223 = vpop.f32.mrf.mxu0
      %v2224 = vadd.f32 %v1705, %v2223
      %2225 = vmatmul.bf16.gmra.mxu0 %v1649
      %v2226 = vpop.f32.mrf.mxu0
      %v2227 = vadd.f32 %v1705, %v2226
      %v2228 = vpop.f32.mrf.mxu0
      %v2229 = vadd.f32 %v1705, %v2228
      %2230 = vmatmul.bf16.gmra.mxu0 %v1651
      %v2231 = vpop.f32.mrf.mxu0
      %v2232 = vadd.f32 %v1705, %v2231
      %v2233 = vpop.f32.mrf.mxu0
      %v2234 = vadd.f32 %v1705, %v2233
      %2235 = vmatmul.bf16.gmra.mxu0 %v1653
      %v2236 = vpop.f32.mrf.mxu0
      %v2237 = vadd.f32 %v1705, %v2236
      %v2238 = vpop.f32.mrf.mxu0
      %v2239 = vadd.f32 %v1705, %v2238
      %2240 = vmatmul.bf16.gmra.mxu0 %v1655
      %v2241 = vpop.f32.mrf.mxu0
      %v2242 = vadd.f32 %v1705, %v2241
      %v2243 = vpop.f32.mrf.mxu0
      %v2244 = vadd.f32 %v1705, %v2243
      %2245 = vmatmul.bf16.gmra.mxu0 %v1657
      %v2246 = vpop.f32.mrf.mxu0
      %v2247 = vadd.f32 %v1705, %v2246
      %v2248 = vpop.f32.mrf.mxu0
      %v2249 = vadd.f32 %v1705, %v2248
      %2250 = vmatmul.bf16.gmra.mxu0 %v1659
      %v2251 = vpop.f32.mrf.mxu0
      %v2252 = vadd.f32 %v1705, %v2251
      %v2253 = vpop.f32.mrf.mxu0
      %v2254 = vadd.f32 %v1705, %v2253
      %2255 = vmatmul.bf16.gmra.mxu0 %v1661
      %v2256 = vpop.f32.mrf.mxu0
      %v2257 = vadd.f32 %v1705, %v2256
      %v2258 = vpop.f32.mrf.mxu0
      %v2259 = vadd.f32 %v1705, %v2258
      %2260 = vmatmul.bf16.gmra.mxu0 %v1663
      %v2261 = vpop.f32.mrf.mxu0
      %v2262 = vadd.f32 %v1705, %v2261
      %v2263 = vpop.f32.mrf.mxu0
      %v2264 = vadd.f32 %v1705, %v2263
      %2265 = vmatmul.bf16.gmra.mxu0 %v1665
      %v2266 = vpop.f32.mrf.mxu0
      %v2267 = vadd.f32 %v1705, %v2266
      %v2268 = vpop.f32.mrf.mxu0
      %v2269 = vadd.f32 %v1705, %v2268
      %2270 = vmatmul.bf16.gmra.mxu0 %v1667
      %v2271 = vpop.f32.mrf.mxu0
      %v2272 = vadd.f32 %v1705, %v2271
      %v2273 = vpop.f32.mrf.mxu0
      %v2274 = vadd.f32 %v1705, %v2273
      %2275 = vmatmul.bf16.gmra.mxu0 %v1669
      %v2276 = vpop.f32.mrf.mxu0
      %v2277 = vadd.f32 %v1705, %v2276
      %v2278 = vpop.f32.mrf.mxu0
      %v2279 = vadd.f32 %v1705, %v2278
      %2280 = vmatmul.bf16.gmra.mxu0 %v1671
      %v2281 = vpop.f32.mrf.mxu0
      %v2282 = vadd.f32 %v1705, %v2281
      %v2283 = vpop.f32.mrf.mxu0
      %v2284 = vadd.f32 %v1705, %v2283
      %2285 = vmatmul.bf16.gmra.mxu0 %v1673
      %v2286 = vpop.f32.mrf.mxu0
      %v2287 = vadd.f32 %v1705, %v2286
      %v2288 = vpop.f32.mrf.mxu0
      %v2289 = vadd.f32 %v1705, %v2288
      %2290 = vmatmul.bf16.gmra.mxu0 %v1675
      %v2291 = vpop.f32.mrf.mxu0
      %v2292 = vadd.f32 %v1705, %v2291
      %v2293 = vpop.f32.mrf.mxu0
      %v2294 = vadd.f32 %v1705, %v2293
      %2295 = vmatmul.bf16.gmra.mxu0 %v1677
      %v2296 = vpop.f32.mrf.mxu0
      %v2297 = vadd.f32 %v1705, %v2296
      %v2298 = vpop.f32.mrf.mxu0
      %v2299 = vadd.f32 %v1705, %v2298
      %2300 = vdwg.mxu0
      %2301 = vmatpush.bf16.msra.mxu0 0
      %2302 = vmatpush.bf16.msra.mxu0 0
      %2303 = vmatpush.bf16.msra.mxu0 0
      %2304 = vmatpush.bf16.msra.mxu0 0
      %2305 = vmatpush.bf16.msra.mxu0 %v1766
      %2306 = vmatpush.bf16.msra.mxu0 %v1765
      %2307 = vmatpush.bf16.msra.mxu0 %v1764
      %2308 = vmatpush.bf16.msra.mxu0 %v1763
      %2309 = vmatmul.bf16.gmra.mxu0 %v1781
      %v2310 = vpop.f32.mrf.mxu0
      %v2311 = vadd.f32 %v1982, %v2310
      %v2312 = vpop.f32.mrf.mxu0
      %v2313 = vadd.f32 %v1984, %v2312
      %2314 = vmatmul.bf16.gmra.mxu0 %v1784
      %v2315 = vpop.f32.mrf.mxu0
      %v2316 = vadd.f32 %v1987, %v2315
      %v2317 = vpop.f32.mrf.mxu0
      %v2318 = vadd.f32 %v1989, %v2317
      %2319 = vmatmul.bf16.gmra.mxu0 %v1787
      %v2320 = vpop.f32.mrf.mxu0
      %v2321 = vadd.f32 %v1992, %v2320
      %v2322 = vpop.f32.mrf.mxu0
      %v2323 = vadd.f32 %v1994, %v2322
      %2324 = vmatmul.bf16.gmra.mxu0 %v1790
      %v2325 = vpop.f32.mrf.mxu0
      %v2326 = vadd.f32 %v1997, %v2325
      %v2327 = vpop.f32.mrf.mxu0
      %v2328 = vadd.f32 %v1999, %v2327
      %2329 = vmatmul.bf16.gmra.mxu0 %v1793
      %v2330 = vpop.f32.mrf.mxu0
      %v2331 = vadd.f32 %v2002, %v2330
      %v2332 = vpop.f32.mrf.mxu0
      %v2333 = vadd.f32 %v2004, %v2332
      %2334 = vmatmul.bf16.gmra.mxu0 %v1796
      %v2335 = vpop.f32.mrf.mxu0
      %v2336 = vadd.f32 %v2007, %v2335
      %v2337 = vpop.f32.mrf.mxu0
      %v2338 = vadd.f32 %v2009, %v2337
      %2339 = vmatmul.bf16.gmra.mxu0 %v1799
      %v2340 = vpop.f32.mrf.mxu0
      %v2341 = vadd.f32 %v2012, %v2340
      %v2342 = vpop.f32.mrf.mxu0
      %v2343 = vadd.f32 %v2014, %v2342
      %2344 = vmatmul.bf16.gmra.mxu0 %v1802
      %v2345 = vpop.f32.mrf.mxu0
      %v2346 = vadd.f32 %v2017, %v2345
      %v2347 = vpop.f32.mrf.mxu0
      %v2348 = vadd.f32 %v2019, %v2347
      %2349 = vmatmul.bf16.gmra.mxu0 %v1805
      %v2350 = vpop.f32.mrf.mxu0
      %v2351 = vadd.f32 %v2022, %v2350
      %v2352 = vpop.f32.mrf.mxu0
      %v2353 = vadd.f32 %v2024, %v2352
      %2354 = vmatmul.bf16.gmra.mxu0 %v1808
      %v2355 = vpop.f32.mrf.mxu0
      %v2356 = vadd.f32 %v2027, %v2355
      %v2357 = vpop.f32.mrf.mxu0
      %v2358 = vadd.f32 %v2029, %v2357
      %2359 = vmatmul.bf16.gmra.mxu0 %v1811
      %v2360 = vpop.f32.mrf.mxu0
      %v2361 = vadd.f32 %v2032, %v2360
      %v2362 = vpop.f32.mrf.mxu0
      %v2363 = vadd.f32 %v2034, %v2362
      %2364 = vmatmul.bf16.gmra.mxu0 %v1814
      %v2365 = vpop.f32.mrf.mxu0
      %v2366 = vadd.f32 %v2037, %v2365
      %v2367 = vpop.f32.mrf.mxu0
      %v2368 = vadd.f32 %v2039, %v2367
      %2369 = vmatmul.bf16.gmra.mxu0 %v1817
      %v2370 = vpop.f32.mrf.mxu0
      %v2371 = vadd.f32 %v2042, %v2370
      %v2372 = vpop.f32.mrf.mxu0
      %v2373 = vadd.f32 %v2044, %v2372
      %2374 = vmatmul.bf16.gmra.mxu0 %v1820
      %v2375 = vpop.f32.mrf.mxu0
      %v2376 = vadd.f32 %v2047, %v2375
      %v2377 = vpop.f32.mrf.mxu0
      %v2378 = vadd.f32 %v2049, %v2377
      %2379 = vmatmul.bf16.gmra.mxu0 %v1823
      %v2380 = vpop.f32.mrf.mxu0
      %v2381 = vadd.f32 %v2052, %v2380
      %v2382 = vpop.f32.mrf.mxu0
      %v2383 = vadd.f32 %v2054, %v2382
      %2384 = vmatmul.bf16.gmra.mxu0 %v1826
      %v2385 = vpop.f32.mrf.mxu0
      %v2386 = vadd.f32 %v2057, %v2385
      %v2387 = vpop.f32.mrf.mxu0
      %v2388 = vadd.f32 %v2059, %v2387
      %2389 = vmatmul.bf16.gmra.mxu0 %v1829
      %v2390 = vpop.f32.mrf.mxu0
      %v2391 = vadd.f32 %v2062, %v2390
      %v2392 = vpop.f32.mrf.mxu0
      %v2393 = vadd.f32 %v2064, %v2392
      %2394 = vmatmul.bf16.gmra.mxu0 %v1832
      %v2395 = vpop.f32.mrf.mxu0
      %v2396 = vadd.f32 %v2067, %v2395
      %v2397 = vpop.f32.mrf.mxu0
      %v2398 = vadd.f32 %v2069, %v2397
      %2399 = vmatmul.bf16.gmra.mxu0 %v1835
      %v2400 = vpop.f32.mrf.mxu0
      %v2401 = vadd.f32 %v2072, %v2400
      %v2402 = vpop.f32.mrf.mxu0
      %v2403 = vadd.f32 %v2074, %v2402
      %2404 = vmatmul.bf16.gmra.mxu0 %v1838
      %v2405 = vpop.f32.mrf.mxu0
      %v2406 = vadd.f32 %v2077, %v2405
      %v2407 = vpop.f32.mrf.mxu0
      %v2408 = vadd.f32 %v2079, %v2407
      %2409 = vmatmul.bf16.gmra.mxu0 %v1841
      %v2410 = vpop.f32.mrf.mxu0
      %v2411 = vadd.f32 %v2082, %v2410
      %v2412 = vpop.f32.mrf.mxu0
      %v2413 = vadd.f32 %v2084, %v2412
      %2414 = vmatmul.bf16.gmra.mxu0 %v1844
      %v2415 = vpop.f32.mrf.mxu0
      %v2416 = vadd.f32 %v2087, %v2415
      %v2417 = vpop.f32.mrf.mxu0
      %v2418 = vadd.f32 %v2089, %v2417
      %2419 = vmatmul.bf16.gmra.mxu0 %v1847
      %v2420 = vpop.f32.mrf.mxu0
      %v2421 = vadd.f32 %v2092, %v2420
      %v2422 = vpop.f32.mrf.mxu0
      %v2423 = vadd.f32 %v2094, %v2422
      %2424 = vmatmul.bf16.gmra.mxu0 %v1850
      %v2425 = vpop.f32.mrf.mxu0
      %v2426 = vadd.f32 %v2097, %v2425
      %v2427 = vpop.f32.mrf.mxu0
      %v2428 = vadd.f32 %v2099, %v2427
      %2429 = vmatmul.bf16.gmra.mxu0 %v1853
      %v2430 = vpop.f32.mrf.mxu0
      %v2431 = vadd.f32 %v2102, %v2430
      %v2432 = vpop.f32.mrf.mxu0
      %v2433 = vadd.f32 %v2104, %v2432
      %2434 = vmatmul.bf16.gmra.mxu0 %v1856
      %v2435 = vpop.f32.mrf.mxu0
      %v2436 = vadd.f32 %v2107, %v2435
      %v2437 = vpop.f32.mrf.mxu0
      %v2438 = vadd.f32 %v2109, %v2437
      %2439 = vmatmul.bf16.gmra.mxu0 %v1859
      %v2440 = vpop.f32.mrf.mxu0
      %v2441 = vadd.f32 %v2112, %v2440
      %v2442 = vpop.f32.mrf.mxu0
      %v2443 = vadd.f32 %v2114, %v2442
      %2444 = vmatmul.bf16.gmra.mxu0 %v1862
      %v2445 = vpop.f32.mrf.mxu0
      %v2446 = vadd.f32 %v2117, %v2445
      %v2447 = vpop.f32.mrf.mxu0
      %v2448 = vadd.f32 %v2119, %v2447
      %2449 = vmatmul.bf16.gmra.mxu0 %v1865
      %v2450 = vpop.f32.mrf.mxu0
      %v2451 = vadd.f32 %v2122, %v2450
      %v2452 = vpop.f32.mrf.mxu0
      %v2453 = vadd.f32 %v2124, %v2452
      %2454 = vmatmul.bf16.gmra.mxu0 %v1868
      %v2455 = vpop.f32.mrf.mxu0
      %v2456 = vadd.f32 %v2127, %v2455
      %v2457 = vpop.f32.mrf.mxu0
      %v2458 = vadd.f32 %v2129, %v2457
      %2459 = vmatmul.bf16.gmra.mxu0 %v1871
      %v2460 = vpop.f32.mrf.mxu0
      %v2461 = vadd.f32 %v2132, %v2460
      %v2462 = vpop.f32.mrf.mxu0
      %v2463 = vadd.f32 %v2134, %v2462
      %2464 = vmatmul.bf16.gmra.mxu0 %v1874
      %v2465 = vpop.f32.mrf.mxu0
      %v2466 = vadd.f32 %v2137, %v2465
      %v2467 = vpop.f32.mrf.mxu0
      %v2468 = vadd.f32 %v2139, %v2467
      %2469 = vmatmul.bf16.gmra.mxu0 %v1877
      %v2470 = vpop.f32.mrf.mxu0
      %v2471 = vadd.f32 %v2142, %v2470
      %v2472 = vpop.f32.mrf.mxu0
      %v2473 = vadd.f32 %v2144, %v2472
      %2474 = vmatmul.bf16.gmra.mxu0 %v1880
      %v2475 = vpop.f32.mrf.mxu0
      %v2476 = vadd.f32 %v2147, %v2475
      %v2477 = vpop.f32.mrf.mxu0
      %v2478 = vadd.f32 %v2149, %v2477
      %2479 = vmatmul.bf16.gmra.mxu0 %v1883
      %v2480 = vpop.f32.mrf.mxu0
      %v2481 = vadd.f32 %v2152, %v2480
      %v2482 = vpop.f32.mrf.mxu0
      %v2483 = vadd.f32 %v2154, %v2482
      %2484 = vmatmul.bf16.gmra.mxu0 %v1886
      %v2485 = vpop.f32.mrf.mxu0
      %v2486 = vadd.f32 %v2157, %v2485
      %v2487 = vpop.f32.mrf.mxu0
      %v2488 = vadd.f32 %v2159, %v2487
      %2489 = vmatmul.bf16.gmra.mxu0 %v1889
      %v2490 = vpop.f32.mrf.mxu0
      %v2491 = vadd.f32 %v2162, %v2490
      %v2492 = vpop.f32.mrf.mxu0
      %v2493 = vadd.f32 %v2164, %v2492
      %2494 = vmatmul.bf16.gmra.mxu0 %v1892
      %v2495 = vpop.f32.mrf.mxu0
      %v2496 = vadd.f32 %v2167, %v2495
      %v2497 = vpop.f32.mrf.mxu0
      %v2498 = vadd.f32 %v2169, %v2497
      %2499 = vmatmul.bf16.gmra.mxu0 %v1895
      %v2500 = vpop.f32.mrf.mxu0
      %v2501 = vadd.f32 %v2172, %v2500
      %v2502 = vpop.f32.mrf.mxu0
      %v2503 = vadd.f32 %v2174, %v2502
      %2504 = vmatmul.bf16.gmra.mxu0 %v1898
      %v2505 = vpop.f32.mrf.mxu0
      %v2506 = vadd.f32 %v2177, %v2505
      %v2507 = vpop.f32.mrf.mxu0
      %v2508 = vadd.f32 %v2179, %v2507
      %2509 = vmatmul.bf16.gmra.mxu0 %v1901
      %v2510 = vpop.f32.mrf.mxu0
      %v2511 = vadd.f32 %v2182, %v2510
      %v2512 = vpop.f32.mrf.mxu0
      %v2513 = vadd.f32 %v2184, %v2512
      %2514 = vmatmul.bf16.gmra.mxu0 %v1904
      %v2515 = vpop.f32.mrf.mxu0
      %v2516 = vadd.f32 %v2187, %v2515
      %v2517 = vpop.f32.mrf.mxu0
      %v2518 = vadd.f32 %v2189, %v2517
      %2519 = vmatmul.bf16.gmra.mxu0 %v1907
      %v2520 = vpop.f32.mrf.mxu0
      %v2521 = vadd.f32 %v2192, %v2520
      %v2522 = vpop.f32.mrf.mxu0
      %v2523 = vadd.f32 %v2194, %v2522
      %2524 = vmatmul.bf16.gmra.mxu0 %v1910
      %v2525 = vpop.f32.mrf.mxu0
      %v2526 = vadd.f32 %v2197, %v2525
      %v2527 = vpop.f32.mrf.mxu0
      %v2528 = vadd.f32 %v2199, %v2527
      %2529 = vmatmul.bf16.gmra.mxu0 %v1913
      %v2530 = vpop.f32.mrf.mxu0
      %v2531 = vadd.f32 %v2202, %v2530
      %v2532 = vpop.f32.mrf.mxu0
      %v2533 = vadd.f32 %v2204, %v2532
      %2534 = vmatmul.bf16.gmra.mxu0 %v1916
      %v2535 = vpop.f32.mrf.mxu0
      %v2536 = vadd.f32 %v2207, %v2535
      %v2537 = vpop.f32.mrf.mxu0
      %v2538 = vadd.f32 %v2209, %v2537
      %2539 = vmatmul.bf16.gmra.mxu0 %v1919
      %v2540 = vpop.f32.mrf.mxu0
      %v2541 = vadd.f32 %v2212, %v2540
      %v2542 = vpop.f32.mrf.mxu0
      %v2543 = vadd.f32 %v2214, %v2542
      %2544 = vmatmul.bf16.gmra.mxu0 %v1922
      %v2545 = vpop.f32.mrf.mxu0
      %v2546 = vadd.f32 %v2217, %v2545
      %v2547 = vpop.f32.mrf.mxu0
      %v2548 = vadd.f32 %v2219, %v2547
      %2549 = vmatmul.bf16.gmra.mxu0 %v1925
      %v2550 = vpop.f32.mrf.mxu0
      %v2551 = vadd.f32 %v2222, %v2550
      %v2552 = vpop.f32.mrf.mxu0
      %v2553 = vadd.f32 %v2224, %v2552
      %2554 = vmatmul.bf16.gmra.mxu0 %v1928
      %v2555 = vpop.f32.mrf.mxu0
      %v2556 = vadd.f32 %v2227, %v2555
      %v2557 = vpop.f32.mrf.mxu0
      %v2558 = vadd.f32 %v2229, %v2557
      %2559 = vmatmul.bf16.gmra.mxu0 %v1931
      %v2560 = vpop.f32.mrf.mxu0
      %v2561 = vadd.f32 %v2232, %v2560
      %v2562 = vpop.f32.mrf.mxu0
      %v2563 = vadd.f32 %v2234, %v2562
      %2564 = vmatmul.bf16.gmra.mxu0 %v1934
      %v2565 = vpop.f32.mrf.mxu0
      %v2566 = vadd.f32 %v2237, %v2565
      %v2567 = vpop.f32.mrf.mxu0
      %v2568 = vadd.f32 %v2239, %v2567
      %2569 = vmatmul.bf16.gmra.mxu0 %v1937
      %v2570 = vpop.f32.mrf.mxu0
      %v2571 = vadd.f32 %v2242, %v2570
      %v2572 = vpop.f32.mrf.mxu0
      %v2573 = vadd.f32 %v2244, %v2572
      %2574 = vmatmul.bf16.gmra.mxu0 %v1940
      %v2575 = vpop.f32.mrf.mxu0
      %v2576 = vadd.f32 %v2247, %v2575
      %v2577 = vpop.f32.mrf.mxu0
      %v2578 = vadd.f32 %v2249, %v2577
      %2579 = vmatmul.bf16.gmra.mxu0 %v1943
      %v2580 = vpop.f32.mrf.mxu0
      %v2581 = vadd.f32 %v2252, %v2580
      %v2582 = vpop.f32.mrf.mxu0
      %v2583 = vadd.f32 %v2254, %v2582
      %2584 = vmatmul.bf16.gmra.mxu0 %v1946
      %v2585 = vpop.f32.mrf.mxu0
      %v2586 = vadd.f32 %v2257, %v2585
      %v2587 = vpop.f32.mrf.mxu0
      %v2588 = vadd.f32 %v2259, %v2587
      %2589 = vmatmul.bf16.gmra.mxu0 %v1949
      %v2590 = vpop.f32.mrf.mxu0
      %v2591 = vadd.f32 %v2262, %v2590
      %v2592 = vpop.f32.mrf.mxu0
      %v2593 = vadd.f32 %v2264, %v2592
      %2594 = vmatmul.bf16.gmra.mxu0 %v1952
      %v2595 = vpop.f32.mrf.mxu0
      %v2596 = vadd.f32 %v2267, %v2595
      %v2597 = vpop.f32.mrf.mxu0
      %v2598 = vadd.f32 %v2269, %v2597
      %2599 = vmatmul.bf16.gmra.mxu0 %v1955
      %v2600 = vpop.f32.mrf.mxu0
      %v2601 = vadd.f32 %v2272, %v2600
      %v2602 = vpop.f32.mrf.mxu0
      %v2603 = vadd.f32 %v2274, %v2602
      %2604 = vmatmul.bf16.gmra.mxu0 %v1958
      %v2605 = vpop.f32.mrf.mxu0
      %v2606 = vadd.f32 %v2277, %v2605
      %v2607 = vpop.f32.mrf.mxu0
      %v2608 = vadd.f32 %v2279, %v2607
      %2609 = vmatmul.bf16.gmra.mxu0 %v1961
      %v2610 = vpop.f32.mrf.mxu0
      %v2611 = vadd.f32 %v2282, %v2610
      %v2612 = vpop.f32.mrf.mxu0
      %v2613 = vadd.f32 %v2284, %v2612
      %2614 = vmatmul.bf16.gmra.mxu0 %v1964
      %v2615 = vpop.f32.mrf.mxu0
      %v2616 = vadd.f32 %v2287, %v2615
      %v2617 = vpop.f32.mrf.mxu0
      %v2618 = vadd.f32 %v2289, %v2617
      %2619 = vmatmul.bf16.gmra.mxu0 %v1967
      %v2620 = vpop.f32.mrf.mxu0
      %v2621 = vadd.f32 %v2292, %v2620
      %v2622 = vpop.f32.mrf.mxu0
      %v2623 = vadd.f32 %v2294, %v2622
      %2624 = vmatmul.bf16.gmra.mxu0 %v1970
      %v2625 = vpop.f32.mrf.mxu0
      %v2626 = vadd.f32 %v2297, %v2625
      %v2627 = vpop.f32.mrf.mxu0
      %v2628 = vadd.f32 %v2299, %v2627
      %2629 = vdwg.mxu0
      %2758 = vrot.lane.b32.xlu0 %v2311, 80
      %v2759 = vpop.permute.xlu0 %2758
      %2760 = vrot.lane.b32.xlu0 %v2313, 80
      %v2761 = vpop.permute.xlu0 %2760
      %2762 = vrot.lane.b32.xlu0 %v2316, 80
      %v2763 = vpop.permute.xlu0 %2762
      %2764 = vrot.lane.b32.xlu0 %v2318, 80
      %v2765 = vpop.permute.xlu0 %2764
      %2766 = vrot.lane.b32.xlu0 %v2321, 80
      %v2767 = vpop.permute.xlu0 %2766
      %2768 = vrot.lane.b32.xlu0 %v2323, 80
      %v2769 = vpop.permute.xlu0 %2768
      %2770 = vrot.lane.b32.xlu0 %v2326, 80
      %v2771 = vpop.permute.xlu0 %2770
      %2772 = vrot.lane.b32.xlu0 %v2328, 80
      %v2773 = vpop.permute.xlu0 %2772
      %2774 = vrot.lane.b32.xlu0 %v2331, 80
      %v2775 = vpop.permute.xlu0 %2774
      %2776 = vrot.lane.b32.xlu0 %v2333, 80
      %v2777 = vpop.permute.xlu0 %2776
      %2778 = vrot.lane.b32.xlu0 %v2336, 80
      %v2779 = vpop.permute.xlu0 %2778
      %2780 = vrot.lane.b32.xlu0 %v2338, 80
      %v2781 = vpop.permute.xlu0 %2780
      %2782 = vrot.lane.b32.xlu0 %v2341, 80
      %v2783 = vpop.permute.xlu0 %2782
      %2784 = vrot.lane.b32.xlu0 %v2343, 80
      %v2785 = vpop.permute.xlu0 %2784
      %2786 = vrot.lane.b32.xlu0 %v2346, 80
      %v2787 = vpop.permute.xlu0 %2786
      %2788 = vrot.lane.b32.xlu0 %v2348, 80
      %v2789 = vpop.permute.xlu0 %2788
      %2790 = vrot.lane.b32.xlu0 %v2351, 80
      %v2791 = vpop.permute.xlu0 %2790
      %2792 = vrot.lane.b32.xlu0 %v2353, 80
      %v2793 = vpop.permute.xlu0 %2792
      %2794 = vrot.lane.b32.xlu0 %v2356, 80
      %v2795 = vpop.permute.xlu0 %2794
      %2796 = vrot.lane.b32.xlu0 %v2358, 80
      %v2797 = vpop.permute.xlu0 %2796
      %2798 = vrot.lane.b32.xlu0 %v2361, 80
      %v2799 = vpop.permute.xlu0 %2798
      %2800 = vrot.lane.b32.xlu0 %v2363, 80
      %v2801 = vpop.permute.xlu0 %2800
      %2802 = vrot.lane.b32.xlu0 %v2366, 80
      %v2803 = vpop.permute.xlu0 %2802
      %2804 = vrot.lane.b32.xlu0 %v2368, 80
      %v2805 = vpop.permute.xlu0 %2804
      %2806 = vrot.lane.b32.xlu0 %v2371, 80
      %v2807 = vpop.permute.xlu0 %2806
      %2808 = vrot.lane.b32.xlu0 %v2373, 80
      %v2809 = vpop.permute.xlu0 %2808
      %2810 = vrot.lane.b32.xlu0 %v2376, 80
      %v2811 = vpop.permute.xlu0 %2810
      %2812 = vrot.lane.b32.xlu0 %v2378, 80
      %v2813 = vpop.permute.xlu0 %2812
      %2814 = vrot.lane.b32.xlu0 %v2381, 80
      %v2815 = vpop.permute.xlu0 %2814
      %2816 = vrot.lane.b32.xlu0 %v2383, 80
      %v2817 = vpop.permute.xlu0 %2816
      %2818 = vrot.lane.b32.xlu0 %v2386, 80
      %v2819 = vpop.permute.xlu0 %2818
      %2820 = vrot.lane.b32.xlu0 %v2388, 80
      %v2821 = vpop.permute.xlu0 %2820
      %2822 = vrot.lane.b32.xlu0 %v2391, 80
      %v2823 = vpop.permute.xlu0 %2822
      %2824 = vrot.lane.b32.xlu0 %v2393, 80
      %v2825 = vpop.permute.xlu0 %2824
      %2826 = vrot.lane.b32.xlu0 %v2396, 80
      %v2827 = vpop.permute.xlu0 %2826
      %2828 = vrot.lane.b32.xlu0 %v2398, 80
      %v2829 = vpop.permute.xlu0 %2828
      %2830 = vrot.lane.b32.xlu0 %v2401, 80
      %v2831 = vpop.permute.xlu0 %2830
      %2832 = vrot.lane.b32.xlu0 %v2403, 80
      %v2833 = vpop.permute.xlu0 %2832
      %2834 = vrot.lane.b32.xlu0 %v2406, 80
      %v2835 = vpop.permute.xlu0 %2834
      %2836 = vrot.lane.b32.xlu0 %v2408, 80
      %v2837 = vpop.permute.xlu0 %2836
      %2838 = vrot.lane.b32.xlu0 %v2411, 80
      %v2839 = vpop.permute.xlu0 %2838
      %2840 = vrot.lane.b32.xlu0 %v2413, 80
      %v2841 = vpop.permute.xlu0 %2840
      %2842 = vrot.lane.b32.xlu0 %v2416, 80
      %v2843 = vpop.permute.xlu0 %2842
      %2844 = vrot.lane.b32.xlu0 %v2418, 80
      %v2845 = vpop.permute.xlu0 %2844
      %2846 = vrot.lane.b32.xlu0 %v2421, 80
      %v2847 = vpop.permute.xlu0 %2846
      %2848 = vrot.lane.b32.xlu0 %v2423, 80
      %v2849 = vpop.permute.xlu0 %2848
      %2850 = vrot.lane.b32.xlu0 %v2426, 80
      %v2851 = vpop.permute.xlu0 %2850
      %2852 = vrot.lane.b32.xlu0 %v2428, 80
      %v2853 = vpop.permute.xlu0 %2852
      %2854 = vrot.lane.b32.xlu0 %v2431, 80
      %v2855 = vpop.permute.xlu0 %2854
      %2856 = vrot.lane.b32.xlu0 %v2433, 80
      %v2857 = vpop.permute.xlu0 %2856
      %2858 = vrot.lane.b32.xlu0 %v2436, 80
      %v2859 = vpop.permute.xlu0 %2858
      %2860 = vrot.lane.b32.xlu0 %v2438, 80
      %v2861 = vpop.permute.xlu0 %2860
      %2862 = vrot.lane.b32.xlu0 %v2441, 80
      %v2863 = vpop.permute.xlu0 %2862
      %2864 = vrot.lane.b32.xlu0 %v2443, 80
      %v2865 = vpop.permute.xlu0 %2864
      %2866 = vrot.lane.b32.xlu0 %v2446, 80
      %v2867 = vpop.permute.xlu0 %2866
      %2868 = vrot.lane.b32.xlu0 %v2448, 80
      %v2869 = vpop.permute.xlu0 %2868
      %2870 = vrot.lane.b32.xlu0 %v2451, 80
      %v2871 = vpop.permute.xlu0 %2870
      %2872 = vrot.lane.b32.xlu0 %v2453, 80
      %v2873 = vpop.permute.xlu0 %2872
      %2874 = vrot.lane.b32.xlu0 %v2456, 80
      %v2875 = vpop.permute.xlu0 %2874
      %2876 = vrot.lane.b32.xlu0 %v2458, 80
      %v2877 = vpop.permute.xlu0 %2876
      %2878 = vrot.lane.b32.xlu0 %v2461, 80
      %v2879 = vpop.permute.xlu0 %2878
      %2880 = vrot.lane.b32.xlu0 %v2463, 80
      %v2881 = vpop.permute.xlu0 %2880
      %2882 = vrot.lane.b32.xlu0 %v2466, 80
      %v2883 = vpop.permute.xlu0 %2882
      %2884 = vrot.lane.b32.xlu0 %v2468, 80
      %v2885 = vpop.permute.xlu0 %2884
      %2886 = vrot.lane.b32.xlu0 %v2471, 80
      %v2887 = vpop.permute.xlu0 %2886
      %2888 = vrot.lane.b32.xlu0 %v2473, 80
      %v2889 = vpop.permute.xlu0 %2888
      %2890 = vrot.lane.b32.xlu0 %v2476, 80
      %v2891 = vpop.permute.xlu0 %2890
      %2892 = vrot.lane.b32.xlu0 %v2478, 80
      %v2893 = vpop.permute.xlu0 %2892
      %2894 = vrot.lane.b32.xlu0 %v2481, 80
      %v2895 = vpop.permute.xlu0 %2894
      %2896 = vrot.lane.b32.xlu0 %v2483, 80
      %v2897 = vpop.permute.xlu0 %2896
      %2898 = vrot.lane.b32.xlu0 %v2486, 80
      %v2899 = vpop.permute.xlu0 %2898
      %2900 = vrot.lane.b32.xlu0 %v2488, 80
      %v2901 = vpop.permute.xlu0 %2900
      %2902 = vrot.lane.b32.xlu0 %v2491, 80
      %v2903 = vpop.permute.xlu0 %2902
      %2904 = vrot.lane.b32.xlu0 %v2493, 80
      %v2905 = vpop.permute.xlu0 %2904
      %2906 = vrot.lane.b32.xlu0 %v2496, 80
      %v2907 = vpop.permute.xlu0 %2906
      %2908 = vrot.lane.b32.xlu0 %v2498, 80
      %v2909 = vpop.permute.xlu0 %2908
      %2910 = vrot.lane.b32.xlu0 %v2501, 80
      %v2911 = vpop.permute.xlu0 %2910
      %2912 = vrot.lane.b32.xlu0 %v2503, 80
      %v2913 = vpop.permute.xlu0 %2912
      %2914 = vrot.lane.b32.xlu0 %v2506, 80
      %v2915 = vpop.permute.xlu0 %2914
      %2916 = vrot.lane.b32.xlu0 %v2508, 80
      %v2917 = vpop.permute.xlu0 %2916
      %2918 = vrot.lane.b32.xlu0 %v2511, 80
      %v2919 = vpop.permute.xlu0 %2918
      %2920 = vrot.lane.b32.xlu0 %v2513, 80
      %v2921 = vpop.permute.xlu0 %2920
      %2922 = vrot.lane.b32.xlu0 %v2516, 80
      %v2923 = vpop.permute.xlu0 %2922
      %2924 = vrot.lane.b32.xlu0 %v2518, 80
      %v2925 = vpop.permute.xlu0 %2924
      %2926 = vrot.lane.b32.xlu0 %v2521, 80
      %v2927 = vpop.permute.xlu0 %2926
      %2928 = vrot.lane.b32.xlu0 %v2523, 80
      %v2929 = vpop.permute.xlu0 %2928
      %2930 = vrot.lane.b32.xlu0 %v2526, 80
      %v2931 = vpop.permute.xlu0 %2930
      %2932 = vrot.lane.b32.xlu0 %v2528, 80
      %v2933 = vpop.permute.xlu0 %2932
      %2934 = vrot.lane.b32.xlu0 %v2531, 80
      %v2935 = vpop.permute.xlu0 %2934
      %2936 = vrot.lane.b32.xlu0 %v2533, 80
      %v2937 = vpop.permute.xlu0 %2936
      %2938 = vrot.lane.b32.xlu0 %v2536, 80
      %v2939 = vpop.permute.xlu0 %2938
      %2940 = vrot.lane.b32.xlu0 %v2538, 80
      %v2941 = vpop.permute.xlu0 %2940
      %2942 = vrot.lane.b32.xlu0 %v2541, 80
      %v2943 = vpop.permute.xlu0 %2942
      %2944 = vrot.lane.b32.xlu0 %v2543, 80
      %v2945 = vpop.permute.xlu0 %2944
      %2946 = vrot.lane.b32.xlu0 %v2546, 80
      %v2947 = vpop.permute.xlu0 %2946
      %2948 = vrot.lane.b32.xlu0 %v2548, 80
      %v2949 = vpop.permute.xlu0 %2948
      %2950 = vrot.lane.b32.xlu0 %v2551, 80
      %v2951 = vpop.permute.xlu0 %2950
      %2952 = vrot.lane.b32.xlu0 %v2553, 80
      %v2953 = vpop.permute.xlu0 %2952
      %2954 = vrot.lane.b32.xlu0 %v2556, 80
      %v2955 = vpop.permute.xlu0 %2954
      %2956 = vrot.lane.b32.xlu0 %v2558, 80
      %v2957 = vpop.permute.xlu0 %2956
      %2958 = vrot.lane.b32.xlu0 %v2561, 80
      %v2959 = vpop.permute.xlu0 %2958
      %2960 = vrot.lane.b32.xlu0 %v2563, 80
      %v2961 = vpop.permute.xlu0 %2960
      %2962 = vrot.lane.b32.xlu0 %v2566, 80
      %v2963 = vpop.permute.xlu0 %2962
      %2964 = vrot.lane.b32.xlu0 %v2568, 80
      %v2965 = vpop.permute.xlu0 %2964
      %2966 = vrot.lane.b32.xlu0 %v2571, 80
      %v2967 = vpop.permute.xlu0 %2966
      %2968 = vrot.lane.b32.xlu0 %v2573, 80
      %v2969 = vpop.permute.xlu0 %2968
      %2970 = vrot.lane.b32.xlu0 %v2576, 80
      %v2971 = vpop.permute.xlu0 %2970
      %2972 = vrot.lane.b32.xlu0 %v2578, 80
      %v2973 = vpop.permute.xlu0 %2972
      %2974 = vrot.lane.b32.xlu0 %v2581, 80
      %v2975 = vpop.permute.xlu0 %2974
      %2976 = vrot.lane.b32.xlu0 %v2583, 80
      %v2977 = vpop.permute.xlu0 %2976
      %2978 = vrot.lane.b32.xlu0 %v2586, 80
      %v2979 = vpop.permute.xlu0 %2978
      %2980 = vrot.lane.b32.xlu0 %v2588, 80
      %v2981 = vpop.permute.xlu0 %2980
      %2982 = vrot.lane.b32.xlu0 %v2591, 80
      %v2983 = vpop.permute.xlu0 %2982
      %2984 = vrot.lane.b32.xlu0 %v2593, 80
      %v2985 = vpop.permute.xlu0 %2984
      %2986 = vrot.lane.b32.xlu0 %v2596, 80
      %v2987 = vpop.permute.xlu0 %2986
      %2988 = vrot.lane.b32.xlu0 %v2598, 80
      %v2989 = vpop.permute.xlu0 %2988
      %2990 = vrot.lane.b32.xlu0 %v2601, 80
      %v2991 = vpop.permute.xlu0 %2990
      %2992 = vrot.lane.b32.xlu0 %v2603, 80
      %v2993 = vpop.permute.xlu0 %2992
      %2994 = vrot.lane.b32.xlu0 %v2606, 80
      %v2995 = vpop.permute.xlu0 %2994
      %2996 = vrot.lane.b32.xlu0 %v2608, 80
      %v2997 = vpop.permute.xlu0 %2996
      %2998 = vrot.lane.b32.xlu0 %v2611, 80
      %v2999 = vpop.permute.xlu0 %2998
      %3000 = vrot.lane.b32.xlu0 %v2613, 80
      %v3001 = vpop.permute.xlu0 %3000
      %3002 = vrot.lane.b32.xlu0 %v2616, 80
      %v3003 = vpop.permute.xlu0 %3002
      %3004 = vrot.lane.b32.xlu0 %v2618, 80
      %v3005 = vpop.permute.xlu0 %3004
      %3006 = vrot.lane.b32.xlu0 %v2621, 80
      %v3007 = vpop.permute.xlu0 %3006
      %3008 = vrot.lane.b32.xlu0 %v2623, 80
      %v3009 = vpop.permute.xlu0 %3008
      %3010 = vrot.lane.b32.xlu0 %v2626, 80
      %v3011 = vpop.permute.xlu0 %3010
      %3012 = vrot.lane.b32.xlu0 %v2628, 80
      %v3013 = vpop.permute.xlu0 %3012
      %v3142 = vmul.f32 %v2311, %v2759
      %v3143 = vmul.f32 %v2313, %v2761
      %v3144 = vmul.f32 %v2316, %v2763
      %v3145 = vmul.f32 %v2318, %v2765
      %v3146 = vmul.f32 %v2321, %v2767
      %v3147 = vmul.f32 %v2323, %v2769
      %v3148 = vmul.f32 %v2326, %v2771
      %v3149 = vmul.f32 %v2328, %v2773
      %v3150 = vmul.f32 %v2331, %v2775
      %v3151 = vmul.f32 %v2333, %v2777
      %v3152 = vmul.f32 %v2336, %v2779
      %v3153 = vmul.f32 %v2338, %v2781
      %v3154 = vmul.f32 %v2341, %v2783
      %v3155 = vmul.f32 %v2343, %v2785
      %v3156 = vmul.f32 %v2346, %v2787
      %v3157 = vmul.f32 %v2348, %v2789
      %v3158 = vmul.f32 %v2351, %v2791
      %v3159 = vmul.f32 %v2353, %v2793
      %v3160 = vmul.f32 %v2356, %v2795
      %v3161 = vmul.f32 %v2358, %v2797
      %v3162 = vmul.f32 %v2361, %v2799
      %v3163 = vmul.f32 %v2363, %v2801
      %v3164 = vmul.f32 %v2366, %v2803
      %v3165 = vmul.f32 %v2368, %v2805
      %v3166 = vmul.f32 %v2371, %v2807
      %v3167 = vmul.f32 %v2373, %v2809
      %v3168 = vmul.f32 %v2376, %v2811
      %v3169 = vmul.f32 %v2378, %v2813
      %v3170 = vmul.f32 %v2381, %v2815
      %v3171 = vmul.f32 %v2383, %v2817
      %v3172 = vmul.f32 %v2386, %v2819
      %v3173 = vmul.f32 %v2388, %v2821
      %v3174 = vmul.f32 %v2391, %v2823
      %v3175 = vmul.f32 %v2393, %v2825
      %v3176 = vmul.f32 %v2396, %v2827
      %v3177 = vmul.f32 %v2398, %v2829
      %v3178 = vmul.f32 %v2401, %v2831
      %v3179 = vmul.f32 %v2403, %v2833
      %v3180 = vmul.f32 %v2406, %v2835
      %v3181 = vmul.f32 %v2408, %v2837
      %v3182 = vmul.f32 %v2411, %v2839
      %v3183 = vmul.f32 %v2413, %v2841
      %v3184 = vmul.f32 %v2416, %v2843
      %v3185 = vmul.f32 %v2418, %v2845
      %v3186 = vmul.f32 %v2421, %v2847
      %v3187 = vmul.f32 %v2423, %v2849
      %v3188 = vmul.f32 %v2426, %v2851
      %v3189 = vmul.f32 %v2428, %v2853
      %v3190 = vmul.f32 %v2431, %v2855
      %v3191 = vmul.f32 %v2433, %v2857
      %v3192 = vmul.f32 %v2436, %v2859
      %v3193 = vmul.f32 %v2438, %v2861
      %v3194 = vmul.f32 %v2441, %v2863
      %v3195 = vmul.f32 %v2443, %v2865
      %v3196 = vmul.f32 %v2446, %v2867
      %v3197 = vmul.f32 %v2448, %v2869
      %v3198 = vmul.f32 %v2451, %v2871
      %v3199 = vmul.f32 %v2453, %v2873
      %v3200 = vmul.f32 %v2456, %v2875
      %v3201 = vmul.f32 %v2458, %v2877
      %v3202 = vmul.f32 %v2461, %v2879
      %v3203 = vmul.f32 %v2463, %v2881
      %v3204 = vmul.f32 %v2466, %v2883
      %v3205 = vmul.f32 %v2468, %v2885
      %v3206 = vmul.f32 %v2471, %v2887
      %v3207 = vmul.f32 %v2473, %v2889
      %v3208 = vmul.f32 %v2476, %v2891
      %v3209 = vmul.f32 %v2478, %v2893
      %v3210 = vmul.f32 %v2481, %v2895
      %v3211 = vmul.f32 %v2483, %v2897
      %v3212 = vmul.f32 %v2486, %v2899
      %v3213 = vmul.f32 %v2488, %v2901
      %v3214 = vmul.f32 %v2491, %v2903
      %v3215 = vmul.f32 %v2493, %v2905
      %v3216 = vmul.f32 %v2496, %v2907
      %v3217 = vmul.f32 %v2498, %v2909
      %v3218 = vmul.f32 %v2501, %v2911
      %v3219 = vmul.f32 %v2503, %v2913
      %v3220 = vmul.f32 %v2506, %v2915
      %v3221 = vmul.f32 %v2508, %v2917
      %v3222 = vmul.f32 %v2511, %v2919
      %v3223 = vmul.f32 %v2513, %v2921
      %v3224 = vmul.f32 %v2516, %v2923
      %v3225 = vmul.f32 %v2518, %v2925
      %v3226 = vmul.f32 %v2521, %v2927
      %v3227 = vmul.f32 %v2523, %v2929
      %v3228 = vmul.f32 %v2526, %v2931
      %v3229 = vmul.f32 %v2528, %v2933
      %v3230 = vmul.f32 %v2531, %v2935
      %v3231 = vmul.f32 %v2533, %v2937
      %v3232 = vmul.f32 %v2536, %v2939
      %v3233 = vmul.f32 %v2538, %v2941
      %v3234 = vmul.f32 %v2541, %v2943
      %v3235 = vmul.f32 %v2543, %v2945
      %v3236 = vmul.f32 %v2546, %v2947
      %v3237 = vmul.f32 %v2548, %v2949
      %v3238 = vmul.f32 %v2551, %v2951
      %v3239 = vmul.f32 %v2553, %v2953
      %v3240 = vmul.f32 %v2556, %v2955
      %v3241 = vmul.f32 %v2558, %v2957
      %v3242 = vmul.f32 %v2561, %v2959
      %v3243 = vmul.f32 %v2563, %v2961
      %v3244 = vmul.f32 %v2566, %v2963
      %v3245 = vmul.f32 %v2568, %v2965
      %v3246 = vmul.f32 %v2571, %v2967
      %v3247 = vmul.f32 %v2573, %v2969
      %v3248 = vmul.f32 %v2576, %v2971
      %v3249 = vmul.f32 %v2578, %v2973
      %v3250 = vmul.f32 %v2581, %v2975
      %v3251 = vmul.f32 %v2583, %v2977
      %v3252 = vmul.f32 %v2586, %v2979
      %v3253 = vmul.f32 %v2588, %v2981
      %v3254 = vmul.f32 %v2591, %v2983
      %v3255 = vmul.f32 %v2593, %v2985
      %v3256 = vmul.f32 %v2596, %v2987
      %v3257 = vmul.f32 %v2598, %v2989
      %v3258 = vmul.f32 %v2601, %v2991
      %v3259 = vmul.f32 %v2603, %v2993
      %v3260 = vmul.f32 %v2606, %v2995
      %v3261 = vmul.f32 %v2608, %v2997
      %v3262 = vmul.f32 %v2611, %v2999
      %v3263 = vmul.f32 %v2613, %v3001
      %v3264 = vmul.f32 %v2616, %v3003
      %v3265 = vmul.f32 %v2618, %v3005
      %v3266 = vmul.f32 %v2621, %v3007
      %v3267 = vmul.f32 %v2623, %v3009
      %v3268 = vmul.f32 %v2626, %v3011
      %v3269 = vmul.f32 %v2628, %v3013
      %vm3270 = vcmask 392192
      %v3271 = vsel %vm3270, %v3142, 0.0
      %3272 = vadd.xlane.f32.xlu0 %v3271
      %v3273 = vpop.xlane.xlu0 %3272
      %v3274 = vsel %vm3270, %v3143, 0.0
      %3275 = vadd.xlane.f32.xlu0 %v3274
      %v3276 = vpop.xlane.xlu0 %3275
      %v3277 = vsel %vm3270, %v3144, 0.0
      %3278 = vadd.xlane.f32.xlu0 %v3277
      %v3279 = vpop.xlane.xlu0 %3278
      %v3280 = vsel %vm3270, %v3145, 0.0
      %3281 = vadd.xlane.f32.xlu0 %v3280
      %v3282 = vpop.xlane.xlu0 %3281
      %v3283 = vsel %vm3270, %v3146, 0.0
      %3284 = vadd.xlane.f32.xlu0 %v3283
      %v3285 = vpop.xlane.xlu0 %3284
      %v3286 = vsel %vm3270, %v3147, 0.0
      %3287 = vadd.xlane.f32.xlu0 %v3286
      %v3288 = vpop.xlane.xlu0 %3287
      %v3289 = vsel %vm3270, %v3148, 0.0
      %3290 = vadd.xlane.f32.xlu0 %v3289
      %v3291 = vpop.xlane.xlu0 %3290
      %v3292 = vsel %vm3270, %v3149, 0.0
      %3293 = vadd.xlane.f32.xlu0 %v3292
      %v3294 = vpop.xlane.xlu0 %3293
      %v3295 = vsel %vm3270, %v3150, 0.0
      %3296 = vadd.xlane.f32.xlu0 %v3295
      %v3297 = vpop.xlane.xlu0 %3296
      %v3298 = vsel %vm3270, %v3151, 0.0
      %3299 = vadd.xlane.f32.xlu0 %v3298
      %v3300 = vpop.xlane.xlu0 %3299
      %v3301 = vsel %vm3270, %v3152, 0.0
      %3302 = vadd.xlane.f32.xlu0 %v3301
      %v3303 = vpop.xlane.xlu0 %3302
      %v3304 = vsel %vm3270, %v3153, 0.0
      %3305 = vadd.xlane.f32.xlu0 %v3304
      %v3306 = vpop.xlane.xlu0 %3305
      %v3307 = vsel %vm3270, %v3154, 0.0
      %3308 = vadd.xlane.f32.xlu0 %v3307
      %v3309 = vpop.xlane.xlu0 %3308
      %v3310 = vsel %vm3270, %v3155, 0.0
      %3311 = vadd.xlane.f32.xlu0 %v3310
      %v3312 = vpop.xlane.xlu0 %3311
      %v3313 = vsel %vm3270, %v3156, 0.0
      %3314 = vadd.xlane.f32.xlu0 %v3313
      %v3315 = vpop.xlane.xlu0 %3314
      %v3316 = vsel %vm3270, %v3157, 0.0
      %3317 = vadd.xlane.f32.xlu0 %v3316
      %v3318 = vpop.xlane.xlu0 %3317
      %v3319 = vsel %vm3270, %v3158, 0.0
      %3320 = vadd.xlane.f32.xlu0 %v3319
      %v3321 = vpop.xlane.xlu0 %3320
      %v3322 = vsel %vm3270, %v3159, 0.0
      %3323 = vadd.xlane.f32.xlu0 %v3322
      %v3324 = vpop.xlane.xlu0 %3323
      %v3325 = vsel %vm3270, %v3160, 0.0
      %3326 = vadd.xlane.f32.xlu0 %v3325
      %v3327 = vpop.xlane.xlu0 %3326
      %v3328 = vsel %vm3270, %v3161, 0.0
      %3329 = vadd.xlane.f32.xlu0 %v3328
      %v3330 = vpop.xlane.xlu0 %3329
      %v3331 = vsel %vm3270, %v3162, 0.0
      %3332 = vadd.xlane.f32.xlu0 %v3331
      %v3333 = vpop.xlane.xlu0 %3332
      %v3334 = vsel %vm3270, %v3163, 0.0
      %3335 = vadd.xlane.f32.xlu0 %v3334
      %v3336 = vpop.xlane.xlu0 %3335
      %v3337 = vsel %vm3270, %v3164, 0.0
      %3338 = vadd.xlane.f32.xlu0 %v3337
      %v3339 = vpop.xlane.xlu0 %3338
      %v3340 = vsel %vm3270, %v3165, 0.0
      %3341 = vadd.xlane.f32.xlu0 %v3340
      %v3342 = vpop.xlane.xlu0 %3341
      %v3343 = vsel %vm3270, %v3166, 0.0
      %3344 = vadd.xlane.f32.xlu0 %v3343
      %v3345 = vpop.xlane.xlu0 %3344
      %v3346 = vsel %vm3270, %v3167, 0.0
      %3347 = vadd.xlane.f32.xlu0 %v3346
      %v3348 = vpop.xlane.xlu0 %3347
      %v3349 = vsel %vm3270, %v3168, 0.0
      %3350 = vadd.xlane.f32.xlu0 %v3349
      %v3351 = vpop.xlane.xlu0 %3350
      %v3352 = vsel %vm3270, %v3169, 0.0
      %3353 = vadd.xlane.f32.xlu0 %v3352
      %v3354 = vpop.xlane.xlu0 %3353
      %v3355 = vsel %vm3270, %v3170, 0.0
      %3356 = vadd.xlane.f32.xlu0 %v3355
      %v3357 = vpop.xlane.xlu0 %3356
      %v3358 = vsel %vm3270, %v3171, 0.0
      %3359 = vadd.xlane.f32.xlu0 %v3358
      %v3360 = vpop.xlane.xlu0 %3359
      %v3361 = vsel %vm3270, %v3172, 0.0
      %3362 = vadd.xlane.f32.xlu0 %v3361
      %v3363 = vpop.xlane.xlu0 %3362
      %v3364 = vsel %vm3270, %v3173, 0.0
      %3365 = vadd.xlane.f32.xlu0 %v3364
      %v3366 = vpop.xlane.xlu0 %3365
      %v3367 = vsel %vm3270, %v3174, 0.0
      %3368 = vadd.xlane.f32.xlu0 %v3367
      %v3369 = vpop.xlane.xlu0 %3368
      %v3370 = vsel %vm3270, %v3175, 0.0
      %3371 = vadd.xlane.f32.xlu0 %v3370
      %v3372 = vpop.xlane.xlu0 %3371
      %v3373 = vsel %vm3270, %v3176, 0.0
      %3374 = vadd.xlane.f32.xlu0 %v3373
      %v3375 = vpop.xlane.xlu0 %3374
      %v3376 = vsel %vm3270, %v3177, 0.0
      %3377 = vadd.xlane.f32.xlu0 %v3376
      %v3378 = vpop.xlane.xlu0 %3377
      %v3379 = vsel %vm3270, %v3178, 0.0
      %3380 = vadd.xlane.f32.xlu0 %v3379
      %v3381 = vpop.xlane.xlu0 %3380
      %v3382 = vsel %vm3270, %v3179, 0.0
      %3383 = vadd.xlane.f32.xlu0 %v3382
      %v3384 = vpop.xlane.xlu0 %3383
      %v3385 = vsel %vm3270, %v3180, 0.0
      %3386 = vadd.xlane.f32.xlu0 %v3385
      %v3387 = vpop.xlane.xlu0 %3386
      %v3388 = vsel %vm3270, %v3181, 0.0
      %3389 = vadd.xlane.f32.xlu0 %v3388
      %v3390 = vpop.xlane.xlu0 %3389
      %v3391 = vsel %vm3270, %v3182, 0.0
      %3392 = vadd.xlane.f32.xlu0 %v3391
      %v3393 = vpop.xlane.xlu0 %3392
      %v3394 = vsel %vm3270, %v3183, 0.0
      %3395 = vadd.xlane.f32.xlu0 %v3394
      %v3396 = vpop.xlane.xlu0 %3395
      %v3397 = vsel %vm3270, %v3184, 0.0
      %3398 = vadd.xlane.f32.xlu0 %v3397
      %v3399 = vpop.xlane.xlu0 %3398
      %v3400 = vsel %vm3270, %v3185, 0.0
      %3401 = vadd.xlane.f32.xlu0 %v3400
      %v3402 = vpop.xlane.xlu0 %3401
      %v3403 = vsel %vm3270, %v3186, 0.0
      %3404 = vadd.xlane.f32.xlu0 %v3403
      %v3405 = vpop.xlane.xlu0 %3404
      %v3406 = vsel %vm3270, %v3187, 0.0
      %3407 = vadd.xlane.f32.xlu0 %v3406
      %v3408 = vpop.xlane.xlu0 %3407
      %v3409 = vsel %vm3270, %v3188, 0.0
      %3410 = vadd.xlane.f32.xlu0 %v3409
      %v3411 = vpop.xlane.xlu0 %3410
      %v3412 = vsel %vm3270, %v3189, 0.0
      %3413 = vadd.xlane.f32.xlu0 %v3412
      %v3414 = vpop.xlane.xlu0 %3413
      %v3415 = vsel %vm3270, %v3190, 0.0
      %3416 = vadd.xlane.f32.xlu0 %v3415
      %v3417 = vpop.xlane.xlu0 %3416
      %v3418 = vsel %vm3270, %v3191, 0.0
      %3419 = vadd.xlane.f32.xlu0 %v3418
      %v3420 = vpop.xlane.xlu0 %3419
      %v3421 = vsel %vm3270, %v3192, 0.0
      %3422 = vadd.xlane.f32.xlu0 %v3421
      %v3423 = vpop.xlane.xlu0 %3422
      %v3424 = vsel %vm3270, %v3193, 0.0
      %3425 = vadd.xlane.f32.xlu0 %v3424
      %v3426 = vpop.xlane.xlu0 %3425
      %v3427 = vsel %vm3270, %v3194, 0.0
      %3428 = vadd.xlane.f32.xlu0 %v3427
      %v3429 = vpop.xlane.xlu0 %3428
      %v3430 = vsel %vm3270, %v3195, 0.0
      %3431 = vadd.xlane.f32.xlu0 %v3430
      %v3432 = vpop.xlane.xlu0 %3431
      %v3433 = vsel %vm3270, %v3196, 0.0
      %3434 = vadd.xlane.f32.xlu0 %v3433
      %v3435 = vpop.xlane.xlu0 %3434
      %v3436 = vsel %vm3270, %v3197, 0.0
      %3437 = vadd.xlane.f32.xlu0 %v3436
      %v3438 = vpop.xlane.xlu0 %3437
      %v3439 = vsel %vm3270, %v3198, 0.0
      %3440 = vadd.xlane.f32.xlu0 %v3439
      %v3441 = vpop.xlane.xlu0 %3440
      %v3442 = vsel %vm3270, %v3199, 0.0
      %3443 = vadd.xlane.f32.xlu0 %v3442
      %v3444 = vpop.xlane.xlu0 %3443
      %v3445 = vsel %vm3270, %v3200, 0.0
      %3446 = vadd.xlane.f32.xlu0 %v3445
      %v3447 = vpop.xlane.xlu0 %3446
      %v3448 = vsel %vm3270, %v3201, 0.0
      %3449 = vadd.xlane.f32.xlu0 %v3448
      %v3450 = vpop.xlane.xlu0 %3449
      %v3451 = vsel %vm3270, %v3202, 0.0
      %3452 = vadd.xlane.f32.xlu0 %v3451
      %v3453 = vpop.xlane.xlu0 %3452
      %v3454 = vsel %vm3270, %v3203, 0.0
      %3455 = vadd.xlane.f32.xlu0 %v3454
      %v3456 = vpop.xlane.xlu0 %3455
      %v3457 = vsel %vm3270, %v3204, 0.0
      %3458 = vadd.xlane.f32.xlu0 %v3457
      %v3459 = vpop.xlane.xlu0 %3458
      %v3460 = vsel %vm3270, %v3205, 0.0
      %3461 = vadd.xlane.f32.xlu0 %v3460
      %v3462 = vpop.xlane.xlu0 %3461
      %v3463 = vsel %vm3270, %v3206, 0.0
      %3464 = vadd.xlane.f32.xlu0 %v3463
      %v3465 = vpop.xlane.xlu0 %3464
      %v3466 = vsel %vm3270, %v3207, 0.0
      %3467 = vadd.xlane.f32.xlu0 %v3466
      %v3468 = vpop.xlane.xlu0 %3467
      %v3469 = vsel %vm3270, %v3208, 0.0
      %3470 = vadd.xlane.f32.xlu0 %v3469
      %v3471 = vpop.xlane.xlu0 %3470
      %v3472 = vsel %vm3270, %v3209, 0.0
      %3473 = vadd.xlane.f32.xlu0 %v3472
      %v3474 = vpop.xlane.xlu0 %3473
      %v3475 = vsel %vm3270, %v3210, 0.0
      %3476 = vadd.xlane.f32.xlu0 %v3475
      %v3477 = vpop.xlane.xlu0 %3476
      %v3478 = vsel %vm3270, %v3211, 0.0
      %3479 = vadd.xlane.f32.xlu0 %v3478
      %v3480 = vpop.xlane.xlu0 %3479
      %v3481 = vsel %vm3270, %v3212, 0.0
      %3482 = vadd.xlane.f32.xlu0 %v3481
      %v3483 = vpop.xlane.xlu0 %3482
      %v3484 = vsel %vm3270, %v3213, 0.0
      %3485 = vadd.xlane.f32.xlu0 %v3484
      %v3486 = vpop.xlane.xlu0 %3485
      %v3487 = vsel %vm3270, %v3214, 0.0
      %3488 = vadd.xlane.f32.xlu0 %v3487
      %v3489 = vpop.xlane.xlu0 %3488
      %v3490 = vsel %vm3270, %v3215, 0.0
      %3491 = vadd.xlane.f32.xlu0 %v3490
      %v3492 = vpop.xlane.xlu0 %3491
      %v3493 = vsel %vm3270, %v3216, 0.0
      %3494 = vadd.xlane.f32.xlu0 %v3493
      %v3495 = vpop.xlane.xlu0 %3494
      %v3496 = vsel %vm3270, %v3217, 0.0
      %3497 = vadd.xlane.f32.xlu0 %v3496
      %v3498 = vpop.xlane.xlu0 %3497
      %v3499 = vsel %vm3270, %v3218, 0.0
      %3500 = vadd.xlane.f32.xlu0 %v3499
      %v3501 = vpop.xlane.xlu0 %3500
      %v3502 = vsel %vm3270, %v3219, 0.0
      %3503 = vadd.xlane.f32.xlu0 %v3502
      %v3504 = vpop.xlane.xlu0 %3503
      %v3505 = vsel %vm3270, %v3220, 0.0
      %3506 = vadd.xlane.f32.xlu0 %v3505
      %v3507 = vpop.xlane.xlu0 %3506
      %v3508 = vsel %vm3270, %v3221, 0.0
      %3509 = vadd.xlane.f32.xlu0 %v3508
      %v3510 = vpop.xlane.xlu0 %3509
      %v3511 = vsel %vm3270, %v3222, 0.0
      %3512 = vadd.xlane.f32.xlu0 %v3511
      %v3513 = vpop.xlane.xlu0 %3512
      %v3514 = vsel %vm3270, %v3223, 0.0
      %3515 = vadd.xlane.f32.xlu0 %v3514
      %v3516 = vpop.xlane.xlu0 %3515
      %v3517 = vsel %vm3270, %v3224, 0.0
      %3518 = vadd.xlane.f32.xlu0 %v3517
      %v3519 = vpop.xlane.xlu0 %3518
      %v3520 = vsel %vm3270, %v3225, 0.0
      %3521 = vadd.xlane.f32.xlu0 %v3520
      %v3522 = vpop.xlane.xlu0 %3521
      %v3523 = vsel %vm3270, %v3226, 0.0
      %3524 = vadd.xlane.f32.xlu0 %v3523
      %v3525 = vpop.xlane.xlu0 %3524
      %v3526 = vsel %vm3270, %v3227, 0.0
      %3527 = vadd.xlane.f32.xlu0 %v3526
      %v3528 = vpop.xlane.xlu0 %3527
      %v3529 = vsel %vm3270, %v3228, 0.0
      %3530 = vadd.xlane.f32.xlu0 %v3529
      %v3531 = vpop.xlane.xlu0 %3530
      %v3532 = vsel %vm3270, %v3229, 0.0
      %3533 = vadd.xlane.f32.xlu0 %v3532
      %v3534 = vpop.xlane.xlu0 %3533
      %v3535 = vsel %vm3270, %v3230, 0.0
      %3536 = vadd.xlane.f32.xlu0 %v3535
      %v3537 = vpop.xlane.xlu0 %3536
      %v3538 = vsel %vm3270, %v3231, 0.0
      %3539 = vadd.xlane.f32.xlu0 %v3538
      %v3540 = vpop.xlane.xlu0 %3539
      %v3541 = vsel %vm3270, %v3232, 0.0
      %3542 = vadd.xlane.f32.xlu0 %v3541
      %v3543 = vpop.xlane.xlu0 %3542
      %v3544 = vsel %vm3270, %v3233, 0.0
      %3545 = vadd.xlane.f32.xlu0 %v3544
      %v3546 = vpop.xlane.xlu0 %3545
      %v3547 = vsel %vm3270, %v3234, 0.0
      %3548 = vadd.xlane.f32.xlu0 %v3547
      %v3549 = vpop.xlane.xlu0 %3548
      %v3550 = vsel %vm3270, %v3235, 0.0
      %3551 = vadd.xlane.f32.xlu0 %v3550
      %v3552 = vpop.xlane.xlu0 %3551
      %v3553 = vsel %vm3270, %v3236, 0.0
      %3554 = vadd.xlane.f32.xlu0 %v3553
      %v3555 = vpop.xlane.xlu0 %3554
      %v3556 = vsel %vm3270, %v3237, 0.0
      %3557 = vadd.xlane.f32.xlu0 %v3556
      %v3558 = vpop.xlane.xlu0 %3557
      %v3559 = vsel %vm3270, %v3238, 0.0
      %3560 = vadd.xlane.f32.xlu0 %v3559
      %v3561 = vpop.xlane.xlu0 %3560
      %v3562 = vsel %vm3270, %v3239, 0.0
      %3563 = vadd.xlane.f32.xlu0 %v3562
      %v3564 = vpop.xlane.xlu0 %3563
      %v3565 = vsel %vm3270, %v3240, 0.0
      %3566 = vadd.xlane.f32.xlu0 %v3565
      %v3567 = vpop.xlane.xlu0 %3566
      %v3568 = vsel %vm3270, %v3241, 0.0
      %3569 = vadd.xlane.f32.xlu0 %v3568
      %v3570 = vpop.xlane.xlu0 %3569
      %v3571 = vsel %vm3270, %v3242, 0.0
      %3572 = vadd.xlane.f32.xlu0 %v3571
      %v3573 = vpop.xlane.xlu0 %3572
      %v3574 = vsel %vm3270, %v3243, 0.0
      %3575 = vadd.xlane.f32.xlu0 %v3574
      %v3576 = vpop.xlane.xlu0 %3575
      %v3577 = vsel %vm3270, %v3244, 0.0
      %3578 = vadd.xlane.f32.xlu0 %v3577
      %v3579 = vpop.xlane.xlu0 %3578
      %v3580 = vsel %vm3270, %v3245, 0.0
      %3581 = vadd.xlane.f32.xlu0 %v3580
      %v3582 = vpop.xlane.xlu0 %3581
      %v3583 = vsel %vm3270, %v3246, 0.0
      %3584 = vadd.xlane.f32.xlu0 %v3583
      %v3585 = vpop.xlane.xlu0 %3584
      %v3586 = vsel %vm3270, %v3247, 0.0
      %3587 = vadd.xlane.f32.xlu0 %v3586
      %v3588 = vpop.xlane.xlu0 %3587
      %v3589 = vsel %vm3270, %v3248, 0.0
      %3590 = vadd.xlane.f32.xlu0 %v3589
      %v3591 = vpop.xlane.xlu0 %3590
      %v3592 = vsel %vm3270, %v3249, 0.0
      %3593 = vadd.xlane.f32.xlu0 %v3592
      %v3594 = vpop.xlane.xlu0 %3593
      %v3595 = vsel %vm3270, %v3250, 0.0
      %3596 = vadd.xlane.f32.xlu0 %v3595
      %v3597 = vpop.xlane.xlu0 %3596
      %v3598 = vsel %vm3270, %v3251, 0.0
      %3599 = vadd.xlane.f32.xlu0 %v3598
      %v3600 = vpop.xlane.xlu0 %3599
      %v3601 = vsel %vm3270, %v3252, 0.0
      %3602 = vadd.xlane.f32.xlu0 %v3601
      %v3603 = vpop.xlane.xlu0 %3602
      %v3604 = vsel %vm3270, %v3253, 0.0
      %3605 = vadd.xlane.f32.xlu0 %v3604
      %v3606 = vpop.xlane.xlu0 %3605
      %v3607 = vsel %vm3270, %v3254, 0.0
      %3608 = vadd.xlane.f32.xlu0 %v3607
      %v3609 = vpop.xlane.xlu0 %3608
      %v3610 = vsel %vm3270, %v3255, 0.0
      %3611 = vadd.xlane.f32.xlu0 %v3610
      %v3612 = vpop.xlane.xlu0 %3611
      %v3613 = vsel %vm3270, %v3256, 0.0
      %3614 = vadd.xlane.f32.xlu0 %v3613
      %v3615 = vpop.xlane.xlu0 %3614
      %v3616 = vsel %vm3270, %v3257, 0.0
      %3617 = vadd.xlane.f32.xlu0 %v3616
      %v3618 = vpop.xlane.xlu0 %3617
      %v3619 = vsel %vm3270, %v3258, 0.0
      %3620 = vadd.xlane.f32.xlu0 %v3619
      %v3621 = vpop.xlane.xlu0 %3620
      %v3622 = vsel %vm3270, %v3259, 0.0
      %3623 = vadd.xlane.f32.xlu0 %v3622
      %v3624 = vpop.xlane.xlu0 %3623
      %v3625 = vsel %vm3270, %v3260, 0.0
      %3626 = vadd.xlane.f32.xlu0 %v3625
      %v3627 = vpop.xlane.xlu0 %3626
      %v3628 = vsel %vm3270, %v3261, 0.0
      %3629 = vadd.xlane.f32.xlu0 %v3628
      %v3630 = vpop.xlane.xlu0 %3629
      %v3631 = vsel %vm3270, %v3262, 0.0
      %3632 = vadd.xlane.f32.xlu0 %v3631
      %v3633 = vpop.xlane.xlu0 %3632
      %v3634 = vsel %vm3270, %v3263, 0.0
      %3635 = vadd.xlane.f32.xlu0 %v3634
      %v3636 = vpop.xlane.xlu0 %3635
      %v3637 = vsel %vm3270, %v3264, 0.0
      %3638 = vadd.xlane.f32.xlu0 %v3637
      %v3639 = vpop.xlane.xlu0 %3638
      %v3640 = vsel %vm3270, %v3265, 0.0
      %3641 = vadd.xlane.f32.xlu0 %v3640
      %v3642 = vpop.xlane.xlu0 %3641
      %v3643 = vsel %vm3270, %v3266, 0.0
      %3644 = vadd.xlane.f32.xlu0 %v3643
      %v3645 = vpop.xlane.xlu0 %3644
      %v3646 = vsel %vm3270, %v3267, 0.0
      %3647 = vadd.xlane.f32.xlu0 %v3646
      %v3648 = vpop.xlane.xlu0 %3647
      %v3649 = vsel %vm3270, %v3268, 0.0
      %3650 = vadd.xlane.f32.xlu0 %v3649
      %v3651 = vpop.xlane.xlu0 %3650
      %v3652 = vsel %vm3270, %v3269, 0.0
      %3653 = vadd.xlane.f32.xlu0 %v3652
      %v3654 = vpop.xlane.xlu0 %3653
      %vm3655 = vcmask 7168
      %3656 = vst.msk [vmem:[%s226] sm:$0xff] %vm3655, %v3273
      %3657 = vst.msk [vmem:[%s226 + $0x8] sm:$0xff] %vm3655, %v3276
      %3658 = vst.msk [vmem:[%s226 + $0x10] sm:$0xff] %vm3655, %v3279
      %3659 = vst.msk [vmem:[%s226 + $0x18] sm:$0xff] %vm3655, %v3282
      %3660 = vst.msk [vmem:[%s226 + $0x20] sm:$0xff] %vm3655, %v3285
      %3661 = vst.msk [vmem:[%s226 + $0x28] sm:$0xff] %vm3655, %v3288
      %3662 = vst.msk [vmem:[%s226 + $0x30] sm:$0xff] %vm3655, %v3291
      %3663 = vst.msk [vmem:[%s226 + $0x38] sm:$0xff] %vm3655, %v3294
      %3664 = vst.msk [vmem:[%s226 + $0x40] sm:$0xff] %vm3655, %v3297
      %3665 = vst.msk [vmem:[%s226 + $0x48] sm:$0xff] %vm3655, %v3300
      %3666 = vst.msk [vmem:[%s226 + $0x50] sm:$0xff] %vm3655, %v3303
      %3667 = vst.msk [vmem:[%s226 + $0x58] sm:$0xff] %vm3655, %v3306
      %3668 = vst.msk [vmem:[%s226 + $0x60] sm:$0xff] %vm3655, %v3309
      %3669 = vst.msk [vmem:[%s226 + $0x68] sm:$0xff] %vm3655, %v3312
      %3670 = vst.msk [vmem:[%s226 + $0x70] sm:$0xff] %vm3655, %v3315
      %3671 = vst.msk [vmem:[%s226 + $0x78] sm:$0xff] %vm3655, %v3318
      %3672 = vst.msk [vmem:[%s226 + $0x80] sm:$0xff] %vm3655, %v3321
      %3673 = vst.msk [vmem:[%s226 + $0x88] sm:$0xff] %vm3655, %v3324
      %3674 = vst.msk [vmem:[%s226 + $0x90] sm:$0xff] %vm3655, %v3327
      %3675 = vst.msk [vmem:[%s226 + $0x98] sm:$0xff] %vm3655, %v3330
      %3676 = vst.msk [vmem:[%s226 + $0xa0] sm:$0xff] %vm3655, %v3333
      %3677 = vst.msk [vmem:[%s226 + $0xa8] sm:$0xff] %vm3655, %v3336
      %3678 = vst.msk [vmem:[%s226 + $0xb0] sm:$0xff] %vm3655, %v3339
      %3679 = vst.msk [vmem:[%s226 + $0xb8] sm:$0xff] %vm3655, %v3342
      %3680 = vst.msk [vmem:[%s226 + $0xc0] sm:$0xff] %vm3655, %v3345
      %3681 = vst.msk [vmem:[%s226 + $0xc8] sm:$0xff] %vm3655, %v3348
      %3682 = vst.msk [vmem:[%s226 + $0xd0] sm:$0xff] %vm3655, %v3351
      %3683 = vst.msk [vmem:[%s226 + $0xd8] sm:$0xff] %vm3655, %v3354
      %3684 = vst.msk [vmem:[%s226 + $0xe0] sm:$0xff] %vm3655, %v3357
      %3685 = vst.msk [vmem:[%s226 + $0xe8] sm:$0xff] %vm3655, %v3360
      %3686 = vst.msk [vmem:[%s226 + $0xf0] sm:$0xff] %vm3655, %v3363
      %3687 = vst.msk [vmem:[%s226 + $0xf8] sm:$0xff] %vm3655, %v3366
      %3688 = vst.msk [vmem:[%s226 + $0x100] sm:$0xff] %vm3655, %v3369
      %3689 = vst.msk [vmem:[%s226 + $0x108] sm:$0xff] %vm3655, %v3372
      %3690 = vst.msk [vmem:[%s226 + $0x110] sm:$0xff] %vm3655, %v3375
      %3691 = vst.msk [vmem:[%s226 + $0x118] sm:$0xff] %vm3655, %v3378
      %3692 = vst.msk [vmem:[%s226 + $0x120] sm:$0xff] %vm3655, %v3381
      %3693 = vst.msk [vmem:[%s226 + $0x128] sm:$0xff] %vm3655, %v3384
      %3694 = vst.msk [vmem:[%s226 + $0x130] sm:$0xff] %vm3655, %v3387
      %3695 = vst.msk [vmem:[%s226 + $0x138] sm:$0xff] %vm3655, %v3390
      %3696 = vst.msk [vmem:[%s226 + $0x140] sm:$0xff] %vm3655, %v3393
      %3697 = vst.msk [vmem:[%s226 + $0x148] sm:$0xff] %vm3655, %v3396
      %3698 = vst.msk [vmem:[%s226 + $0x150] sm:$0xff] %vm3655, %v3399
      %3699 = vst.msk [vmem:[%s226 + $0x158] sm:$0xff] %vm3655, %v3402
      %3700 = vst.msk [vmem:[%s226 + $0x160] sm:$0xff] %vm3655, %v3405
      %3701 = vst.msk [vmem:[%s226 + $0x168] sm:$0xff] %vm3655, %v3408
      %3702 = vst.msk [vmem:[%s226 + $0x170] sm:$0xff] %vm3655, %v3411
      %3703 = vst.msk [vmem:[%s226 + $0x178] sm:$0xff] %vm3655, %v3414
      %3704 = vst.msk [vmem:[%s226 + $0x180] sm:$0xff] %vm3655, %v3417
      %3705 = vst.msk [vmem:[%s226 + $0x188] sm:$0xff] %vm3655, %v3420
      %3706 = vst.msk [vmem:[%s226 + $0x190] sm:$0xff] %vm3655, %v3423
      %3707 = vst.msk [vmem:[%s226 + $0x198] sm:$0xff] %vm3655, %v3426
      %3708 = vst.msk [vmem:[%s226 + $0x1a0] sm:$0xff] %vm3655, %v3429
      %3709 = vst.msk [vmem:[%s226 + $0x1a8] sm:$0xff] %vm3655, %v3432
      %3710 = vst.msk [vmem:[%s226 + $0x1b0] sm:$0xff] %vm3655, %v3435
      %3711 = vst.msk [vmem:[%s226 + $0x1b8] sm:$0xff] %vm3655, %v3438
      %3712 = vst.msk [vmem:[%s226 + $0x1c0] sm:$0xff] %vm3655, %v3441
      %3713 = vst.msk [vmem:[%s226 + $0x1c8] sm:$0xff] %vm3655, %v3444
      %3714 = vst.msk [vmem:[%s226 + $0x1d0] sm:$0xff] %vm3655, %v3447
      %3715 = vst.msk [vmem:[%s226 + $0x1d8] sm:$0xff] %vm3655, %v3450
      %3716 = vst.msk [vmem:[%s226 + $0x1e0] sm:$0xff] %vm3655, %v3453
      %3717 = vst.msk [vmem:[%s226 + $0x1e8] sm:$0xff] %vm3655, %v3456
      %3718 = vst.msk [vmem:[%s226 + $0x1f0] sm:$0xff] %vm3655, %v3459
      %3719 = vst.msk [vmem:[%s226 + $0x1f8] sm:$0xff] %vm3655, %v3462
      %3720 = vst.msk [vmem:[%s226 + $0x200] sm:$0xff] %vm3655, %v3465
      %3721 = vst.msk [vmem:[%s226 + $0x208] sm:$0xff] %vm3655, %v3468
      %3722 = vst.msk [vmem:[%s226 + $0x210] sm:$0xff] %vm3655, %v3471
      %3723 = vst.msk [vmem:[%s226 + $0x218] sm:$0xff] %vm3655, %v3474
      %3724 = vst.msk [vmem:[%s226 + $0x220] sm:$0xff] %vm3655, %v3477
      %3725 = vst.msk [vmem:[%s226 + $0x228] sm:$0xff] %vm3655, %v3480
      %3726 = vst.msk [vmem:[%s226 + $0x230] sm:$0xff] %vm3655, %v3483
      %3727 = vst.msk [vmem:[%s226 + $0x238] sm:$0xff] %vm3655, %v3486
      %3728 = vst.msk [vmem:[%s226 + $0x240] sm:$0xff] %vm3655, %v3489
      %3729 = vst.msk [vmem:[%s226 + $0x248] sm:$0xff] %vm3655, %v3492
      %3730 = vst.msk [vmem:[%s226 + $0x250] sm:$0xff] %vm3655, %v3495
      %3731 = vst.msk [vmem:[%s226 + $0x258] sm:$0xff] %vm3655, %v3498
      %3732 = vst.msk [vmem:[%s226 + $0x260] sm:$0xff] %vm3655, %v3501
      %3733 = vst.msk [vmem:[%s226 + $0x268] sm:$0xff] %vm3655, %v3504
      %3734 = vst.msk [vmem:[%s226 + $0x270] sm:$0xff] %vm3655, %v3507
      %3735 = vst.msk [vmem:[%s226 + $0x278] sm:$0xff] %vm3655, %v3510
      %3736 = vst.msk [vmem:[%s226 + $0x280] sm:$0xff] %vm3655, %v3513
      %3737 = vst.msk [vmem:[%s226 + $0x288] sm:$0xff] %vm3655, %v3516
      %3738 = vst.msk [vmem:[%s226 + $0x290] sm:$0xff] %vm3655, %v3519
      %3739 = vst.msk [vmem:[%s226 + $0x298] sm:$0xff] %vm3655, %v3522
      %3740 = vst.msk [vmem:[%s226 + $0x2a0] sm:$0xff] %vm3655, %v3525
      %3741 = vst.msk [vmem:[%s226 + $0x2a8] sm:$0xff] %vm3655, %v3528
      %3742 = vst.msk [vmem:[%s226 + $0x2b0] sm:$0xff] %vm3655, %v3531
      %3743 = vst.msk [vmem:[%s226 + $0x2b8] sm:$0xff] %vm3655, %v3534
      %3744 = vst.msk [vmem:[%s226 + $0x2c0] sm:$0xff] %vm3655, %v3537
      %3745 = vst.msk [vmem:[%s226 + $0x2c8] sm:$0xff] %vm3655, %v3540
      %3746 = vst.msk [vmem:[%s226 + $0x2d0] sm:$0xff] %vm3655, %v3543
      %3747 = vst.msk [vmem:[%s226 + $0x2d8] sm:$0xff] %vm3655, %v3546
      %3748 = vst.msk [vmem:[%s226 + $0x2e0] sm:$0xff] %vm3655, %v3549
      %3749 = vst.msk [vmem:[%s226 + $0x2e8] sm:$0xff] %vm3655, %v3552
      %3750 = vst.msk [vmem:[%s226 + $0x2f0] sm:$0xff] %vm3655, %v3555
      %3751 = vst.msk [vmem:[%s226 + $0x2f8] sm:$0xff] %vm3655, %v3558
      %3752 = vst.msk [vmem:[%s226 + $0x300] sm:$0xff] %vm3655, %v3561
      %3753 = vst.msk [vmem:[%s226 + $0x308] sm:$0xff] %vm3655, %v3564
      %3754 = vst.msk [vmem:[%s226 + $0x310] sm:$0xff] %vm3655, %v3567
      %3755 = vst.msk [vmem:[%s226 + $0x318] sm:$0xff] %vm3655, %v3570
      %3756 = vst.msk [vmem:[%s226 + $0x320] sm:$0xff] %vm3655, %v3573
      %3757 = vst.msk [vmem:[%s226 + $0x328] sm:$0xff] %vm3655, %v3576
      %3758 = vst.msk [vmem:[%s226 + $0x330] sm:$0xff] %vm3655, %v3579
      %3759 = vst.msk [vmem:[%s226 + $0x338] sm:$0xff] %vm3655, %v3582
      %3760 = vst.msk [vmem:[%s226 + $0x340] sm:$0xff] %vm3655, %v3585
      %3761 = vst.msk [vmem:[%s226 + $0x348] sm:$0xff] %vm3655, %v3588
      %3762 = vst.msk [vmem:[%s226 + $0x350] sm:$0xff] %vm3655, %v3591
      %3763 = vst.msk [vmem:[%s226 + $0x358] sm:$0xff] %vm3655, %v3594
      %3764 = vst.msk [vmem:[%s226 + $0x360] sm:$0xff] %vm3655, %v3597
      %3765 = vst.msk [vmem:[%s226 + $0x368] sm:$0xff] %vm3655, %v3600
      %3766 = vst.msk [vmem:[%s226 + $0x370] sm:$0xff] %vm3655, %v3603
      %3767 = vst.msk [vmem:[%s226 + $0x378] sm:$0xff] %vm3655, %v3606
      %3768 = vst.msk [vmem:[%s226 + $0x380] sm:$0xff] %vm3655, %v3609
      %3769 = vst.msk [vmem:[%s226 + $0x388] sm:$0xff] %vm3655, %v3612
      %3770 = vst.msk [vmem:[%s226 + $0x390] sm:$0xff] %vm3655, %v3615
      %3771 = vst.msk [vmem:[%s226 + $0x398] sm:$0xff] %vm3655, %v3618
      %3772 = vst.msk [vmem:[%s226 + $0x3a0] sm:$0xff] %vm3655, %v3621
      %3773 = vst.msk [vmem:[%s226 + $0x3a8] sm:$0xff] %vm3655, %v3624
      %3774 = vst.msk [vmem:[%s226 + $0x3b0] sm:$0xff] %vm3655, %v3627
      %3775 = vst.msk [vmem:[%s226 + $0x3b8] sm:$0xff] %vm3655, %v3630
      %3776 = vst.msk [vmem:[%s226 + $0x3c0] sm:$0xff] %vm3655, %v3633
      %3777 = vst.msk [vmem:[%s226 + $0x3c8] sm:$0xff] %vm3655, %v3636
      %3778 = vst.msk [vmem:[%s226 + $0x3d0] sm:$0xff] %vm3655, %v3639
      %3779 = vst.msk [vmem:[%s226 + $0x3d8] sm:$0xff] %vm3655, %v3642
      %3780 = vst.msk [vmem:[%s226 + $0x3e0] sm:$0xff] %vm3655, %v3645
      %3781 = vst.msk [vmem:[%s226 + $0x3e8] sm:$0xff] %vm3655, %v3648
      %3782 = vst.msk [vmem:[%s226 + $0x3f0] sm:$0xff] %vm3655, %v3651
      %3783 = vst.msk [vmem:[%s226 + $0x3f8] sm:$0xff] %vm3655, %v3654
      %s3784 = smul.u32 128, %s16
      %p3785 = scmp.lt.s32.totalorder %s3784, 255
      %s3786 = scalar_select %p3785, %s3784, 255
      %s3787 = smul.addr %s3786, 8
      %s3788 = scalar_lea.vmem %s5, %s3787
      // Predicated region
      $region41: #{tpu_custom_call.1} parent=39 // pred_check
        %p3789 = pneg %p144
      $region42: #{tpu_custom_call.1} parent=39 // pred_check_branch
        %3791 = sbr.rel (%p3789) target = $region44
      $region43: #{tpu_custom_call.1} parent=39 // pred_region
        %s3792 = smul.u32 128, %s16
      $region44: #{tpu_custom_call.1} parent=39 // pred_fallthru
        _
    $region40: #{tpu_custom_call.1} parent=5 // pred_fallthru
      _
    %p3793 = scmp.le.s32.totalorder 2, %s11
    // Predicated region
    $region45: #{tpu_custom_call.1} parent=5 // pred_check
      %p3794 = pneg %p3793
    $region46: #{tpu_custom_call.1} parent=5 // pred_check_branch
      %3796 = sbr.rel (%p3794) target = $region48
    $region47: #{tpu_custom_call.1} parent=5 // pred_region
      %s3797 = ssub.s32 %s11, 2
      // Predicated region
      $region49: #{tpu_custom_call.1} parent=47 // pred_check
        %p3798 = pneg %p150
      $region50: #{tpu_custom_call.1} parent=47 // pred_check_branch
        %3800 = sbr.rel (%p3798) target = $region52
      $region51: #{tpu_custom_call.1} parent=47 // pred_region
        %s3801 = smul.u32 128, %s17
        %p3802 = scmp.lt.s32.totalorder %s3801, 255
        %s3803 = scalar_select %p3802, %s3801, 255
        %s3804 = smul.addr %s3803, 8
        %s3805 = scalar_lea.vmem %s5, %s3804
      $region52: #{tpu_custom_call.1} parent=47 // pred_fallthru
        _
    $region48: #{tpu_custom_call.1} parent=5 // pred_fallthru
      _
  $region6: #{tpu_custom_call.1} parent=0 // loop_footer
    %s15 = sadd.s32 1, %s11
  $region7: #{tpu_custom_call.1} parent=0 // loop_footer_branch
    %10 = sbr.rel target = $region3
  $region8: #{tpu_custom_call.1} parent=0 // loop_exit
    _

</llo_original>
